<compile_context>
chip_gen: v6e
topology: v6e:2x2x1
jax: 0.10.0
libtpu: 0.0.40
codegen_flags: <defaults>
</compile_context>

<pallas_src>
import functools

import jax
import jax.numpy as jnp
from jax.experimental import pallas as pl
from jax.experimental.pallas import tpu as pltpu

IN_FEATURES = 3 * 32 * 32   # 3072
HIDDEN = 4096
OUT_FEATURES = 10
OUT_PAD = 128               # lane-dense padded width for the second matmul / output
BN_EPS = 1e-5


def _mlp_kernel(x_ref, w1_ref, scale_ref, shift_ref, w2_ref, o_ref, h_acc, *, tk):
    """Fused Linear(3072,4096) + BN(inference) + ReLU + Linear(4096,128-padded).

    grid = (n_splits, IN_FEATURES // tk). Axis 0 ("parallel") splits HIDDEN,
    axis 1 ("arbitrary") is the first matmul's K reduction. h_acc stays in VMEM.
    """
    k = pl.program_id(1)
    nk = pl.num_programs(1)

    @pl.when(k == 0)
    def _():
        h_acc[...] = jnp.zeros_like(h_acc)

    # x is resident as a full (Bp, 3072) block; slice the current K window.
    start = pl.multiple_of(k * tk, 128)
    x_blk = x_ref[:, pl.ds(start, tk)]

    # partial first matmul: (Bp, tk) @ (tk, HIDDEN/n_splits), f32 accumulation
    h_acc[...] += jnp.dot(x_blk, w1_ref[...], preferred_element_type=jnp.float32)

    @pl.when(k == nk - 1)
    def _():
        # BatchNorm (folded affine, f32) + ReLU, then the small second matmul
        # in the streamed weight dtype with f32 accumulation.
        h = jnp.maximum(h_acc[...] * scale_ref[...] + shift_ref[...], 0.0)
        o_ref[0] = jnp.dot(h.astype(w2_ref.dtype), w2_ref[...],
                           preferred_element_type=jnp.float32)


def _pick_tiling(weight_dtype):
    """Per-generation / per-dtype (tk, vmem_limit_bytes, n_splits).

    W1 block = tk * (HIDDEN / n_splits) * itemsize, double-buffered by the pipeline.
    """
    try:
        kind = jax.devices()[0].device_kind.lower()
    except Exception:  # pragma: no cover
        kind = ""
    bf16 = jnp.dtype(weight_dtype).itemsize == 2
    if "v7" in kind or "7x" in kind:
        # 64 MiB physical VMEM, 2 TensorCores: split HIDDEN across cores.
        if bf16:
            return 1024, 40 * 1024 * 1024, 2    # 2 x 4 MiB W1 buffers per core
        return 768, 40 * 1024 * 1024, 2         # 2 x 6 MiB W1 buffers per core
    if "v6" in kind or "v5" in kind:
        # 128 MiB physical VMEM, single TC.
        if bf16:
            return 1536, 48 * 1024 * 1024, 1    # 2 x 12 MiB W1 buffers, 2 K steps
        return 1024, 64 * 1024 * 1024, 1        # 2 x 16 MiB W1 buffers, 3 K steps
    # Unknown generation: conservative.
    if bf16:
        return 768, 40 * 1024 * 1024, 1
    return 512, 40 * 1024 * 1024, 1


@functools.partial(
    jax.jit,
    static_argnames=("tk", "vmem_limit_bytes", "weight_dtype", "n_splits"))
def _forward_impl(x, w1, b1, gamma, beta, run_mean, run_var, w2, b2,
                  *, tk, vmem_limit_bytes, weight_dtype, n_splits):
    B = x.shape[0]
    x2d = x.reshape(B, -1)                       # Flatten (row-major, == torch)

    # Pad batch to a sublane-aligned multiple of 8.
    Bp = max(8, -(-B // 8) * 8)
    if Bp != B:
        x2d = jnp.pad(x2d, ((0, Bp - B), (0, 0)))

    # Fold BN (inference) + first Linear bias into per-feature scale/shift:
    #   bn(z) = gamma * (z - mean) / sqrt(var + eps) + beta, with z = x @ W1 + b1
    scale = gamma * jax.lax.rsqrt(run_var + BN_EPS)          # (4096,)
    shift = (b1 - run_mean) * scale + beta                   # (4096,)
    scale2d = scale.reshape(1, HIDDEN).astype(jnp.float32)
    shift2d = shift.reshape(1, HIDDEN).astype(jnp.float32)

    # Lane-dense second matmul: zero-pad W2 to (4096, 128).
    w2p = jnp.pad(w2, ((0, 0), (0, OUT_PAD - OUT_FEATURES)))

    x2d = x2d.astype(weight_dtype)
    w1c = w1.astype(weight_dtype)
    w2c = w2p.astype(weight_dtype)

    hs = HIDDEN // n_splits
    grid = (n_splits, IN_FEATURES // tk)

    out = pl.pallas_call(
        functools.partial(_mlp_kernel, tk=tk),
        out_shape=jax.ShapeDtypeStruct((n_splits, Bp, OUT_PAD), jnp.float32),
        grid_spec=pltpu.PrefetchScalarGridSpec(
            num_scalar_prefetch=0,
            grid=grid,
            in_specs=[
                pl.BlockSpec((Bp, IN_FEATURES), lambda j, k: (0, 0)),  # x (whole)
                pl.BlockSpec((tk, hs), lambda j, k: (k, j)),           # W1 slab
                pl.BlockSpec((1, hs), lambda j, k: (0, j)),            # BN scale
                pl.BlockSpec((1, hs), lambda j, k: (0, j)),            # BN shift
                pl.BlockSpec((hs, OUT_PAD), lambda j, k: (j, 0)),      # W2 (padded)
            ],
            out_specs=pl.BlockSpec((1, Bp, OUT_PAD), lambda j, k: (j, 0, 0)),
            scratch_shapes=[pltpu.VMEM((Bp, hs), jnp.float32)],
        ),
        compiler_params=pltpu.CompilerParams(
            dimension_semantics=("parallel", "arbitrary"),
            vmem_limit_bytes=vmem_limit_bytes),
    )(x2d, w1c, scale2d, shift2d, w2c)

    # Sum partial logits over the hidden split, drop padding, add final bias.
    logits = jnp.sum(out, axis=0)
    return logits[:B, :OUT_FEATURES] + b2


def shallow_mlp_forward(x, params, *, tk=None, vmem_limit_bytes=None,
                        weight_dtype=jnp.bfloat16, n_splits=None):
    """x: (B, 3, 32, 32) float32 NCHW. Returns logits (B, 10) float32.

    weight_dtype=jnp.bfloat16 (default) streams W1/W2/x in bf16 (~2x less HBM
    traffic on this bandwidth-bound kernel); accumulation stays f32. Pass
    weight_dtype=jnp.float32 for the exact-semantics path.
    """
    dtk, dvmem, dsplit = _pick_tiling(weight_dtype)
    tk = dtk if tk is None else tk
    vmem_limit_bytes = dvmem if vmem_limit_bytes is None else vmem_limit_bytes
    n_splits = dsplit if n_splits is None else n_splits
    assert IN_FEATURES % tk == 0 and tk % 128 == 0, f"bad tk={tk}"
    assert HIDDEN % n_splits == 0, f"bad n_splits={n_splits}"
    return _forward_impl(
        x, params["w1"], params["b1"], params["gamma"], params["beta"],
        params["running_mean"], params["running_var"], params["w2"], params["b2"],
        tk=tk, vmem_limit_bytes=vmem_limit_bytes, weight_dtype=weight_dtype,
        n_splits=n_splits)


def init_params(key):
    ks = jax.random.split(key, 8)
    w1 = jax.random.normal(ks[0], (IN_FEATURES, HIDDEN), jnp.float32) * 0.02
    b1 = jax.random.normal(ks[1], (HIDDEN,), jnp.float32) * 0.02
    gamma = 1.0 + 0.1 * jax.random.normal(ks[2], (HIDDEN,), jnp.float32)
    beta = 0.1 * jax.random.normal(ks[3], (HIDDEN,), jnp.float32)
    running_mean = 0.1 * jax.random.normal(ks[4], (HIDDEN,), jnp.float32)
    running_var = jnp.abs(1.0 + 0.1 * jax.random.normal(ks[5], (HIDDEN,),
                                                        jnp.float32))
    w2 = jax.random.normal(ks[6], (HIDDEN, OUT_FEATURES), jnp.float32) * 0.02
    b2 = jax.random.normal(ks[7], (OUT_FEATURES,), jnp.float32) * 0.02
    return dict(w1=w1, b1=b1, gamma=gamma, beta=beta,
                running_mean=running_mean, running_var=running_var,
                w2=w2, b2=b2)


def reference_forward(x, params):
    x2d = x.reshape(x.shape[0], -1)
    h = x2d @ params["w1"] + params["b1"]
    h = params["gamma"] * (h - params["running_mean"]) / jnp.sqrt(
        params["running_var"] + BN_EPS) + params["beta"]
    h = jnp.maximum(h, 0.0)
    return h @ params["w2"] + params["b2"]


if __name__ == "__main__":
    key = jax.random.PRNGKey(0)
    kx, kp = jax.random.split(key)
    B = 8  # small batch; module dictates (B, 3, 32, 32) -> 3072 features
    x = jax.random.normal(kx, (B, 3, 32, 32), jnp.float32)
    params = init_params(kp)
    ref = reference_forward(x, params)

    # Exact-semantics path (f32 weight streaming): tight tolerance.
    out_f32 = jax.block_until_ready(
        shallow_mlp_forward(x, params, weight_dtype=jnp.float32))
    assert out_f32.shape == (B, OUT_FEATURES)
    assert jnp.allclose(out_f32, ref, atol=1e-3, rtol=1e-3), \
        f"f32 path max abs err = {jnp.max(jnp.abs(out_f32 - ref))}"

    # Default path (bf16 weight streaming, f32 accumulation): looser tolerance.
    out_bf16 = jax.block_until_ready(shallow_mlp_forward(x, params))
    assert out_bf16.shape == (B, OUT_FEATURES)
    assert jnp.allclose(out_bf16, ref, atol=1e-1, rtol=5e-2), \
        f"bf16 path max abs err = {jnp.max(jnp.abs(out_bf16 - ref))}"

    print("KERNEL_OK")
</pallas_src>

<mosaic_0001>
module attributes {stable_mosaic.version = 11 : i64} {
  func.func @_mlp_kernel(%arg0: i32, %arg1: i32, %arg2: memref<8x3072xf32, #tpu.memory_space<vmem>>, %arg3: memref<512x4096xf32, #tpu.memory_space<vmem>>, %arg4: memref<1x4096xf32, #tpu.memory_space<vmem>>, %arg5: memref<1x4096xf32, #tpu.memory_space<vmem>>, %arg6: memref<4096x128xf32, #tpu.memory_space<vmem>>, %arg7: memref<1x8x128xf32, #tpu.memory_space<vmem>>, %arg8: memref<8x4096xf32, #tpu.memory_space<vmem>>) attributes {dimension_semantics = [#tpu.dimension_semantics<parallel>, #tpu.dimension_semantics<arbitrary>], iteration_bounds = array<i64: 1, 6>, scalar_prefetch = 0 : i64, scratch_operands = 1 : i64, tpu.core_type = #tpu.core_type<tc>, window_params = [{pipeline_mode = #tpu.pipeline_mode<synchronous>, transform_indices = @transform_0, window_bounds = array<i64: 8, 3072>}, {transform_indices = @transform_1, window_bounds = array<i64: 512, 4096>}, {transform_indices = @transform_2, window_bounds = array<i64: 1, 4096>}, {transform_indices = @transform_3, window_bounds = array<i64: 1, 4096>}, {transform_indices = @transform_4, window_bounds = array<i64: 4096, 128>}, {transform_indices = @transform_5, window_bounds = array<i64: 1, 8, 128>}]} {
    %c0_i32 = arith.constant 0 : i32
    %0 = arith.cmpi eq, %arg1, %c0_i32 : i32
    %1 = arith.extui %0 : i1 to i32
    %c0_i32_0 = arith.constant 0 : i32
    %2 = arith.cmpi ne, %1, %c0_i32_0 : i32
    scf.if %2 {
      %cst_8 = arith.constant 0.000000e+00 : f32
      %15 = vector.broadcast %cst_8 : f32 to vector<8x4096xf32>
      %c0_9 = arith.constant 0 : index
      %c0_10 = arith.constant 0 : index
      %16 = vector.load %arg8[%c0_9, %c0_10] : memref<8x4096xf32, #tpu.memory_space<vmem>>, vector<8x4096xf32>
      tpu.vector_store %arg8[%c0_9, %c0_10], %15 {strides = array<i32>} : memref<8x4096xf32, #tpu.memory_space<vmem>>, vector<8x4096xf32>,
    } else {
    }
    %c512_i32 = arith.constant 512 : i32
    %3 = arith.muli %arg1, %c512_i32 : i32
    %4 = tpu.assume_multiple %3, 128 : i32
    %c0 = arith.constant 0 : index
    %5 = arith.index_cast %4 : i32 to index
    %6 = vector.load %arg2[%c0, %5] : memref<8x3072xf32, #tpu.memory_space<vmem>>, vector<8x512xf32>
    %c0_1 = arith.constant 0 : index
    %c0_2 = arith.constant 0 : index
    %7 = vector.load %arg8[%c0_1, %c0_2] : memref<8x4096xf32, #tpu.memory_space<vmem>>, vector<8x4096xf32>
    %c0_3 = arith.constant 0 : index
    %c0_4 = arith.constant 0 : index
    %8 = vector.load %arg3[%c0_3, %c0_4] : memref<512x4096xf32, #tpu.memory_space<vmem>>, vector<512x4096xf32>
    %cst = arith.constant dense<0.000000e+00> : vector<8x4096xf32>
    %9 = tpu.matmul %6, %8, %cst {dimension_numbers = #tpu.dot_dimension_numbers<[1], [0], [0], [1], [0, 0, 1, 1], [], []>} : vector<8x512xf32>, vector<512x4096xf32>, vector<8x4096xf32> -> vector<8x4096xf32>
    %10 = arith.addf %7, %9 : vector<8x4096xf32>
    %c0_5 = arith.constant 0 : index
    %c0_6 = arith.constant 0 : index
    %11 = vector.load %arg8[%c0_5, %c0_6] : memref<8x4096xf32, #tpu.memory_space<vmem>>, vector<8x4096xf32>
    tpu.vector_store %arg8[%c0_5, %c0_6], %10 {strides = array<i32>} : memref<8x4096xf32, #tpu.memory_space<vmem>>, vector<8x4096xf32>,
    %c5_i32 = arith.constant 5 : i32
    %12 = arith.cmpi eq, %arg1, %c5_i32 : i32
    %13 = arith.extui %12 : i1 to i32
    %c0_i32_7 = arith.constant 0 : i32
    %14 = arith.cmpi ne, %13, %c0_i32_7 : i32
    scf.if %14 {
      %c0_8 = arith.constant 0 : index
      %c0_9 = arith.constant 0 : index
      %15 = vector.load %arg8[%c0_8, %c0_9] : memref<8x4096xf32, #tpu.memory_space<vmem>>, vector<8x4096xf32>
      %c0_10 = arith.constant 0 : index
      %c0_11 = arith.constant 0 : index
      %16 = vector.load %arg4[%c0_10, %c0_11] : memref<1x4096xf32, #tpu.memory_space<vmem>>, vector<1x4096xf32>
      %17 = vector.broadcast %16 : vector<1x4096xf32> to vector<8x4096xf32>
      %18 = arith.mulf %15, %17 : vector<8x4096xf32>
      %c0_12 = arith.constant 0 : index
      %c0_13 = arith.constant 0 : index
      %19 = vector.load %arg5[%c0_12, %c0_13] : memref<1x4096xf32, #tpu.memory_space<vmem>>, vector<1x4096xf32>
      %20 = vector.broadcast %19 : vector<1x4096xf32> to vector<8x4096xf32>
      %21 = arith.addf %18, %20 : vector<8x4096xf32>
      %cst_14 = arith.constant 0.000000e+00 : f32
      %22 = vector.broadcast %cst_14 : f32 to vector<8x4096xf32>
      %23 = arith.maximumf %21, %22 : vector<8x4096xf32>
      %c0_15 = arith.constant 0 : index
      %c0_16 = arith.constant 0 : index
      %24 = vector.load %arg6[%c0_15, %c0_16] : memref<4096x128xf32, #tpu.memory_space<vmem>>, vector<4096x128xf32>
      %cst_17 = arith.constant dense<0.000000e+00> : vector<8x128xf32>
      %25 = tpu.matmul %23, %24, %cst_17 {dimension_numbers = #tpu.dot_dimension_numbers<[1], [0], [0], [1], [0, 0, 1, 1], [], []>} : vector<8x4096xf32>, vector<4096x128xf32>, vector<8x128xf32> -> vector<8x128xf32>
      %c0_18 = arith.constant 0 : index
      %c0_19 = arith.constant 0 : index
      %c0_20 = arith.constant 0 : index
      %26 = vector.load %arg7[%c0_18, %c0_19, %c0_20] : memref<1x8x128xf32, #tpu.memory_space<vmem>>, vector<1x8x128xf32>
      %27 = vector.shape_cast %26 : vector<1x8x128xf32> to vector<8x128xf32>
      %28 = vector.shape_cast %25 : vector<8x128xf32> to vector<1x8x128xf32>
      tpu.vector_store %arg7[%c0_18, %c0_19, %c0_20], %28 {strides = array<i32>} : memref<1x8x128xf32, #tpu.memory_space<vmem>>, vector<1x8x128xf32>,
    } else {
    }
    return
  }
  func.func @transform_0(%arg0: i32, %arg1: i32) -> (i32, i32) {
    %c0_i32 = arith.constant 0 : i32
    %c0_i32_0 = arith.constant 0 : i32
    %c0_i32_1 = arith.constant 0 : i32
    return %c0_i32, %c0_i32_0 : i32, i32
  }
  func.func @transform_1(%arg0: i32, %arg1: i32) -> (i32, i32) {
    %c0_i32 = arith.constant 0 : i32
    return %arg1, %arg0 : i32, i32
  }
  func.func @transform_2(%arg0: i32, %arg1: i32) -> (i32, i32) {
    %c0_i32 = arith.constant 0 : i32
    %c0_i32_0 = arith.constant 0 : i32
    return %c0_i32, %arg0 : i32, i32
  }
  func.func @transform_3(%arg0: i32, %arg1: i32) -> (i32, i32) {
    %c0_i32 = arith.constant 0 : i32
    %c0_i32_0 = arith.constant 0 : i32
    return %c0_i32, %arg0 : i32, i32
  }
  func.func @transform_4(%arg0: i32, %arg1: i32) -> (i32, i32) {
    %c0_i32 = arith.constant 0 : i32
    %c0_i32_0 = arith.constant 0 : i32
    return %arg0, %c0_i32 : i32, i32
  }
  func.func @transform_5(%arg0: i32, %arg1: i32) -> (i32, i32, i32) {
    %c0_i32 = arith.constant 0 : i32
    %c0_i32_0 = arith.constant 0 : i32
    %c0_i32_1 = arith.constant 0 : i32
    return %arg0, %c0_i32, %c0_i32_0 : i32, i32, i32
  }
}

</mosaic_0001>

<llo_original>
// kernel: _forward_impl.1
$region0: #{_forward_impl.1}
  #allocation0 [shape = 'u32[]', space=smem, size = 0x4, offset = 0x4, fixed_abs, tag = 'smem constant byte address 0x4 - core index']
  #allocation1 [shape = 'u32[144,128]{1,0:T(1,128)}', space=vmem, size = 0x12000, scoped, tag = 'internal scratch']
  #allocation2 [shape = 'f32[8,4096]{1,0:T(8,128)}', space=vmem, size = 0x20000, scoped, tag = 'scratch operand']
  %s0 = inlined_call_operand.vmem [shape: f32[8,3072], index: 0, kind: input, shape index: {}]
  %s1 = inlined_call_operand.hbm [shape: f32[3072,4096], index: 1, kind: input, shape index: {}]
  %s2 = inlined_call_operand.vmem [shape: f32[1,4096], index: 2, kind: input, shape index: {}]
  %s3 = inlined_call_operand.vmem [shape: f32[1,4096], index: 3, kind: input, shape index: {}]
  %s4 = inlined_call_operand.vmem [shape: f32[4096,128], index: 4, kind: input, shape index: {}]
  %s5 = inlined_call_operand.vmem [shape: f32[1,8,128], index: 5, kind: output, shape index: {}]
  %s6 = sld [smem:[#allocation0]]
  $region65: #{_forward_impl.1} parent=0
    _
  %s8 = ssub.s32 1, %s6
  %s9 = scalar_select 0, %s8, %s6
  $region1: #{_forward_impl.1} parent=0
    #allocation3 [shape = 'u8[16777216]{0}', space=vmem, size = 0x1000000, scoped, tag = 'input window, operand 1']
    #allocation4 [shape = 's32[2]{0}', space=sflag, size = 0x8, scoped, tag = 'scoped memory for _forward_impl.1']
    %10 = vsyncpa [#allocation4], 0
    %s11 = scalar_lea.sflag [#allocation4], 1
    %12 = vsyncpa %s11, 0
    loop: start=0, step=1, limit=8
    $region2: #{_forward_impl.1} parent=1 // loop_pre_header
      _
    $region3: #{_forward_impl.1} parent=1 // loop_header
      %s14 = sphi 0, %s18
      %p15 = scmp.ge.s32.totalorder %s14, 8
      %s21 = sphi 0, %s33
      %s22 = sphi 0, %s29
      %s23 = sphi 0, %s21
      %s24 = sphi 0, %s22
      %s25 = sphi 0, %s23
      %s26 = sphi 0, %s24
      %s34 = sphi 0, %s34
      %s36 = sphi 0, %s34
      %s37 = sphi 0, %s36
      %s51 = sphi 0, %s37
      %s59 = sphi 0, %s61
      %s62 = sphi 0, %s59
      %s63 = sphi 0, %s62
      %s79 = sphi 0, %s63
      %s85 = sphi 0, %s87
      %s88 = sphi 0, %s85
      %s89 = sphi 0, %s88
      %s105 = sphi 0, %s89
      %s111 = sphi 0, %s113
      %s114 = sphi 0, %s111
      %s115 = sphi 0, %s114
      %s131 = sphi 0, %s115
      %s137 = sphi 0, %s139
      %s140 = sphi 0, %s137
      %s141 = sphi 0, %s140
      %s157 = sphi 0, %s141
      %s163 = sphi 0, %s165
      %s166 = sphi 0, %s163
      %s167 = sphi 0, %s166
      %s183 = sphi 0, %s167
    $region4: #{_forward_impl.1} parent=1 // loop_header_branch
      %17 = sbr.rel (%p15) target = $region8
    $region5: #{_forward_impl.1} parent=1 // loop_body
      %s19 = ssub.s32 %s14, 1
      %s20 = ssub.s32 %s14, 2
      %s27 = sadd.s32 1, %s22
      %p28 = scmp.ge.s32.totalorder %s27, 6
      %s29 = scalar_select %p28, 0, %s27
      %s30 = sadd.s32 1, %s21
      %s31 = scalar_select %p28, %s30, %s21
      %p32 = scmp.ge.s32.totalorder %s31, 1
      %s33 = scalar_select %p32, 0, %s31
      %s35 = sadd.s32 %s34, 1
      %p38 = scmp.eq.s32.totalorder %s14, 5
      %p39 = scmp.ne.s32.totalorder %s34, %s36
      %p40 = scmp.eq.s32.totalorder %s14, 0
      %p41 = por %p39, %p40
      %p42 = scmp.ne.s32.totalorder %s34, %s36
      %p43 = scmp.eq.s32.totalorder %s19, 5
      %p44 = por %p42, %p43
      %p45 = scmp.ne.s32.totalorder %s36, %s37
      %p46 = scmp.eq.s32.totalorder %s19, 0
      %p47 = por %p45, %p46
      %p48 = scmp.ne.s32.totalorder %s36, %s37
      %p49 = scmp.eq.s32.totalorder %s20, 5
      %p50 = por %p48, %p49
      %p52 = scmp.ne.s32.totalorder %s37, %s51
      %p53 = scmp.eq.s32.totalorder %s20, 0
      %p54 = por %p52, %p53
      %s55 = ssub.s32 %s22, %s29
      %s56 = ssub.s32 %s21, %s33
      %s57 = sor.u32 %s55, %s56
      %p58 = scmp.eq.s32.totalorder %s57, 0
      %s60 = sadd.s32 %s59, 1
      %s61 = scalar_select %p58, %s59, %s60
      %p64 = pneg %p58
      %p65 = scmp.eq.s32.totalorder %s14, 5
      %p66 = por %p64, %p65
      %p67 = scmp.ne.s32.totalorder %s59, %s62
      %p68 = scmp.eq.s32.totalorder %s14, 0
      %p69 = por %p67, %p68
      %p70 = scmp.ne.s32.totalorder %s59, %s62
      %p71 = scmp.eq.s32.totalorder %s19, 5
      %p72 = por %p70, %p71
      %p73 = scmp.ne.s32.totalorder %s62, %s63
      %p74 = scmp.eq.s32.totalorder %s19, 0
      %p75 = por %p73, %p74
      %p76 = scmp.ne.s32.totalorder %s62, %s63
      %p77 = scmp.eq.s32.totalorder %s20, 5
      %p78 = por %p76, %p77
      %p80 = scmp.ne.s32.totalorder %s63, %s79
      %p81 = scmp.eq.s32.totalorder %s20, 0
      %p82 = por %p80, %p81
      %s83 = ssub.s32 %s21, %s33
      %p84 = scmp.eq.s32.totalorder %s83, 0
      %s86 = sadd.s32 %s85, 1
      %s87 = scalar_select %p84, %s85, %s86
      %p90 = pneg %p84
      %p91 = scmp.eq.s32.totalorder %s14, 5
      %p92 = por %p90, %p91
      %p93 = scmp.ne.s32.totalorder %s85, %s88
      %p94 = scmp.eq.s32.totalorder %s14, 0
      %p95 = por %p93, %p94
      %p96 = scmp.ne.s32.totalorder %s85, %s88
      %p97 = scmp.eq.s32.totalorder %s19, 5
      %p98 = por %p96, %p97
      %p99 = scmp.ne.s32.totalorder %s88, %s89
      %p100 = scmp.eq.s32.totalorder %s19, 0
      %p101 = por %p99, %p100
      %p102 = scmp.ne.s32.totalorder %s88, %s89
      %p103 = scmp.eq.s32.totalorder %s20, 5
      %p104 = por %p102, %p103
      %p106 = scmp.ne.s32.totalorder %s89, %s105
      %p107 = scmp.eq.s32.totalorder %s20, 0
      %p108 = por %p106, %p107
      %s109 = ssub.s32 %s21, %s33
      %p110 = scmp.eq.s32.totalorder %s109, 0
      %s112 = sadd.s32 %s111, 1
      %s113 = scalar_select %p110, %s111, %s112
      %p116 = pneg %p110
      %p117 = scmp.eq.s32.totalorder %s14, 5
      %p118 = por %p116, %p117
      %p119 = scmp.ne.s32.totalorder %s111, %s114
      %p120 = scmp.eq.s32.totalorder %s14, 0
      %p121 = por %p119, %p120
      %p122 = scmp.ne.s32.totalorder %s111, %s114
      %p123 = scmp.eq.s32.totalorder %s19, 5
      %p124 = por %p122, %p123
      %p125 = scmp.ne.s32.totalorder %s114, %s115
      %p126 = scmp.eq.s32.totalorder %s19, 0
      %p127 = por %p125, %p126
      %p128 = scmp.ne.s32.totalorder %s114, %s115
      %p129 = scmp.eq.s32.totalorder %s20, 5
      %p130 = por %p128, %p129
      %p132 = scmp.ne.s32.totalorder %s115, %s131
      %p133 = scmp.eq.s32.totalorder %s20, 0
      %p134 = por %p132, %p133
      %s135 = ssub.s32 %s21, %s33
      %p136 = scmp.eq.s32.totalorder %s135, 0
      %s138 = sadd.s32 %s137, 1
      %s139 = scalar_select %p136, %s137, %s138
      %p142 = pneg %p136
      %p143 = scmp.eq.s32.totalorder %s14, 5
      %p144 = por %p142, %p143
      %p145 = scmp.ne.s32.totalorder %s137, %s140
      %p146 = scmp.eq.s32.totalorder %s14, 0
      %p147 = por %p145, %p146
      %p148 = scmp.ne.s32.totalorder %s137, %s140
      %p149 = scmp.eq.s32.totalorder %s19, 5
      %p150 = por %p148, %p149
      %p151 = scmp.ne.s32.totalorder %s140, %s141
      %p152 = scmp.eq.s32.totalorder %s19, 0
      %p153 = por %p151, %p152
      %p154 = scmp.ne.s32.totalorder %s140, %s141
      %p155 = scmp.eq.s32.totalorder %s20, 5
      %p156 = por %p154, %p155
      %p158 = scmp.ne.s32.totalorder %s141, %s157
      %p159 = scmp.eq.s32.totalorder %s20, 0
      %p160 = por %p158, %p159
      %s161 = ssub.s32 %s21, %s33
      %p162 = scmp.eq.s32.totalorder %s161, 0
      %s164 = sadd.s32 %s163, 1
      %s165 = scalar_select %p162, %s163, %s164
      %p168 = pneg %p162
      %p169 = scmp.eq.s32.totalorder %s14, 5
      %p170 = por %p168, %p169
      %p171 = scmp.ne.s32.totalorder %s163, %s166
      %p172 = scmp.eq.s32.totalorder %s14, 0
      %p173 = por %p171, %p172
      %p174 = scmp.ne.s32.totalorder %s163, %s166
      %p175 = scmp.eq.s32.totalorder %s19, 5
      %p176 = por %p174, %p175
      %p177 = scmp.ne.s32.totalorder %s166, %s167
      %p178 = scmp.eq.s32.totalorder %s19, 0
      %p179 = por %p177, %p178
      %p180 = scmp.ne.s32.totalorder %s166, %s167
      %p181 = scmp.eq.s32.totalorder %s20, 5
      %p182 = por %p180, %p181
      %p184 = scmp.ne.s32.totalorder %s167, %s183
      %p185 = scmp.eq.s32.totalorder %s20, 0
      %p186 = por %p184, %p185
      %p187 = scmp.le.s32.totalorder 1, %s14
      %p188 = scmp.lt.s32.totalorder %s14, 7
      %p189 = pnand %p187, %p188
      %p190 = pneg %p189
      // Predicated region
      $region9: #{_forward_impl.1} parent=5 // pred_check
        _
      $region10: #{_forward_impl.1} parent=5 // pred_check_branch
        %192 = sbr.rel (%p189) target = $region12
      $region11: #{_forward_impl.1} parent=5 // pred_region
        %s193 = ssub.s32 %s14, 1
        // Predicated region
        $region13: #{_forward_impl.1} parent=11 // pred_check
          %p194 = pneg %p47
        $region14: #{_forward_impl.1} parent=11 // pred_check_branch
          %196 = sbr.rel (%p194) target = $region16
        $region15: #{_forward_impl.1} parent=11 // pred_region
          _
        $region16: #{_forward_impl.1} parent=11 // pred_fallthru
          _
        // Predicated region
        $region17: #{_forward_impl.1} parent=11 // pred_check
          %p197 = pneg %p101
        $region18: #{_forward_impl.1} parent=11 // pred_check_branch
          %199 = sbr.rel (%p197) target = $region20
        $region19: #{_forward_impl.1} parent=11 // pred_region
          %s200 = smul.u32 32, %s23
          %p201 = scmp.lt.s32.totalorder %s200, 31
          %s202 = scalar_select %p201, %s200, 31
          %s203 = scalar_lea.vmem %s2, %s202
          %s204 = smul.u32 32, %s23
        $region20: #{_forward_impl.1} parent=11 // pred_fallthru
          _
        // Predicated region
        $region21: #{_forward_impl.1} parent=11 // pred_check
          %p205 = pneg %p127
        $region22: #{_forward_impl.1} parent=11 // pred_check_branch
          %207 = sbr.rel (%p205) target = $region24
        $region23: #{_forward_impl.1} parent=11 // pred_region
          %s208 = smul.u32 32, %s23
          %p209 = scmp.lt.s32.totalorder %s208, 31
          %s210 = scalar_select %p209, %s208, 31
          %s211 = scalar_lea.vmem %s3, %s210
          %s212 = smul.u32 32, %s23
        $region24: #{_forward_impl.1} parent=11 // pred_fallthru
          _
        // Predicated region
        $region25: #{_forward_impl.1} parent=11 // pred_check
          %p213 = pneg %p153
        $region26: #{_forward_impl.1} parent=11 // pred_check_branch
          %215 = sbr.rel (%p213) target = $region28
        $region27: #{_forward_impl.1} parent=11 // pred_region
          %s216 = smul.u32 512, %s23
          %p217 = scmp.lt.s32.totalorder %s216, 511
          %s218 = scalar_select %p217, %s216, 511
          %s219 = smul.addr %s218, 8
          %s220 = scalar_lea.vmem %s4, %s219
          %s221 = smul.u32 512, %s23
        $region28: #{_forward_impl.1} parent=11 // pred_fallthru
          _
      $region12: #{_forward_impl.1} parent=5 // pred_fallthru
        _
      %p222 = scmp.lt.s32.totalorder %s14, 6
      // Predicated region
      $region29: #{_forward_impl.1} parent=5 // pred_check
        %p223 = pneg %p222
      $region30: #{_forward_impl.1} parent=5 // pred_check_branch
        %225 = sbr.rel (%p223) target = $region32
      $region31: #{_forward_impl.1} parent=5 // pred_region
        // Predicated region
        $region33: #{_forward_impl.1} parent=31 // pred_check
          %p226 = pneg %p69
        $region34: #{_forward_impl.1} parent=31 // pred_check_branch
          %228 = sbr.rel (%p226) target = $region36
        $region35: #{_forward_impl.1} parent=31 // pred_region
          %s229 = sand.u32 %s59, 1
          %s230 = scalar_lea.sflag [#allocation4], %s229
          %s231 = sand.u32 %s59, 1
          %s232 = smul.addr %s231, 16384
          %s233 = scalar_lea.vmem [#allocation3], %s232
          %s234 = smul.u32 64, %s22
          %s235 = smul.u32 32, %s21
          %s237 = ssub.s32 262144, 262144
          %238 = vsyncadd %s230, %s237
          %s239 = smul.addr %s234, 32
          %s240 = sadd.s32 %s235, %s239
          %s241 = smul.addr %s240, 128
          %s242 = scalar_lea.hbm %s1, %s241
          %s243 = sshll.u32 %s233, 4
          %s244 = int_to_ptr.vmem [resolvable:$true] %s243
          %249 = dma.hbm_to_vmem [thread:$0]  %s242, 262144, %s244, %s230, 4096, 4096, 256
        $region36: #{_forward_impl.1} parent=31 // pred_fallthru
          _
      $region32: #{_forward_impl.1} parent=5 // pred_fallthru
        _
      %p250 = scmp.le.s32.totalorder 1, %s14
      %p251 = scmp.lt.s32.totalorder %s14, 7
      %p252 = pnand %p250, %p251
      %p253 = pneg %p252
      // Predicated region
      $region37: #{_forward_impl.1} parent=5 // pred_check
        _
      $region38: #{_forward_impl.1} parent=5 // pred_check_branch
        %255 = sbr.rel (%p252) target = $region40
      $region39: #{_forward_impl.1} parent=5 // pred_region
        %s256 = ssub.s32 %s14, 1
        %s257 = sand.u32 %s62, 1
        %s258 = scalar_lea.sflag [#allocation4], %s257
        %s259 = sand.u32 %s62, 1
        %s260 = smul.addr %s259, 16384
        %s261 = scalar_lea.vmem [#allocation3], %s260
        // Predicated region
        $region41: #{_forward_impl.1} parent=39 // pred_check
          %p262 = pneg %p75
        $region42: #{_forward_impl.1} parent=39 // pred_check_branch
          %264 = sbr.rel (%p262) target = $region44
        $region43: #{_forward_impl.1} parent=39 // pred_region
          %265 = dma.done %s258, 262144
        $region44: #{_forward_impl.1} parent=39 // pred_fallthru
          _
        %p266 = pneg %p47
        %p267 = pneg %p44
        %s268 = sand.u32 %s62, 1
        %s269 = scalar_lea.sflag [#allocation4], %s268
        %s270 = sand.u32 %s62, 1
        %s271 = smul.addr %s270, 16384
        %s272 = scalar_lea.vmem [#allocation3], %s271
        %p273 = pneg %p75
        %p274 = pneg %p72
        %s275 = smul.u32 32, %s23
        %p276 = scmp.lt.s32.totalorder %s275, 31
        %s277 = scalar_select %p276, %s275, 31
        %s278 = scalar_lea.vmem %s2, %s277
        %p279 = pneg %p101
        %p280 = pneg %p98
        %s281 = smul.u32 32, %s23
        %p282 = scmp.lt.s32.totalorder %s281, 31
        %s283 = scalar_select %p282, %s281, 31
        %s284 = scalar_lea.vmem %s3, %s283
        %p285 = pneg %p127
        %p286 = pneg %p124
        %s287 = smul.u32 512, %s23
        %p288 = scmp.lt.s32.totalorder %s287, 511
        %s289 = scalar_select %p288, %s287, 511
        %s290 = smul.addr %s289, 8
        %s291 = scalar_lea.vmem %s4, %s290
        %p292 = pneg %p153
        %p293 = pneg %p150
        %p294 = pneg %p179
        %p295 = pneg %p176
        %p296 = scmp.lt.s32.totalorder %s23, 0
        %s297 = scalar_select %p296, %s23, 0
        %s298 = smul.addr %s297, 8
        %s299 = scalar_lea.vmem %s5, %s298
        %s300 = smul.u32 64, %s24
        %s301 = smul.u32 32, %s23
        %s302 = smul.u32 32, %s23
        %p303 = scmp.lt.s32.totalorder %s302, 31
        %s304 = scalar_select %p303, %s302, 31
        %s305 = scalar_lea.vmem %s2, %s304
        %s306 = smul.u32 32, %s23
        %s307 = smul.u32 32, %s23
        %p308 = scmp.lt.s32.totalorder %s307, 31
        %s309 = scalar_select %p308, %s307, 31
        %s310 = scalar_lea.vmem %s3, %s309
        %s311 = smul.u32 32, %s23
        %s312 = smul.u32 512, %s23
        %p313 = scmp.lt.s32.totalorder %s312, 511
        %s314 = scalar_select %p313, %s312, 511
        %s315 = smul.addr %s314, 8
        %s316 = scalar_lea.vmem %s4, %s315
        %s317 = smul.u32 512, %s23
        %p318 = scmp.lt.s32.totalorder %s23, 0
        %s319 = scalar_select %p318, %s23, 0
        %s320 = smul.addr %s319, 8
        %s321 = scalar_lea.vmem %s5, %s320
        %p322 = scmp.eq.s32.totalorder %s24, 0
        // Predicated region
        $region45: #{_forward_impl.1} parent=39 // pred_check
          %p323 = pneg %p322
        $region46: #{_forward_impl.1} parent=39 // pred_check_branch
          %325 = sbr.rel (%p323) target = $region48
        $region47: #{_forward_impl.1} parent=39 // pred_region
          %326 = vst [vmem:[#allocation2] sm:$0xff] 0.0
          %327 = vst [vmem:[#allocation2 + $0x8] sm:$0xff] 0.0
          %328 = vst [vmem:[#allocation2 + $0x10] sm:$0xff] 0.0
          %329 = vst [vmem:[#allocation2 + $0x18] sm:$0xff] 0.0
          %330 = vst [vmem:[#allocation2 + $0x20] sm:$0xff] 0.0
          %331 = vst [vmem:[#allocation2 + $0x28] sm:$0xff] 0.0
          %332 = vst [vmem:[#allocation2 + $0x30] sm:$0xff] 0.0
          %333 = vst [vmem:[#allocation2 + $0x38] sm:$0xff] 0.0
          %334 = vst [vmem:[#allocation2 + $0x40] sm:$0xff] 0.0
          %335 = vst [vmem:[#allocation2 + $0x48] sm:$0xff] 0.0
          %336 = vst [vmem:[#allocation2 + $0x50] sm:$0xff] 0.0
          %337 = vst [vmem:[#allocation2 + $0x58] sm:$0xff] 0.0
          %338 = vst [vmem:[#allocation2 + $0x60] sm:$0xff] 0.0
          %339 = vst [vmem:[#allocation2 + $0x68] sm:$0xff] 0.0
          %340 = vst [vmem:[#allocation2 + $0x70] sm:$0xff] 0.0
          %341 = vst [vmem:[#allocation2 + $0x78] sm:$0xff] 0.0
          %342 = vst [vmem:[#allocation2 + $0x80] sm:$0xff] 0.0
          %343 = vst [vmem:[#allocation2 + $0x88] sm:$0xff] 0.0
          %344 = vst [vmem:[#allocation2 + $0x90] sm:$0xff] 0.0
          %345 = vst [vmem:[#allocation2 + $0x98] sm:$0xff] 0.0
          %346 = vst [vmem:[#allocation2 + $0xa0] sm:$0xff] 0.0
          %347 = vst [vmem:[#allocation2 + $0xa8] sm:$0xff] 0.0
          %348 = vst [vmem:[#allocation2 + $0xb0] sm:$0xff] 0.0
          %349 = vst [vmem:[#allocation2 + $0xb8] sm:$0xff] 0.0
          %350 = vst [vmem:[#allocation2 + $0xc0] sm:$0xff] 0.0
          %351 = vst [vmem:[#allocation2 + $0xc8] sm:$0xff] 0.0
          %352 = vst [vmem:[#allocation2 + $0xd0] sm:$0xff] 0.0
          %353 = vst [vmem:[#allocation2 + $0xd8] sm:$0xff] 0.0
          %354 = vst [vmem:[#allocation2 + $0xe0] sm:$0xff] 0.0
          %355 = vst [vmem:[#allocation2 + $0xe8] sm:$0xff] 0.0
          %356 = vst [vmem:[#allocation2 + $0xf0] sm:$0xff] 0.0
          %357 = vst [vmem:[#allocation2 + $0xf8] sm:$0xff] 0.0
        $region48: #{_forward_impl.1} parent=39 // pred_fallthru
          _
        %s358 = smul.u32 %s24, 512
        %s359 = sshra.s32 %s358, 7
        %s360 = sand.u32 %s358, 127
        %s361 = smul.addr %s359, 8
        %s362 = scalar_lea.vmem %s0, %s361
        %v363 = vld [vmem:[%s362] sm:$0xff]
        %v364 = vld [vmem:[%s362 + $0x8] sm:$0xff]
        %v365 = vld [vmem:[%s362 + $0x10] sm:$0xff]
        %v366 = vld [vmem:[%s362 + $0x18] sm:$0xff]
        %v367 = vld [vmem:[#allocation2] sm:$0xff]
        %v368 = vld [vmem:[#allocation2 + $0x8] sm:$0xff]
        %v369 = vld [vmem:[#allocation2 + $0x10] sm:$0xff]
        %v370 = vld [vmem:[#allocation2 + $0x18] sm:$0xff]
        %v371 = vld [vmem:[#allocation2 + $0x20] sm:$0xff]
        %v372 = vld [vmem:[#allocation2 + $0x28] sm:$0xff]
        %v373 = vld [vmem:[#allocation2 + $0x30] sm:$0xff]
        %v374 = vld [vmem:[#allocation2 + $0x38] sm:$0xff]
        %v375 = vld [vmem:[#allocation2 + $0x40] sm:$0xff]
        %v376 = vld [vmem:[#allocation2 + $0x48] sm:$0xff]
        %v377 = vld [vmem:[#allocation2 + $0x50] sm:$0xff]
        %v378 = vld [vmem:[#allocation2 + $0x58] sm:$0xff]
        %v379 = vld [vmem:[#allocation2 + $0x60] sm:$0xff]
        %v380 = vld [vmem:[#allocation2 + $0x68] sm:$0xff]
        %v381 = vld [vmem:[#allocation2 + $0x70] sm:$0xff]
        %v382 = vld [vmem:[#allocation2 + $0x78] sm:$0xff]
        %v383 = vld [vmem:[#allocation2 + $0x80] sm:$0xff]
        %v384 = vld [vmem:[#allocation2 + $0x88] sm:$0xff]
        %v385 = vld [vmem:[#allocation2 + $0x90] sm:$0xff]
        %v386 = vld [vmem:[#allocation2 + $0x98] sm:$0xff]
        %v387 = vld [vmem:[#allocation2 + $0xa0] sm:$0xff]
        %v388 = vld [vmem:[#allocation2 + $0xa8] sm:$0xff]
        %v389 = vld [vmem:[#allocation2 + $0xb0] sm:$0xff]
        %v390 = vld [vmem:[#allocation2 + $0xb8] sm:$0xff]
        %v391 = vld [vmem:[#allocation2 + $0xc0] sm:$0xff]
        %v392 = vld [vmem:[#allocation2 + $0xc8] sm:$0xff]
        %v393 = vld [vmem:[#allocation2 + $0xd0] sm:$0xff]
        %v394 = vld [vmem:[#allocation2 + $0xd8] sm:$0xff]
        %v395 = vld [vmem:[#allocation2 + $0xe0] sm:$0xff]
        %v396 = vld [vmem:[#allocation2 + $0xe8] sm:$0xff]
        %v397 = vld [vmem:[#allocation2 + $0xf0] sm:$0xff]
        %v398 = vld [vmem:[#allocation2 + $0xf8] sm:$0xff]
        %v399 = vld [vmem:[%s261] sm:$0xff]
        %v400 = vld [vmem:[%s261 + $0x8] sm:$0xff]
        %v401 = vld [vmem:[%s261 + $0x10] sm:$0xff]
        %v402 = vld [vmem:[%s261 + $0x18] sm:$0xff]
        %v403 = vld [vmem:[%s261 + $0x20] sm:$0xff]
        %v404 = vld [vmem:[%s261 + $0x28] sm:$0xff]
        %v405 = vld [vmem:[%s261 + $0x30] sm:$0xff]
        %v406 = vld [vmem:[%s261 + $0x38] sm:$0xff]
        %v407 = vld [vmem:[%s261 + $0x40] sm:$0xff]
        %v408 = vld [vmem:[%s261 + $0x48] sm:$0xff]
        %v409 = vld [vmem:[%s261 + $0x50] sm:$0xff]
        %v410 = vld [vmem:[%s261 + $0x58] sm:$0xff]
        %v411 = vld [vmem:[%s261 + $0x60] sm:$0xff]
        %v412 = vld [vmem:[%s261 + $0x68] sm:$0xff]
        %v413 = vld [vmem:[%s261 + $0x70] sm:$0xff]
        %v414 = vld [vmem:[%s261 + $0x78] sm:$0xff]
        %v415 = vld [vmem:[%s261 + $0x80] sm:$0xff]
        %v416 = vld [vmem:[%s261 + $0x88] sm:$0xff]
        %v417 = vld [vmem:[%s261 + $0x90] sm:$0xff]
        %v418 = vld [vmem:[%s261 + $0x98] sm:$0xff]
        %v419 = vld [vmem:[%s261 + $0xa0] sm:$0xff]
        %v420 = vld [vmem:[%s261 + $0xa8] sm:$0xff]
        %v421 = vld [vmem:[%s261 + $0xb0] sm:$0xff]
        %v422 = vld [vmem:[%s261 + $0xb8] sm:$0xff]
        %v423 = vld [vmem:[%s261 + $0xc0] sm:$0xff]
        %v424 = vld [vmem:[%s261 + $0xc8] sm:$0xff]
        %v425 = vld [vmem:[%s261 + $0xd0] sm:$0xff]
        %v426 = vld [vmem:[%s261 + $0xd8] sm:$0xff]
        %v427 = vld [vmem:[%s261 + $0xe0] sm:$0xff]
        %v428 = vld [vmem:[%s261 + $0xe8] sm:$0xff]
        %v429 = vld [vmem:[%s261 + $0xf0] sm:$0xff]
        %v430 = vld [vmem:[%s261 + $0xf8] sm:$0xff]
        %v431 = vld [vmem:[%s261 + $0x100] sm:$0xff]
        %v432 = vld [vmem:[%s261 + $0x108] sm:$0xff]
        %v433 = vld [vmem:[%s261 + $0x110] sm:$0xff]
        %v434 = vld [vmem:[%s261 + $0x118] sm:$0xff]
        %v435 = vld [vmem:[%s261 + $0x120] sm:$0xff]
        %v436 = vld [vmem:[%s261 + $0x128] sm:$0xff]
        %v437 = vld [vmem:[%s261 + $0x130] sm:$0xff]
        %v438 = vld [vmem:[%s261 + $0x138] sm:$0xff]
        %v439 = vld [vmem:[%s261 + $0x140] sm:$0xff]
        %v440 = vld [vmem:[%s261 + $0x148] sm:$0xff]
        %v441 = vld [vmem:[%s261 + $0x150] sm:$0xff]
        %v442 = vld [vmem:[%s261 + $0x158] sm:$0xff]
        %v443 = vld [vmem:[%s261 + $0x160] sm:$0xff]
        %v444 = vld [vmem:[%s261 + $0x168] sm:$0xff]
        %v445 = vld [vmem:[%s261 + $0x170] sm:$0xff]
        %v446 = vld [vmem:[%s261 + $0x178] sm:$0xff]
        %v447 = vld [vmem:[%s261 + $0x180] sm:$0xff]
        %v448 = vld [vmem:[%s261 + $0x188] sm:$0xff]
        %v449 = vld [vmem:[%s261 + $0x190] sm:$0xff]
        %v450 = vld [vmem:[%s261 + $0x198] sm:$0xff]
        %v451 = vld [vmem:[%s261 + $0x1a0] sm:$0xff]
        %v452 = vld [vmem:[%s261 + $0x1a8] sm:$0xff]
        %v453 = vld [vmem:[%s261 + $0x1b0] sm:$0xff]
        %v454 = vld [vmem:[%s261 + $0x1b8] sm:$0xff]
        %v455 = vld [vmem:[%s261 + $0x1c0] sm:$0xff]
        %v456 = vld [vmem:[%s261 + $0x1c8] sm:$0xff]
        %v457 = vld [vmem:[%s261 + $0x1d0] sm:$0xff]
        %v458 = vld [vmem:[%s261 + $0x1d8] sm:$0xff]
        %v459 = vld [vmem:[%s261 + $0x1e0] sm:$0xff]
        %v460 = vld [vmem:[%s261 + $0x1e8] sm:$0xff]
        %v461 = vld [vmem:[%s261 + $0x1f0] sm:$0xff]
        %v462 = vld [vmem:[%s261 + $0x1f8] sm:$0xff]
        %v463 = vld [vmem:[%s261 + $0x200] sm:$0xff]
        %v464 = vld [vmem:[%s261 + $0x208] sm:$0xff]
        %v465 = vld [vmem:[%s261 + $0x210] sm:$0xff]
        %v466 = vld [vmem:[%s261 + $0x218] sm:$0xff]
        %v467 = vld [vmem:[%s261 + $0x220] sm:$0xff]
        %v468 = vld [vmem:[%s261 + $0x228] sm:$0xff]
        %v469 = vld [vmem:[%s261 + $0x230] sm:$0xff]
        %v470 = vld [vmem:[%s261 + $0x238] sm:$0xff]
        %v471 = vld [vmem:[%s261 + $0x240] sm:$0xff]
        %v472 = vld [vmem:[%s261 + $0x248] sm:$0xff]
        %v473 = vld [vmem:[%s261 + $0x250] sm:$0xff]
        %v474 = vld [vmem:[%s261 + $0x258] sm:$0xff]
        %v475 = vld [vmem:[%s261 + $0x260] sm:$0xff]
        %v476 = vld [vmem:[%s261 + $0x268] sm:$0xff]
        %v477 = vld [vmem:[%s261 + $0x270] sm:$0xff]
        %v478 = vld [vmem:[%s261 + $0x278] sm:$0xff]
        %v479 = vld [vmem:[%s261 + $0x280] sm:$0xff]
        %v480 = vld [vmem:[%s261 + $0x288] sm:$0xff]
        %v481 = vld [vmem:[%s261 + $0x290] sm:$0xff]
        %v482 = vld [vmem:[%s261 + $0x298] sm:$0xff]
        %v483 = vld [vmem:[%s261 + $0x2a0] sm:$0xff]
        %v484 = vld [vmem:[%s261 + $0x2a8] sm:$0xff]
        %v485 = vld [vmem:[%s261 + $0x2b0] sm:$0xff]
        %v486 = vld [vmem:[%s261 + $0x2b8] sm:$0xff]
        %v487 = vld [vmem:[%s261 + $0x2c0] sm:$0xff]
        %v488 = vld [vmem:[%s261 + $0x2c8] sm:$0xff]
        %v489 = vld [vmem:[%s261 + $0x2d0] sm:$0xff]
        %v490 = vld [vmem:[%s261 + $0x2d8] sm:$0xff]
        %v491 = vld [vmem:[%s261 + $0x2e0] sm:$0xff]
        %v492 = vld [vmem:[%s261 + $0x2e8] sm:$0xff]
        %v493 = vld [vmem:[%s261 + $0x2f0] sm:$0xff]
        %v494 = vld [vmem:[%s261 + $0x2f8] sm:$0xff]
        %v495 = vld [vmem:[%s261 + $0x300] sm:$0xff]
        %v496 = vld [vmem:[%s261 + $0x308] sm:$0xff]
        %v497 = vld [vmem:[%s261 + $0x310] sm:$0xff]
        %v498 = vld [vmem:[%s261 + $0x318] sm:$0xff]
        %v499 = vld [vmem:[%s261 + $0x320] sm:$0xff]
        %v500 = vld [vmem:[%s261 + $0x328] sm:$0xff]
        %v501 = vld [vmem:[%s261 + $0x330] sm:$0xff]
        %v502 = vld [vmem:[%s261 + $0x338] sm:$0xff]
        %v503 = vld [vmem:[%s261 + $0x340] sm:$0xff]
        %v504 = vld [vmem:[%s261 + $0x348] sm:$0xff]
        %v505 = vld [vmem:[%s261 + $0x350] sm:$0xff]
        %v506 = vld [vmem:[%s261 + $0x358] sm:$0xff]
        %v507 = vld [vmem:[%s261 + $0x360] sm:$0xff]
        %v508 = vld [vmem:[%s261 + $0x368] sm:$0xff]
        %v509 = vld [vmem:[%s261 + $0x370] sm:$0xff]
        %v510 = vld [vmem:[%s261 + $0x378] sm:$0xff]
        %v511 = vld [vmem:[%s261 + $0x380] sm:$0xff]
        %v512 = vld [vmem:[%s261 + $0x388] sm:$0xff]
        %v513 = vld [vmem:[%s261 + $0x390] sm:$0xff]
        %v514 = vld [vmem:[%s261 + $0x398] sm:$0xff]
        %v515 = vld [vmem:[%s261 + $0x3a0] sm:$0xff]
        %v516 = vld [vmem:[%s261 + $0x3a8] sm:$0xff]
        %v517 = vld [vmem:[%s261 + $0x3b0] sm:$0xff]
        %v518 = vld [vmem:[%s261 + $0x3b8] sm:$0xff]
        %v519 = vld [vmem:[%s261 + $0x3c0] sm:$0xff]
        %v520 = vld [vmem:[%s261 + $0x3c8] sm:$0xff]
        %v521 = vld [vmem:[%s261 + $0x3d0] sm:$0xff]
        %v522 = vld [vmem:[%s261 + $0x3d8] sm:$0xff]
        %v523 = vld [vmem:[%s261 + $0x3e0] sm:$0xff]
        %v524 = vld [vmem:[%s261 + $0x3e8] sm:$0xff]
        %v525 = vld [vmem:[%s261 + $0x3f0] sm:$0xff]
        %v526 = vld [vmem:[%s261 + $0x3f8] sm:$0xff]
        %v527 = vld [vmem:[%s261 + $0x400] sm:$0xff]
        %v528 = vld [vmem:[%s261 + $0x408] sm:$0xff]
        %v529 = vld [vmem:[%s261 + $0x410] sm:$0xff]
        %v530 = vld [vmem:[%s261 + $0x418] sm:$0xff]
        %v531 = vld [vmem:[%s261 + $0x420] sm:$0xff]
        %v532 = vld [vmem:[%s261 + $0x428] sm:$0xff]
        %v533 = vld [vmem:[%s261 + $0x430] sm:$0xff]
        %v534 = vld [vmem:[%s261 + $0x438] sm:$0xff]
        %v535 = vld [vmem:[%s261 + $0x440] sm:$0xff]
        %v536 = vld [vmem:[%s261 + $0x448] sm:$0xff]
        %v537 = vld [vmem:[%s261 + $0x450] sm:$0xff]
        %v538 = vld [vmem:[%s261 + $0x458] sm:$0xff]
        %v539 = vld [vmem:[%s261 + $0x460] sm:$0xff]
        %v540 = vld [vmem:[%s261 + $0x468] sm:$0xff]
        %v541 = vld [vmem:[%s261 + $0x470] sm:$0xff]
        %v542 = vld [vmem:[%s261 + $0x478] sm:$0xff]
        %v543 = vld [vmem:[%s261 + $0x480] sm:$0xff]
        %v544 = vld [vmem:[%s261 + $0x488] sm:$0xff]
        %v545 = vld [vmem:[%s261 + $0x490] sm:$0xff]
        %v546 = vld [vmem:[%s261 + $0x498] sm:$0xff]
        %v547 = vld [vmem:[%s261 + $0x4a0] sm:$0xff]
        %v548 = vld [vmem:[%s261 + $0x4a8] sm:$0xff]
        %v549 = vld [vmem:[%s261 + $0x4b0] sm:$0xff]
        %v550 = vld [vmem:[%s261 + $0x4b8] sm:$0xff]
        %v551 = vld [vmem:[%s261 + $0x4c0] sm:$0xff]
        %v552 = vld [vmem:[%s261 + $0x4c8] sm:$0xff]
        %v553 = vld [vmem:[%s261 + $0x4d0] sm:$0xff]
        %v554 = vld [vmem:[%s261 + $0x4d8] sm:$0xff]
        %v555 = vld [vmem:[%s261 + $0x4e0] sm:$0xff]
        %v556 = vld [vmem:[%s261 + $0x4e8] sm:$0xff]
        %v557 = vld [vmem:[%s261 + $0x4f0] sm:$0xff]
        %v558 = vld [vmem:[%s261 + $0x4f8] sm:$0xff]
        %v559 = vld [vmem:[%s261 + $0x500] sm:$0xff]
        %v560 = vld [vmem:[%s261 + $0x508] sm:$0xff]
        %v561 = vld [vmem:[%s261 + $0x510] sm:$0xff]
        %v562 = vld [vmem:[%s261 + $0x518] sm:$0xff]
        %v563 = vld [vmem:[%s261 + $0x520] sm:$0xff]
        %v564 = vld [vmem:[%s261 + $0x528] sm:$0xff]
        %v565 = vld [vmem:[%s261 + $0x530] sm:$0xff]
        %v566 = vld [vmem:[%s261 + $0x538] sm:$0xff]
        %v567 = vld [vmem:[%s261 + $0x540] sm:$0xff]
        %v568 = vld [vmem:[%s261 + $0x548] sm:$0xff]
        %v569 = vld [vmem:[%s261 + $0x550] sm:$0xff]
        %v570 = vld [vmem:[%s261 + $0x558] sm:$0xff]
        %v571 = vld [vmem:[%s261 + $0x560] sm:$0xff]
        %v572 = vld [vmem:[%s261 + $0x568] sm:$0xff]
        %v573 = vld [vmem:[%s261 + $0x570] sm:$0xff]
        %v574 = vld [vmem:[%s261 + $0x578] sm:$0xff]
        %v575 = vld [vmem:[%s261 + $0x580] sm:$0xff]
        %v576 = vld [vmem:[%s261 + $0x588] sm:$0xff]
        %v577 = vld [vmem:[%s261 + $0x590] sm:$0xff]
        %v578 = vld [vmem:[%s261 + $0x598] sm:$0xff]
        %v579 = vld [vmem:[%s261 + $0x5a0] sm:$0xff]
        %v580 = vld [vmem:[%s261 + $0x5a8] sm:$0xff]
        %v581 = vld [vmem:[%s261 + $0x5b0] sm:$0xff]
        %v582 = vld [vmem:[%s261 + $0x5b8] sm:$0xff]
        %v583 = vld [vmem:[%s261 + $0x5c0] sm:$0xff]
        %v584 = vld [vmem:[%s261 + $0x5c8] sm:$0xff]
        %v585 = vld [vmem:[%s261 + $0x5d0] sm:$0xff]
        %v586 = vld [vmem:[%s261 + $0x5d8] sm:$0xff]
        %v587 = vld [vmem:[%s261 + $0x5e0] sm:$0xff]
        %v588 = vld [vmem:[%s261 + $0x5e8] sm:$0xff]
        %v589 = vld [vmem:[%s261 + $0x5f0] sm:$0xff]
        %v590 = vld [vmem:[%s261 + $0x5f8] sm:$0xff]
        %v591 = vld [vmem:[%s261 + $0x600] sm:$0xff]
        %v592 = vld [vmem:[%s261 + $0x608] sm:$0xff]
        %v593 = vld [vmem:[%s261 + $0x610] sm:$0xff]
        %v594 = vld [vmem:[%s261 + $0x618] sm:$0xff]
        %v595 = vld [vmem:[%s261 + $0x620] sm:$0xff]
        %v596 = vld [vmem:[%s261 + $0x628] sm:$0xff]
        %v597 = vld [vmem:[%s261 + $0x630] sm:$0xff]
        %v598 = vld [vmem:[%s261 + $0x638] sm:$0xff]
        %v599 = vld [vmem:[%s261 + $0x640] sm:$0xff]
        %v600 = vld [vmem:[%s261 + $0x648] sm:$0xff]
        %v601 = vld [vmem:[%s261 + $0x650] sm:$0xff]
        %v602 = vld [vmem:[%s261 + $0x658] sm:$0xff]
        %v603 = vld [vmem:[%s261 + $0x660] sm:$0xff]
        %v604 = vld [vmem:[%s261 + $0x668] sm:$0xff]
        %v605 = vld [vmem:[%s261 + $0x670] sm:$0xff]
        %v606 = vld [vmem:[%s261 + $0x678] sm:$0xff]
        %v607 = vld [vmem:[%s261 + $0x680] sm:$0xff]
        %v608 = vld [vmem:[%s261 + $0x688] sm:$0xff]
        %v609 = vld [vmem:[%s261 + $0x690] sm:$0xff]
        %v610 = vld [vmem:[%s261 + $0x698] sm:$0xff]
        %v611 = vld [vmem:[%s261 + $0x6a0] sm:$0xff]
        %v612 = vld [vmem:[%s261 + $0x6a8] sm:$0xff]
        %v613 = vld [vmem:[%s261 + $0x6b0] sm:$0xff]
        %v614 = vld [vmem:[%s261 + $0x6b8] sm:$0xff]
        %v615 = vld [vmem:[%s261 + $0x6c0] sm:$0xff]
        %v616 = vld [vmem:[%s261 + $0x6c8] sm:$0xff]
        %v617 = vld [vmem:[%s261 + $0x6d0] sm:$0xff]
        %v618 = vld [vmem:[%s261 + $0x6d8] sm:$0xff]
        %v619 = vld [vmem:[%s261 + $0x6e0] sm:$0xff]
        %v620 = vld [vmem:[%s261 + $0x6e8] sm:$0xff]
        %v621 = vld [vmem:[%s261 + $0x6f0] sm:$0xff]
        %v622 = vld [vmem:[%s261 + $0x6f8] sm:$0xff]
        %v623 = vld [vmem:[%s261 + $0x700] sm:$0xff]
        %v624 = vld [vmem:[%s261 + $0x708] sm:$0xff]
        %v625 = vld [vmem:[%s261 + $0x710] sm:$0xff]
        %v626 = vld [vmem:[%s261 + $0x718] sm:$0xff]
        %v627 = vld [vmem:[%s261 + $0x720] sm:$0xff]
        %v628 = vld [vmem:[%s261 + $0x728] sm:$0xff]
        %v629 = vld [vmem:[%s261 + $0x730] sm:$0xff]
        %v630 = vld [vmem:[%s261 + $0x738] sm:$0xff]
        %v631 = vld [vmem:[%s261 + $0x740] sm:$0xff]
        %v632 = vld [vmem:[%s261 + $0x748] sm:$0xff]
        %v633 = vld [vmem:[%s261 + $0x750] sm:$0xff]
        %v634 = vld [vmem:[%s261 + $0x758] sm:$0xff]
        %v635 = vld [vmem:[%s261 + $0x760] sm:$0xff]
        %v636 = vld [vmem:[%s261 + $0x768] sm:$0xff]
        %v637 = vld [vmem:[%s261 + $0x770] sm:$0xff]
        %v638 = vld [vmem:[%s261 + $0x778] sm:$0xff]
        %v639 = vld [vmem:[%s261 + $0x780] sm:$0xff]
        %v640 = vld [vmem:[%s261 + $0x788] sm:$0xff]
        %v641 = vld [vmem:[%s261 + $0x790] sm:$0xff]
        %v642 = vld [vmem:[%s261 + $0x798] sm:$0xff]
        %v643 = vld [vmem:[%s261 + $0x7a0] sm:$0xff]
        %v644 = vld [vmem:[%s261 + $0x7a8] sm:$0xff]
        %v645 = vld [vmem:[%s261 + $0x7b0] sm:$0xff]
        %v646 = vld [vmem:[%s261 + $0x7b8] sm:$0xff]
        %v647 = vld [vmem:[%s261 + $0x7c0] sm:$0xff]
        %v648 = vld [vmem:[%s261 + $0x7c8] sm:$0xff]
        %v649 = vld [vmem:[%s261 + $0x7d0] sm:$0xff]
        %v650 = vld [vmem:[%s261 + $0x7d8] sm:$0xff]
        %v651 = vld [vmem:[%s261 + $0x7e0] sm:$0xff]
        %v652 = vld [vmem:[%s261 + $0x7e8] sm:$0xff]
        %v653 = vld [vmem:[%s261 + $0x7f0] sm:$0xff]
        %v654 = vld [vmem:[%s261 + $0x7f8] sm:$0xff]
        %v655 = vld [vmem:[%s261 + $0x800] sm:$0xff]
        %v656 = vld [vmem:[%s261 + $0x808] sm:$0xff]
        %v657 = vld [vmem:[%s261 + $0x810] sm:$0xff]
        %v658 = vld [vmem:[%s261 + $0x818] sm:$0xff]
        %v659 = vld [vmem:[%s261 + $0x820] sm:$0xff]
        %v660 = vld [vmem:[%s261 + $0x828] sm:$0xff]
        %v661 = vld [vmem:[%s261 + $0x830] sm:$0xff]
        %v662 = vld [vmem:[%s261 + $0x838] sm:$0xff]
        %v663 = vld [vmem:[%s261 + $0x840] sm:$0xff]
        %v664 = vld [vmem:[%s261 + $0x848] sm:$0xff]
        %v665 = vld [vmem:[%s261 + $0x850] sm:$0xff]
        %v666 = vld [vmem:[%s261 + $0x858] sm:$0xff]
        %v667 = vld [vmem:[%s261 + $0x860] sm:$0xff]
        %v668 = vld [vmem:[%s261 + $0x868] sm:$0xff]
        %v669 = vld [vmem:[%s261 + $0x870] sm:$0xff]
        %v670 = vld [vmem:[%s261 + $0x878] sm:$0xff]
        %v671 = vld [vmem:[%s261 + $0x880] sm:$0xff]
        %v672 = vld [vmem:[%s261 + $0x888] sm:$0xff]
        %v673 = vld [vmem:[%s261 + $0x890] sm:$0xff]
        %v674 = vld [vmem:[%s261 + $0x898] sm:$0xff]
        %v675 = vld [vmem:[%s261 + $0x8a0] sm:$0xff]
        %v676 = vld [vmem:[%s261 + $0x8a8] sm:$0xff]
        %v677 = vld [vmem:[%s261 + $0x8b0] sm:$0xff]
        %v678 = vld [vmem:[%s261 + $0x8b8] sm:$0xff]
        %v679 = vld [vmem:[%s261 + $0x8c0] sm:$0xff]
        %v680 = vld [vmem:[%s261 + $0x8c8] sm:$0xff]
        %v681 = vld [vmem:[%s261 + $0x8d0] sm:$0xff]
        %v682 = vld [vmem:[%s261 + $0x8d8] sm:$0xff]
        %v683 = vld [vmem:[%s261 + $0x8e0] sm:$0xff]
        %v684 = vld [vmem:[%s261 + $0x8e8] sm:$0xff]
        %v685 = vld [vmem:[%s261 + $0x8f0] sm:$0xff]
        %v686 = vld [vmem:[%s261 + $0x8f8] sm:$0xff]
        %v687 = vld [vmem:[%s261 + $0x900] sm:$0xff]
        %v688 = vld [vmem:[%s261 + $0x908] sm:$0xff]
        %v689 = vld [vmem:[%s261 + $0x910] sm:$0xff]
        %v690 = vld [vmem:[%s261 + $0x918] sm:$0xff]
        %v691 = vld [vmem:[%s261 + $0x920] sm:$0xff]
        %v692 = vld [vmem:[%s261 + $0x928] sm:$0xff]
        %v693 = vld [vmem:[%s261 + $0x930] sm:$0xff]
        %v694 = vld [vmem:[%s261 + $0x938] sm:$0xff]
        %v695 = vld [vmem:[%s261 + $0x940] sm:$0xff]
        %v696 = vld [vmem:[%s261 + $0x948] sm:$0xff]
        %v697 = vld [vmem:[%s261 + $0x950] sm:$0xff]
        %v698 = vld [vmem:[%s261 + $0x958] sm:$0xff]
        %v699 = vld [vmem:[%s261 + $0x960] sm:$0xff]
        %v700 = vld [vmem:[%s261 + $0x968] sm:$0xff]
        %v701 = vld [vmem:[%s261 + $0x970] sm:$0xff]
        %v702 = vld [vmem:[%s261 + $0x978] sm:$0xff]
        %v703 = vld [vmem:[%s261 + $0x980] sm:$0xff]
        %v704 = vld [vmem:[%s261 + $0x988] sm:$0xff]
        %v705 = vld [vmem:[%s261 + $0x990] sm:$0xff]
        %v706 = vld [vmem:[%s261 + $0x998] sm:$0xff]
        %v707 = vld [vmem:[%s261 + $0x9a0] sm:$0xff]
        %v708 = vld [vmem:[%s261 + $0x9a8] sm:$0xff]
        %v709 = vld [vmem:[%s261 + $0x9b0] sm:$0xff]
        %v710 = vld [vmem:[%s261 + $0x9b8] sm:$0xff]
        %v711 = vld [vmem:[%s261 + $0x9c0] sm:$0xff]
        %v712 = vld [vmem:[%s261 + $0x9c8] sm:$0xff]
        %v713 = vld [vmem:[%s261 + $0x9d0] sm:$0xff]
        %v714 = vld [vmem:[%s261 + $0x9d8] sm:$0xff]
        %v715 = vld [vmem:[%s261 + $0x9e0] sm:$0xff]
        %v716 = vld [vmem:[%s261 + $0x9e8] sm:$0xff]
        %v717 = vld [vmem:[%s261 + $0x9f0] sm:$0xff]
        %v718 = vld [vmem:[%s261 + $0x9f8] sm:$0xff]
        %v719 = vld [vmem:[%s261 + $0xa00] sm:$0xff]
        %v720 = vld [vmem:[%s261 + $0xa08] sm:$0xff]
        %v721 = vld [vmem:[%s261 + $0xa10] sm:$0xff]
        %v722 = vld [vmem:[%s261 + $0xa18] sm:$0xff]
        %v723 = vld [vmem:[%s261 + $0xa20] sm:$0xff]
        %v724 = vld [vmem:[%s261 + $0xa28] sm:$0xff]
        %v725 = vld [vmem:[%s261 + $0xa30] sm:$0xff]
        %v726 = vld [vmem:[%s261 + $0xa38] sm:$0xff]
        %v727 = vld [vmem:[%s261 + $0xa40] sm:$0xff]
        %v728 = vld [vmem:[%s261 + $0xa48] sm:$0xff]
        %v729 = vld [vmem:[%s261 + $0xa50] sm:$0xff]
        %v730 = vld [vmem:[%s261 + $0xa58] sm:$0xff]
        %v731 = vld [vmem:[%s261 + $0xa60] sm:$0xff]
        %v732 = vld [vmem:[%s261 + $0xa68] sm:$0xff]
        %v733 = vld [vmem:[%s261 + $0xa70] sm:$0xff]
        %v734 = vld [vmem:[%s261 + $0xa78] sm:$0xff]
        %v735 = vld [vmem:[%s261 + $0xa80] sm:$0xff]
        %v736 = vld [vmem:[%s261 + $0xa88] sm:$0xff]
        %v737 = vld [vmem:[%s261 + $0xa90] sm:$0xff]
        %v738 = vld [vmem:[%s261 + $0xa98] sm:$0xff]
        %v739 = vld [vmem:[%s261 + $0xaa0] sm:$0xff]
        %v740 = vld [vmem:[%s261 + $0xaa8] sm:$0xff]
        %v741 = vld [vmem:[%s261 + $0xab0] sm:$0xff]
        %v742 = vld [vmem:[%s261 + $0xab8] sm:$0xff]
        %v743 = vld [vmem:[%s261 + $0xac0] sm:$0xff]
        %v744 = vld [vmem:[%s261 + $0xac8] sm:$0xff]
        %v745 = vld [vmem:[%s261 + $0xad0] sm:$0xff]
        %v746 = vld [vmem:[%s261 + $0xad8] sm:$0xff]
        %v747 = vld [vmem:[%s261 + $0xae0] sm:$0xff]
        %v748 = vld [vmem:[%s261 + $0xae8] sm:$0xff]
        %v749 = vld [vmem:[%s261 + $0xaf0] sm:$0xff]
        %v750 = vld [vmem:[%s261 + $0xaf8] sm:$0xff]
        %v751 = vld [vmem:[%s261 + $0xb00] sm:$0xff]
        %v752 = vld [vmem:[%s261 + $0xb08] sm:$0xff]
        %v753 = vld [vmem:[%s261 + $0xb10] sm:$0xff]
        %v754 = vld [vmem:[%s261 + $0xb18] sm:$0xff]
        %v755 = vld [vmem:[%s261 + $0xb20] sm:$0xff]
        %v756 = vld [vmem:[%s261 + $0xb28] sm:$0xff]
        %v757 = vld [vmem:[%s261 + $0xb30] sm:$0xff]
        %v758 = vld [vmem:[%s261 + $0xb38] sm:$0xff]
        %v759 = vld [vmem:[%s261 + $0xb40] sm:$0xff]
        %v760 = vld [vmem:[%s261 + $0xb48] sm:$0xff]
        %v761 = vld [vmem:[%s261 + $0xb50] sm:$0xff]
        %v762 = vld [vmem:[%s261 + $0xb58] sm:$0xff]
        %v763 = vld [vmem:[%s261 + $0xb60] sm:$0xff]
        %v764 = vld [vmem:[%s261 + $0xb68] sm:$0xff]
        %v765 = vld [vmem:[%s261 + $0xb70] sm:$0xff]
        %v766 = vld [vmem:[%s261 + $0xb78] sm:$0xff]
        %v767 = vld [vmem:[%s261 + $0xb80] sm:$0xff]
        %v768 = vld [vmem:[%s261 + $0xb88] sm:$0xff]
        %v769 = vld [vmem:[%s261 + $0xb90] sm:$0xff]
        %v770 = vld [vmem:[%s261 + $0xb98] sm:$0xff]
        %v771 = vld [vmem:[%s261 + $0xba0] sm:$0xff]
        %v772 = vld [vmem:[%s261 + $0xba8] sm:$0xff]
        %v773 = vld [vmem:[%s261 + $0xbb0] sm:$0xff]
        %v774 = vld [vmem:[%s261 + $0xbb8] sm:$0xff]
        %v775 = vld [vmem:[%s261 + $0xbc0] sm:$0xff]
        %v776 = vld [vmem:[%s261 + $0xbc8] sm:$0xff]
        %v777 = vld [vmem:[%s261 + $0xbd0] sm:$0xff]
        %v778 = vld [vmem:[%s261 + $0xbd8] sm:$0xff]
        %v779 = vld [vmem:[%s261 + $0xbe0] sm:$0xff]
        %v780 = vld [vmem:[%s261 + $0xbe8] sm:$0xff]
        %v781 = vld [vmem:[%s261 + $0xbf0] sm:$0xff]
        %v782 = vld [vmem:[%s261 + $0xbf8] sm:$0xff]
        %v783 = vld [vmem:[%s261 + $0xc00] sm:$0xff]
        %v784 = vld [vmem:[%s261 + $0xc08] sm:$0xff]
        %v785 = vld [vmem:[%s261 + $0xc10] sm:$0xff]
        %v786 = vld [vmem:[%s261 + $0xc18] sm:$0xff]
        %v787 = vld [vmem:[%s261 + $0xc20] sm:$0xff]
        %v788 = vld [vmem:[%s261 + $0xc28] sm:$0xff]
        %v789 = vld [vmem:[%s261 + $0xc30] sm:$0xff]
        %v790 = vld [vmem:[%s261 + $0xc38] sm:$0xff]
        %v791 = vld [vmem:[%s261 + $0xc40] sm:$0xff]
        %v792 = vld [vmem:[%s261 + $0xc48] sm:$0xff]
        %v793 = vld [vmem:[%s261 + $0xc50] sm:$0xff]
        %v794 = vld [vmem:[%s261 + $0xc58] sm:$0xff]
        %v795 = vld [vmem:[%s261 + $0xc60] sm:$0xff]
        %v796 = vld [vmem:[%s261 + $0xc68] sm:$0xff]
        %v797 = vld [vmem:[%s261 + $0xc70] sm:$0xff]
        %v798 = vld [vmem:[%s261 + $0xc78] sm:$0xff]
        %v799 = vld [vmem:[%s261 + $0xc80] sm:$0xff]
        %v800 = vld [vmem:[%s261 + $0xc88] sm:$0xff]
        %v801 = vld [vmem:[%s261 + $0xc90] sm:$0xff]
        %v802 = vld [vmem:[%s261 + $0xc98] sm:$0xff]
        %v803 = vld [vmem:[%s261 + $0xca0] sm:$0xff]
        %v804 = vld [vmem:[%s261 + $0xca8] sm:$0xff]
        %v805 = vld [vmem:[%s261 + $0xcb0] sm:$0xff]
        %v806 = vld [vmem:[%s261 + $0xcb8] sm:$0xff]
        %v807 = vld [vmem:[%s261 + $0xcc0] sm:$0xff]
        %v808 = vld [vmem:[%s261 + $0xcc8] sm:$0xff]
        %v809 = vld [vmem:[%s261 + $0xcd0] sm:$0xff]
        %v810 = vld [vmem:[%s261 + $0xcd8] sm:$0xff]
        %v811 = vld [vmem:[%s261 + $0xce0] sm:$0xff]
        %v812 = vld [vmem:[%s261 + $0xce8] sm:$0xff]
        %v813 = vld [vmem:[%s261 + $0xcf0] sm:$0xff]
        %v814 = vld [vmem:[%s261 + $0xcf8] sm:$0xff]
        %v815 = vld [vmem:[%s261 + $0xd00] sm:$0xff]
        %v816 = vld [vmem:[%s261 + $0xd08] sm:$0xff]
        %v817 = vld [vmem:[%s261 + $0xd10] sm:$0xff]
        %v818 = vld [vmem:[%s261 + $0xd18] sm:$0xff]
        %v819 = vld [vmem:[%s261 + $0xd20] sm:$0xff]
        %v820 = vld [vmem:[%s261 + $0xd28] sm:$0xff]
        %v821 = vld [vmem:[%s261 + $0xd30] sm:$0xff]
        %v822 = vld [vmem:[%s261 + $0xd38] sm:$0xff]
        %v823 = vld [vmem:[%s261 + $0xd40] sm:$0xff]
        %v824 = vld [vmem:[%s261 + $0xd48] sm:$0xff]
        %v825 = vld [vmem:[%s261 + $0xd50] sm:$0xff]
        %v826 = vld [vmem:[%s261 + $0xd58] sm:$0xff]
        %v827 = vld [vmem:[%s261 + $0xd60] sm:$0xff]
        %v828 = vld [vmem:[%s261 + $0xd68] sm:$0xff]
        %v829 = vld [vmem:[%s261 + $0xd70] sm:$0xff]
        %v830 = vld [vmem:[%s261 + $0xd78] sm:$0xff]
        %v831 = vld [vmem:[%s261 + $0xd80] sm:$0xff]
        %v832 = vld [vmem:[%s261 + $0xd88] sm:$0xff]
        %v833 = vld [vmem:[%s261 + $0xd90] sm:$0xff]
        %v834 = vld [vmem:[%s261 + $0xd98] sm:$0xff]
        %v835 = vld [vmem:[%s261 + $0xda0] sm:$0xff]
        %v836 = vld [vmem:[%s261 + $0xda8] sm:$0xff]
        %v837 = vld [vmem:[%s261 + $0xdb0] sm:$0xff]
        %v838 = vld [vmem:[%s261 + $0xdb8] sm:$0xff]
        %v839 = vld [vmem:[%s261 + $0xdc0] sm:$0xff]
        %v840 = vld [vmem:[%s261 + $0xdc8] sm:$0xff]
        %v841 = vld [vmem:[%s261 + $0xdd0] sm:$0xff]
        %v842 = vld [vmem:[%s261 + $0xdd8] sm:$0xff]
        %v843 = vld [vmem:[%s261 + $0xde0] sm:$0xff]
        %v844 = vld [vmem:[%s261 + $0xde8] sm:$0xff]
        %v845 = vld [vmem:[%s261 + $0xdf0] sm:$0xff]
        %v846 = vld [vmem:[%s261 + $0xdf8] sm:$0xff]
        %v847 = vld [vmem:[%s261 + $0xe00] sm:$0xff]
        %v848 = vld [vmem:[%s261 + $0xe08] sm:$0xff]
        %v849 = vld [vmem:[%s261 + $0xe10] sm:$0xff]
        %v850 = vld [vmem:[%s261 + $0xe18] sm:$0xff]
        %v851 = vld [vmem:[%s261 + $0xe20] sm:$0xff]
        %v852 = vld [vmem:[%s261 + $0xe28] sm:$0xff]
        %v853 = vld [vmem:[%s261 + $0xe30] sm:$0xff]
        %v854 = vld [vmem:[%s261 + $0xe38] sm:$0xff]
        %v855 = vld [vmem:[%s261 + $0xe40] sm:$0xff]
        %v856 = vld [vmem:[%s261 + $0xe48] sm:$0xff]
        %v857 = vld [vmem:[%s261 + $0xe50] sm:$0xff]
        %v858 = vld [vmem:[%s261 + $0xe58] sm:$0xff]
        %v859 = vld [vmem:[%s261 + $0xe60] sm:$0xff]
        %v860 = vld [vmem:[%s261 + $0xe68] sm:$0xff]
        %v861 = vld [vmem:[%s261 + $0xe70] sm:$0xff]
        %v862 = vld [vmem:[%s261 + $0xe78] sm:$0xff]
        %v863 = vld [vmem:[%s261 + $0xe80] sm:$0xff]
        %v864 = vld [vmem:[%s261 + $0xe88] sm:$0xff]
        %v865 = vld [vmem:[%s261 + $0xe90] sm:$0xff]
        %v866 = vld [vmem:[%s261 + $0xe98] sm:$0xff]
        %v867 = vld [vmem:[%s261 + $0xea0] sm:$0xff]
        %v868 = vld [vmem:[%s261 + $0xea8] sm:$0xff]
        %v869 = vld [vmem:[%s261 + $0xeb0] sm:$0xff]
        %v870 = vld [vmem:[%s261 + $0xeb8] sm:$0xff]
        %v871 = vld [vmem:[%s261 + $0xec0] sm:$0xff]
        %v872 = vld [vmem:[%s261 + $0xec8] sm:$0xff]
        %v873 = vld [vmem:[%s261 + $0xed0] sm:$0xff]
        %v874 = vld [vmem:[%s261 + $0xed8] sm:$0xff]
        %v875 = vld [vmem:[%s261 + $0xee0] sm:$0xff]
        %v876 = vld [vmem:[%s261 + $0xee8] sm:$0xff]
        %v877 = vld [vmem:[%s261 + $0xef0] sm:$0xff]
        %v878 = vld [vmem:[%s261 + $0xef8] sm:$0xff]
        %v879 = vld [vmem:[%s261 + $0xf00] sm:$0xff]
        %v880 = vld [vmem:[%s261 + $0xf08] sm:$0xff]
        %v881 = vld [vmem:[%s261 + $0xf10] sm:$0xff]
        %v882 = vld [vmem:[%s261 + $0xf18] sm:$0xff]
        %v883 = vld [vmem:[%s261 + $0xf20] sm:$0xff]
        %v884 = vld [vmem:[%s261 + $0xf28] sm:$0xff]
        %v885 = vld [vmem:[%s261 + $0xf30] sm:$0xff]
        %v886 = vld [vmem:[%s261 + $0xf38] sm:$0xff]
        %v887 = vld [vmem:[%s261 + $0xf40] sm:$0xff]
        %v888 = vld [vmem:[%s261 + $0xf48] sm:$0xff]
        %v889 = vld [vmem:[%s261 + $0xf50] sm:$0xff]
        %v890 = vld [vmem:[%s261 + $0xf58] sm:$0xff]
        %v891 = vld [vmem:[%s261 + $0xf60] sm:$0xff]
        %v892 = vld [vmem:[%s261 + $0xf68] sm:$0xff]
        %v893 = vld [vmem:[%s261 + $0xf70] sm:$0xff]
        %v894 = vld [vmem:[%s261 + $0xf78] sm:$0xff]
        %v895 = vld [vmem:[%s261 + $0xf80] sm:$0xff]
        %v896 = vld [vmem:[%s261 + $0xf88] sm:$0xff]
        %v897 = vld [vmem:[%s261 + $0xf90] sm:$0xff]
        %v898 = vld [vmem:[%s261 + $0xf98] sm:$0xff]
        %v899 = vld [vmem:[%s261 + $0xfa0] sm:$0xff]
        %v900 = vld [vmem:[%s261 + $0xfa8] sm:$0xff]
        %v901 = vld [vmem:[%s261 + $0xfb0] sm:$0xff]
        %v902 = vld [vmem:[%s261 + $0xfb8] sm:$0xff]
        %v903 = vld [vmem:[%s261 + $0xfc0] sm:$0xff]
        %v904 = vld [vmem:[%s261 + $0xfc8] sm:$0xff]
        %v905 = vld [vmem:[%s261 + $0xfd0] sm:$0xff]
        %v906 = vld [vmem:[%s261 + $0xfd8] sm:$0xff]
        %v907 = vld [vmem:[%s261 + $0xfe0] sm:$0xff]
        %v908 = vld [vmem:[%s261 + $0xfe8] sm:$0xff]
        %v909 = vld [vmem:[%s261 + $0xff0] sm:$0xff]
        %v910 = vld [vmem:[%s261 + $0xff8] sm:$0xff]
        %v911 = vld [vmem:[%s261 + $0x1000] sm:$0xff]
        %v912 = vld [vmem:[%s261 + $0x1008] sm:$0xff]
        %v913 = vld [vmem:[%s261 + $0x1010] sm:$0xff]
        %v914 = vld [vmem:[%s261 + $0x1018] sm:$0xff]
        %v915 = vld [vmem:[%s261 + $0x1020] sm:$0xff]
        %v916 = vld [vmem:[%s261 + $0x1028] sm:$0xff]
        %v917 = vld [vmem:[%s261 + $0x1030] sm:$0xff]
        %v918 = vld [vmem:[%s261 + $0x1038] sm:$0xff]
        %v919 = vld [vmem:[%s261 + $0x1040] sm:$0xff]
        %v920 = vld [vmem:[%s261 + $0x1048] sm:$0xff]
        %v921 = vld [vmem:[%s261 + $0x1050] sm:$0xff]
        %v922 = vld [vmem:[%s261 + $0x1058] sm:$0xff]
        %v923 = vld [vmem:[%s261 + $0x1060] sm:$0xff]
        %v924 = vld [vmem:[%s261 + $0x1068] sm:$0xff]
        %v925 = vld [vmem:[%s261 + $0x1070] sm:$0xff]
        %v926 = vld [vmem:[%s261 + $0x1078] sm:$0xff]
        %v927 = vld [vmem:[%s261 + $0x1080] sm:$0xff]
        %v928 = vld [vmem:[%s261 + $0x1088] sm:$0xff]
        %v929 = vld [vmem:[%s261 + $0x1090] sm:$0xff]
        %v930 = vld [vmem:[%s261 + $0x1098] sm:$0xff]
        %v931 = vld [vmem:[%s261 + $0x10a0] sm:$0xff]
        %v932 = vld [vmem:[%s261 + $0x10a8] sm:$0xff]
        %v933 = vld [vmem:[%s261 + $0x10b0] sm:$0xff]
        %v934 = vld [vmem:[%s261 + $0x10b8] sm:$0xff]
        %v935 = vld [vmem:[%s261 + $0x10c0] sm:$0xff]
        %v936 = vld [vmem:[%s261 + $0x10c8] sm:$0xff]
        %v937 = vld [vmem:[%s261 + $0x10d0] sm:$0xff]
        %v938 = vld [vmem:[%s261 + $0x10d8] sm:$0xff]
        %v939 = vld [vmem:[%s261 + $0x10e0] sm:$0xff]
        %v940 = vld [vmem:[%s261 + $0x10e8] sm:$0xff]
        %v941 = vld [vmem:[%s261 + $0x10f0] sm:$0xff]
        %v942 = vld [vmem:[%s261 + $0x10f8] sm:$0xff]
        %v943 = vld [vmem:[%s261 + $0x1100] sm:$0xff]
        %v944 = vld [vmem:[%s261 + $0x1108] sm:$0xff]
        %v945 = vld [vmem:[%s261 + $0x1110] sm:$0xff]
        %v946 = vld [vmem:[%s261 + $0x1118] sm:$0xff]
        %v947 = vld [vmem:[%s261 + $0x1120] sm:$0xff]
        %v948 = vld [vmem:[%s261 + $0x1128] sm:$0xff]
        %v949 = vld [vmem:[%s261 + $0x1130] sm:$0xff]
        %v950 = vld [vmem:[%s261 + $0x1138] sm:$0xff]
        %v951 = vld [vmem:[%s261 + $0x1140] sm:$0xff]
        %v952 = vld [vmem:[%s261 + $0x1148] sm:$0xff]
        %v953 = vld [vmem:[%s261 + $0x1150] sm:$0xff]
        %v954 = vld [vmem:[%s261 + $0x1158] sm:$0xff]
        %v955 = vld [vmem:[%s261 + $0x1160] sm:$0xff]
        %v956 = vld [vmem:[%s261 + $0x1168] sm:$0xff]
        %v957 = vld [vmem:[%s261 + $0x1170] sm:$0xff]
        %v958 = vld [vmem:[%s261 + $0x1178] sm:$0xff]
        %v959 = vld [vmem:[%s261 + $0x1180] sm:$0xff]
        %v960 = vld [vmem:[%s261 + $0x1188] sm:$0xff]
        %v961 = vld [vmem:[%s261 + $0x1190] sm:$0xff]
        %v962 = vld [vmem:[%s261 + $0x1198] sm:$0xff]
        %v963 = vld [vmem:[%s261 + $0x11a0] sm:$0xff]
        %v964 = vld [vmem:[%s261 + $0x11a8] sm:$0xff]
        %v965 = vld [vmem:[%s261 + $0x11b0] sm:$0xff]
        %v966 = vld [vmem:[%s261 + $0x11b8] sm:$0xff]
        %v967 = vld [vmem:[%s261 + $0x11c0] sm:$0xff]
        %v968 = vld [vmem:[%s261 + $0x11c8] sm:$0xff]
        %v969 = vld [vmem:[%s261 + $0x11d0] sm:$0xff]
        %v970 = vld [vmem:[%s261 + $0x11d8] sm:$0xff]
        %v971 = vld [vmem:[%s261 + $0x11e0] sm:$0xff]
        %v972 = vld [vmem:[%s261 + $0x11e8] sm:$0xff]
        %v973 = vld [vmem:[%s261 + $0x11f0] sm:$0xff]
        %v974 = vld [vmem:[%s261 + $0x11f8] sm:$0xff]
        %v975 = vld [vmem:[%s261 + $0x1200] sm:$0xff]
        %v976 = vld [vmem:[%s261 + $0x1208] sm:$0xff]
        %v977 = vld [vmem:[%s261 + $0x1210] sm:$0xff]
        %v978 = vld [vmem:[%s261 + $0x1218] sm:$0xff]
        %v979 = vld [vmem:[%s261 + $0x1220] sm:$0xff]
        %v980 = vld [vmem:[%s261 + $0x1228] sm:$0xff]
        %v981 = vld [vmem:[%s261 + $0x1230] sm:$0xff]
        %v982 = vld [vmem:[%s261 + $0x1238] sm:$0xff]
        %v983 = vld [vmem:[%s261 + $0x1240] sm:$0xff]
        %v984 = vld [vmem:[%s261 + $0x1248] sm:$0xff]
        %v985 = vld [vmem:[%s261 + $0x1250] sm:$0xff]
        %v986 = vld [vmem:[%s261 + $0x1258] sm:$0xff]
        %v987 = vld [vmem:[%s261 + $0x1260] sm:$0xff]
        %v988 = vld [vmem:[%s261 + $0x1268] sm:$0xff]
        %v989 = vld [vmem:[%s261 + $0x1270] sm:$0xff]
        %v990 = vld [vmem:[%s261 + $0x1278] sm:$0xff]
        %v991 = vld [vmem:[%s261 + $0x1280] sm:$0xff]
        %v992 = vld [vmem:[%s261 + $0x1288] sm:$0xff]
        %v993 = vld [vmem:[%s261 + $0x1290] sm:$0xff]
        %v994 = vld [vmem:[%s261 + $0x1298] sm:$0xff]
        %v995 = vld [vmem:[%s261 + $0x12a0] sm:$0xff]
        %v996 = vld [vmem:[%s261 + $0x12a8] sm:$0xff]
        %v997 = vld [vmem:[%s261 + $0x12b0] sm:$0xff]
        %v998 = vld [vmem:[%s261 + $0x12b8] sm:$0xff]
        %v999 = vld [vmem:[%s261 + $0x12c0] sm:$0xff]
        %v1000 = vld [vmem:[%s261 + $0x12c8] sm:$0xff]
        %v1001 = vld [vmem:[%s261 + $0x12d0] sm:$0xff]
        %v1002 = vld [vmem:[%s261 + $0x12d8] sm:$0xff]
        %v1003 = vld [vmem:[%s261 + $0x12e0] sm:$0xff]
        %v1004 = vld [vmem:[%s261 + $0x12e8] sm:$0xff]
        %v1005 = vld [vmem:[%s261 + $0x12f0] sm:$0xff]
        %v1006 = vld [vmem:[%s261 + $0x12f8] sm:$0xff]
        %v1007 = vld [vmem:[%s261 + $0x1300] sm:$0xff]
        %v1008 = vld [vmem:[%s261 + $0x1308] sm:$0xff]
        %v1009 = vld [vmem:[%s261 + $0x1310] sm:$0xff]
        %v1010 = vld [vmem:[%s261 + $0x1318] sm:$0xff]
        %v1011 = vld [vmem:[%s261 + $0x1320] sm:$0xff]
        %v1012 = vld [vmem:[%s261 + $0x1328] sm:$0xff]
        %v1013 = vld [vmem:[%s261 + $0x1330] sm:$0xff]
        %v1014 = vld [vmem:[%s261 + $0x1338] sm:$0xff]
        %v1015 = vld [vmem:[%s261 + $0x1340] sm:$0xff]
        %v1016 = vld [vmem:[%s261 + $0x1348] sm:$0xff]
        %v1017 = vld [vmem:[%s261 + $0x1350] sm:$0xff]
        %v1018 = vld [vmem:[%s261 + $0x1358] sm:$0xff]
        %v1019 = vld [vmem:[%s261 + $0x1360] sm:$0xff]
        %v1020 = vld [vmem:[%s261 + $0x1368] sm:$0xff]
        %v1021 = vld [vmem:[%s261 + $0x1370] sm:$0xff]
        %v1022 = vld [vmem:[%s261 + $0x1378] sm:$0xff]
        %v1023 = vld [vmem:[%s261 + $0x1380] sm:$0xff]
        %v1024 = vld [vmem:[%s261 + $0x1388] sm:$0xff]
        %v1025 = vld [vmem:[%s261 + $0x1390] sm:$0xff]
        %v1026 = vld [vmem:[%s261 + $0x1398] sm:$0xff]
        %v1027 = vld [vmem:[%s261 + $0x13a0] sm:$0xff]
        %v1028 = vld [vmem:[%s261 + $0x13a8] sm:$0xff]
        %v1029 = vld [vmem:[%s261 + $0x13b0] sm:$0xff]
        %v1030 = vld [vmem:[%s261 + $0x13b8] sm:$0xff]
        %v1031 = vld [vmem:[%s261 + $0x13c0] sm:$0xff]
        %v1032 = vld [vmem:[%s261 + $0x13c8] sm:$0xff]
        %v1033 = vld [vmem:[%s261 + $0x13d0] sm:$0xff]
        %v1034 = vld [vmem:[%s261 + $0x13d8] sm:$0xff]
        %v1035 = vld [vmem:[%s261 + $0x13e0] sm:$0xff]
        %v1036 = vld [vmem:[%s261 + $0x13e8] sm:$0xff]
        %v1037 = vld [vmem:[%s261 + $0x13f0] sm:$0xff]
        %v1038 = vld [vmem:[%s261 + $0x13f8] sm:$0xff]
        %v1039 = vld [vmem:[%s261 + $0x1400] sm:$0xff]
        %v1040 = vld [vmem:[%s261 + $0x1408] sm:$0xff]
        %v1041 = vld [vmem:[%s261 + $0x1410] sm:$0xff]
        %v1042 = vld [vmem:[%s261 + $0x1418] sm:$0xff]
        %v1043 = vld [vmem:[%s261 + $0x1420] sm:$0xff]
        %v1044 = vld [vmem:[%s261 + $0x1428] sm:$0xff]
        %v1045 = vld [vmem:[%s261 + $0x1430] sm:$0xff]
        %v1046 = vld [vmem:[%s261 + $0x1438] sm:$0xff]
        %v1047 = vld [vmem:[%s261 + $0x1440] sm:$0xff]
        %v1048 = vld [vmem:[%s261 + $0x1448] sm:$0xff]
        %v1049 = vld [vmem:[%s261 + $0x1450] sm:$0xff]
        %v1050 = vld [vmem:[%s261 + $0x1458] sm:$0xff]
        %v1051 = vld [vmem:[%s261 + $0x1460] sm:$0xff]
        %v1052 = vld [vmem:[%s261 + $0x1468] sm:$0xff]
        %v1053 = vld [vmem:[%s261 + $0x1470] sm:$0xff]
        %v1054 = vld [vmem:[%s261 + $0x1478] sm:$0xff]
        %v1055 = vld [vmem:[%s261 + $0x1480] sm:$0xff]
        %v1056 = vld [vmem:[%s261 + $0x1488] sm:$0xff]
        %v1057 = vld [vmem:[%s261 + $0x1490] sm:$0xff]
        %v1058 = vld [vmem:[%s261 + $0x1498] sm:$0xff]
        %v1059 = vld [vmem:[%s261 + $0x14a0] sm:$0xff]
        %v1060 = vld [vmem:[%s261 + $0x14a8] sm:$0xff]
        %v1061 = vld [vmem:[%s261 + $0x14b0] sm:$0xff]
        %v1062 = vld [vmem:[%s261 + $0x14b8] sm:$0xff]
        %v1063 = vld [vmem:[%s261 + $0x14c0] sm:$0xff]
        %v1064 = vld [vmem:[%s261 + $0x14c8] sm:$0xff]
        %v1065 = vld [vmem:[%s261 + $0x14d0] sm:$0xff]
        %v1066 = vld [vmem:[%s261 + $0x14d8] sm:$0xff]
        %v1067 = vld [vmem:[%s261 + $0x14e0] sm:$0xff]
        %v1068 = vld [vmem:[%s261 + $0x14e8] sm:$0xff]
        %v1069 = vld [vmem:[%s261 + $0x14f0] sm:$0xff]
        %v1070 = vld [vmem:[%s261 + $0x14f8] sm:$0xff]
        %v1071 = vld [vmem:[%s261 + $0x1500] sm:$0xff]
        %v1072 = vld [vmem:[%s261 + $0x1508] sm:$0xff]
        %v1073 = vld [vmem:[%s261 + $0x1510] sm:$0xff]
        %v1074 = vld [vmem:[%s261 + $0x1518] sm:$0xff]
        %v1075 = vld [vmem:[%s261 + $0x1520] sm:$0xff]
        %v1076 = vld [vmem:[%s261 + $0x1528] sm:$0xff]
        %v1077 = vld [vmem:[%s261 + $0x1530] sm:$0xff]
        %v1078 = vld [vmem:[%s261 + $0x1538] sm:$0xff]
        %v1079 = vld [vmem:[%s261 + $0x1540] sm:$0xff]
        %v1080 = vld [vmem:[%s261 + $0x1548] sm:$0xff]
        %v1081 = vld [vmem:[%s261 + $0x1550] sm:$0xff]
        %v1082 = vld [vmem:[%s261 + $0x1558] sm:$0xff]
        %v1083 = vld [vmem:[%s261 + $0x1560] sm:$0xff]
        %v1084 = vld [vmem:[%s261 + $0x1568] sm:$0xff]
        %v1085 = vld [vmem:[%s261 + $0x1570] sm:$0xff]
        %v1086 = vld [vmem:[%s261 + $0x1578] sm:$0xff]
        %v1087 = vld [vmem:[%s261 + $0x1580] sm:$0xff]
        %v1088 = vld [vmem:[%s261 + $0x1588] sm:$0xff]
        %v1089 = vld [vmem:[%s261 + $0x1590] sm:$0xff]
        %v1090 = vld [vmem:[%s261 + $0x1598] sm:$0xff]
        %v1091 = vld [vmem:[%s261 + $0x15a0] sm:$0xff]
        %v1092 = vld [vmem:[%s261 + $0x15a8] sm:$0xff]
        %v1093 = vld [vmem:[%s261 + $0x15b0] sm:$0xff]
        %v1094 = vld [vmem:[%s261 + $0x15b8] sm:$0xff]
        %v1095 = vld [vmem:[%s261 + $0x15c0] sm:$0xff]
        %v1096 = vld [vmem:[%s261 + $0x15c8] sm:$0xff]
        %v1097 = vld [vmem:[%s261 + $0x15d0] sm:$0xff]
        %v1098 = vld [vmem:[%s261 + $0x15d8] sm:$0xff]
        %v1099 = vld [vmem:[%s261 + $0x15e0] sm:$0xff]
        %v1100 = vld [vmem:[%s261 + $0x15e8] sm:$0xff]
        %v1101 = vld [vmem:[%s261 + $0x15f0] sm:$0xff]
        %v1102 = vld [vmem:[%s261 + $0x15f8] sm:$0xff]
        %v1103 = vld [vmem:[%s261 + $0x1600] sm:$0xff]
        %v1104 = vld [vmem:[%s261 + $0x1608] sm:$0xff]
        %v1105 = vld [vmem:[%s261 + $0x1610] sm:$0xff]
        %v1106 = vld [vmem:[%s261 + $0x1618] sm:$0xff]
        %v1107 = vld [vmem:[%s261 + $0x1620] sm:$0xff]
        %v1108 = vld [vmem:[%s261 + $0x1628] sm:$0xff]
        %v1109 = vld [vmem:[%s261 + $0x1630] sm:$0xff]
        %v1110 = vld [vmem:[%s261 + $0x1638] sm:$0xff]
        %v1111 = vld [vmem:[%s261 + $0x1640] sm:$0xff]
        %v1112 = vld [vmem:[%s261 + $0x1648] sm:$0xff]
        %v1113 = vld [vmem:[%s261 + $0x1650] sm:$0xff]
        %v1114 = vld [vmem:[%s261 + $0x1658] sm:$0xff]
        %v1115 = vld [vmem:[%s261 + $0x1660] sm:$0xff]
        %v1116 = vld [vmem:[%s261 + $0x1668] sm:$0xff]
        %v1117 = vld [vmem:[%s261 + $0x1670] sm:$0xff]
        %v1118 = vld [vmem:[%s261 + $0x1678] sm:$0xff]
        %v1119 = vld [vmem:[%s261 + $0x1680] sm:$0xff]
        %v1120 = vld [vmem:[%s261 + $0x1688] sm:$0xff]
        %v1121 = vld [vmem:[%s261 + $0x1690] sm:$0xff]
        %v1122 = vld [vmem:[%s261 + $0x1698] sm:$0xff]
        %v1123 = vld [vmem:[%s261 + $0x16a0] sm:$0xff]
        %v1124 = vld [vmem:[%s261 + $0x16a8] sm:$0xff]
        %v1125 = vld [vmem:[%s261 + $0x16b0] sm:$0xff]
        %v1126 = vld [vmem:[%s261 + $0x16b8] sm:$0xff]
        %v1127 = vld [vmem:[%s261 + $0x16c0] sm:$0xff]
        %v1128 = vld [vmem:[%s261 + $0x16c8] sm:$0xff]
        %v1129 = vld [vmem:[%s261 + $0x16d0] sm:$0xff]
        %v1130 = vld [vmem:[%s261 + $0x16d8] sm:$0xff]
        %v1131 = vld [vmem:[%s261 + $0x16e0] sm:$0xff]
        %v1132 = vld [vmem:[%s261 + $0x16e8] sm:$0xff]
        %v1133 = vld [vmem:[%s261 + $0x16f0] sm:$0xff]
        %v1134 = vld [vmem:[%s261 + $0x16f8] sm:$0xff]
        %v1135 = vld [vmem:[%s261 + $0x1700] sm:$0xff]
        %v1136 = vld [vmem:[%s261 + $0x1708] sm:$0xff]
        %v1137 = vld [vmem:[%s261 + $0x1710] sm:$0xff]
        %v1138 = vld [vmem:[%s261 + $0x1718] sm:$0xff]
        %v1139 = vld [vmem:[%s261 + $0x1720] sm:$0xff]
        %v1140 = vld [vmem:[%s261 + $0x1728] sm:$0xff]
        %v1141 = vld [vmem:[%s261 + $0x1730] sm:$0xff]
        %v1142 = vld [vmem:[%s261 + $0x1738] sm:$0xff]
        %v1143 = vld [vmem:[%s261 + $0x1740] sm:$0xff]
        %v1144 = vld [vmem:[%s261 + $0x1748] sm:$0xff]
        %v1145 = vld [vmem:[%s261 + $0x1750] sm:$0xff]
        %v1146 = vld [vmem:[%s261 + $0x1758] sm:$0xff]
        %v1147 = vld [vmem:[%s261 + $0x1760] sm:$0xff]
        %v1148 = vld [vmem:[%s261 + $0x1768] sm:$0xff]
        %v1149 = vld [vmem:[%s261 + $0x1770] sm:$0xff]
        %v1150 = vld [vmem:[%s261 + $0x1778] sm:$0xff]
        %v1151 = vld [vmem:[%s261 + $0x1780] sm:$0xff]
        %v1152 = vld [vmem:[%s261 + $0x1788] sm:$0xff]
        %v1153 = vld [vmem:[%s261 + $0x1790] sm:$0xff]
        %v1154 = vld [vmem:[%s261 + $0x1798] sm:$0xff]
        %v1155 = vld [vmem:[%s261 + $0x17a0] sm:$0xff]
        %v1156 = vld [vmem:[%s261 + $0x17a8] sm:$0xff]
        %v1157 = vld [vmem:[%s261 + $0x17b0] sm:$0xff]
        %v1158 = vld [vmem:[%s261 + $0x17b8] sm:$0xff]
        %v1159 = vld [vmem:[%s261 + $0x17c0] sm:$0xff]
        %v1160 = vld [vmem:[%s261 + $0x17c8] sm:$0xff]
        %v1161 = vld [vmem:[%s261 + $0x17d0] sm:$0xff]
        %v1162 = vld [vmem:[%s261 + $0x17d8] sm:$0xff]
        %v1163 = vld [vmem:[%s261 + $0x17e0] sm:$0xff]
        %v1164 = vld [vmem:[%s261 + $0x17e8] sm:$0xff]
        %v1165 = vld [vmem:[%s261 + $0x17f0] sm:$0xff]
        %v1166 = vld [vmem:[%s261 + $0x17f8] sm:$0xff]
        %v1167 = vld [vmem:[%s261 + $0x1800] sm:$0xff]
        %v1168 = vld [vmem:[%s261 + $0x1808] sm:$0xff]
        %v1169 = vld [vmem:[%s261 + $0x1810] sm:$0xff]
        %v1170 = vld [vmem:[%s261 + $0x1818] sm:$0xff]
        %v1171 = vld [vmem:[%s261 + $0x1820] sm:$0xff]
        %v1172 = vld [vmem:[%s261 + $0x1828] sm:$0xff]
        %v1173 = vld [vmem:[%s261 + $0x1830] sm:$0xff]
        %v1174 = vld [vmem:[%s261 + $0x1838] sm:$0xff]
        %v1175 = vld [vmem:[%s261 + $0x1840] sm:$0xff]
        %v1176 = vld [vmem:[%s261 + $0x1848] sm:$0xff]
        %v1177 = vld [vmem:[%s261 + $0x1850] sm:$0xff]
        %v1178 = vld [vmem:[%s261 + $0x1858] sm:$0xff]
        %v1179 = vld [vmem:[%s261 + $0x1860] sm:$0xff]
        %v1180 = vld [vmem:[%s261 + $0x1868] sm:$0xff]
        %v1181 = vld [vmem:[%s261 + $0x1870] sm:$0xff]
        %v1182 = vld [vmem:[%s261 + $0x1878] sm:$0xff]
        %v1183 = vld [vmem:[%s261 + $0x1880] sm:$0xff]
        %v1184 = vld [vmem:[%s261 + $0x1888] sm:$0xff]
        %v1185 = vld [vmem:[%s261 + $0x1890] sm:$0xff]
        %v1186 = vld [vmem:[%s261 + $0x1898] sm:$0xff]
        %v1187 = vld [vmem:[%s261 + $0x18a0] sm:$0xff]
        %v1188 = vld [vmem:[%s261 + $0x18a8] sm:$0xff]
        %v1189 = vld [vmem:[%s261 + $0x18b0] sm:$0xff]
        %v1190 = vld [vmem:[%s261 + $0x18b8] sm:$0xff]
        %v1191 = vld [vmem:[%s261 + $0x18c0] sm:$0xff]
        %v1192 = vld [vmem:[%s261 + $0x18c8] sm:$0xff]
        %v1193 = vld [vmem:[%s261 + $0x18d0] sm:$0xff]
        %v1194 = vld [vmem:[%s261 + $0x18d8] sm:$0xff]
        %v1195 = vld [vmem:[%s261 + $0x18e0] sm:$0xff]
        %v1196 = vld [vmem:[%s261 + $0x18e8] sm:$0xff]
        %v1197 = vld [vmem:[%s261 + $0x18f0] sm:$0xff]
        %v1198 = vld [vmem:[%s261 + $0x18f8] sm:$0xff]
        %v1199 = vld [vmem:[%s261 + $0x1900] sm:$0xff]
        %v1200 = vld [vmem:[%s261 + $0x1908] sm:$0xff]
        %v1201 = vld [vmem:[%s261 + $0x1910] sm:$0xff]
        %v1202 = vld [vmem:[%s261 + $0x1918] sm:$0xff]
        %v1203 = vld [vmem:[%s261 + $0x1920] sm:$0xff]
        %v1204 = vld [vmem:[%s261 + $0x1928] sm:$0xff]
        %v1205 = vld [vmem:[%s261 + $0x1930] sm:$0xff]
        %v1206 = vld [vmem:[%s261 + $0x1938] sm:$0xff]
        %v1207 = vld [vmem:[%s261 + $0x1940] sm:$0xff]
        %v1208 = vld [vmem:[%s261 + $0x1948] sm:$0xff]
        %v1209 = vld [vmem:[%s261 + $0x1950] sm:$0xff]
        %v1210 = vld [vmem:[%s261 + $0x1958] sm:$0xff]
        %v1211 = vld [vmem:[%s261 + $0x1960] sm:$0xff]
        %v1212 = vld [vmem:[%s261 + $0x1968] sm:$0xff]
        %v1213 = vld [vmem:[%s261 + $0x1970] sm:$0xff]
        %v1214 = vld [vmem:[%s261 + $0x1978] sm:$0xff]
        %v1215 = vld [vmem:[%s261 + $0x1980] sm:$0xff]
        %v1216 = vld [vmem:[%s261 + $0x1988] sm:$0xff]
        %v1217 = vld [vmem:[%s261 + $0x1990] sm:$0xff]
        %v1218 = vld [vmem:[%s261 + $0x1998] sm:$0xff]
        %v1219 = vld [vmem:[%s261 + $0x19a0] sm:$0xff]
        %v1220 = vld [vmem:[%s261 + $0x19a8] sm:$0xff]
        %v1221 = vld [vmem:[%s261 + $0x19b0] sm:$0xff]
        %v1222 = vld [vmem:[%s261 + $0x19b8] sm:$0xff]
        %v1223 = vld [vmem:[%s261 + $0x19c0] sm:$0xff]
        %v1224 = vld [vmem:[%s261 + $0x19c8] sm:$0xff]
        %v1225 = vld [vmem:[%s261 + $0x19d0] sm:$0xff]
        %v1226 = vld [vmem:[%s261 + $0x19d8] sm:$0xff]
        %v1227 = vld [vmem:[%s261 + $0x19e0] sm:$0xff]
        %v1228 = vld [vmem:[%s261 + $0x19e8] sm:$0xff]
        %v1229 = vld [vmem:[%s261 + $0x19f0] sm:$0xff]
        %v1230 = vld [vmem:[%s261 + $0x19f8] sm:$0xff]
        %v1231 = vld [vmem:[%s261 + $0x1a00] sm:$0xff]
        %v1232 = vld [vmem:[%s261 + $0x1a08] sm:$0xff]
        %v1233 = vld [vmem:[%s261 + $0x1a10] sm:$0xff]
        %v1234 = vld [vmem:[%s261 + $0x1a18] sm:$0xff]
        %v1235 = vld [vmem:[%s261 + $0x1a20] sm:$0xff]
        %v1236 = vld [vmem:[%s261 + $0x1a28] sm:$0xff]
        %v1237 = vld [vmem:[%s261 + $0x1a30] sm:$0xff]
        %v1238 = vld [vmem:[%s261 + $0x1a38] sm:$0xff]
        %v1239 = vld [vmem:[%s261 + $0x1a40] sm:$0xff]
        %v1240 = vld [vmem:[%s261 + $0x1a48] sm:$0xff]
        %v1241 = vld [vmem:[%s261 + $0x1a50] sm:$0xff]
        %v1242 = vld [vmem:[%s261 + $0x1a58] sm:$0xff]
        %v1243 = vld [vmem:[%s261 + $0x1a60] sm:$0xff]
        %v1244 = vld [vmem:[%s261 + $0x1a68] sm:$0xff]
        %v1245 = vld [vmem:[%s261 + $0x1a70] sm:$0xff]
        %v1246 = vld [vmem:[%s261 + $0x1a78] sm:$0xff]
        %v1247 = vld [vmem:[%s261 + $0x1a80] sm:$0xff]
        %v1248 = vld [vmem:[%s261 + $0x1a88] sm:$0xff]
        %v1249 = vld [vmem:[%s261 + $0x1a90] sm:$0xff]
        %v1250 = vld [vmem:[%s261 + $0x1a98] sm:$0xff]
        %v1251 = vld [vmem:[%s261 + $0x1aa0] sm:$0xff]
        %v1252 = vld [vmem:[%s261 + $0x1aa8] sm:$0xff]
        %v1253 = vld [vmem:[%s261 + $0x1ab0] sm:$0xff]
        %v1254 = vld [vmem:[%s261 + $0x1ab8] sm:$0xff]
        %v1255 = vld [vmem:[%s261 + $0x1ac0] sm:$0xff]
        %v1256 = vld [vmem:[%s261 + $0x1ac8] sm:$0xff]
        %v1257 = vld [vmem:[%s261 + $0x1ad0] sm:$0xff]
        %v1258 = vld [vmem:[%s261 + $0x1ad8] sm:$0xff]
        %v1259 = vld [vmem:[%s261 + $0x1ae0] sm:$0xff]
        %v1260 = vld [vmem:[%s261 + $0x1ae8] sm:$0xff]
        %v1261 = vld [vmem:[%s261 + $0x1af0] sm:$0xff]
        %v1262 = vld [vmem:[%s261 + $0x1af8] sm:$0xff]
        %v1263 = vld [vmem:[%s261 + $0x1b00] sm:$0xff]
        %v1264 = vld [vmem:[%s261 + $0x1b08] sm:$0xff]
        %v1265 = vld [vmem:[%s261 + $0x1b10] sm:$0xff]
        %v1266 = vld [vmem:[%s261 + $0x1b18] sm:$0xff]
        %v1267 = vld [vmem:[%s261 + $0x1b20] sm:$0xff]
        %v1268 = vld [vmem:[%s261 + $0x1b28] sm:$0xff]
        %v1269 = vld [vmem:[%s261 + $0x1b30] sm:$0xff]
        %v1270 = vld [vmem:[%s261 + $0x1b38] sm:$0xff]
        %v1271 = vld [vmem:[%s261 + $0x1b40] sm:$0xff]
        %v1272 = vld [vmem:[%s261 + $0x1b48] sm:$0xff]
        %v1273 = vld [vmem:[%s261 + $0x1b50] sm:$0xff]
        %v1274 = vld [vmem:[%s261 + $0x1b58] sm:$0xff]
        %v1275 = vld [vmem:[%s261 + $0x1b60] sm:$0xff]
        %v1276 = vld [vmem:[%s261 + $0x1b68] sm:$0xff]
        %v1277 = vld [vmem:[%s261 + $0x1b70] sm:$0xff]
        %v1278 = vld [vmem:[%s261 + $0x1b78] sm:$0xff]
        %v1279 = vld [vmem:[%s261 + $0x1b80] sm:$0xff]
        %v1280 = vld [vmem:[%s261 + $0x1b88] sm:$0xff]
        %v1281 = vld [vmem:[%s261 + $0x1b90] sm:$0xff]
        %v1282 = vld [vmem:[%s261 + $0x1b98] sm:$0xff]
        %v1283 = vld [vmem:[%s261 + $0x1ba0] sm:$0xff]
        %v1284 = vld [vmem:[%s261 + $0x1ba8] sm:$0xff]
        %v1285 = vld [vmem:[%s261 + $0x1bb0] sm:$0xff]
        %v1286 = vld [vmem:[%s261 + $0x1bb8] sm:$0xff]
        %v1287 = vld [vmem:[%s261 + $0x1bc0] sm:$0xff]
        %v1288 = vld [vmem:[%s261 + $0x1bc8] sm:$0xff]
        %v1289 = vld [vmem:[%s261 + $0x1bd0] sm:$0xff]
        %v1290 = vld [vmem:[%s261 + $0x1bd8] sm:$0xff]
        %v1291 = vld [vmem:[%s261 + $0x1be0] sm:$0xff]
        %v1292 = vld [vmem:[%s261 + $0x1be8] sm:$0xff]
        %v1293 = vld [vmem:[%s261 + $0x1bf0] sm:$0xff]
        %v1294 = vld [vmem:[%s261 + $0x1bf8] sm:$0xff]
        %v1295 = vld [vmem:[%s261 + $0x1c00] sm:$0xff]
        %v1296 = vld [vmem:[%s261 + $0x1c08] sm:$0xff]
        %v1297 = vld [vmem:[%s261 + $0x1c10] sm:$0xff]
        %v1298 = vld [vmem:[%s261 + $0x1c18] sm:$0xff]
        %v1299 = vld [vmem:[%s261 + $0x1c20] sm:$0xff]
        %v1300 = vld [vmem:[%s261 + $0x1c28] sm:$0xff]
        %v1301 = vld [vmem:[%s261 + $0x1c30] sm:$0xff]
        %v1302 = vld [vmem:[%s261 + $0x1c38] sm:$0xff]
        %v1303 = vld [vmem:[%s261 + $0x1c40] sm:$0xff]
        %v1304 = vld [vmem:[%s261 + $0x1c48] sm:$0xff]
        %v1305 = vld [vmem:[%s261 + $0x1c50] sm:$0xff]
        %v1306 = vld [vmem:[%s261 + $0x1c58] sm:$0xff]
        %v1307 = vld [vmem:[%s261 + $0x1c60] sm:$0xff]
        %v1308 = vld [vmem:[%s261 + $0x1c68] sm:$0xff]
        %v1309 = vld [vmem:[%s261 + $0x1c70] sm:$0xff]
        %v1310 = vld [vmem:[%s261 + $0x1c78] sm:$0xff]
        %v1311 = vld [vmem:[%s261 + $0x1c80] sm:$0xff]
        %v1312 = vld [vmem:[%s261 + $0x1c88] sm:$0xff]
        %v1313 = vld [vmem:[%s261 + $0x1c90] sm:$0xff]
        %v1314 = vld [vmem:[%s261 + $0x1c98] sm:$0xff]
        %v1315 = vld [vmem:[%s261 + $0x1ca0] sm:$0xff]
        %v1316 = vld [vmem:[%s261 + $0x1ca8] sm:$0xff]
        %v1317 = vld [vmem:[%s261 + $0x1cb0] sm:$0xff]
        %v1318 = vld [vmem:[%s261 + $0x1cb8] sm:$0xff]
        %v1319 = vld [vmem:[%s261 + $0x1cc0] sm:$0xff]
        %v1320 = vld [vmem:[%s261 + $0x1cc8] sm:$0xff]
        %v1321 = vld [vmem:[%s261 + $0x1cd0] sm:$0xff]
        %v1322 = vld [vmem:[%s261 + $0x1cd8] sm:$0xff]
        %v1323 = vld [vmem:[%s261 + $0x1ce0] sm:$0xff]
        %v1324 = vld [vmem:[%s261 + $0x1ce8] sm:$0xff]
        %v1325 = vld [vmem:[%s261 + $0x1cf0] sm:$0xff]
        %v1326 = vld [vmem:[%s261 + $0x1cf8] sm:$0xff]
        %v1327 = vld [vmem:[%s261 + $0x1d00] sm:$0xff]
        %v1328 = vld [vmem:[%s261 + $0x1d08] sm:$0xff]
        %v1329 = vld [vmem:[%s261 + $0x1d10] sm:$0xff]
        %v1330 = vld [vmem:[%s261 + $0x1d18] sm:$0xff]
        %v1331 = vld [vmem:[%s261 + $0x1d20] sm:$0xff]
        %v1332 = vld [vmem:[%s261 + $0x1d28] sm:$0xff]
        %v1333 = vld [vmem:[%s261 + $0x1d30] sm:$0xff]
        %v1334 = vld [vmem:[%s261 + $0x1d38] sm:$0xff]
        %v1335 = vld [vmem:[%s261 + $0x1d40] sm:$0xff]
        %v1336 = vld [vmem:[%s261 + $0x1d48] sm:$0xff]
        %v1337 = vld [vmem:[%s261 + $0x1d50] sm:$0xff]
        %v1338 = vld [vmem:[%s261 + $0x1d58] sm:$0xff]
        %v1339 = vld [vmem:[%s261 + $0x1d60] sm:$0xff]
        %v1340 = vld [vmem:[%s261 + $0x1d68] sm:$0xff]
        %v1341 = vld [vmem:[%s261 + $0x1d70] sm:$0xff]
        %v1342 = vld [vmem:[%s261 + $0x1d78] sm:$0xff]
        %v1343 = vld [vmem:[%s261 + $0x1d80] sm:$0xff]
        %v1344 = vld [vmem:[%s261 + $0x1d88] sm:$0xff]
        %v1345 = vld [vmem:[%s261 + $0x1d90] sm:$0xff]
        %v1346 = vld [vmem:[%s261 + $0x1d98] sm:$0xff]
        %v1347 = vld [vmem:[%s261 + $0x1da0] sm:$0xff]
        %v1348 = vld [vmem:[%s261 + $0x1da8] sm:$0xff]
        %v1349 = vld [vmem:[%s261 + $0x1db0] sm:$0xff]
        %v1350 = vld [vmem:[%s261 + $0x1db8] sm:$0xff]
        %v1351 = vld [vmem:[%s261 + $0x1dc0] sm:$0xff]
        %v1352 = vld [vmem:[%s261 + $0x1dc8] sm:$0xff]
        %v1353 = vld [vmem:[%s261 + $0x1dd0] sm:$0xff]
        %v1354 = vld [vmem:[%s261 + $0x1dd8] sm:$0xff]
        %v1355 = vld [vmem:[%s261 + $0x1de0] sm:$0xff]
        %v1356 = vld [vmem:[%s261 + $0x1de8] sm:$0xff]
        %v1357 = vld [vmem:[%s261 + $0x1df0] sm:$0xff]
        %v1358 = vld [vmem:[%s261 + $0x1df8] sm:$0xff]
        %v1359 = vld [vmem:[%s261 + $0x1e00] sm:$0xff]
        %v1360 = vld [vmem:[%s261 + $0x1e08] sm:$0xff]
        %v1361 = vld [vmem:[%s261 + $0x1e10] sm:$0xff]
        %v1362 = vld [vmem:[%s261 + $0x1e18] sm:$0xff]
        %v1363 = vld [vmem:[%s261 + $0x1e20] sm:$0xff]
        %v1364 = vld [vmem:[%s261 + $0x1e28] sm:$0xff]
        %v1365 = vld [vmem:[%s261 + $0x1e30] sm:$0xff]
        %v1366 = vld [vmem:[%s261 + $0x1e38] sm:$0xff]
        %v1367 = vld [vmem:[%s261 + $0x1e40] sm:$0xff]
        %v1368 = vld [vmem:[%s261 + $0x1e48] sm:$0xff]
        %v1369 = vld [vmem:[%s261 + $0x1e50] sm:$0xff]
        %v1370 = vld [vmem:[%s261 + $0x1e58] sm:$0xff]
        %v1371 = vld [vmem:[%s261 + $0x1e60] sm:$0xff]
        %v1372 = vld [vmem:[%s261 + $0x1e68] sm:$0xff]
        %v1373 = vld [vmem:[%s261 + $0x1e70] sm:$0xff]
        %v1374 = vld [vmem:[%s261 + $0x1e78] sm:$0xff]
        %v1375 = vld [vmem:[%s261 + $0x1e80] sm:$0xff]
        %v1376 = vld [vmem:[%s261 + $0x1e88] sm:$0xff]
        %v1377 = vld [vmem:[%s261 + $0x1e90] sm:$0xff]
        %v1378 = vld [vmem:[%s261 + $0x1e98] sm:$0xff]
        %v1379 = vld [vmem:[%s261 + $0x1ea0] sm:$0xff]
        %v1380 = vld [vmem:[%s261 + $0x1ea8] sm:$0xff]
        %v1381 = vld [vmem:[%s261 + $0x1eb0] sm:$0xff]
        %v1382 = vld [vmem:[%s261 + $0x1eb8] sm:$0xff]
        %v1383 = vld [vmem:[%s261 + $0x1ec0] sm:$0xff]
        %v1384 = vld [vmem:[%s261 + $0x1ec8] sm:$0xff]
        %v1385 = vld [vmem:[%s261 + $0x1ed0] sm:$0xff]
        %v1386 = vld [vmem:[%s261 + $0x1ed8] sm:$0xff]
        %v1387 = vld [vmem:[%s261 + $0x1ee0] sm:$0xff]
        %v1388 = vld [vmem:[%s261 + $0x1ee8] sm:$0xff]
        %v1389 = vld [vmem:[%s261 + $0x1ef0] sm:$0xff]
        %v1390 = vld [vmem:[%s261 + $0x1ef8] sm:$0xff]
        %v1391 = vld [vmem:[%s261 + $0x1f00] sm:$0xff]
        %v1392 = vld [vmem:[%s261 + $0x1f08] sm:$0xff]
        %v1393 = vld [vmem:[%s261 + $0x1f10] sm:$0xff]
        %v1394 = vld [vmem:[%s261 + $0x1f18] sm:$0xff]
        %v1395 = vld [vmem:[%s261 + $0x1f20] sm:$0xff]
        %v1396 = vld [vmem:[%s261 + $0x1f28] sm:$0xff]
        %v1397 = vld [vmem:[%s261 + $0x1f30] sm:$0xff]
        %v1398 = vld [vmem:[%s261 + $0x1f38] sm:$0xff]
        %v1399 = vld [vmem:[%s261 + $0x1f40] sm:$0xff]
        %v1400 = vld [vmem:[%s261 + $0x1f48] sm:$0xff]
        %v1401 = vld [vmem:[%s261 + $0x1f50] sm:$0xff]
        %v1402 = vld [vmem:[%s261 + $0x1f58] sm:$0xff]
        %v1403 = vld [vmem:[%s261 + $0x1f60] sm:$0xff]
        %v1404 = vld [vmem:[%s261 + $0x1f68] sm:$0xff]
        %v1405 = vld [vmem:[%s261 + $0x1f70] sm:$0xff]
        %v1406 = vld [vmem:[%s261 + $0x1f78] sm:$0xff]
        %v1407 = vld [vmem:[%s261 + $0x1f80] sm:$0xff]
        %v1408 = vld [vmem:[%s261 + $0x1f88] sm:$0xff]
        %v1409 = vld [vmem:[%s261 + $0x1f90] sm:$0xff]
        %v1410 = vld [vmem:[%s261 + $0x1f98] sm:$0xff]
        %v1411 = vld [vmem:[%s261 + $0x1fa0] sm:$0xff]
        %v1412 = vld [vmem:[%s261 + $0x1fa8] sm:$0xff]
        %v1413 = vld [vmem:[%s261 + $0x1fb0] sm:$0xff]
        %v1414 = vld [vmem:[%s261 + $0x1fb8] sm:$0xff]
        %v1415 = vld [vmem:[%s261 + $0x1fc0] sm:$0xff]
        %v1416 = vld [vmem:[%s261 + $0x1fc8] sm:$0xff]
        %v1417 = vld [vmem:[%s261 + $0x1fd0] sm:$0xff]
        %v1418 = vld [vmem:[%s261 + $0x1fd8] sm:$0xff]
        %v1419 = vld [vmem:[%s261 + $0x1fe0] sm:$0xff]
        %v1420 = vld [vmem:[%s261 + $0x1fe8] sm:$0xff]
        %v1421 = vld [vmem:[%s261 + $0x1ff0] sm:$0xff]
        %v1422 = vld [vmem:[%s261 + $0x1ff8] sm:$0xff]
        %v1423 = vld [vmem:[%s261 + $0x2000] sm:$0xff]
        %v1424 = vld [vmem:[%s261 + $0x2008] sm:$0xff]
        %v1425 = vld [vmem:[%s261 + $0x2010] sm:$0xff]
        %v1426 = vld [vmem:[%s261 + $0x2018] sm:$0xff]
        %v1427 = vld [vmem:[%s261 + $0x2020] sm:$0xff]
        %v1428 = vld [vmem:[%s261 + $0x2028] sm:$0xff]
        %v1429 = vld [vmem:[%s261 + $0x2030] sm:$0xff]
        %v1430 = vld [vmem:[%s261 + $0x2038] sm:$0xff]
        %v1431 = vld [vmem:[%s261 + $0x2040] sm:$0xff]
        %v1432 = vld [vmem:[%s261 + $0x2048] sm:$0xff]
        %v1433 = vld [vmem:[%s261 + $0x2050] sm:$0xff]
        %v1434 = vld [vmem:[%s261 + $0x2058] sm:$0xff]
        %v1435 = vld [vmem:[%s261 + $0x2060] sm:$0xff]
        %v1436 = vld [vmem:[%s261 + $0x2068] sm:$0xff]
        %v1437 = vld [vmem:[%s261 + $0x2070] sm:$0xff]
        %v1438 = vld [vmem:[%s261 + $0x2078] sm:$0xff]
        %v1439 = vld [vmem:[%s261 + $0x2080] sm:$0xff]
        %v1440 = vld [vmem:[%s261 + $0x2088] sm:$0xff]
        %v1441 = vld [vmem:[%s261 + $0x2090] sm:$0xff]
        %v1442 = vld [vmem:[%s261 + $0x2098] sm:$0xff]
        %v1443 = vld [vmem:[%s261 + $0x20a0] sm:$0xff]
        %v1444 = vld [vmem:[%s261 + $0x20a8] sm:$0xff]
        %v1445 = vld [vmem:[%s261 + $0x20b0] sm:$0xff]
        %v1446 = vld [vmem:[%s261 + $0x20b8] sm:$0xff]
        %v1447 = vld [vmem:[%s261 + $0x20c0] sm:$0xff]
        %v1448 = vld [vmem:[%s261 + $0x20c8] sm:$0xff]
        %v1449 = vld [vmem:[%s261 + $0x20d0] sm:$0xff]
        %v1450 = vld [vmem:[%s261 + $0x20d8] sm:$0xff]
        %v1451 = vld [vmem:[%s261 + $0x20e0] sm:$0xff]
        %v1452 = vld [vmem:[%s261 + $0x20e8] sm:$0xff]
        %v1453 = vld [vmem:[%s261 + $0x20f0] sm:$0xff]
        %v1454 = vld [vmem:[%s261 + $0x20f8] sm:$0xff]
        %v1455 = vld [vmem:[%s261 + $0x2100] sm:$0xff]
        %v1456 = vld [vmem:[%s261 + $0x2108] sm:$0xff]
        %v1457 = vld [vmem:[%s261 + $0x2110] sm:$0xff]
        %v1458 = vld [vmem:[%s261 + $0x2118] sm:$0xff]
        %v1459 = vld [vmem:[%s261 + $0x2120] sm:$0xff]
        %v1460 = vld [vmem:[%s261 + $0x2128] sm:$0xff]
        %v1461 = vld [vmem:[%s261 + $0x2130] sm:$0xff]
        %v1462 = vld [vmem:[%s261 + $0x2138] sm:$0xff]
        %v1463 = vld [vmem:[%s261 + $0x2140] sm:$0xff]
        %v1464 = vld [vmem:[%s261 + $0x2148] sm:$0xff]
        %v1465 = vld [vmem:[%s261 + $0x2150] sm:$0xff]
        %v1466 = vld [vmem:[%s261 + $0x2158] sm:$0xff]
        %v1467 = vld [vmem:[%s261 + $0x2160] sm:$0xff]
        %v1468 = vld [vmem:[%s261 + $0x2168] sm:$0xff]
        %v1469 = vld [vmem:[%s261 + $0x2170] sm:$0xff]
        %v1470 = vld [vmem:[%s261 + $0x2178] sm:$0xff]
        %v1471 = vld [vmem:[%s261 + $0x2180] sm:$0xff]
        %v1472 = vld [vmem:[%s261 + $0x2188] sm:$0xff]
        %v1473 = vld [vmem:[%s261 + $0x2190] sm:$0xff]
        %v1474 = vld [vmem:[%s261 + $0x2198] sm:$0xff]
        %v1475 = vld [vmem:[%s261 + $0x21a0] sm:$0xff]
        %v1476 = vld [vmem:[%s261 + $0x21a8] sm:$0xff]
        %v1477 = vld [vmem:[%s261 + $0x21b0] sm:$0xff]
        %v1478 = vld [vmem:[%s261 + $0x21b8] sm:$0xff]
        %v1479 = vld [vmem:[%s261 + $0x21c0] sm:$0xff]
        %v1480 = vld [vmem:[%s261 + $0x21c8] sm:$0xff]
        %v1481 = vld [vmem:[%s261 + $0x21d0] sm:$0xff]
        %v1482 = vld [vmem:[%s261 + $0x21d8] sm:$0xff]
        %v1483 = vld [vmem:[%s261 + $0x21e0] sm:$0xff]
        %v1484 = vld [vmem:[%s261 + $0x21e8] sm:$0xff]
        %v1485 = vld [vmem:[%s261 + $0x21f0] sm:$0xff]
        %v1486 = vld [vmem:[%s261 + $0x21f8] sm:$0xff]
        %v1487 = vld [vmem:[%s261 + $0x2200] sm:$0xff]
        %v1488 = vld [vmem:[%s261 + $0x2208] sm:$0xff]
        %v1489 = vld [vmem:[%s261 + $0x2210] sm:$0xff]
        %v1490 = vld [vmem:[%s261 + $0x2218] sm:$0xff]
        %v1491 = vld [vmem:[%s261 + $0x2220] sm:$0xff]
        %v1492 = vld [vmem:[%s261 + $0x2228] sm:$0xff]
        %v1493 = vld [vmem:[%s261 + $0x2230] sm:$0xff]
        %v1494 = vld [vmem:[%s261 + $0x2238] sm:$0xff]
        %v1495 = vld [vmem:[%s261 + $0x2240] sm:$0xff]
        %v1496 = vld [vmem:[%s261 + $0x2248] sm:$0xff]
        %v1497 = vld [vmem:[%s261 + $0x2250] sm:$0xff]
        %v1498 = vld [vmem:[%s261 + $0x2258] sm:$0xff]
        %v1499 = vld [vmem:[%s261 + $0x2260] sm:$0xff]
        %v1500 = vld [vmem:[%s261 + $0x2268] sm:$0xff]
        %v1501 = vld [vmem:[%s261 + $0x2270] sm:$0xff]
        %v1502 = vld [vmem:[%s261 + $0x2278] sm:$0xff]
        %v1503 = vld [vmem:[%s261 + $0x2280] sm:$0xff]
        %v1504 = vld [vmem:[%s261 + $0x2288] sm:$0xff]
        %v1505 = vld [vmem:[%s261 + $0x2290] sm:$0xff]
        %v1506 = vld [vmem:[%s261 + $0x2298] sm:$0xff]
        %v1507 = vld [vmem:[%s261 + $0x22a0] sm:$0xff]
        %v1508 = vld [vmem:[%s261 + $0x22a8] sm:$0xff]
        %v1509 = vld [vmem:[%s261 + $0x22b0] sm:$0xff]
        %v1510 = vld [vmem:[%s261 + $0x22b8] sm:$0xff]
        %v1511 = vld [vmem:[%s261 + $0x22c0] sm:$0xff]
        %v1512 = vld [vmem:[%s261 + $0x22c8] sm:$0xff]
        %v1513 = vld [vmem:[%s261 + $0x22d0] sm:$0xff]
        %v1514 = vld [vmem:[%s261 + $0x22d8] sm:$0xff]
        %v1515 = vld [vmem:[%s261 + $0x22e0] sm:$0xff]
        %v1516 = vld [vmem:[%s261 + $0x22e8] sm:$0xff]
        %v1517 = vld [vmem:[%s261 + $0x22f0] sm:$0xff]
        %v1518 = vld [vmem:[%s261 + $0x22f8] sm:$0xff]
        %v1519 = vld [vmem:[%s261 + $0x2300] sm:$0xff]
        %v1520 = vld [vmem:[%s261 + $0x2308] sm:$0xff]
        %v1521 = vld [vmem:[%s261 + $0x2310] sm:$0xff]
        %v1522 = vld [vmem:[%s261 + $0x2318] sm:$0xff]
        %v1523 = vld [vmem:[%s261 + $0x2320] sm:$0xff]
        %v1524 = vld [vmem:[%s261 + $0x2328] sm:$0xff]
        %v1525 = vld [vmem:[%s261 + $0x2330] sm:$0xff]
        %v1526 = vld [vmem:[%s261 + $0x2338] sm:$0xff]
        %v1527 = vld [vmem:[%s261 + $0x2340] sm:$0xff]
        %v1528 = vld [vmem:[%s261 + $0x2348] sm:$0xff]
        %v1529 = vld [vmem:[%s261 + $0x2350] sm:$0xff]
        %v1530 = vld [vmem:[%s261 + $0x2358] sm:$0xff]
        %v1531 = vld [vmem:[%s261 + $0x2360] sm:$0xff]
        %v1532 = vld [vmem:[%s261 + $0x2368] sm:$0xff]
        %v1533 = vld [vmem:[%s261 + $0x2370] sm:$0xff]
        %v1534 = vld [vmem:[%s261 + $0x2378] sm:$0xff]
        %v1535 = vld [vmem:[%s261 + $0x2380] sm:$0xff]
        %v1536 = vld [vmem:[%s261 + $0x2388] sm:$0xff]
        %v1537 = vld [vmem:[%s261 + $0x2390] sm:$0xff]
        %v1538 = vld [vmem:[%s261 + $0x2398] sm:$0xff]
        %v1539 = vld [vmem:[%s261 + $0x23a0] sm:$0xff]
        %v1540 = vld [vmem:[%s261 + $0x23a8] sm:$0xff]
        %v1541 = vld [vmem:[%s261 + $0x23b0] sm:$0xff]
        %v1542 = vld [vmem:[%s261 + $0x23b8] sm:$0xff]
        %v1543 = vld [vmem:[%s261 + $0x23c0] sm:$0xff]
        %v1544 = vld [vmem:[%s261 + $0x23c8] sm:$0xff]
        %v1545 = vld [vmem:[%s261 + $0x23d0] sm:$0xff]
        %v1546 = vld [vmem:[%s261 + $0x23d8] sm:$0xff]
        %v1547 = vld [vmem:[%s261 + $0x23e0] sm:$0xff]
        %v1548 = vld [vmem:[%s261 + $0x23e8] sm:$0xff]
        %v1549 = vld [vmem:[%s261 + $0x23f0] sm:$0xff]
        %v1550 = vld [vmem:[%s261 + $0x23f8] sm:$0xff]
        %v1551 = vld [vmem:[%s261 + $0x2400] sm:$0xff]
        %v1552 = vld [vmem:[%s261 + $0x2408] sm:$0xff]
        %v1553 = vld [vmem:[%s261 + $0x2410] sm:$0xff]
        %v1554 = vld [vmem:[%s261 + $0x2418] sm:$0xff]
        %v1555 = vld [vmem:[%s261 + $0x2420] sm:$0xff]
        %v1556 = vld [vmem:[%s261 + $0x2428] sm:$0xff]
        %v1557 = vld [vmem:[%s261 + $0x2430] sm:$0xff]
        %v1558 = vld [vmem:[%s261 + $0x2438] sm:$0xff]
        %v1559 = vld [vmem:[%s261 + $0x2440] sm:$0xff]
        %v1560 = vld [vmem:[%s261 + $0x2448] sm:$0xff]
        %v1561 = vld [vmem:[%s261 + $0x2450] sm:$0xff]
        %v1562 = vld [vmem:[%s261 + $0x2458] sm:$0xff]
        %v1563 = vld [vmem:[%s261 + $0x2460] sm:$0xff]
        %v1564 = vld [vmem:[%s261 + $0x2468] sm:$0xff]
        %v1565 = vld [vmem:[%s261 + $0x2470] sm:$0xff]
        %v1566 = vld [vmem:[%s261 + $0x2478] sm:$0xff]
        %v1567 = vld [vmem:[%s261 + $0x2480] sm:$0xff]
        %v1568 = vld [vmem:[%s261 + $0x2488] sm:$0xff]
        %v1569 = vld [vmem:[%s261 + $0x2490] sm:$0xff]
        %v1570 = vld [vmem:[%s261 + $0x2498] sm:$0xff]
        %v1571 = vld [vmem:[%s261 + $0x24a0] sm:$0xff]
        %v1572 = vld [vmem:[%s261 + $0x24a8] sm:$0xff]
        %v1573 = vld [vmem:[%s261 + $0x24b0] sm:$0xff]
        %v1574 = vld [vmem:[%s261 + $0x24b8] sm:$0xff]
        %v1575 = vld [vmem:[%s261 + $0x24c0] sm:$0xff]
        %v1576 = vld [vmem:[%s261 + $0x24c8] sm:$0xff]
        %v1577 = vld [vmem:[%s261 + $0x24d0] sm:$0xff]
        %v1578 = vld [vmem:[%s261 + $0x24d8] sm:$0xff]
        %v1579 = vld [vmem:[%s261 + $0x24e0] sm:$0xff]
        %v1580 = vld [vmem:[%s261 + $0x24e8] sm:$0xff]
        %v1581 = vld [vmem:[%s261 + $0x24f0] sm:$0xff]
        %v1582 = vld [vmem:[%s261 + $0x24f8] sm:$0xff]
        %v1583 = vld [vmem:[%s261 + $0x2500] sm:$0xff]
        %v1584 = vld [vmem:[%s261 + $0x2508] sm:$0xff]
        %v1585 = vld [vmem:[%s261 + $0x2510] sm:$0xff]
        %v1586 = vld [vmem:[%s261 + $0x2518] sm:$0xff]
        %v1587 = vld [vmem:[%s261 + $0x2520] sm:$0xff]
        %v1588 = vld [vmem:[%s261 + $0x2528] sm:$0xff]
        %v1589 = vld [vmem:[%s261 + $0x2530] sm:$0xff]
        %v1590 = vld [vmem:[%s261 + $0x2538] sm:$0xff]
        %v1591 = vld [vmem:[%s261 + $0x2540] sm:$0xff]
        %v1592 = vld [vmem:[%s261 + $0x2548] sm:$0xff]
        %v1593 = vld [vmem:[%s261 + $0x2550] sm:$0xff]
        %v1594 = vld [vmem:[%s261 + $0x2558] sm:$0xff]
        %v1595 = vld [vmem:[%s261 + $0x2560] sm:$0xff]
        %v1596 = vld [vmem:[%s261 + $0x2568] sm:$0xff]
        %v1597 = vld [vmem:[%s261 + $0x2570] sm:$0xff]
        %v1598 = vld [vmem:[%s261 + $0x2578] sm:$0xff]
        %v1599 = vld [vmem:[%s261 + $0x2580] sm:$0xff]
        %v1600 = vld [vmem:[%s261 + $0x2588] sm:$0xff]
        %v1601 = vld [vmem:[%s261 + $0x2590] sm:$0xff]
        %v1602 = vld [vmem:[%s261 + $0x2598] sm:$0xff]
        %v1603 = vld [vmem:[%s261 + $0x25a0] sm:$0xff]
        %v1604 = vld [vmem:[%s261 + $0x25a8] sm:$0xff]
        %v1605 = vld [vmem:[%s261 + $0x25b0] sm:$0xff]
        %v1606 = vld [vmem:[%s261 + $0x25b8] sm:$0xff]
        %v1607 = vld [vmem:[%s261 + $0x25c0] sm:$0xff]
        %v1608 = vld [vmem:[%s261 + $0x25c8] sm:$0xff]
        %v1609 = vld [vmem:[%s261 + $0x25d0] sm:$0xff]
        %v1610 = vld [vmem:[%s261 + $0x25d8] sm:$0xff]
        %v1611 = vld [vmem:[%s261 + $0x25e0] sm:$0xff]
        %v1612 = vld [vmem:[%s261 + $0x25e8] sm:$0xff]
        %v1613 = vld [vmem:[%s261 + $0x25f0] sm:$0xff]
        %v1614 = vld [vmem:[%s261 + $0x25f8] sm:$0xff]
        %v1615 = vld [vmem:[%s261 + $0x2600] sm:$0xff]
        %v1616 = vld [vmem:[%s261 + $0x2608] sm:$0xff]
        %v1617 = vld [vmem:[%s261 + $0x2610] sm:$0xff]
        %v1618 = vld [vmem:[%s261 + $0x2618] sm:$0xff]
        %v1619 = vld [vmem:[%s261 + $0x2620] sm:$0xff]
        %v1620 = vld [vmem:[%s261 + $0x2628] sm:$0xff]
        %v1621 = vld [vmem:[%s261 + $0x2630] sm:$0xff]
        %v1622 = vld [vmem:[%s261 + $0x2638] sm:$0xff]
        %v1623 = vld [vmem:[%s261 + $0x2640] sm:$0xff]
        %v1624 = vld [vmem:[%s261 + $0x2648] sm:$0xff]
        %v1625 = vld [vmem:[%s261 + $0x2650] sm:$0xff]
        %v1626 = vld [vmem:[%s261 + $0x2658] sm:$0xff]
        %v1627 = vld [vmem:[%s261 + $0x2660] sm:$0xff]
        %v1628 = vld [vmem:[%s261 + $0x2668] sm:$0xff]
        %v1629 = vld [vmem:[%s261 + $0x2670] sm:$0xff]
        %v1630 = vld [vmem:[%s261 + $0x2678] sm:$0xff]
        %v1631 = vld [vmem:[%s261 + $0x2680] sm:$0xff]
        %v1632 = vld [vmem:[%s261 + $0x2688] sm:$0xff]
        %v1633 = vld [vmem:[%s261 + $0x2690] sm:$0xff]
        %v1634 = vld [vmem:[%s261 + $0x2698] sm:$0xff]
        %v1635 = vld [vmem:[%s261 + $0x26a0] sm:$0xff]
        %v1636 = vld [vmem:[%s261 + $0x26a8] sm:$0xff]
        %v1637 = vld [vmem:[%s261 + $0x26b0] sm:$0xff]
        %v1638 = vld [vmem:[%s261 + $0x26b8] sm:$0xff]
        %v1639 = vld [vmem:[%s261 + $0x26c0] sm:$0xff]
        %v1640 = vld [vmem:[%s261 + $0x26c8] sm:$0xff]
        %v1641 = vld [vmem:[%s261 + $0x26d0] sm:$0xff]
        %v1642 = vld [vmem:[%s261 + $0x26d8] sm:$0xff]
        %v1643 = vld [vmem:[%s261 + $0x26e0] sm:$0xff]
        %v1644 = vld [vmem:[%s261 + $0x26e8] sm:$0xff]
        %v1645 = vld [vmem:[%s261 + $0x26f0] sm:$0xff]
        %v1646 = vld [vmem:[%s261 + $0x26f8] sm:$0xff]
        %v1647 = vld [vmem:[%s261 + $0x2700] sm:$0xff]
        %v1648 = vld [vmem:[%s261 + $0x2708] sm:$0xff]
        %v1649 = vld [vmem:[%s261 + $0x2710] sm:$0xff]
        %v1650 = vld [vmem:[%s261 + $0x2718] sm:$0xff]
        %v1651 = vld [vmem:[%s261 + $0x2720] sm:$0xff]
        %v1652 = vld [vmem:[%s261 + $0x2728] sm:$0xff]
        %v1653 = vld [vmem:[%s261 + $0x2730] sm:$0xff]
        %v1654 = vld [vmem:[%s261 + $0x2738] sm:$0xff]
        %v1655 = vld [vmem:[%s261 + $0x2740] sm:$0xff]
        %v1656 = vld [vmem:[%s261 + $0x2748] sm:$0xff]
        %v1657 = vld [vmem:[%s261 + $0x2750] sm:$0xff]
        %v1658 = vld [vmem:[%s261 + $0x2758] sm:$0xff]
        %v1659 = vld [vmem:[%s261 + $0x2760] sm:$0xff]
        %v1660 = vld [vmem:[%s261 + $0x2768] sm:$0xff]
        %v1661 = vld [vmem:[%s261 + $0x2770] sm:$0xff]
        %v1662 = vld [vmem:[%s261 + $0x2778] sm:$0xff]
        %v1663 = vld [vmem:[%s261 + $0x2780] sm:$0xff]
        %v1664 = vld [vmem:[%s261 + $0x2788] sm:$0xff]
        %v1665 = vld [vmem:[%s261 + $0x2790] sm:$0xff]
        %v1666 = vld [vmem:[%s261 + $0x2798] sm:$0xff]
        %v1667 = vld [vmem:[%s261 + $0x27a0] sm:$0xff]
        %v1668 = vld [vmem:[%s261 + $0x27a8] sm:$0xff]
        %v1669 = vld [vmem:[%s261 + $0x27b0] sm:$0xff]
        %v1670 = vld [vmem:[%s261 + $0x27b8] sm:$0xff]
        %v1671 = vld [vmem:[%s261 + $0x27c0] sm:$0xff]
        %v1672 = vld [vmem:[%s261 + $0x27c8] sm:$0xff]
        %v1673 = vld [vmem:[%s261 + $0x27d0] sm:$0xff]
        %v1674 = vld [vmem:[%s261 + $0x27d8] sm:$0xff]
        %v1675 = vld [vmem:[%s261 + $0x27e0] sm:$0xff]
        %v1676 = vld [vmem:[%s261 + $0x27e8] sm:$0xff]
        %v1677 = vld [vmem:[%s261 + $0x27f0] sm:$0xff]
        %v1678 = vld [vmem:[%s261 + $0x27f8] sm:$0xff]
        %v1679 = vld [vmem:[%s261 + $0x2800] sm:$0xff]
        %v1680 = vld [vmem:[%s261 + $0x2808] sm:$0xff]
        %v1681 = vld [vmem:[%s261 + $0x2810] sm:$0xff]
        %v1682 = vld [vmem:[%s261 + $0x2818] sm:$0xff]
        %v1683 = vld [vmem:[%s261 + $0x2820] sm:$0xff]
        %v1684 = vld [vmem:[%s261 + $0x2828] sm:$0xff]
        %v1685 = vld [vmem:[%s261 + $0x2830] sm:$0xff]
        %v1686 = vld [vmem:[%s261 + $0x2838] sm:$0xff]
        %v1687 = vld [vmem:[%s261 + $0x2840] sm:$0xff]
        %v1688 = vld [vmem:[%s261 + $0x2848] sm:$0xff]
        %v1689 = vld [vmem:[%s261 + $0x2850] sm:$0xff]
        %v1690 = vld [vmem:[%s261 + $0x2858] sm:$0xff]
        %v1691 = vld [vmem:[%s261 + $0x2860] sm:$0xff]
        %v1692 = vld [vmem:[%s261 + $0x2868] sm:$0xff]
        %v1693 = vld [vmem:[%s261 + $0x2870] sm:$0xff]
        %v1694 = vld [vmem:[%s261 + $0x2878] sm:$0xff]
        %v1695 = vld [vmem:[%s261 + $0x2880] sm:$0xff]
        %v1696 = vld [vmem:[%s261 + $0x2888] sm:$0xff]
        %v1697 = vld [vmem:[%s261 + $0x2890] sm:$0xff]
        %v1698 = vld [vmem:[%s261 + $0x2898] sm:$0xff]
        %v1699 = vld [vmem:[%s261 + $0x28a0] sm:$0xff]
        %v1700 = vld [vmem:[%s261 + $0x28a8] sm:$0xff]
        %v1701 = vld [vmem:[%s261 + $0x28b0] sm:$0xff]
        %v1702 = vld [vmem:[%s261 + $0x28b8] sm:$0xff]
        %v1703 = vld [vmem:[%s261 + $0x28c0] sm:$0xff]
        %v1704 = vld [vmem:[%s261 + $0x28c8] sm:$0xff]
        %v1705 = vld [vmem:[%s261 + $0x28d0] sm:$0xff]
        %v1706 = vld [vmem:[%s261 + $0x28d8] sm:$0xff]
        %v1707 = vld [vmem:[%s261 + $0x28e0] sm:$0xff]
        %v1708 = vld [vmem:[%s261 + $0x28e8] sm:$0xff]
        %v1709 = vld [vmem:[%s261 + $0x28f0] sm:$0xff]
        %v1710 = vld [vmem:[%s261 + $0x28f8] sm:$0xff]
        %v1711 = vld [vmem:[%s261 + $0x2900] sm:$0xff]
        %v1712 = vld [vmem:[%s261 + $0x2908] sm:$0xff]
        %v1713 = vld [vmem:[%s261 + $0x2910] sm:$0xff]
        %v1714 = vld [vmem:[%s261 + $0x2918] sm:$0xff]
        %v1715 = vld [vmem:[%s261 + $0x2920] sm:$0xff]
        %v1716 = vld [vmem:[%s261 + $0x2928] sm:$0xff]
        %v1717 = vld [vmem:[%s261 + $0x2930] sm:$0xff]
        %v1718 = vld [vmem:[%s261 + $0x2938] sm:$0xff]
        %v1719 = vld [vmem:[%s261 + $0x2940] sm:$0xff]
        %v1720 = vld [vmem:[%s261 + $0x2948] sm:$0xff]
        %v1721 = vld [vmem:[%s261 + $0x2950] sm:$0xff]
        %v1722 = vld [vmem:[%s261 + $0x2958] sm:$0xff]
        %v1723 = vld [vmem:[%s261 + $0x2960] sm:$0xff]
        %v1724 = vld [vmem:[%s261 + $0x2968] sm:$0xff]
        %v1725 = vld [vmem:[%s261 + $0x2970] sm:$0xff]
        %v1726 = vld [vmem:[%s261 + $0x2978] sm:$0xff]
        %v1727 = vld [vmem:[%s261 + $0x2980] sm:$0xff]
        %v1728 = vld [vmem:[%s261 + $0x2988] sm:$0xff]
        %v1729 = vld [vmem:[%s261 + $0x2990] sm:$0xff]
        %v1730 = vld [vmem:[%s261 + $0x2998] sm:$0xff]
        %v1731 = vld [vmem:[%s261 + $0x29a0] sm:$0xff]
        %v1732 = vld [vmem:[%s261 + $0x29a8] sm:$0xff]
        %v1733 = vld [vmem:[%s261 + $0x29b0] sm:$0xff]
        %v1734 = vld [vmem:[%s261 + $0x29b8] sm:$0xff]
        %v1735 = vld [vmem:[%s261 + $0x29c0] sm:$0xff]
        %v1736 = vld [vmem:[%s261 + $0x29c8] sm:$0xff]
        %v1737 = vld [vmem:[%s261 + $0x29d0] sm:$0xff]
        %v1738 = vld [vmem:[%s261 + $0x29d8] sm:$0xff]
        %v1739 = vld [vmem:[%s261 + $0x29e0] sm:$0xff]
        %v1740 = vld [vmem:[%s261 + $0x29e8] sm:$0xff]
        %v1741 = vld [vmem:[%s261 + $0x29f0] sm:$0xff]
        %v1742 = vld [vmem:[%s261 + $0x29f8] sm:$0xff]
        %v1743 = vld [vmem:[%s261 + $0x2a00] sm:$0xff]
        %v1744 = vld [vmem:[%s261 + $0x2a08] sm:$0xff]
        %v1745 = vld [vmem:[%s261 + $0x2a10] sm:$0xff]
        %v1746 = vld [vmem:[%s261 + $0x2a18] sm:$0xff]
        %v1747 = vld [vmem:[%s261 + $0x2a20] sm:$0xff]
        %v1748 = vld [vmem:[%s261 + $0x2a28] sm:$0xff]
        %v1749 = vld [vmem:[%s261 + $0x2a30] sm:$0xff]
        %v1750 = vld [vmem:[%s261 + $0x2a38] sm:$0xff]
        %v1751 = vld [vmem:[%s261 + $0x2a40] sm:$0xff]
        %v1752 = vld [vmem:[%s261 + $0x2a48] sm:$0xff]
        %v1753 = vld [vmem:[%s261 + $0x2a50] sm:$0xff]
        %v1754 = vld [vmem:[%s261 + $0x2a58] sm:$0xff]
        %v1755 = vld [vmem:[%s261 + $0x2a60] sm:$0xff]
        %v1756 = vld [vmem:[%s261 + $0x2a68] sm:$0xff]
        %v1757 = vld [vmem:[%s261 + $0x2a70] sm:$0xff]
        %v1758 = vld [vmem:[%s261 + $0x2a78] sm:$0xff]
        %v1759 = vld [vmem:[%s261 + $0x2a80] sm:$0xff]
        %v1760 = vld [vmem:[%s261 + $0x2a88] sm:$0xff]
        %v1761 = vld [vmem:[%s261 + $0x2a90] sm:$0xff]
        %v1762 = vld [vmem:[%s261 + $0x2a98] sm:$0xff]
        %v1763 = vld [vmem:[%s261 + $0x2aa0] sm:$0xff]
        %v1764 = vld [vmem:[%s261 + $0x2aa8] sm:$0xff]
        %v1765 = vld [vmem:[%s261 + $0x2ab0] sm:$0xff]
        %v1766 = vld [vmem:[%s261 + $0x2ab8] sm:$0xff]
        %v1767 = vld [vmem:[%s261 + $0x2ac0] sm:$0xff]
        %v1768 = vld [vmem:[%s261 + $0x2ac8] sm:$0xff]
        %v1769 = vld [vmem:[%s261 + $0x2ad0] sm:$0xff]
        %v1770 = vld [vmem:[%s261 + $0x2ad8] sm:$0xff]
        %v1771 = vld [vmem:[%s261 + $0x2ae0] sm:$0xff]
        %v1772 = vld [vmem:[%s261 + $0x2ae8] sm:$0xff]
        %v1773 = vld [vmem:[%s261 + $0x2af0] sm:$0xff]
        %v1774 = vld [vmem:[%s261 + $0x2af8] sm:$0xff]
        %v1775 = vld [vmem:[%s261 + $0x2b00] sm:$0xff]
        %v1776 = vld [vmem:[%s261 + $0x2b08] sm:$0xff]
        %v1777 = vld [vmem:[%s261 + $0x2b10] sm:$0xff]
        %v1778 = vld [vmem:[%s261 + $0x2b18] sm:$0xff]
        %v1779 = vld [vmem:[%s261 + $0x2b20] sm:$0xff]
        %v1780 = vld [vmem:[%s261 + $0x2b28] sm:$0xff]
        %v1781 = vld [vmem:[%s261 + $0x2b30] sm:$0xff]
        %v1782 = vld [vmem:[%s261 + $0x2b38] sm:$0xff]
        %v1783 = vld [vmem:[%s261 + $0x2b40] sm:$0xff]
        %v1784 = vld [vmem:[%s261 + $0x2b48] sm:$0xff]
        %v1785 = vld [vmem:[%s261 + $0x2b50] sm:$0xff]
        %v1786 = vld [vmem:[%s261 + $0x2b58] sm:$0xff]
        %v1787 = vld [vmem:[%s261 + $0x2b60] sm:$0xff]
        %v1788 = vld [vmem:[%s261 + $0x2b68] sm:$0xff]
        %v1789 = vld [vmem:[%s261 + $0x2b70] sm:$0xff]
        %v1790 = vld [vmem:[%s261 + $0x2b78] sm:$0xff]
        %v1791 = vld [vmem:[%s261 + $0x2b80] sm:$0xff]
        %v1792 = vld [vmem:[%s261 + $0x2b88] sm:$0xff]
        %v1793 = vld [vmem:[%s261 + $0x2b90] sm:$0xff]
        %v1794 = vld [vmem:[%s261 + $0x2b98] sm:$0xff]
        %v1795 = vld [vmem:[%s261 + $0x2ba0] sm:$0xff]
        %v1796 = vld [vmem:[%s261 + $0x2ba8] sm:$0xff]
        %v1797 = vld [vmem:[%s261 + $0x2bb0] sm:$0xff]
        %v1798 = vld [vmem:[%s261 + $0x2bb8] sm:$0xff]
        %v1799 = vld [vmem:[%s261 + $0x2bc0] sm:$0xff]
        %v1800 = vld [vmem:[%s261 + $0x2bc8] sm:$0xff]
        %v1801 = vld [vmem:[%s261 + $0x2bd0] sm:$0xff]
        %v1802 = vld [vmem:[%s261 + $0x2bd8] sm:$0xff]
        %v1803 = vld [vmem:[%s261 + $0x2be0] sm:$0xff]
        %v1804 = vld [vmem:[%s261 + $0x2be8] sm:$0xff]
        %v1805 = vld [vmem:[%s261 + $0x2bf0] sm:$0xff]
        %v1806 = vld [vmem:[%s261 + $0x2bf8] sm:$0xff]
        %v1807 = vld [vmem:[%s261 + $0x2c00] sm:$0xff]
        %v1808 = vld [vmem:[%s261 + $0x2c08] sm:$0xff]
        %v1809 = vld [vmem:[%s261 + $0x2c10] sm:$0xff]
        %v1810 = vld [vmem:[%s261 + $0x2c18] sm:$0xff]
        %v1811 = vld [vmem:[%s261 + $0x2c20] sm:$0xff]
        %v1812 = vld [vmem:[%s261 + $0x2c28] sm:$0xff]
        %v1813 = vld [vmem:[%s261 + $0x2c30] sm:$0xff]
        %v1814 = vld [vmem:[%s261 + $0x2c38] sm:$0xff]
        %v1815 = vld [vmem:[%s261 + $0x2c40] sm:$0xff]
        %v1816 = vld [vmem:[%s261 + $0x2c48] sm:$0xff]
        %v1817 = vld [vmem:[%s261 + $0x2c50] sm:$0xff]
        %v1818 = vld [vmem:[%s261 + $0x2c58] sm:$0xff]
        %v1819 = vld [vmem:[%s261 + $0x2c60] sm:$0xff]
        %v1820 = vld [vmem:[%s261 + $0x2c68] sm:$0xff]
        %v1821 = vld [vmem:[%s261 + $0x2c70] sm:$0xff]
        %v1822 = vld [vmem:[%s261 + $0x2c78] sm:$0xff]
        %v1823 = vld [vmem:[%s261 + $0x2c80] sm:$0xff]
        %v1824 = vld [vmem:[%s261 + $0x2c88] sm:$0xff]
        %v1825 = vld [vmem:[%s261 + $0x2c90] sm:$0xff]
        %v1826 = vld [vmem:[%s261 + $0x2c98] sm:$0xff]
        %v1827 = vld [vmem:[%s261 + $0x2ca0] sm:$0xff]
        %v1828 = vld [vmem:[%s261 + $0x2ca8] sm:$0xff]
        %v1829 = vld [vmem:[%s261 + $0x2cb0] sm:$0xff]
        %v1830 = vld [vmem:[%s261 + $0x2cb8] sm:$0xff]
        %v1831 = vld [vmem:[%s261 + $0x2cc0] sm:$0xff]
        %v1832 = vld [vmem:[%s261 + $0x2cc8] sm:$0xff]
        %v1833 = vld [vmem:[%s261 + $0x2cd0] sm:$0xff]
        %v1834 = vld [vmem:[%s261 + $0x2cd8] sm:$0xff]
        %v1835 = vld [vmem:[%s261 + $0x2ce0] sm:$0xff]
        %v1836 = vld [vmem:[%s261 + $0x2ce8] sm:$0xff]
        %v1837 = vld [vmem:[%s261 + $0x2cf0] sm:$0xff]
        %v1838 = vld [vmem:[%s261 + $0x2cf8] sm:$0xff]
        %v1839 = vld [vmem:[%s261 + $0x2d00] sm:$0xff]
        %v1840 = vld [vmem:[%s261 + $0x2d08] sm:$0xff]
        %v1841 = vld [vmem:[%s261 + $0x2d10] sm:$0xff]
        %v1842 = vld [vmem:[%s261 + $0x2d18] sm:$0xff]
        %v1843 = vld [vmem:[%s261 + $0x2d20] sm:$0xff]
        %v1844 = vld [vmem:[%s261 + $0x2d28] sm:$0xff]
        %v1845 = vld [vmem:[%s261 + $0x2d30] sm:$0xff]
        %v1846 = vld [vmem:[%s261 + $0x2d38] sm:$0xff]
        %v1847 = vld [vmem:[%s261 + $0x2d40] sm:$0xff]
        %v1848 = vld [vmem:[%s261 + $0x2d48] sm:$0xff]
        %v1849 = vld [vmem:[%s261 + $0x2d50] sm:$0xff]
        %v1850 = vld [vmem:[%s261 + $0x2d58] sm:$0xff]
        %v1851 = vld [vmem:[%s261 + $0x2d60] sm:$0xff]
        %v1852 = vld [vmem:[%s261 + $0x2d68] sm:$0xff]
        %v1853 = vld [vmem:[%s261 + $0x2d70] sm:$0xff]
        %v1854 = vld [vmem:[%s261 + $0x2d78] sm:$0xff]
        %v1855 = vld [vmem:[%s261 + $0x2d80] sm:$0xff]
        %v1856 = vld [vmem:[%s261 + $0x2d88] sm:$0xff]
        %v1857 = vld [vmem:[%s261 + $0x2d90] sm:$0xff]
        %v1858 = vld [vmem:[%s261 + $0x2d98] sm:$0xff]
        %v1859 = vld [vmem:[%s261 + $0x2da0] sm:$0xff]
        %v1860 = vld [vmem:[%s261 + $0x2da8] sm:$0xff]
        %v1861 = vld [vmem:[%s261 + $0x2db0] sm:$0xff]
        %v1862 = vld [vmem:[%s261 + $0x2db8] sm:$0xff]
        %v1863 = vld [vmem:[%s261 + $0x2dc0] sm:$0xff]
        %v1864 = vld [vmem:[%s261 + $0x2dc8] sm:$0xff]
        %v1865 = vld [vmem:[%s261 + $0x2dd0] sm:$0xff]
        %v1866 = vld [vmem:[%s261 + $0x2dd8] sm:$0xff]
        %v1867 = vld [vmem:[%s261 + $0x2de0] sm:$0xff]
        %v1868 = vld [vmem:[%s261 + $0x2de8] sm:$0xff]
        %v1869 = vld [vmem:[%s261 + $0x2df0] sm:$0xff]
        %v1870 = vld [vmem:[%s261 + $0x2df8] sm:$0xff]
        %v1871 = vld [vmem:[%s261 + $0x2e00] sm:$0xff]
        %v1872 = vld [vmem:[%s261 + $0x2e08] sm:$0xff]
        %v1873 = vld [vmem:[%s261 + $0x2e10] sm:$0xff]
        %v1874 = vld [vmem:[%s261 + $0x2e18] sm:$0xff]
        %v1875 = vld [vmem:[%s261 + $0x2e20] sm:$0xff]
        %v1876 = vld [vmem:[%s261 + $0x2e28] sm:$0xff]
        %v1877 = vld [vmem:[%s261 + $0x2e30] sm:$0xff]
        %v1878 = vld [vmem:[%s261 + $0x2e38] sm:$0xff]
        %v1879 = vld [vmem:[%s261 + $0x2e40] sm:$0xff]
        %v1880 = vld [vmem:[%s261 + $0x2e48] sm:$0xff]
        %v1881 = vld [vmem:[%s261 + $0x2e50] sm:$0xff]
        %v1882 = vld [vmem:[%s261 + $0x2e58] sm:$0xff]
        %v1883 = vld [vmem:[%s261 + $0x2e60] sm:$0xff]
        %v1884 = vld [vmem:[%s261 + $0x2e68] sm:$0xff]
        %v1885 = vld [vmem:[%s261 + $0x2e70] sm:$0xff]
        %v1886 = vld [vmem:[%s261 + $0x2e78] sm:$0xff]
        %v1887 = vld [vmem:[%s261 + $0x2e80] sm:$0xff]
        %v1888 = vld [vmem:[%s261 + $0x2e88] sm:$0xff]
        %v1889 = vld [vmem:[%s261 + $0x2e90] sm:$0xff]
        %v1890 = vld [vmem:[%s261 + $0x2e98] sm:$0xff]
        %v1891 = vld [vmem:[%s261 + $0x2ea0] sm:$0xff]
        %v1892 = vld [vmem:[%s261 + $0x2ea8] sm:$0xff]
        %v1893 = vld [vmem:[%s261 + $0x2eb0] sm:$0xff]
        %v1894 = vld [vmem:[%s261 + $0x2eb8] sm:$0xff]
        %v1895 = vld [vmem:[%s261 + $0x2ec0] sm:$0xff]
        %v1896 = vld [vmem:[%s261 + $0x2ec8] sm:$0xff]
        %v1897 = vld [vmem:[%s261 + $0x2ed0] sm:$0xff]
        %v1898 = vld [vmem:[%s261 + $0x2ed8] sm:$0xff]
        %v1899 = vld [vmem:[%s261 + $0x2ee0] sm:$0xff]
        %v1900 = vld [vmem:[%s261 + $0x2ee8] sm:$0xff]
        %v1901 = vld [vmem:[%s261 + $0x2ef0] sm:$0xff]
        %v1902 = vld [vmem:[%s261 + $0x2ef8] sm:$0xff]
        %v1903 = vld [vmem:[%s261 + $0x2f00] sm:$0xff]
        %v1904 = vld [vmem:[%s261 + $0x2f08] sm:$0xff]
        %v1905 = vld [vmem:[%s261 + $0x2f10] sm:$0xff]
        %v1906 = vld [vmem:[%s261 + $0x2f18] sm:$0xff]
        %v1907 = vld [vmem:[%s261 + $0x2f20] sm:$0xff]
        %v1908 = vld [vmem:[%s261 + $0x2f28] sm:$0xff]
        %v1909 = vld [vmem:[%s261 + $0x2f30] sm:$0xff]
        %v1910 = vld [vmem:[%s261 + $0x2f38] sm:$0xff]
        %v1911 = vld [vmem:[%s261 + $0x2f40] sm:$0xff]
        %v1912 = vld [vmem:[%s261 + $0x2f48] sm:$0xff]
        %v1913 = vld [vmem:[%s261 + $0x2f50] sm:$0xff]
        %v1914 = vld [vmem:[%s261 + $0x2f58] sm:$0xff]
        %v1915 = vld [vmem:[%s261 + $0x2f60] sm:$0xff]
        %v1916 = vld [vmem:[%s261 + $0x2f68] sm:$0xff]
        %v1917 = vld [vmem:[%s261 + $0x2f70] sm:$0xff]
        %v1918 = vld [vmem:[%s261 + $0x2f78] sm:$0xff]
        %v1919 = vld [vmem:[%s261 + $0x2f80] sm:$0xff]
        %v1920 = vld [vmem:[%s261 + $0x2f88] sm:$0xff]
        %v1921 = vld [vmem:[%s261 + $0x2f90] sm:$0xff]
        %v1922 = vld [vmem:[%s261 + $0x2f98] sm:$0xff]
        %v1923 = vld [vmem:[%s261 + $0x2fa0] sm:$0xff]
        %v1924 = vld [vmem:[%s261 + $0x2fa8] sm:$0xff]
        %v1925 = vld [vmem:[%s261 + $0x2fb0] sm:$0xff]
        %v1926 = vld [vmem:[%s261 + $0x2fb8] sm:$0xff]
        %v1927 = vld [vmem:[%s261 + $0x2fc0] sm:$0xff]
        %v1928 = vld [vmem:[%s261 + $0x2fc8] sm:$0xff]
        %v1929 = vld [vmem:[%s261 + $0x2fd0] sm:$0xff]
        %v1930 = vld [vmem:[%s261 + $0x2fd8] sm:$0xff]
        %v1931 = vld [vmem:[%s261 + $0x2fe0] sm:$0xff]
        %v1932 = vld [vmem:[%s261 + $0x2fe8] sm:$0xff]
        %v1933 = vld [vmem:[%s261 + $0x2ff0] sm:$0xff]
        %v1934 = vld [vmem:[%s261 + $0x2ff8] sm:$0xff]
        %v1935 = vld [vmem:[%s261 + $0x3000] sm:$0xff]
        %v1936 = vld [vmem:[%s261 + $0x3008] sm:$0xff]
        %v1937 = vld [vmem:[%s261 + $0x3010] sm:$0xff]
        %v1938 = vld [vmem:[%s261 + $0x3018] sm:$0xff]
        %v1939 = vld [vmem:[%s261 + $0x3020] sm:$0xff]
        %v1940 = vld [vmem:[%s261 + $0x3028] sm:$0xff]
        %v1941 = vld [vmem:[%s261 + $0x3030] sm:$0xff]
        %v1942 = vld [vmem:[%s261 + $0x3038] sm:$0xff]
        %v1943 = vld [vmem:[%s261 + $0x3040] sm:$0xff]
        %v1944 = vld [vmem:[%s261 + $0x3048] sm:$0xff]
        %v1945 = vld [vmem:[%s261 + $0x3050] sm:$0xff]
        %v1946 = vld [vmem:[%s261 + $0x3058] sm:$0xff]
        %v1947 = vld [vmem:[%s261 + $0x3060] sm:$0xff]
        %v1948 = vld [vmem:[%s261 + $0x3068] sm:$0xff]
        %v1949 = vld [vmem:[%s261 + $0x3070] sm:$0xff]
        %v1950 = vld [vmem:[%s261 + $0x3078] sm:$0xff]
        %v1951 = vld [vmem:[%s261 + $0x3080] sm:$0xff]
        %v1952 = vld [vmem:[%s261 + $0x3088] sm:$0xff]
        %v1953 = vld [vmem:[%s261 + $0x3090] sm:$0xff]
        %v1954 = vld [vmem:[%s261 + $0x3098] sm:$0xff]
        %v1955 = vld [vmem:[%s261 + $0x30a0] sm:$0xff]
        %v1956 = vld [vmem:[%s261 + $0x30a8] sm:$0xff]
        %v1957 = vld [vmem:[%s261 + $0x30b0] sm:$0xff]
        %v1958 = vld [vmem:[%s261 + $0x30b8] sm:$0xff]
        %v1959 = vld [vmem:[%s261 + $0x30c0] sm:$0xff]
        %v1960 = vld [vmem:[%s261 + $0x30c8] sm:$0xff]
        %v1961 = vld [vmem:[%s261 + $0x30d0] sm:$0xff]
        %v1962 = vld [vmem:[%s261 + $0x30d8] sm:$0xff]
        %v1963 = vld [vmem:[%s261 + $0x30e0] sm:$0xff]
        %v1964 = vld [vmem:[%s261 + $0x30e8] sm:$0xff]
        %v1965 = vld [vmem:[%s261 + $0x30f0] sm:$0xff]
        %v1966 = vld [vmem:[%s261 + $0x30f8] sm:$0xff]
        %v1967 = vld [vmem:[%s261 + $0x3100] sm:$0xff]
        %v1968 = vld [vmem:[%s261 + $0x3108] sm:$0xff]
        %v1969 = vld [vmem:[%s261 + $0x3110] sm:$0xff]
        %v1970 = vld [vmem:[%s261 + $0x3118] sm:$0xff]
        %v1971 = vld [vmem:[%s261 + $0x3120] sm:$0xff]
        %v1972 = vld [vmem:[%s261 + $0x3128] sm:$0xff]
        %v1973 = vld [vmem:[%s261 + $0x3130] sm:$0xff]
        %v1974 = vld [vmem:[%s261 + $0x3138] sm:$0xff]
        %v1975 = vld [vmem:[%s261 + $0x3140] sm:$0xff]
        %v1976 = vld [vmem:[%s261 + $0x3148] sm:$0xff]
        %v1977 = vld [vmem:[%s261 + $0x3150] sm:$0xff]
        %v1978 = vld [vmem:[%s261 + $0x3158] sm:$0xff]
        %v1979 = vld [vmem:[%s261 + $0x3160] sm:$0xff]
        %v1980 = vld [vmem:[%s261 + $0x3168] sm:$0xff]
        %v1981 = vld [vmem:[%s261 + $0x3170] sm:$0xff]
        %v1982 = vld [vmem:[%s261 + $0x3178] sm:$0xff]
        %v1983 = vld [vmem:[%s261 + $0x3180] sm:$0xff]
        %v1984 = vld [vmem:[%s261 + $0x3188] sm:$0xff]
        %v1985 = vld [vmem:[%s261 + $0x3190] sm:$0xff]
        %v1986 = vld [vmem:[%s261 + $0x3198] sm:$0xff]
        %v1987 = vld [vmem:[%s261 + $0x31a0] sm:$0xff]
        %v1988 = vld [vmem:[%s261 + $0x31a8] sm:$0xff]
        %v1989 = vld [vmem:[%s261 + $0x31b0] sm:$0xff]
        %v1990 = vld [vmem:[%s261 + $0x31b8] sm:$0xff]
        %v1991 = vld [vmem:[%s261 + $0x31c0] sm:$0xff]
        %v1992 = vld [vmem:[%s261 + $0x31c8] sm:$0xff]
        %v1993 = vld [vmem:[%s261 + $0x31d0] sm:$0xff]
        %v1994 = vld [vmem:[%s261 + $0x31d8] sm:$0xff]
        %v1995 = vld [vmem:[%s261 + $0x31e0] sm:$0xff]
        %v1996 = vld [vmem:[%s261 + $0x31e8] sm:$0xff]
        %v1997 = vld [vmem:[%s261 + $0x31f0] sm:$0xff]
        %v1998 = vld [vmem:[%s261 + $0x31f8] sm:$0xff]
        %v1999 = vld [vmem:[%s261 + $0x3200] sm:$0xff]
        %v2000 = vld [vmem:[%s261 + $0x3208] sm:$0xff]
        %v2001 = vld [vmem:[%s261 + $0x3210] sm:$0xff]
        %v2002 = vld [vmem:[%s261 + $0x3218] sm:$0xff]
        %v2003 = vld [vmem:[%s261 + $0x3220] sm:$0xff]
        %v2004 = vld [vmem:[%s261 + $0x3228] sm:$0xff]
        %v2005 = vld [vmem:[%s261 + $0x3230] sm:$0xff]
        %v2006 = vld [vmem:[%s261 + $0x3238] sm:$0xff]
        %v2007 = vld [vmem:[%s261 + $0x3240] sm:$0xff]
        %v2008 = vld [vmem:[%s261 + $0x3248] sm:$0xff]
        %v2009 = vld [vmem:[%s261 + $0x3250] sm:$0xff]
        %v2010 = vld [vmem:[%s261 + $0x3258] sm:$0xff]
        %v2011 = vld [vmem:[%s261 + $0x3260] sm:$0xff]
        %v2012 = vld [vmem:[%s261 + $0x3268] sm:$0xff]
        %v2013 = vld [vmem:[%s261 + $0x3270] sm:$0xff]
        %v2014 = vld [vmem:[%s261 + $0x3278] sm:$0xff]
        %v2015 = vld [vmem:[%s261 + $0x3280] sm:$0xff]
        %v2016 = vld [vmem:[%s261 + $0x3288] sm:$0xff]
        %v2017 = vld [vmem:[%s261 + $0x3290] sm:$0xff]
        %v2018 = vld [vmem:[%s261 + $0x3298] sm:$0xff]
        %v2019 = vld [vmem:[%s261 + $0x32a0] sm:$0xff]
        %v2020 = vld [vmem:[%s261 + $0x32a8] sm:$0xff]
        %v2021 = vld [vmem:[%s261 + $0x32b0] sm:$0xff]
        %v2022 = vld [vmem:[%s261 + $0x32b8] sm:$0xff]
        %v2023 = vld [vmem:[%s261 + $0x32c0] sm:$0xff]
        %v2024 = vld [vmem:[%s261 + $0x32c8] sm:$0xff]
        %v2025 = vld [vmem:[%s261 + $0x32d0] sm:$0xff]
        %v2026 = vld [vmem:[%s261 + $0x32d8] sm:$0xff]
        %v2027 = vld [vmem:[%s261 + $0x32e0] sm:$0xff]
        %v2028 = vld [vmem:[%s261 + $0x32e8] sm:$0xff]
        %v2029 = vld [vmem:[%s261 + $0x32f0] sm:$0xff]
        %v2030 = vld [vmem:[%s261 + $0x32f8] sm:$0xff]
        %v2031 = vld [vmem:[%s261 + $0x3300] sm:$0xff]
        %v2032 = vld [vmem:[%s261 + $0x3308] sm:$0xff]
        %v2033 = vld [vmem:[%s261 + $0x3310] sm:$0xff]
        %v2034 = vld [vmem:[%s261 + $0x3318] sm:$0xff]
        %v2035 = vld [vmem:[%s261 + $0x3320] sm:$0xff]
        %v2036 = vld [vmem:[%s261 + $0x3328] sm:$0xff]
        %v2037 = vld [vmem:[%s261 + $0x3330] sm:$0xff]
        %v2038 = vld [vmem:[%s261 + $0x3338] sm:$0xff]
        %v2039 = vld [vmem:[%s261 + $0x3340] sm:$0xff]
        %v2040 = vld [vmem:[%s261 + $0x3348] sm:$0xff]
        %v2041 = vld [vmem:[%s261 + $0x3350] sm:$0xff]
        %v2042 = vld [vmem:[%s261 + $0x3358] sm:$0xff]
        %v2043 = vld [vmem:[%s261 + $0x3360] sm:$0xff]
        %v2044 = vld [vmem:[%s261 + $0x3368] sm:$0xff]
        %v2045 = vld [vmem:[%s261 + $0x3370] sm:$0xff]
        %v2046 = vld [vmem:[%s261 + $0x3378] sm:$0xff]
        %v2047 = vld [vmem:[%s261 + $0x3380] sm:$0xff]
        %v2048 = vld [vmem:[%s261 + $0x3388] sm:$0xff]
        %v2049 = vld [vmem:[%s261 + $0x3390] sm:$0xff]
        %v2050 = vld [vmem:[%s261 + $0x3398] sm:$0xff]
        %v2051 = vld [vmem:[%s261 + $0x33a0] sm:$0xff]
        %v2052 = vld [vmem:[%s261 + $0x33a8] sm:$0xff]
        %v2053 = vld [vmem:[%s261 + $0x33b0] sm:$0xff]
        %v2054 = vld [vmem:[%s261 + $0x33b8] sm:$0xff]
        %v2055 = vld [vmem:[%s261 + $0x33c0] sm:$0xff]
        %v2056 = vld [vmem:[%s261 + $0x33c8] sm:$0xff]
        %v2057 = vld [vmem:[%s261 + $0x33d0] sm:$0xff]
        %v2058 = vld [vmem:[%s261 + $0x33d8] sm:$0xff]
        %v2059 = vld [vmem:[%s261 + $0x33e0] sm:$0xff]
        %v2060 = vld [vmem:[%s261 + $0x33e8] sm:$0xff]
        %v2061 = vld [vmem:[%s261 + $0x33f0] sm:$0xff]
        %v2062 = vld [vmem:[%s261 + $0x33f8] sm:$0xff]
        %v2063 = vld [vmem:[%s261 + $0x3400] sm:$0xff]
        %v2064 = vld [vmem:[%s261 + $0x3408] sm:$0xff]
        %v2065 = vld [vmem:[%s261 + $0x3410] sm:$0xff]
        %v2066 = vld [vmem:[%s261 + $0x3418] sm:$0xff]
        %v2067 = vld [vmem:[%s261 + $0x3420] sm:$0xff]
        %v2068 = vld [vmem:[%s261 + $0x3428] sm:$0xff]
        %v2069 = vld [vmem:[%s261 + $0x3430] sm:$0xff]
        %v2070 = vld [vmem:[%s261 + $0x3438] sm:$0xff]
        %v2071 = vld [vmem:[%s261 + $0x3440] sm:$0xff]
        %v2072 = vld [vmem:[%s261 + $0x3448] sm:$0xff]
        %v2073 = vld [vmem:[%s261 + $0x3450] sm:$0xff]
        %v2074 = vld [vmem:[%s261 + $0x3458] sm:$0xff]
        %v2075 = vld [vmem:[%s261 + $0x3460] sm:$0xff]
        %v2076 = vld [vmem:[%s261 + $0x3468] sm:$0xff]
        %v2077 = vld [vmem:[%s261 + $0x3470] sm:$0xff]
        %v2078 = vld [vmem:[%s261 + $0x3478] sm:$0xff]
        %v2079 = vld [vmem:[%s261 + $0x3480] sm:$0xff]
        %v2080 = vld [vmem:[%s261 + $0x3488] sm:$0xff]
        %v2081 = vld [vmem:[%s261 + $0x3490] sm:$0xff]
        %v2082 = vld [vmem:[%s261 + $0x3498] sm:$0xff]
        %v2083 = vld [vmem:[%s261 + $0x34a0] sm:$0xff]
        %v2084 = vld [vmem:[%s261 + $0x34a8] sm:$0xff]
        %v2085 = vld [vmem:[%s261 + $0x34b0] sm:$0xff]
        %v2086 = vld [vmem:[%s261 + $0x34b8] sm:$0xff]
        %v2087 = vld [vmem:[%s261 + $0x34c0] sm:$0xff]
        %v2088 = vld [vmem:[%s261 + $0x34c8] sm:$0xff]
        %v2089 = vld [vmem:[%s261 + $0x34d0] sm:$0xff]
        %v2090 = vld [vmem:[%s261 + $0x34d8] sm:$0xff]
        %v2091 = vld [vmem:[%s261 + $0x34e0] sm:$0xff]
        %v2092 = vld [vmem:[%s261 + $0x34e8] sm:$0xff]
        %v2093 = vld [vmem:[%s261 + $0x34f0] sm:$0xff]
        %v2094 = vld [vmem:[%s261 + $0x34f8] sm:$0xff]
        %v2095 = vld [vmem:[%s261 + $0x3500] sm:$0xff]
        %v2096 = vld [vmem:[%s261 + $0x3508] sm:$0xff]
        %v2097 = vld [vmem:[%s261 + $0x3510] sm:$0xff]
        %v2098 = vld [vmem:[%s261 + $0x3518] sm:$0xff]
        %v2099 = vld [vmem:[%s261 + $0x3520] sm:$0xff]
        %v2100 = vld [vmem:[%s261 + $0x3528] sm:$0xff]
        %v2101 = vld [vmem:[%s261 + $0x3530] sm:$0xff]
        %v2102 = vld [vmem:[%s261 + $0x3538] sm:$0xff]
        %v2103 = vld [vmem:[%s261 + $0x3540] sm:$0xff]
        %v2104 = vld [vmem:[%s261 + $0x3548] sm:$0xff]
        %v2105 = vld [vmem:[%s261 + $0x3550] sm:$0xff]
        %v2106 = vld [vmem:[%s261 + $0x3558] sm:$0xff]
        %v2107 = vld [vmem:[%s261 + $0x3560] sm:$0xff]
        %v2108 = vld [vmem:[%s261 + $0x3568] sm:$0xff]
        %v2109 = vld [vmem:[%s261 + $0x3570] sm:$0xff]
        %v2110 = vld [vmem:[%s261 + $0x3578] sm:$0xff]
        %v2111 = vld [vmem:[%s261 + $0x3580] sm:$0xff]
        %v2112 = vld [vmem:[%s261 + $0x3588] sm:$0xff]
        %v2113 = vld [vmem:[%s261 + $0x3590] sm:$0xff]
        %v2114 = vld [vmem:[%s261 + $0x3598] sm:$0xff]
        %v2115 = vld [vmem:[%s261 + $0x35a0] sm:$0xff]
        %v2116 = vld [vmem:[%s261 + $0x35a8] sm:$0xff]
        %v2117 = vld [vmem:[%s261 + $0x35b0] sm:$0xff]
        %v2118 = vld [vmem:[%s261 + $0x35b8] sm:$0xff]
        %v2119 = vld [vmem:[%s261 + $0x35c0] sm:$0xff]
        %v2120 = vld [vmem:[%s261 + $0x35c8] sm:$0xff]
        %v2121 = vld [vmem:[%s261 + $0x35d0] sm:$0xff]
        %v2122 = vld [vmem:[%s261 + $0x35d8] sm:$0xff]
        %v2123 = vld [vmem:[%s261 + $0x35e0] sm:$0xff]
        %v2124 = vld [vmem:[%s261 + $0x35e8] sm:$0xff]
        %v2125 = vld [vmem:[%s261 + $0x35f0] sm:$0xff]
        %v2126 = vld [vmem:[%s261 + $0x35f8] sm:$0xff]
        %v2127 = vld [vmem:[%s261 + $0x3600] sm:$0xff]
        %v2128 = vld [vmem:[%s261 + $0x3608] sm:$0xff]
        %v2129 = vld [vmem:[%s261 + $0x3610] sm:$0xff]
        %v2130 = vld [vmem:[%s261 + $0x3618] sm:$0xff]
        %v2131 = vld [vmem:[%s261 + $0x3620] sm:$0xff]
        %v2132 = vld [vmem:[%s261 + $0x3628] sm:$0xff]
        %v2133 = vld [vmem:[%s261 + $0x3630] sm:$0xff]
        %v2134 = vld [vmem:[%s261 + $0x3638] sm:$0xff]
        %v2135 = vld [vmem:[%s261 + $0x3640] sm:$0xff]
        %v2136 = vld [vmem:[%s261 + $0x3648] sm:$0xff]
        %v2137 = vld [vmem:[%s261 + $0x3650] sm:$0xff]
        %v2138 = vld [vmem:[%s261 + $0x3658] sm:$0xff]
        %v2139 = vld [vmem:[%s261 + $0x3660] sm:$0xff]
        %v2140 = vld [vmem:[%s261 + $0x3668] sm:$0xff]
        %v2141 = vld [vmem:[%s261 + $0x3670] sm:$0xff]
        %v2142 = vld [vmem:[%s261 + $0x3678] sm:$0xff]
        %v2143 = vld [vmem:[%s261 + $0x3680] sm:$0xff]
        %v2144 = vld [vmem:[%s261 + $0x3688] sm:$0xff]
        %v2145 = vld [vmem:[%s261 + $0x3690] sm:$0xff]
        %v2146 = vld [vmem:[%s261 + $0x3698] sm:$0xff]
        %v2147 = vld [vmem:[%s261 + $0x36a0] sm:$0xff]
        %v2148 = vld [vmem:[%s261 + $0x36a8] sm:$0xff]
        %v2149 = vld [vmem:[%s261 + $0x36b0] sm:$0xff]
        %v2150 = vld [vmem:[%s261 + $0x36b8] sm:$0xff]
        %v2151 = vld [vmem:[%s261 + $0x36c0] sm:$0xff]
        %v2152 = vld [vmem:[%s261 + $0x36c8] sm:$0xff]
        %v2153 = vld [vmem:[%s261 + $0x36d0] sm:$0xff]
        %v2154 = vld [vmem:[%s261 + $0x36d8] sm:$0xff]
        %v2155 = vld [vmem:[%s261 + $0x36e0] sm:$0xff]
        %v2156 = vld [vmem:[%s261 + $0x36e8] sm:$0xff]
        %v2157 = vld [vmem:[%s261 + $0x36f0] sm:$0xff]
        %v2158 = vld [vmem:[%s261 + $0x36f8] sm:$0xff]
        %v2159 = vld [vmem:[%s261 + $0x3700] sm:$0xff]
        %v2160 = vld [vmem:[%s261 + $0x3708] sm:$0xff]
        %v2161 = vld [vmem:[%s261 + $0x3710] sm:$0xff]
        %v2162 = vld [vmem:[%s261 + $0x3718] sm:$0xff]
        %v2163 = vld [vmem:[%s261 + $0x3720] sm:$0xff]
        %v2164 = vld [vmem:[%s261 + $0x3728] sm:$0xff]
        %v2165 = vld [vmem:[%s261 + $0x3730] sm:$0xff]
        %v2166 = vld [vmem:[%s261 + $0x3738] sm:$0xff]
        %v2167 = vld [vmem:[%s261 + $0x3740] sm:$0xff]
        %v2168 = vld [vmem:[%s261 + $0x3748] sm:$0xff]
        %v2169 = vld [vmem:[%s261 + $0x3750] sm:$0xff]
        %v2170 = vld [vmem:[%s261 + $0x3758] sm:$0xff]
        %v2171 = vld [vmem:[%s261 + $0x3760] sm:$0xff]
        %v2172 = vld [vmem:[%s261 + $0x3768] sm:$0xff]
        %v2173 = vld [vmem:[%s261 + $0x3770] sm:$0xff]
        %v2174 = vld [vmem:[%s261 + $0x3778] sm:$0xff]
        %v2175 = vld [vmem:[%s261 + $0x3780] sm:$0xff]
        %v2176 = vld [vmem:[%s261 + $0x3788] sm:$0xff]
        %v2177 = vld [vmem:[%s261 + $0x3790] sm:$0xff]
        %v2178 = vld [vmem:[%s261 + $0x3798] sm:$0xff]
        %v2179 = vld [vmem:[%s261 + $0x37a0] sm:$0xff]
        %v2180 = vld [vmem:[%s261 + $0x37a8] sm:$0xff]
        %v2181 = vld [vmem:[%s261 + $0x37b0] sm:$0xff]
        %v2182 = vld [vmem:[%s261 + $0x37b8] sm:$0xff]
        %v2183 = vld [vmem:[%s261 + $0x37c0] sm:$0xff]
        %v2184 = vld [vmem:[%s261 + $0x37c8] sm:$0xff]
        %v2185 = vld [vmem:[%s261 + $0x37d0] sm:$0xff]
        %v2186 = vld [vmem:[%s261 + $0x37d8] sm:$0xff]
        %v2187 = vld [vmem:[%s261 + $0x37e0] sm:$0xff]
        %v2188 = vld [vmem:[%s261 + $0x37e8] sm:$0xff]
        %v2189 = vld [vmem:[%s261 + $0x37f0] sm:$0xff]
        %v2190 = vld [vmem:[%s261 + $0x37f8] sm:$0xff]
        %v2191 = vld [vmem:[%s261 + $0x3800] sm:$0xff]
        %v2192 = vld [vmem:[%s261 + $0x3808] sm:$0xff]
        %v2193 = vld [vmem:[%s261 + $0x3810] sm:$0xff]
        %v2194 = vld [vmem:[%s261 + $0x3818] sm:$0xff]
        %v2195 = vld [vmem:[%s261 + $0x3820] sm:$0xff]
        %v2196 = vld [vmem:[%s261 + $0x3828] sm:$0xff]
        %v2197 = vld [vmem:[%s261 + $0x3830] sm:$0xff]
        %v2198 = vld [vmem:[%s261 + $0x3838] sm:$0xff]
        %v2199 = vld [vmem:[%s261 + $0x3840] sm:$0xff]
        %v2200 = vld [vmem:[%s261 + $0x3848] sm:$0xff]
        %v2201 = vld [vmem:[%s261 + $0x3850] sm:$0xff]
        %v2202 = vld [vmem:[%s261 + $0x3858] sm:$0xff]
        %v2203 = vld [vmem:[%s261 + $0x3860] sm:$0xff]
        %v2204 = vld [vmem:[%s261 + $0x3868] sm:$0xff]
        %v2205 = vld [vmem:[%s261 + $0x3870] sm:$0xff]
        %v2206 = vld [vmem:[%s261 + $0x3878] sm:$0xff]
        %v2207 = vld [vmem:[%s261 + $0x3880] sm:$0xff]
        %v2208 = vld [vmem:[%s261 + $0x3888] sm:$0xff]
        %v2209 = vld [vmem:[%s261 + $0x3890] sm:$0xff]
        %v2210 = vld [vmem:[%s261 + $0x3898] sm:$0xff]
        %v2211 = vld [vmem:[%s261 + $0x38a0] sm:$0xff]
        %v2212 = vld [vmem:[%s261 + $0x38a8] sm:$0xff]
        %v2213 = vld [vmem:[%s261 + $0x38b0] sm:$0xff]
        %v2214 = vld [vmem:[%s261 + $0x38b8] sm:$0xff]
        %v2215 = vld [vmem:[%s261 + $0x38c0] sm:$0xff]
        %v2216 = vld [vmem:[%s261 + $0x38c8] sm:$0xff]
        %v2217 = vld [vmem:[%s261 + $0x38d0] sm:$0xff]
        %v2218 = vld [vmem:[%s261 + $0x38d8] sm:$0xff]
        %v2219 = vld [vmem:[%s261 + $0x38e0] sm:$0xff]
        %v2220 = vld [vmem:[%s261 + $0x38e8] sm:$0xff]
        %v2221 = vld [vmem:[%s261 + $0x38f0] sm:$0xff]
        %v2222 = vld [vmem:[%s261 + $0x38f8] sm:$0xff]
        %v2223 = vld [vmem:[%s261 + $0x3900] sm:$0xff]
        %v2224 = vld [vmem:[%s261 + $0x3908] sm:$0xff]
        %v2225 = vld [vmem:[%s261 + $0x3910] sm:$0xff]
        %v2226 = vld [vmem:[%s261 + $0x3918] sm:$0xff]
        %v2227 = vld [vmem:[%s261 + $0x3920] sm:$0xff]
        %v2228 = vld [vmem:[%s261 + $0x3928] sm:$0xff]
        %v2229 = vld [vmem:[%s261 + $0x3930] sm:$0xff]
        %v2230 = vld [vmem:[%s261 + $0x3938] sm:$0xff]
        %v2231 = vld [vmem:[%s261 + $0x3940] sm:$0xff]
        %v2232 = vld [vmem:[%s261 + $0x3948] sm:$0xff]
        %v2233 = vld [vmem:[%s261 + $0x3950] sm:$0xff]
        %v2234 = vld [vmem:[%s261 + $0x3958] sm:$0xff]
        %v2235 = vld [vmem:[%s261 + $0x3960] sm:$0xff]
        %v2236 = vld [vmem:[%s261 + $0x3968] sm:$0xff]
        %v2237 = vld [vmem:[%s261 + $0x3970] sm:$0xff]
        %v2238 = vld [vmem:[%s261 + $0x3978] sm:$0xff]
        %v2239 = vld [vmem:[%s261 + $0x3980] sm:$0xff]
        %v2240 = vld [vmem:[%s261 + $0x3988] sm:$0xff]
        %v2241 = vld [vmem:[%s261 + $0x3990] sm:$0xff]
        %v2242 = vld [vmem:[%s261 + $0x3998] sm:$0xff]
        %v2243 = vld [vmem:[%s261 + $0x39a0] sm:$0xff]
        %v2244 = vld [vmem:[%s261 + $0x39a8] sm:$0xff]
        %v2245 = vld [vmem:[%s261 + $0x39b0] sm:$0xff]
        %v2246 = vld [vmem:[%s261 + $0x39b8] sm:$0xff]
        %v2247 = vld [vmem:[%s261 + $0x39c0] sm:$0xff]
        %v2248 = vld [vmem:[%s261 + $0x39c8] sm:$0xff]
        %v2249 = vld [vmem:[%s261 + $0x39d0] sm:$0xff]
        %v2250 = vld [vmem:[%s261 + $0x39d8] sm:$0xff]
        %v2251 = vld [vmem:[%s261 + $0x39e0] sm:$0xff]
        %v2252 = vld [vmem:[%s261 + $0x39e8] sm:$0xff]
        %v2253 = vld [vmem:[%s261 + $0x39f0] sm:$0xff]
        %v2254 = vld [vmem:[%s261 + $0x39f8] sm:$0xff]
        %v2255 = vld [vmem:[%s261 + $0x3a00] sm:$0xff]
        %v2256 = vld [vmem:[%s261 + $0x3a08] sm:$0xff]
        %v2257 = vld [vmem:[%s261 + $0x3a10] sm:$0xff]
        %v2258 = vld [vmem:[%s261 + $0x3a18] sm:$0xff]
        %v2259 = vld [vmem:[%s261 + $0x3a20] sm:$0xff]
        %v2260 = vld [vmem:[%s261 + $0x3a28] sm:$0xff]
        %v2261 = vld [vmem:[%s261 + $0x3a30] sm:$0xff]
        %v2262 = vld [vmem:[%s261 + $0x3a38] sm:$0xff]
        %v2263 = vld [vmem:[%s261 + $0x3a40] sm:$0xff]
        %v2264 = vld [vmem:[%s261 + $0x3a48] sm:$0xff]
        %v2265 = vld [vmem:[%s261 + $0x3a50] sm:$0xff]
        %v2266 = vld [vmem:[%s261 + $0x3a58] sm:$0xff]
        %v2267 = vld [vmem:[%s261 + $0x3a60] sm:$0xff]
        %v2268 = vld [vmem:[%s261 + $0x3a68] sm:$0xff]
        %v2269 = vld [vmem:[%s261 + $0x3a70] sm:$0xff]
        %v2270 = vld [vmem:[%s261 + $0x3a78] sm:$0xff]
        %v2271 = vld [vmem:[%s261 + $0x3a80] sm:$0xff]
        %v2272 = vld [vmem:[%s261 + $0x3a88] sm:$0xff]
        %v2273 = vld [vmem:[%s261 + $0x3a90] sm:$0xff]
        %v2274 = vld [vmem:[%s261 + $0x3a98] sm:$0xff]
        %v2275 = vld [vmem:[%s261 + $0x3aa0] sm:$0xff]
        %v2276 = vld [vmem:[%s261 + $0x3aa8] sm:$0xff]
        %v2277 = vld [vmem:[%s261 + $0x3ab0] sm:$0xff]
        %v2278 = vld [vmem:[%s261 + $0x3ab8] sm:$0xff]
        %v2279 = vld [vmem:[%s261 + $0x3ac0] sm:$0xff]
        %v2280 = vld [vmem:[%s261 + $0x3ac8] sm:$0xff]
        %v2281 = vld [vmem:[%s261 + $0x3ad0] sm:$0xff]
        %v2282 = vld [vmem:[%s261 + $0x3ad8] sm:$0xff]
        %v2283 = vld [vmem:[%s261 + $0x3ae0] sm:$0xff]
        %v2284 = vld [vmem:[%s261 + $0x3ae8] sm:$0xff]
        %v2285 = vld [vmem:[%s261 + $0x3af0] sm:$0xff]
        %v2286 = vld [vmem:[%s261 + $0x3af8] sm:$0xff]
        %v2287 = vld [vmem:[%s261 + $0x3b00] sm:$0xff]
        %v2288 = vld [vmem:[%s261 + $0x3b08] sm:$0xff]
        %v2289 = vld [vmem:[%s261 + $0x3b10] sm:$0xff]
        %v2290 = vld [vmem:[%s261 + $0x3b18] sm:$0xff]
        %v2291 = vld [vmem:[%s261 + $0x3b20] sm:$0xff]
        %v2292 = vld [vmem:[%s261 + $0x3b28] sm:$0xff]
        %v2293 = vld [vmem:[%s261 + $0x3b30] sm:$0xff]
        %v2294 = vld [vmem:[%s261 + $0x3b38] sm:$0xff]
        %v2295 = vld [vmem:[%s261 + $0x3b40] sm:$0xff]
        %v2296 = vld [vmem:[%s261 + $0x3b48] sm:$0xff]
        %v2297 = vld [vmem:[%s261 + $0x3b50] sm:$0xff]
        %v2298 = vld [vmem:[%s261 + $0x3b58] sm:$0xff]
        %v2299 = vld [vmem:[%s261 + $0x3b60] sm:$0xff]
        %v2300 = vld [vmem:[%s261 + $0x3b68] sm:$0xff]
        %v2301 = vld [vmem:[%s261 + $0x3b70] sm:$0xff]
        %v2302 = vld [vmem:[%s261 + $0x3b78] sm:$0xff]
        %v2303 = vld [vmem:[%s261 + $0x3b80] sm:$0xff]
        %v2304 = vld [vmem:[%s261 + $0x3b88] sm:$0xff]
        %v2305 = vld [vmem:[%s261 + $0x3b90] sm:$0xff]
        %v2306 = vld [vmem:[%s261 + $0x3b98] sm:$0xff]
        %v2307 = vld [vmem:[%s261 + $0x3ba0] sm:$0xff]
        %v2308 = vld [vmem:[%s261 + $0x3ba8] sm:$0xff]
        %v2309 = vld [vmem:[%s261 + $0x3bb0] sm:$0xff]
        %v2310 = vld [vmem:[%s261 + $0x3bb8] sm:$0xff]
        %v2311 = vld [vmem:[%s261 + $0x3bc0] sm:$0xff]
        %v2312 = vld [vmem:[%s261 + $0x3bc8] sm:$0xff]
        %v2313 = vld [vmem:[%s261 + $0x3bd0] sm:$0xff]
        %v2314 = vld [vmem:[%s261 + $0x3bd8] sm:$0xff]
        %v2315 = vld [vmem:[%s261 + $0x3be0] sm:$0xff]
        %v2316 = vld [vmem:[%s261 + $0x3be8] sm:$0xff]
        %v2317 = vld [vmem:[%s261 + $0x3bf0] sm:$0xff]
        %v2318 = vld [vmem:[%s261 + $0x3bf8] sm:$0xff]
        %v2319 = vld [vmem:[%s261 + $0x3c00] sm:$0xff]
        %v2320 = vld [vmem:[%s261 + $0x3c08] sm:$0xff]
        %v2321 = vld [vmem:[%s261 + $0x3c10] sm:$0xff]
        %v2322 = vld [vmem:[%s261 + $0x3c18] sm:$0xff]
        %v2323 = vld [vmem:[%s261 + $0x3c20] sm:$0xff]
        %v2324 = vld [vmem:[%s261 + $0x3c28] sm:$0xff]
        %v2325 = vld [vmem:[%s261 + $0x3c30] sm:$0xff]
        %v2326 = vld [vmem:[%s261 + $0x3c38] sm:$0xff]
        %v2327 = vld [vmem:[%s261 + $0x3c40] sm:$0xff]
        %v2328 = vld [vmem:[%s261 + $0x3c48] sm:$0xff]
        %v2329 = vld [vmem:[%s261 + $0x3c50] sm:$0xff]
        %v2330 = vld [vmem:[%s261 + $0x3c58] sm:$0xff]
        %v2331 = vld [vmem:[%s261 + $0x3c60] sm:$0xff]
        %v2332 = vld [vmem:[%s261 + $0x3c68] sm:$0xff]
        %v2333 = vld [vmem:[%s261 + $0x3c70] sm:$0xff]
        %v2334 = vld [vmem:[%s261 + $0x3c78] sm:$0xff]
        %v2335 = vld [vmem:[%s261 + $0x3c80] sm:$0xff]
        %v2336 = vld [vmem:[%s261 + $0x3c88] sm:$0xff]
        %v2337 = vld [vmem:[%s261 + $0x3c90] sm:$0xff]
        %v2338 = vld [vmem:[%s261 + $0x3c98] sm:$0xff]
        %v2339 = vld [vmem:[%s261 + $0x3ca0] sm:$0xff]
        %v2340 = vld [vmem:[%s261 + $0x3ca8] sm:$0xff]
        %v2341 = vld [vmem:[%s261 + $0x3cb0] sm:$0xff]
        %v2342 = vld [vmem:[%s261 + $0x3cb8] sm:$0xff]
        %v2343 = vld [vmem:[%s261 + $0x3cc0] sm:$0xff]
        %v2344 = vld [vmem:[%s261 + $0x3cc8] sm:$0xff]
        %v2345 = vld [vmem:[%s261 + $0x3cd0] sm:$0xff]
        %v2346 = vld [vmem:[%s261 + $0x3cd8] sm:$0xff]
        %v2347 = vld [vmem:[%s261 + $0x3ce0] sm:$0xff]
        %v2348 = vld [vmem:[%s261 + $0x3ce8] sm:$0xff]
        %v2349 = vld [vmem:[%s261 + $0x3cf0] sm:$0xff]
        %v2350 = vld [vmem:[%s261 + $0x3cf8] sm:$0xff]
        %v2351 = vld [vmem:[%s261 + $0x3d00] sm:$0xff]
        %v2352 = vld [vmem:[%s261 + $0x3d08] sm:$0xff]
        %v2353 = vld [vmem:[%s261 + $0x3d10] sm:$0xff]
        %v2354 = vld [vmem:[%s261 + $0x3d18] sm:$0xff]
        %v2355 = vld [vmem:[%s261 + $0x3d20] sm:$0xff]
        %v2356 = vld [vmem:[%s261 + $0x3d28] sm:$0xff]
        %v2357 = vld [vmem:[%s261 + $0x3d30] sm:$0xff]
        %v2358 = vld [vmem:[%s261 + $0x3d38] sm:$0xff]
        %v2359 = vld [vmem:[%s261 + $0x3d40] sm:$0xff]
        %v2360 = vld [vmem:[%s261 + $0x3d48] sm:$0xff]
        %v2361 = vld [vmem:[%s261 + $0x3d50] sm:$0xff]
        %v2362 = vld [vmem:[%s261 + $0x3d58] sm:$0xff]
        %v2363 = vld [vmem:[%s261 + $0x3d60] sm:$0xff]
        %v2364 = vld [vmem:[%s261 + $0x3d68] sm:$0xff]
        %v2365 = vld [vmem:[%s261 + $0x3d70] sm:$0xff]
        %v2366 = vld [vmem:[%s261 + $0x3d78] sm:$0xff]
        %v2367 = vld [vmem:[%s261 + $0x3d80] sm:$0xff]
        %v2368 = vld [vmem:[%s261 + $0x3d88] sm:$0xff]
        %v2369 = vld [vmem:[%s261 + $0x3d90] sm:$0xff]
        %v2370 = vld [vmem:[%s261 + $0x3d98] sm:$0xff]
        %v2371 = vld [vmem:[%s261 + $0x3da0] sm:$0xff]
        %v2372 = vld [vmem:[%s261 + $0x3da8] sm:$0xff]
        %v2373 = vld [vmem:[%s261 + $0x3db0] sm:$0xff]
        %v2374 = vld [vmem:[%s261 + $0x3db8] sm:$0xff]
        %v2375 = vld [vmem:[%s261 + $0x3dc0] sm:$0xff]
        %v2376 = vld [vmem:[%s261 + $0x3dc8] sm:$0xff]
        %v2377 = vld [vmem:[%s261 + $0x3dd0] sm:$0xff]
        %v2378 = vld [vmem:[%s261 + $0x3dd8] sm:$0xff]
        %v2379 = vld [vmem:[%s261 + $0x3de0] sm:$0xff]
        %v2380 = vld [vmem:[%s261 + $0x3de8] sm:$0xff]
        %v2381 = vld [vmem:[%s261 + $0x3df0] sm:$0xff]
        %v2382 = vld [vmem:[%s261 + $0x3df8] sm:$0xff]
        %v2383 = vld [vmem:[%s261 + $0x3e00] sm:$0xff]
        %v2384 = vld [vmem:[%s261 + $0x3e08] sm:$0xff]
        %v2385 = vld [vmem:[%s261 + $0x3e10] sm:$0xff]
        %v2386 = vld [vmem:[%s261 + $0x3e18] sm:$0xff]
        %v2387 = vld [vmem:[%s261 + $0x3e20] sm:$0xff]
        %v2388 = vld [vmem:[%s261 + $0x3e28] sm:$0xff]
        %v2389 = vld [vmem:[%s261 + $0x3e30] sm:$0xff]
        %v2390 = vld [vmem:[%s261 + $0x3e38] sm:$0xff]
        %v2391 = vld [vmem:[%s261 + $0x3e40] sm:$0xff]
        %v2392 = vld [vmem:[%s261 + $0x3e48] sm:$0xff]
        %v2393 = vld [vmem:[%s261 + $0x3e50] sm:$0xff]
        %v2394 = vld [vmem:[%s261 + $0x3e58] sm:$0xff]
        %v2395 = vld [vmem:[%s261 + $0x3e60] sm:$0xff]
        %v2396 = vld [vmem:[%s261 + $0x3e68] sm:$0xff]
        %v2397 = vld [vmem:[%s261 + $0x3e70] sm:$0xff]
        %v2398 = vld [vmem:[%s261 + $0x3e78] sm:$0xff]
        %v2399 = vld [vmem:[%s261 + $0x3e80] sm:$0xff]
        %v2400 = vld [vmem:[%s261 + $0x3e88] sm:$0xff]
        %v2401 = vld [vmem:[%s261 + $0x3e90] sm:$0xff]
        %v2402 = vld [vmem:[%s261 + $0x3e98] sm:$0xff]
        %v2403 = vld [vmem:[%s261 + $0x3ea0] sm:$0xff]
        %v2404 = vld [vmem:[%s261 + $0x3ea8] sm:$0xff]
        %v2405 = vld [vmem:[%s261 + $0x3eb0] sm:$0xff]
        %v2406 = vld [vmem:[%s261 + $0x3eb8] sm:$0xff]
        %v2407 = vld [vmem:[%s261 + $0x3ec0] sm:$0xff]
        %v2408 = vld [vmem:[%s261 + $0x3ec8] sm:$0xff]
        %v2409 = vld [vmem:[%s261 + $0x3ed0] sm:$0xff]
        %v2410 = vld [vmem:[%s261 + $0x3ed8] sm:$0xff]
        %v2411 = vld [vmem:[%s261 + $0x3ee0] sm:$0xff]
        %v2412 = vld [vmem:[%s261 + $0x3ee8] sm:$0xff]
        %v2413 = vld [vmem:[%s261 + $0x3ef0] sm:$0xff]
        %v2414 = vld [vmem:[%s261 + $0x3ef8] sm:$0xff]
        %v2415 = vld [vmem:[%s261 + $0x3f00] sm:$0xff]
        %v2416 = vld [vmem:[%s261 + $0x3f08] sm:$0xff]
        %v2417 = vld [vmem:[%s261 + $0x3f10] sm:$0xff]
        %v2418 = vld [vmem:[%s261 + $0x3f18] sm:$0xff]
        %v2419 = vld [vmem:[%s261 + $0x3f20] sm:$0xff]
        %v2420 = vld [vmem:[%s261 + $0x3f28] sm:$0xff]
        %v2421 = vld [vmem:[%s261 + $0x3f30] sm:$0xff]
        %v2422 = vld [vmem:[%s261 + $0x3f38] sm:$0xff]
        %v2423 = vld [vmem:[%s261 + $0x3f40] sm:$0xff]
        %v2424 = vld [vmem:[%s261 + $0x3f48] sm:$0xff]
        %v2425 = vld [vmem:[%s261 + $0x3f50] sm:$0xff]
        %v2426 = vld [vmem:[%s261 + $0x3f58] sm:$0xff]
        %v2427 = vld [vmem:[%s261 + $0x3f60] sm:$0xff]
        %v2428 = vld [vmem:[%s261 + $0x3f68] sm:$0xff]
        %v2429 = vld [vmem:[%s261 + $0x3f70] sm:$0xff]
        %v2430 = vld [vmem:[%s261 + $0x3f78] sm:$0xff]
        %v2431 = vld [vmem:[%s261 + $0x3f80] sm:$0xff]
        %v2432 = vld [vmem:[%s261 + $0x3f88] sm:$0xff]
        %v2433 = vld [vmem:[%s261 + $0x3f90] sm:$0xff]
        %v2434 = vld [vmem:[%s261 + $0x3f98] sm:$0xff]
        %v2435 = vld [vmem:[%s261 + $0x3fa0] sm:$0xff]
        %v2436 = vld [vmem:[%s261 + $0x3fa8] sm:$0xff]
        %v2437 = vld [vmem:[%s261 + $0x3fb0] sm:$0xff]
        %v2438 = vld [vmem:[%s261 + $0x3fb8] sm:$0xff]
        %v2439 = vld [vmem:[%s261 + $0x3fc0] sm:$0xff]
        %v2440 = vld [vmem:[%s261 + $0x3fc8] sm:$0xff]
        %v2441 = vld [vmem:[%s261 + $0x3fd0] sm:$0xff]
        %v2442 = vld [vmem:[%s261 + $0x3fd8] sm:$0xff]
        %v2443 = vld [vmem:[%s261 + $0x3fe0] sm:$0xff]
        %v2444 = vld [vmem:[%s261 + $0x3fe8] sm:$0xff]
        %v2445 = vld [vmem:[%s261 + $0x3ff0] sm:$0xff]
        %v2446 = vld [vmem:[%s261 + $0x3ff8] sm:$0xff]
        %2447 = vmatprep.subr.mxu0 %v880
        %2448 = vmatpush1.msra.mxu0 %v879
        %2449 = vmatprep.subr.mxu0 %v848
        %2450 = vmatpush1.msra.mxu0 %v847
        %2451 = vmatprep.subr.mxu0 %v816
        %2452 = vmatpush1.msra.mxu0 %v815
        %2453 = vmatprep.subr.mxu0 %v784
        %2454 = vmatpush1.msra.mxu0 %v783
        %2455 = vmatprep.subr.mxu0 %v752
        %2456 = vmatpush1.msra.mxu0 %v751
        %2457 = vmatprep.subr.mxu0 %v720
        %2458 = vmatpush1.msra.mxu0 %v719
        %2459 = vmatprep.subr.mxu0 %v688
        %2460 = vmatpush1.msra.mxu0 %v687
        %2461 = vmatprep.subr.mxu0 %v656
        %2462 = vmatpush1.msra.mxu0 %v655
        %2463 = vmatprep.subr.mxu0 %v624
        %2464 = vmatpush1.msra.mxu0 %v623
        %2465 = vmatprep.subr.mxu0 %v592
        %2466 = vmatpush1.msra.mxu0 %v591
        %2467 = vmatprep.subr.mxu0 %v560
        %2468 = vmatpush1.msra.mxu0 %v559
        %2469 = vmatprep.subr.mxu0 %v528
        %2470 = vmatpush1.msra.mxu0 %v527
        %2471 = vmatprep.subr.mxu0 %v496
        %2472 = vmatpush1.msra.mxu0 %v495
        %2473 = vmatprep.subr.mxu0 %v464
        %2474 = vmatpush1.msra.mxu0 %v463
        %2475 = vmatprep.subr.mxu0 %v432
        %2476 = vmatpush1.msra.mxu0 %v431
        %2477 = vmatprep.subr.mxu0 %v400
        %2478 = vmatpush1.msra.mxu0 %v399
        %2479 = vmatprep.subr.mxu0 %v1392
        %2480 = vmatpush2.msra.mxu0 %v1391
        %2481 = vmatprep.subr.mxu0 %v1360
        %2482 = vmatpush2.msra.mxu0 %v1359
        %2483 = vmatprep.subr.mxu0 %v1328
        %2484 = vmatpush2.msra.mxu0 %v1327
        %2485 = vmatprep.subr.mxu0 %v1296
        %2486 = vmatpush2.msra.mxu0 %v1295
        %2487 = vmatprep.subr.mxu0 %v1264
        %2488 = vmatpush2.msra.mxu0 %v1263
        %2489 = vmatprep.subr.mxu0 %v1232
        %2490 = vmatpush2.msra.mxu0 %v1231
        %2491 = vmatprep.subr.mxu0 %v1200
        %2492 = vmatpush2.msra.mxu0 %v1199
        %2493 = vmatprep.subr.mxu0 %v1168
        %2494 = vmatpush2.msra.mxu0 %v1167
        %2495 = vmatprep.subr.mxu0 %v1136
        %2496 = vmatpush2.msra.mxu0 %v1135
        %2497 = vmatprep.subr.mxu0 %v1104
        %2498 = vmatpush2.msra.mxu0 %v1103
        %2499 = vmatprep.subr.mxu0 %v1072
        %2500 = vmatpush2.msra.mxu0 %v1071
        %2501 = vmatprep.subr.mxu0 %v1040
        %2502 = vmatpush2.msra.mxu0 %v1039
        %2503 = vmatprep.subr.mxu0 %v1008
        %2504 = vmatpush2.msra.mxu0 %v1007
        %2505 = vmatprep.subr.mxu0 %v976
        %2506 = vmatpush2.msra.mxu0 %v975
        %2507 = vmatprep.subr.mxu0 %v944
        %2508 = vmatpush2.msra.mxu0 %v943
        %2509 = vmatprep.subr.mxu0 %v912
        %2510 = vmatpush2.msra.mxu0 %v911
        %2511 = vmatprep.mubr.f32.mxu0 %v364
        %2512 = vmatmul.mubr.f32.gmra.mxu0 %v363
        %v2513 = vpop.f32.mrf.mxu0
        %v2514 = vadd.f32 0.0, %v2513
        %v2515 = vpop.f32.mrf.mxu0
        %v2516 = vadd.f32 0.0, %v2515
        %2517 = vdwg.mxu0
        %2518 = vmatprep.subr.mxu0 %v1904
        %2519 = vmatpush1.msra.mxu0 %v1903
        %2520 = vmatprep.subr.mxu0 %v1872
        %2521 = vmatpush1.msra.mxu0 %v1871
        %2522 = vmatprep.subr.mxu0 %v1840
        %2523 = vmatpush1.msra.mxu0 %v1839
        %2524 = vmatprep.subr.mxu0 %v1808
        %2525 = vmatpush1.msra.mxu0 %v1807
        %2526 = vmatprep.subr.mxu0 %v1776
        %2527 = vmatpush1.msra.mxu0 %v1775
        %2528 = vmatprep.subr.mxu0 %v1744
        %2529 = vmatpush1.msra.mxu0 %v1743
        %2530 = vmatprep.subr.mxu0 %v1712
        %2531 = vmatpush1.msra.mxu0 %v1711
        %2532 = vmatprep.subr.mxu0 %v1680
        %2533 = vmatpush1.msra.mxu0 %v1679
        %2534 = vmatprep.subr.mxu0 %v1648
        %2535 = vmatpush1.msra.mxu0 %v1647
        %2536 = vmatprep.subr.mxu0 %v1616
        %2537 = vmatpush1.msra.mxu0 %v1615
        %2538 = vmatprep.subr.mxu0 %v1584
        %2539 = vmatpush1.msra.mxu0 %v1583
        %2540 = vmatprep.subr.mxu0 %v1552
        %2541 = vmatpush1.msra.mxu0 %v1551
        %2542 = vmatprep.subr.mxu0 %v1520
        %2543 = vmatpush1.msra.mxu0 %v1519
        %2544 = vmatprep.subr.mxu0 %v1488
        %2545 = vmatpush1.msra.mxu0 %v1487
        %2546 = vmatprep.subr.mxu0 %v1456
        %2547 = vmatpush1.msra.mxu0 %v1455
        %2548 = vmatprep.subr.mxu0 %v1424
        %2549 = vmatpush1.msra.mxu0 %v1423
        %2550 = vmatprep.subr.mxu0 %v2416
        %2551 = vmatpush2.msra.mxu0 %v2415
        %2552 = vmatprep.subr.mxu0 %v2384
        %2553 = vmatpush2.msra.mxu0 %v2383
        %2554 = vmatprep.subr.mxu0 %v2352
        %2555 = vmatpush2.msra.mxu0 %v2351
        %2556 = vmatprep.subr.mxu0 %v2320
        %2557 = vmatpush2.msra.mxu0 %v2319
        %2558 = vmatprep.subr.mxu0 %v2288
        %2559 = vmatpush2.msra.mxu0 %v2287
        %2560 = vmatprep.subr.mxu0 %v2256
        %2561 = vmatpush2.msra.mxu0 %v2255
        %2562 = vmatprep.subr.mxu0 %v2224
        %2563 = vmatpush2.msra.mxu0 %v2223
        %2564 = vmatprep.subr.mxu0 %v2192
        %2565 = vmatpush2.msra.mxu0 %v2191
        %2566 = vmatprep.subr.mxu0 %v2160
        %2567 = vmatpush2.msra.mxu0 %v2159
        %2568 = vmatprep.subr.mxu0 %v2128
        %2569 = vmatpush2.msra.mxu0 %v2127
        %2570 = vmatprep.subr.mxu0 %v2096
        %2571 = vmatpush2.msra.mxu0 %v2095
        %2572 = vmatprep.subr.mxu0 %v2064
        %2573 = vmatpush2.msra.mxu0 %v2063
        %2574 = vmatprep.subr.mxu0 %v2032
        %2575 = vmatpush2.msra.mxu0 %v2031
        %2576 = vmatprep.subr.mxu0 %v2000
        %2577 = vmatpush2.msra.mxu0 %v1999
        %2578 = vmatprep.subr.mxu0 %v1968
        %2579 = vmatpush2.msra.mxu0 %v1967
        %2580 = vmatprep.subr.mxu0 %v1936
        %2581 = vmatpush2.msra.mxu0 %v1935
        %2582 = vmatprep.mubr.f32.mxu0 %v366
        %2583 = vmatmul.mubr.f32.gmra.mxu0 %v365
        %v2584 = vpop.f32.mrf.mxu0
        %v2585 = vadd.f32 %v2514, %v2584
        %v2586 = vpop.f32.mrf.mxu0
        %v2587 = vadd.f32 %v2516, %v2586
        %2588 = vdwg.mxu0
        %2589 = vmatprep.subr.mxu0 %v882
        %2590 = vmatpush1.msra.mxu0 %v881
        %2591 = vmatprep.subr.mxu0 %v850
        %2592 = vmatpush1.msra.mxu0 %v849
        %2593 = vmatprep.subr.mxu0 %v818
        %2594 = vmatpush1.msra.mxu0 %v817
        %2595 = vmatprep.subr.mxu0 %v786
        %2596 = vmatpush1.msra.mxu0 %v785
        %2597 = vmatprep.subr.mxu0 %v754
        %2598 = vmatpush1.msra.mxu0 %v753
        %2599 = vmatprep.subr.mxu0 %v722
        %2600 = vmatpush1.msra.mxu0 %v721
        %2601 = vmatprep.subr.mxu0 %v690
        %2602 = vmatpush1.msra.mxu0 %v689
        %2603 = vmatprep.subr.mxu0 %v658
        %2604 = vmatpush1.msra.mxu0 %v657
        %2605 = vmatprep.subr.mxu0 %v626
        %2606 = vmatpush1.msra.mxu0 %v625
        %2607 = vmatprep.subr.mxu0 %v594
        %2608 = vmatpush1.msra.mxu0 %v593
        %2609 = vmatprep.subr.mxu0 %v562
        %2610 = vmatpush1.msra.mxu0 %v561
        %2611 = vmatprep.subr.mxu0 %v530
        %2612 = vmatpush1.msra.mxu0 %v529
        %2613 = vmatprep.subr.mxu0 %v498
        %2614 = vmatpush1.msra.mxu0 %v497
        %2615 = vmatprep.subr.mxu0 %v466
        %2616 = vmatpush1.msra.mxu0 %v465
        %2617 = vmatprep.subr.mxu0 %v434
        %2618 = vmatpush1.msra.mxu0 %v433
        %2619 = vmatprep.subr.mxu0 %v402
        %2620 = vmatpush1.msra.mxu0 %v401
        %2621 = vmatprep.subr.mxu0 %v1394
        %2622 = vmatpush2.msra.mxu0 %v1393
        %2623 = vmatprep.subr.mxu0 %v1362
        %2624 = vmatpush2.msra.mxu0 %v1361
        %2625 = vmatprep.subr.mxu0 %v1330
        %2626 = vmatpush2.msra.mxu0 %v1329
        %2627 = vmatprep.subr.mxu0 %v1298
        %2628 = vmatpush2.msra.mxu0 %v1297
        %2629 = vmatprep.subr.mxu0 %v1266
        %2630 = vmatpush2.msra.mxu0 %v1265
        %2631 = vmatprep.subr.mxu0 %v1234
        %2632 = vmatpush2.msra.mxu0 %v1233
        %2633 = vmatprep.subr.mxu0 %v1202
        %2634 = vmatpush2.msra.mxu0 %v1201
        %2635 = vmatprep.subr.mxu0 %v1170
        %2636 = vmatpush2.msra.mxu0 %v1169
        %2637 = vmatprep.subr.mxu0 %v1138
        %2638 = vmatpush2.msra.mxu0 %v1137
        %2639 = vmatprep.subr.mxu0 %v1106
        %2640 = vmatpush2.msra.mxu0 %v1105
        %2641 = vmatprep.subr.mxu0 %v1074
        %2642 = vmatpush2.msra.mxu0 %v1073
        %2643 = vmatprep.subr.mxu0 %v1042
        %2644 = vmatpush2.msra.mxu0 %v1041
        %2645 = vmatprep.subr.mxu0 %v1010
        %2646 = vmatpush2.msra.mxu0 %v1009
        %2647 = vmatprep.subr.mxu0 %v978
        %2648 = vmatpush2.msra.mxu0 %v977
        %2649 = vmatprep.subr.mxu0 %v946
        %2650 = vmatpush2.msra.mxu0 %v945
        %2651 = vmatprep.subr.mxu0 %v914
        %2652 = vmatpush2.msra.mxu0 %v913
        %2653 = vmatprep.mubr.f32.mxu0 %v364
        %2654 = vmatmul.mubr.f32.gmra.mxu0 %v363
        %v2655 = vpop.f32.mrf.mxu0
        %v2656 = vadd.f32 0.0, %v2655
        %v2657 = vpop.f32.mrf.mxu0
        %v2658 = vadd.f32 0.0, %v2657
        %2659 = vdwg.mxu0
        %2660 = vmatprep.subr.mxu0 %v1906
        %2661 = vmatpush1.msra.mxu0 %v1905
        %2662 = vmatprep.subr.mxu0 %v1874
        %2663 = vmatpush1.msra.mxu0 %v1873
        %2664 = vmatprep.subr.mxu0 %v1842
        %2665 = vmatpush1.msra.mxu0 %v1841
        %2666 = vmatprep.subr.mxu0 %v1810
        %2667 = vmatpush1.msra.mxu0 %v1809
        %2668 = vmatprep.subr.mxu0 %v1778
        %2669 = vmatpush1.msra.mxu0 %v1777
        %2670 = vmatprep.subr.mxu0 %v1746
        %2671 = vmatpush1.msra.mxu0 %v1745
        %2672 = vmatprep.subr.mxu0 %v1714
        %2673 = vmatpush1.msra.mxu0 %v1713
        %2674 = vmatprep.subr.mxu0 %v1682
        %2675 = vmatpush1.msra.mxu0 %v1681
        %2676 = vmatprep.subr.mxu0 %v1650
        %2677 = vmatpush1.msra.mxu0 %v1649
        %2678 = vmatprep.subr.mxu0 %v1618
        %2679 = vmatpush1.msra.mxu0 %v1617
        %2680 = vmatprep.subr.mxu0 %v1586
        %2681 = vmatpush1.msra.mxu0 %v1585
        %2682 = vmatprep.subr.mxu0 %v1554
        %2683 = vmatpush1.msra.mxu0 %v1553
        %2684 = vmatprep.subr.mxu0 %v1522
        %2685 = vmatpush1.msra.mxu0 %v1521
        %2686 = vmatprep.subr.mxu0 %v1490
        %2687 = vmatpush1.msra.mxu0 %v1489
        %2688 = vmatprep.subr.mxu0 %v1458
        %2689 = vmatpush1.msra.mxu0 %v1457
        %2690 = vmatprep.subr.mxu0 %v1426
        %2691 = vmatpush1.msra.mxu0 %v1425
        %2692 = vmatprep.subr.mxu0 %v2418
        %2693 = vmatpush2.msra.mxu0 %v2417
        %2694 = vmatprep.subr.mxu0 %v2386
        %2695 = vmatpush2.msra.mxu0 %v2385
        %2696 = vmatprep.subr.mxu0 %v2354
        %2697 = vmatpush2.msra.mxu0 %v2353
        %2698 = vmatprep.subr.mxu0 %v2322
        %2699 = vmatpush2.msra.mxu0 %v2321
        %2700 = vmatprep.subr.mxu0 %v2290
        %2701 = vmatpush2.msra.mxu0 %v2289
        %2702 = vmatprep.subr.mxu0 %v2258
        %2703 = vmatpush2.msra.mxu0 %v2257
        %2704 = vmatprep.subr.mxu0 %v2226
        %2705 = vmatpush2.msra.mxu0 %v2225
        %2706 = vmatprep.subr.mxu0 %v2194
        %2707 = vmatpush2.msra.mxu0 %v2193
        %2708 = vmatprep.subr.mxu0 %v2162
        %2709 = vmatpush2.msra.mxu0 %v2161
        %2710 = vmatprep.subr.mxu0 %v2130
        %2711 = vmatpush2.msra.mxu0 %v2129
        %2712 = vmatprep.subr.mxu0 %v2098
        %2713 = vmatpush2.msra.mxu0 %v2097
        %2714 = vmatprep.subr.mxu0 %v2066
        %2715 = vmatpush2.msra.mxu0 %v2065
        %2716 = vmatprep.subr.mxu0 %v2034
        %2717 = vmatpush2.msra.mxu0 %v2033
        %2718 = vmatprep.subr.mxu0 %v2002
        %2719 = vmatpush2.msra.mxu0 %v2001
        %2720 = vmatprep.subr.mxu0 %v1970
        %2721 = vmatpush2.msra.mxu0 %v1969
        %2722 = vmatprep.subr.mxu0 %v1938
        %2723 = vmatpush2.msra.mxu0 %v1937
        %2724 = vmatprep.mubr.f32.mxu0 %v366
        %2725 = vmatmul.mubr.f32.gmra.mxu0 %v365
        %v2726 = vpop.f32.mrf.mxu0
        %v2727 = vadd.f32 %v2656, %v2726
        %v2728 = vpop.f32.mrf.mxu0
        %v2729 = vadd.f32 %v2658, %v2728
        %2730 = vdwg.mxu0
        %2731 = vmatprep.subr.mxu0 %v884
        %2732 = vmatpush1.msra.mxu0 %v883
        %2733 = vmatprep.subr.mxu0 %v852
        %2734 = vmatpush1.msra.mxu0 %v851
        %2735 = vmatprep.subr.mxu0 %v820
        %2736 = vmatpush1.msra.mxu0 %v819
        %2737 = vmatprep.subr.mxu0 %v788
        %2738 = vmatpush1.msra.mxu0 %v787
        %2739 = vmatprep.subr.mxu0 %v756
        %2740 = vmatpush1.msra.mxu0 %v755
        %2741 = vmatprep.subr.mxu0 %v724
        %2742 = vmatpush1.msra.mxu0 %v723
        %2743 = vmatprep.subr.mxu0 %v692
        %2744 = vmatpush1.msra.mxu0 %v691
        %2745 = vmatprep.subr.mxu0 %v660
        %2746 = vmatpush1.msra.mxu0 %v659
        %2747 = vmatprep.subr.mxu0 %v628
        %2748 = vmatpush1.msra.mxu0 %v627
        %2749 = vmatprep.subr.mxu0 %v596
        %2750 = vmatpush1.msra.mxu0 %v595
        %2751 = vmatprep.subr.mxu0 %v564
        %2752 = vmatpush1.msra.mxu0 %v563
        %2753 = vmatprep.subr.mxu0 %v532
        %2754 = vmatpush1.msra.mxu0 %v531
        %2755 = vmatprep.subr.mxu0 %v500
        %2756 = vmatpush1.msra.mxu0 %v499
        %2757 = vmatprep.subr.mxu0 %v468
        %2758 = vmatpush1.msra.mxu0 %v467
        %2759 = vmatprep.subr.mxu0 %v436
        %2760 = vmatpush1.msra.mxu0 %v435
        %2761 = vmatprep.subr.mxu0 %v404
        %2762 = vmatpush1.msra.mxu0 %v403
        %2763 = vmatprep.subr.mxu0 %v1396
        %2764 = vmatpush2.msra.mxu0 %v1395
        %2765 = vmatprep.subr.mxu0 %v1364
        %2766 = vmatpush2.msra.mxu0 %v1363
        %2767 = vmatprep.subr.mxu0 %v1332
        %2768 = vmatpush2.msra.mxu0 %v1331
        %2769 = vmatprep.subr.mxu0 %v1300
        %2770 = vmatpush2.msra.mxu0 %v1299
        %2771 = vmatprep.subr.mxu0 %v1268
        %2772 = vmatpush2.msra.mxu0 %v1267
        %2773 = vmatprep.subr.mxu0 %v1236
        %2774 = vmatpush2.msra.mxu0 %v1235
        %2775 = vmatprep.subr.mxu0 %v1204
        %2776 = vmatpush2.msra.mxu0 %v1203
        %2777 = vmatprep.subr.mxu0 %v1172
        %2778 = vmatpush2.msra.mxu0 %v1171
        %2779 = vmatprep.subr.mxu0 %v1140
        %2780 = vmatpush2.msra.mxu0 %v1139
        %2781 = vmatprep.subr.mxu0 %v1108
        %2782 = vmatpush2.msra.mxu0 %v1107
        %2783 = vmatprep.subr.mxu0 %v1076
        %2784 = vmatpush2.msra.mxu0 %v1075
        %2785 = vmatprep.subr.mxu0 %v1044
        %2786 = vmatpush2.msra.mxu0 %v1043
        %2787 = vmatprep.subr.mxu0 %v1012
        %2788 = vmatpush2.msra.mxu0 %v1011
        %2789 = vmatprep.subr.mxu0 %v980
        %2790 = vmatpush2.msra.mxu0 %v979
        %2791 = vmatprep.subr.mxu0 %v948
        %2792 = vmatpush2.msra.mxu0 %v947
        %2793 = vmatprep.subr.mxu0 %v916
        %2794 = vmatpush2.msra.mxu0 %v915
        %2795 = vmatprep.mubr.f32.mxu0 %v364
        %2796 = vmatmul.mubr.f32.gmra.mxu0 %v363
        %v2797 = vpop.f32.mrf.mxu0
        %v2798 = vadd.f32 0.0, %v2797
        %v2799 = vpop.f32.mrf.mxu0
        %v2800 = vadd.f32 0.0, %v2799
        %2801 = vdwg.mxu0
        %2802 = vmatprep.subr.mxu0 %v1908
        %2803 = vmatpush1.msra.mxu0 %v1907
        %2804 = vmatprep.subr.mxu0 %v1876
        %2805 = vmatpush1.msra.mxu0 %v1875
        %2806 = vmatprep.subr.mxu0 %v1844
        %2807 = vmatpush1.msra.mxu0 %v1843
        %2808 = vmatprep.subr.mxu0 %v1812
        %2809 = vmatpush1.msra.mxu0 %v1811
        %2810 = vmatprep.subr.mxu0 %v1780
        %2811 = vmatpush1.msra.mxu0 %v1779
        %2812 = vmatprep.subr.mxu0 %v1748
        %2813 = vmatpush1.msra.mxu0 %v1747
        %2814 = vmatprep.subr.mxu0 %v1716
        %2815 = vmatpush1.msra.mxu0 %v1715
        %2816 = vmatprep.subr.mxu0 %v1684
        %2817 = vmatpush1.msra.mxu0 %v1683
        %2818 = vmatprep.subr.mxu0 %v1652
        %2819 = vmatpush1.msra.mxu0 %v1651
        %2820 = vmatprep.subr.mxu0 %v1620
        %2821 = vmatpush1.msra.mxu0 %v1619
        %2822 = vmatprep.subr.mxu0 %v1588
        %2823 = vmatpush1.msra.mxu0 %v1587
        %2824 = vmatprep.subr.mxu0 %v1556
        %2825 = vmatpush1.msra.mxu0 %v1555
        %2826 = vmatprep.subr.mxu0 %v1524
        %2827 = vmatpush1.msra.mxu0 %v1523
        %2828 = vmatprep.subr.mxu0 %v1492
        %2829 = vmatpush1.msra.mxu0 %v1491
        %2830 = vmatprep.subr.mxu0 %v1460
        %2831 = vmatpush1.msra.mxu0 %v1459
        %2832 = vmatprep.subr.mxu0 %v1428
        %2833 = vmatpush1.msra.mxu0 %v1427
        %2834 = vmatprep.subr.mxu0 %v2420
        %2835 = vmatpush2.msra.mxu0 %v2419
        %2836 = vmatprep.subr.mxu0 %v2388
        %2837 = vmatpush2.msra.mxu0 %v2387
        %2838 = vmatprep.subr.mxu0 %v2356
        %2839 = vmatpush2.msra.mxu0 %v2355
        %2840 = vmatprep.subr.mxu0 %v2324
        %2841 = vmatpush2.msra.mxu0 %v2323
        %2842 = vmatprep.subr.mxu0 %v2292
        %2843 = vmatpush2.msra.mxu0 %v2291
        %2844 = vmatprep.subr.mxu0 %v2260
        %2845 = vmatpush2.msra.mxu0 %v2259
        %2846 = vmatprep.subr.mxu0 %v2228
        %2847 = vmatpush2.msra.mxu0 %v2227
        %2848 = vmatprep.subr.mxu0 %v2196
        %2849 = vmatpush2.msra.mxu0 %v2195
        %2850 = vmatprep.subr.mxu0 %v2164
        %2851 = vmatpush2.msra.mxu0 %v2163
        %2852 = vmatprep.subr.mxu0 %v2132
        %2853 = vmatpush2.msra.mxu0 %v2131
        %2854 = vmatprep.subr.mxu0 %v2100
        %2855 = vmatpush2.msra.mxu0 %v2099
        %2856 = vmatprep.subr.mxu0 %v2068
        %2857 = vmatpush2.msra.mxu0 %v2067
        %2858 = vmatprep.subr.mxu0 %v2036
        %2859 = vmatpush2.msra.mxu0 %v2035
        %2860 = vmatprep.subr.mxu0 %v2004
        %2861 = vmatpush2.msra.mxu0 %v2003
        %2862 = vmatprep.subr.mxu0 %v1972
        %2863 = vmatpush2.msra.mxu0 %v1971
        %2864 = vmatprep.subr.mxu0 %v1940
        %2865 = vmatpush2.msra.mxu0 %v1939
        %2866 = vmatprep.mubr.f32.mxu0 %v366
        %2867 = vmatmul.mubr.f32.gmra.mxu0 %v365
        %v2868 = vpop.f32.mrf.mxu0
        %v2869 = vadd.f32 %v2798, %v2868
        %v2870 = vpop.f32.mrf.mxu0
        %v2871 = vadd.f32 %v2800, %v2870
        %2872 = vdwg.mxu0
        %2873 = vmatprep.subr.mxu0 %v886
        %2874 = vmatpush1.msra.mxu0 %v885
        %2875 = vmatprep.subr.mxu0 %v854
        %2876 = vmatpush1.msra.mxu0 %v853
        %2877 = vmatprep.subr.mxu0 %v822
        %2878 = vmatpush1.msra.mxu0 %v821
        %2879 = vmatprep.subr.mxu0 %v790
        %2880 = vmatpush1.msra.mxu0 %v789
        %2881 = vmatprep.subr.mxu0 %v758
        %2882 = vmatpush1.msra.mxu0 %v757
        %2883 = vmatprep.subr.mxu0 %v726
        %2884 = vmatpush1.msra.mxu0 %v725
        %2885 = vmatprep.subr.mxu0 %v694
        %2886 = vmatpush1.msra.mxu0 %v693
        %2887 = vmatprep.subr.mxu0 %v662
        %2888 = vmatpush1.msra.mxu0 %v661
        %2889 = vmatprep.subr.mxu0 %v630
        %2890 = vmatpush1.msra.mxu0 %v629
        %2891 = vmatprep.subr.mxu0 %v598
        %2892 = vmatpush1.msra.mxu0 %v597
        %2893 = vmatprep.subr.mxu0 %v566
        %2894 = vmatpush1.msra.mxu0 %v565
        %2895 = vmatprep.subr.mxu0 %v534
        %2896 = vmatpush1.msra.mxu0 %v533
        %2897 = vmatprep.subr.mxu0 %v502
        %2898 = vmatpush1.msra.mxu0 %v501
        %2899 = vmatprep.subr.mxu0 %v470
        %2900 = vmatpush1.msra.mxu0 %v469
        %2901 = vmatprep.subr.mxu0 %v438
        %2902 = vmatpush1.msra.mxu0 %v437
        %2903 = vmatprep.subr.mxu0 %v406
        %2904 = vmatpush1.msra.mxu0 %v405
        %2905 = vmatprep.subr.mxu0 %v1398
        %2906 = vmatpush2.msra.mxu0 %v1397
        %2907 = vmatprep.subr.mxu0 %v1366
        %2908 = vmatpush2.msra.mxu0 %v1365
        %2909 = vmatprep.subr.mxu0 %v1334
        %2910 = vmatpush2.msra.mxu0 %v1333
        %2911 = vmatprep.subr.mxu0 %v1302
        %2912 = vmatpush2.msra.mxu0 %v1301
        %2913 = vmatprep.subr.mxu0 %v1270
        %2914 = vmatpush2.msra.mxu0 %v1269
        %2915 = vmatprep.subr.mxu0 %v1238
        %2916 = vmatpush2.msra.mxu0 %v1237
        %2917 = vmatprep.subr.mxu0 %v1206
        %2918 = vmatpush2.msra.mxu0 %v1205
        %2919 = vmatprep.subr.mxu0 %v1174
        %2920 = vmatpush2.msra.mxu0 %v1173
        %2921 = vmatprep.subr.mxu0 %v1142
        %2922 = vmatpush2.msra.mxu0 %v1141
        %2923 = vmatprep.subr.mxu0 %v1110
        %2924 = vmatpush2.msra.mxu0 %v1109
        %2925 = vmatprep.subr.mxu0 %v1078
        %2926 = vmatpush2.msra.mxu0 %v1077
        %2927 = vmatprep.subr.mxu0 %v1046
        %2928 = vmatpush2.msra.mxu0 %v1045
        %2929 = vmatprep.subr.mxu0 %v1014
        %2930 = vmatpush2.msra.mxu0 %v1013
        %2931 = vmatprep.subr.mxu0 %v982
        %2932 = vmatpush2.msra.mxu0 %v981
        %2933 = vmatprep.subr.mxu0 %v950
        %2934 = vmatpush2.msra.mxu0 %v949
        %2935 = vmatprep.subr.mxu0 %v918
        %2936 = vmatpush2.msra.mxu0 %v917
        %2937 = vmatprep.mubr.f32.mxu0 %v364
        %2938 = vmatmul.mubr.f32.gmra.mxu0 %v363
        %v2939 = vpop.f32.mrf.mxu0
        %v2940 = vadd.f32 0.0, %v2939
        %v2941 = vpop.f32.mrf.mxu0
        %v2942 = vadd.f32 0.0, %v2941
        %2943 = vdwg.mxu0
        %2944 = vmatprep.subr.mxu0 %v1910
        %2945 = vmatpush1.msra.mxu0 %v1909
        %2946 = vmatprep.subr.mxu0 %v1878
        %2947 = vmatpush1.msra.mxu0 %v1877
        %2948 = vmatprep.subr.mxu0 %v1846
        %2949 = vmatpush1.msra.mxu0 %v1845
        %2950 = vmatprep.subr.mxu0 %v1814
        %2951 = vmatpush1.msra.mxu0 %v1813
        %2952 = vmatprep.subr.mxu0 %v1782
        %2953 = vmatpush1.msra.mxu0 %v1781
        %2954 = vmatprep.subr.mxu0 %v1750
        %2955 = vmatpush1.msra.mxu0 %v1749
        %2956 = vmatprep.subr.mxu0 %v1718
        %2957 = vmatpush1.msra.mxu0 %v1717
        %2958 = vmatprep.subr.mxu0 %v1686
        %2959 = vmatpush1.msra.mxu0 %v1685
        %2960 = vmatprep.subr.mxu0 %v1654
        %2961 = vmatpush1.msra.mxu0 %v1653
        %2962 = vmatprep.subr.mxu0 %v1622
        %2963 = vmatpush1.msra.mxu0 %v1621
        %2964 = vmatprep.subr.mxu0 %v1590
        %2965 = vmatpush1.msra.mxu0 %v1589
        %2966 = vmatprep.subr.mxu0 %v1558
        %2967 = vmatpush1.msra.mxu0 %v1557
        %2968 = vmatprep.subr.mxu0 %v1526
        %2969 = vmatpush1.msra.mxu0 %v1525
        %2970 = vmatprep.subr.mxu0 %v1494
        %2971 = vmatpush1.msra.mxu0 %v1493
        %2972 = vmatprep.subr.mxu0 %v1462
        %2973 = vmatpush1.msra.mxu0 %v1461
        %2974 = vmatprep.subr.mxu0 %v1430
        %2975 = vmatpush1.msra.mxu0 %v1429
        %2976 = vmatprep.subr.mxu0 %v2422
        %2977 = vmatpush2.msra.mxu0 %v2421
        %2978 = vmatprep.subr.mxu0 %v2390
        %2979 = vmatpush2.msra.mxu0 %v2389
        %2980 = vmatprep.subr.mxu0 %v2358
        %2981 = vmatpush2.msra.mxu0 %v2357
        %2982 = vmatprep.subr.mxu0 %v2326
        %2983 = vmatpush2.msra.mxu0 %v2325
        %2984 = vmatprep.subr.mxu0 %v2294
        %2985 = vmatpush2.msra.mxu0 %v2293
        %2986 = vmatprep.subr.mxu0 %v2262
        %2987 = vmatpush2.msra.mxu0 %v2261
        %2988 = vmatprep.subr.mxu0 %v2230
        %2989 = vmatpush2.msra.mxu0 %v2229
        %2990 = vmatprep.subr.mxu0 %v2198
        %2991 = vmatpush2.msra.mxu0 %v2197
        %2992 = vmatprep.subr.mxu0 %v2166
        %2993 = vmatpush2.msra.mxu0 %v2165
        %2994 = vmatprep.subr.mxu0 %v2134
        %2995 = vmatpush2.msra.mxu0 %v2133
        %2996 = vmatprep.subr.mxu0 %v2102
        %2997 = vmatpush2.msra.mxu0 %v2101
        %2998 = vmatprep.subr.mxu0 %v2070
        %2999 = vmatpush2.msra.mxu0 %v2069
        %3000 = vmatprep.subr.mxu0 %v2038
        %3001 = vmatpush2.msra.mxu0 %v2037
        %3002 = vmatprep.subr.mxu0 %v2006
        %3003 = vmatpush2.msra.mxu0 %v2005
        %3004 = vmatprep.subr.mxu0 %v1974
        %3005 = vmatpush2.msra.mxu0 %v1973
        %3006 = vmatprep.subr.mxu0 %v1942
        %3007 = vmatpush2.msra.mxu0 %v1941
        %3008 = vmatprep.mubr.f32.mxu0 %v366
        %3009 = vmatmul.mubr.f32.gmra.mxu0 %v365
        %v3010 = vpop.f32.mrf.mxu0
        %v3011 = vadd.f32 %v2940, %v3010
        %v3012 = vpop.f32.mrf.mxu0
        %v3013 = vadd.f32 %v2942, %v3012
        %3014 = vdwg.mxu0
        %3015 = vmatprep.subr.mxu0 %v888
        %3016 = vmatpush1.msra.mxu0 %v887
        %3017 = vmatprep.subr.mxu0 %v856
        %3018 = vmatpush1.msra.mxu0 %v855
        %3019 = vmatprep.subr.mxu0 %v824
        %3020 = vmatpush1.msra.mxu0 %v823
        %3021 = vmatprep.subr.mxu0 %v792
        %3022 = vmatpush1.msra.mxu0 %v791
        %3023 = vmatprep.subr.mxu0 %v760
        %3024 = vmatpush1.msra.mxu0 %v759
        %3025 = vmatprep.subr.mxu0 %v728
        %3026 = vmatpush1.msra.mxu0 %v727
        %3027 = vmatprep.subr.mxu0 %v696
        %3028 = vmatpush1.msra.mxu0 %v695
        %3029 = vmatprep.subr.mxu0 %v664
        %3030 = vmatpush1.msra.mxu0 %v663
        %3031 = vmatprep.subr.mxu0 %v632
        %3032 = vmatpush1.msra.mxu0 %v631
        %3033 = vmatprep.subr.mxu0 %v600
        %3034 = vmatpush1.msra.mxu0 %v599
        %3035 = vmatprep.subr.mxu0 %v568
        %3036 = vmatpush1.msra.mxu0 %v567
        %3037 = vmatprep.subr.mxu0 %v536
        %3038 = vmatpush1.msra.mxu0 %v535
        %3039 = vmatprep.subr.mxu0 %v504
        %3040 = vmatpush1.msra.mxu0 %v503
        %3041 = vmatprep.subr.mxu0 %v472
        %3042 = vmatpush1.msra.mxu0 %v471
        %3043 = vmatprep.subr.mxu0 %v440
        %3044 = vmatpush1.msra.mxu0 %v439
        %3045 = vmatprep.subr.mxu0 %v408
        %3046 = vmatpush1.msra.mxu0 %v407
        %3047 = vmatprep.subr.mxu0 %v1400
        %3048 = vmatpush2.msra.mxu0 %v1399
        %3049 = vmatprep.subr.mxu0 %v1368
        %3050 = vmatpush2.msra.mxu0 %v1367
        %3051 = vmatprep.subr.mxu0 %v1336
        %3052 = vmatpush2.msra.mxu0 %v1335
        %3053 = vmatprep.subr.mxu0 %v1304
        %3054 = vmatpush2.msra.mxu0 %v1303
        %3055 = vmatprep.subr.mxu0 %v1272
        %3056 = vmatpush2.msra.mxu0 %v1271
        %3057 = vmatprep.subr.mxu0 %v1240
        %3058 = vmatpush2.msra.mxu0 %v1239
        %3059 = vmatprep.subr.mxu0 %v1208
        %3060 = vmatpush2.msra.mxu0 %v1207
        %3061 = vmatprep.subr.mxu0 %v1176
        %3062 = vmatpush2.msra.mxu0 %v1175
        %3063 = vmatprep.subr.mxu0 %v1144
        %3064 = vmatpush2.msra.mxu0 %v1143
        %3065 = vmatprep.subr.mxu0 %v1112
        %3066 = vmatpush2.msra.mxu0 %v1111
        %3067 = vmatprep.subr.mxu0 %v1080
        %3068 = vmatpush2.msra.mxu0 %v1079
        %3069 = vmatprep.subr.mxu0 %v1048
        %3070 = vmatpush2.msra.mxu0 %v1047
        %3071 = vmatprep.subr.mxu0 %v1016
        %3072 = vmatpush2.msra.mxu0 %v1015
        %3073 = vmatprep.subr.mxu0 %v984
        %3074 = vmatpush2.msra.mxu0 %v983
        %3075 = vmatprep.subr.mxu0 %v952
        %3076 = vmatpush2.msra.mxu0 %v951
        %3077 = vmatprep.subr.mxu0 %v920
        %3078 = vmatpush2.msra.mxu0 %v919
        %3079 = vmatprep.mubr.f32.mxu0 %v364
        %3080 = vmatmul.mubr.f32.gmra.mxu0 %v363
        %v3081 = vpop.f32.mrf.mxu0
        %v3082 = vadd.f32 0.0, %v3081
        %v3083 = vpop.f32.mrf.mxu0
        %v3084 = vadd.f32 0.0, %v3083
        %3085 = vdwg.mxu0
        %3086 = vmatprep.subr.mxu0 %v1912
        %3087 = vmatpush1.msra.mxu0 %v1911
        %3088 = vmatprep.subr.mxu0 %v1880
        %3089 = vmatpush1.msra.mxu0 %v1879
        %3090 = vmatprep.subr.mxu0 %v1848
        %3091 = vmatpush1.msra.mxu0 %v1847
        %3092 = vmatprep.subr.mxu0 %v1816
        %3093 = vmatpush1.msra.mxu0 %v1815
        %3094 = vmatprep.subr.mxu0 %v1784
        %3095 = vmatpush1.msra.mxu0 %v1783
        %3096 = vmatprep.subr.mxu0 %v1752
        %3097 = vmatpush1.msra.mxu0 %v1751
        %3098 = vmatprep.subr.mxu0 %v1720
        %3099 = vmatpush1.msra.mxu0 %v1719
        %3100 = vmatprep.subr.mxu0 %v1688
        %3101 = vmatpush1.msra.mxu0 %v1687
        %3102 = vmatprep.subr.mxu0 %v1656
        %3103 = vmatpush1.msra.mxu0 %v1655
        %3104 = vmatprep.subr.mxu0 %v1624
        %3105 = vmatpush1.msra.mxu0 %v1623
        %3106 = vmatprep.subr.mxu0 %v1592
        %3107 = vmatpush1.msra.mxu0 %v1591
        %3108 = vmatprep.subr.mxu0 %v1560
        %3109 = vmatpush1.msra.mxu0 %v1559
        %3110 = vmatprep.subr.mxu0 %v1528
        %3111 = vmatpush1.msra.mxu0 %v1527
        %3112 = vmatprep.subr.mxu0 %v1496
        %3113 = vmatpush1.msra.mxu0 %v1495
        %3114 = vmatprep.subr.mxu0 %v1464
        %3115 = vmatpush1.msra.mxu0 %v1463
        %3116 = vmatprep.subr.mxu0 %v1432
        %3117 = vmatpush1.msra.mxu0 %v1431
        %3118 = vmatprep.subr.mxu0 %v2424
        %3119 = vmatpush2.msra.mxu0 %v2423
        %3120 = vmatprep.subr.mxu0 %v2392
        %3121 = vmatpush2.msra.mxu0 %v2391
        %3122 = vmatprep.subr.mxu0 %v2360
        %3123 = vmatpush2.msra.mxu0 %v2359
        %3124 = vmatprep.subr.mxu0 %v2328
        %3125 = vmatpush2.msra.mxu0 %v2327
        %3126 = vmatprep.subr.mxu0 %v2296
        %3127 = vmatpush2.msra.mxu0 %v2295
        %3128 = vmatprep.subr.mxu0 %v2264
        %3129 = vmatpush2.msra.mxu0 %v2263
        %3130 = vmatprep.subr.mxu0 %v2232
        %3131 = vmatpush2.msra.mxu0 %v2231
        %3132 = vmatprep.subr.mxu0 %v2200
        %3133 = vmatpush2.msra.mxu0 %v2199
        %3134 = vmatprep.subr.mxu0 %v2168
        %3135 = vmatpush2.msra.mxu0 %v2167
        %3136 = vmatprep.subr.mxu0 %v2136
        %3137 = vmatpush2.msra.mxu0 %v2135
        %3138 = vmatprep.subr.mxu0 %v2104
        %3139 = vmatpush2.msra.mxu0 %v2103
        %3140 = vmatprep.subr.mxu0 %v2072
        %3141 = vmatpush2.msra.mxu0 %v2071
        %3142 = vmatprep.subr.mxu0 %v2040
        %3143 = vmatpush2.msra.mxu0 %v2039
        %3144 = vmatprep.subr.mxu0 %v2008
        %3145 = vmatpush2.msra.mxu0 %v2007
        %3146 = vmatprep.subr.mxu0 %v1976
        %3147 = vmatpush2.msra.mxu0 %v1975
        %3148 = vmatprep.subr.mxu0 %v1944
        %3149 = vmatpush2.msra.mxu0 %v1943
        %3150 = vmatprep.mubr.f32.mxu0 %v366
        %3151 = vmatmul.mubr.f32.gmra.mxu0 %v365
        %v3152 = vpop.f32.mrf.mxu0
        %v3153 = vadd.f32 %v3082, %v3152
        %v3154 = vpop.f32.mrf.mxu0
        %v3155 = vadd.f32 %v3084, %v3154
        %3156 = vdwg.mxu0
        %3157 = vmatprep.subr.mxu0 %v890
        %3158 = vmatpush1.msra.mxu0 %v889
        %3159 = vmatprep.subr.mxu0 %v858
        %3160 = vmatpush1.msra.mxu0 %v857
        %3161 = vmatprep.subr.mxu0 %v826
        %3162 = vmatpush1.msra.mxu0 %v825
        %3163 = vmatprep.subr.mxu0 %v794
        %3164 = vmatpush1.msra.mxu0 %v793
        %3165 = vmatprep.subr.mxu0 %v762
        %3166 = vmatpush1.msra.mxu0 %v761
        %3167 = vmatprep.subr.mxu0 %v730
        %3168 = vmatpush1.msra.mxu0 %v729
        %3169 = vmatprep.subr.mxu0 %v698
        %3170 = vmatpush1.msra.mxu0 %v697
        %3171 = vmatprep.subr.mxu0 %v666
        %3172 = vmatpush1.msra.mxu0 %v665
        %3173 = vmatprep.subr.mxu0 %v634
        %3174 = vmatpush1.msra.mxu0 %v633
        %3175 = vmatprep.subr.mxu0 %v602
        %3176 = vmatpush1.msra.mxu0 %v601
        %3177 = vmatprep.subr.mxu0 %v570
        %3178 = vmatpush1.msra.mxu0 %v569
        %3179 = vmatprep.subr.mxu0 %v538
        %3180 = vmatpush1.msra.mxu0 %v537
        %3181 = vmatprep.subr.mxu0 %v506
        %3182 = vmatpush1.msra.mxu0 %v505
        %3183 = vmatprep.subr.mxu0 %v474
        %3184 = vmatpush1.msra.mxu0 %v473
        %3185 = vmatprep.subr.mxu0 %v442
        %3186 = vmatpush1.msra.mxu0 %v441
        %3187 = vmatprep.subr.mxu0 %v410
        %3188 = vmatpush1.msra.mxu0 %v409
        %3189 = vmatprep.subr.mxu0 %v1402
        %3190 = vmatpush2.msra.mxu0 %v1401
        %3191 = vmatprep.subr.mxu0 %v1370
        %3192 = vmatpush2.msra.mxu0 %v1369
        %3193 = vmatprep.subr.mxu0 %v1338
        %3194 = vmatpush2.msra.mxu0 %v1337
        %3195 = vmatprep.subr.mxu0 %v1306
        %3196 = vmatpush2.msra.mxu0 %v1305
        %3197 = vmatprep.subr.mxu0 %v1274
        %3198 = vmatpush2.msra.mxu0 %v1273
        %3199 = vmatprep.subr.mxu0 %v1242
        %3200 = vmatpush2.msra.mxu0 %v1241
        %3201 = vmatprep.subr.mxu0 %v1210
        %3202 = vmatpush2.msra.mxu0 %v1209
        %3203 = vmatprep.subr.mxu0 %v1178
        %3204 = vmatpush2.msra.mxu0 %v1177
        %3205 = vmatprep.subr.mxu0 %v1146
        %3206 = vmatpush2.msra.mxu0 %v1145
        %3207 = vmatprep.subr.mxu0 %v1114
        %3208 = vmatpush2.msra.mxu0 %v1113
        %3209 = vmatprep.subr.mxu0 %v1082
        %3210 = vmatpush2.msra.mxu0 %v1081
        %3211 = vmatprep.subr.mxu0 %v1050
        %3212 = vmatpush2.msra.mxu0 %v1049
        %3213 = vmatprep.subr.mxu0 %v1018
        %3214 = vmatpush2.msra.mxu0 %v1017
        %3215 = vmatprep.subr.mxu0 %v986
        %3216 = vmatpush2.msra.mxu0 %v985
        %3217 = vmatprep.subr.mxu0 %v954
        %3218 = vmatpush2.msra.mxu0 %v953
        %3219 = vmatprep.subr.mxu0 %v922
        %3220 = vmatpush2.msra.mxu0 %v921
        %3221 = vmatprep.mubr.f32.mxu0 %v364
        %3222 = vmatmul.mubr.f32.gmra.mxu0 %v363
        %v3223 = vpop.f32.mrf.mxu0
        %v3224 = vadd.f32 0.0, %v3223
        %v3225 = vpop.f32.mrf.mxu0
        %v3226 = vadd.f32 0.0, %v3225
        %3227 = vdwg.mxu0
        %3228 = vmatprep.subr.mxu0 %v1914
        %3229 = vmatpush1.msra.mxu0 %v1913
        %3230 = vmatprep.subr.mxu0 %v1882
        %3231 = vmatpush1.msra.mxu0 %v1881
        %3232 = vmatprep.subr.mxu0 %v1850
        %3233 = vmatpush1.msra.mxu0 %v1849
        %3234 = vmatprep.subr.mxu0 %v1818
        %3235 = vmatpush1.msra.mxu0 %v1817
        %3236 = vmatprep.subr.mxu0 %v1786
        %3237 = vmatpush1.msra.mxu0 %v1785
        %3238 = vmatprep.subr.mxu0 %v1754
        %3239 = vmatpush1.msra.mxu0 %v1753
        %3240 = vmatprep.subr.mxu0 %v1722
        %3241 = vmatpush1.msra.mxu0 %v1721
        %3242 = vmatprep.subr.mxu0 %v1690
        %3243 = vmatpush1.msra.mxu0 %v1689
        %3244 = vmatprep.subr.mxu0 %v1658
        %3245 = vmatpush1.msra.mxu0 %v1657
        %3246 = vmatprep.subr.mxu0 %v1626
        %3247 = vmatpush1.msra.mxu0 %v1625
        %3248 = vmatprep.subr.mxu0 %v1594
        %3249 = vmatpush1.msra.mxu0 %v1593
        %3250 = vmatprep.subr.mxu0 %v1562
        %3251 = vmatpush1.msra.mxu0 %v1561
        %3252 = vmatprep.subr.mxu0 %v1530
        %3253 = vmatpush1.msra.mxu0 %v1529
        %3254 = vmatprep.subr.mxu0 %v1498
        %3255 = vmatpush1.msra.mxu0 %v1497
        %3256 = vmatprep.subr.mxu0 %v1466
        %3257 = vmatpush1.msra.mxu0 %v1465
        %3258 = vmatprep.subr.mxu0 %v1434
        %3259 = vmatpush1.msra.mxu0 %v1433
        %3260 = vmatprep.subr.mxu0 %v2426
        %3261 = vmatpush2.msra.mxu0 %v2425
        %3262 = vmatprep.subr.mxu0 %v2394
        %3263 = vmatpush2.msra.mxu0 %v2393
        %3264 = vmatprep.subr.mxu0 %v2362
        %3265 = vmatpush2.msra.mxu0 %v2361
        %3266 = vmatprep.subr.mxu0 %v2330
        %3267 = vmatpush2.msra.mxu0 %v2329
        %3268 = vmatprep.subr.mxu0 %v2298
        %3269 = vmatpush2.msra.mxu0 %v2297
        %3270 = vmatprep.subr.mxu0 %v2266
        %3271 = vmatpush2.msra.mxu0 %v2265
        %3272 = vmatprep.subr.mxu0 %v2234
        %3273 = vmatpush2.msra.mxu0 %v2233
        %3274 = vmatprep.subr.mxu0 %v2202
        %3275 = vmatpush2.msra.mxu0 %v2201
        %3276 = vmatprep.subr.mxu0 %v2170
        %3277 = vmatpush2.msra.mxu0 %v2169
        %3278 = vmatprep.subr.mxu0 %v2138
        %3279 = vmatpush2.msra.mxu0 %v2137
        %3280 = vmatprep.subr.mxu0 %v2106
        %3281 = vmatpush2.msra.mxu0 %v2105
        %3282 = vmatprep.subr.mxu0 %v2074
        %3283 = vmatpush2.msra.mxu0 %v2073
        %3284 = vmatprep.subr.mxu0 %v2042
        %3285 = vmatpush2.msra.mxu0 %v2041
        %3286 = vmatprep.subr.mxu0 %v2010
        %3287 = vmatpush2.msra.mxu0 %v2009
        %3288 = vmatprep.subr.mxu0 %v1978
        %3289 = vmatpush2.msra.mxu0 %v1977
        %3290 = vmatprep.subr.mxu0 %v1946
        %3291 = vmatpush2.msra.mxu0 %v1945
        %3292 = vmatprep.mubr.f32.mxu0 %v366
        %3293 = vmatmul.mubr.f32.gmra.mxu0 %v365
        %v3294 = vpop.f32.mrf.mxu0
        %v3295 = vadd.f32 %v3224, %v3294
        %v3296 = vpop.f32.mrf.mxu0
        %v3297 = vadd.f32 %v3226, %v3296
        %3298 = vdwg.mxu0
        %3299 = vmatprep.subr.mxu0 %v892
        %3300 = vmatpush1.msra.mxu0 %v891
        %3301 = vmatprep.subr.mxu0 %v860
        %3302 = vmatpush1.msra.mxu0 %v859
        %3303 = vmatprep.subr.mxu0 %v828
        %3304 = vmatpush1.msra.mxu0 %v827
        %3305 = vmatprep.subr.mxu0 %v796
        %3306 = vmatpush1.msra.mxu0 %v795
        %3307 = vmatprep.subr.mxu0 %v764
        %3308 = vmatpush1.msra.mxu0 %v763
        %3309 = vmatprep.subr.mxu0 %v732
        %3310 = vmatpush1.msra.mxu0 %v731
        %3311 = vmatprep.subr.mxu0 %v700
        %3312 = vmatpush1.msra.mxu0 %v699
        %3313 = vmatprep.subr.mxu0 %v668
        %3314 = vmatpush1.msra.mxu0 %v667
        %3315 = vmatprep.subr.mxu0 %v636
        %3316 = vmatpush1.msra.mxu0 %v635
        %3317 = vmatprep.subr.mxu0 %v604
        %3318 = vmatpush1.msra.mxu0 %v603
        %3319 = vmatprep.subr.mxu0 %v572
        %3320 = vmatpush1.msra.mxu0 %v571
        %3321 = vmatprep.subr.mxu0 %v540
        %3322 = vmatpush1.msra.mxu0 %v539
        %3323 = vmatprep.subr.mxu0 %v508
        %3324 = vmatpush1.msra.mxu0 %v507
        %3325 = vmatprep.subr.mxu0 %v476
        %3326 = vmatpush1.msra.mxu0 %v475
        %3327 = vmatprep.subr.mxu0 %v444
        %3328 = vmatpush1.msra.mxu0 %v443
        %3329 = vmatprep.subr.mxu0 %v412
        %3330 = vmatpush1.msra.mxu0 %v411
        %3331 = vmatprep.subr.mxu0 %v1404
        %3332 = vmatpush2.msra.mxu0 %v1403
        %3333 = vmatprep.subr.mxu0 %v1372
        %3334 = vmatpush2.msra.mxu0 %v1371
        %3335 = vmatprep.subr.mxu0 %v1340
        %3336 = vmatpush2.msra.mxu0 %v1339
        %3337 = vmatprep.subr.mxu0 %v1308
        %3338 = vmatpush2.msra.mxu0 %v1307
        %3339 = vmatprep.subr.mxu0 %v1276
        %3340 = vmatpush2.msra.mxu0 %v1275
        %3341 = vmatprep.subr.mxu0 %v1244
        %3342 = vmatpush2.msra.mxu0 %v1243
        %3343 = vmatprep.subr.mxu0 %v1212
        %3344 = vmatpush2.msra.mxu0 %v1211
        %3345 = vmatprep.subr.mxu0 %v1180
        %3346 = vmatpush2.msra.mxu0 %v1179
        %3347 = vmatprep.subr.mxu0 %v1148
        %3348 = vmatpush2.msra.mxu0 %v1147
        %3349 = vmatprep.subr.mxu0 %v1116
        %3350 = vmatpush2.msra.mxu0 %v1115
        %3351 = vmatprep.subr.mxu0 %v1084
        %3352 = vmatpush2.msra.mxu0 %v1083
        %3353 = vmatprep.subr.mxu0 %v1052
        %3354 = vmatpush2.msra.mxu0 %v1051
        %3355 = vmatprep.subr.mxu0 %v1020
        %3356 = vmatpush2.msra.mxu0 %v1019
        %3357 = vmatprep.subr.mxu0 %v988
        %3358 = vmatpush2.msra.mxu0 %v987
        %3359 = vmatprep.subr.mxu0 %v956
        %3360 = vmatpush2.msra.mxu0 %v955
        %3361 = vmatprep.subr.mxu0 %v924
        %3362 = vmatpush2.msra.mxu0 %v923
        %3363 = vmatprep.mubr.f32.mxu0 %v364
        %3364 = vmatmul.mubr.f32.gmra.mxu0 %v363
        %v3365 = vpop.f32.mrf.mxu0
        %v3366 = vadd.f32 0.0, %v3365
        %v3367 = vpop.f32.mrf.mxu0
        %v3368 = vadd.f32 0.0, %v3367
        %3369 = vdwg.mxu0
        %3370 = vmatprep.subr.mxu0 %v1916
        %3371 = vmatpush1.msra.mxu0 %v1915
        %3372 = vmatprep.subr.mxu0 %v1884
        %3373 = vmatpush1.msra.mxu0 %v1883
        %3374 = vmatprep.subr.mxu0 %v1852
        %3375 = vmatpush1.msra.mxu0 %v1851
        %3376 = vmatprep.subr.mxu0 %v1820
        %3377 = vmatpush1.msra.mxu0 %v1819
        %3378 = vmatprep.subr.mxu0 %v1788
        %3379 = vmatpush1.msra.mxu0 %v1787
        %3380 = vmatprep.subr.mxu0 %v1756
        %3381 = vmatpush1.msra.mxu0 %v1755
        %3382 = vmatprep.subr.mxu0 %v1724
        %3383 = vmatpush1.msra.mxu0 %v1723
        %3384 = vmatprep.subr.mxu0 %v1692
        %3385 = vmatpush1.msra.mxu0 %v1691
        %3386 = vmatprep.subr.mxu0 %v1660
        %3387 = vmatpush1.msra.mxu0 %v1659
        %3388 = vmatprep.subr.mxu0 %v1628
        %3389 = vmatpush1.msra.mxu0 %v1627
        %3390 = vmatprep.subr.mxu0 %v1596
        %3391 = vmatpush1.msra.mxu0 %v1595
        %3392 = vmatprep.subr.mxu0 %v1564
        %3393 = vmatpush1.msra.mxu0 %v1563
        %3394 = vmatprep.subr.mxu0 %v1532
        %3395 = vmatpush1.msra.mxu0 %v1531
        %3396 = vmatprep.subr.mxu0 %v1500
        %3397 = vmatpush1.msra.mxu0 %v1499
        %3398 = vmatprep.subr.mxu0 %v1468
        %3399 = vmatpush1.msra.mxu0 %v1467
        %3400 = vmatprep.subr.mxu0 %v1436
        %3401 = vmatpush1.msra.mxu0 %v1435
        %3402 = vmatprep.subr.mxu0 %v2428
        %3403 = vmatpush2.msra.mxu0 %v2427
        %3404 = vmatprep.subr.mxu0 %v2396
        %3405 = vmatpush2.msra.mxu0 %v2395
        %3406 = vmatprep.subr.mxu0 %v2364
        %3407 = vmatpush2.msra.mxu0 %v2363
        %3408 = vmatprep.subr.mxu0 %v2332
        %3409 = vmatpush2.msra.mxu0 %v2331
        %3410 = vmatprep.subr.mxu0 %v2300
        %3411 = vmatpush2.msra.mxu0 %v2299
        %3412 = vmatprep.subr.mxu0 %v2268
        %3413 = vmatpush2.msra.mxu0 %v2267
        %3414 = vmatprep.subr.mxu0 %v2236
        %3415 = vmatpush2.msra.mxu0 %v2235
        %3416 = vmatprep.subr.mxu0 %v2204
        %3417 = vmatpush2.msra.mxu0 %v2203
        %3418 = vmatprep.subr.mxu0 %v2172
        %3419 = vmatpush2.msra.mxu0 %v2171
        %3420 = vmatprep.subr.mxu0 %v2140
        %3421 = vmatpush2.msra.mxu0 %v2139
        %3422 = vmatprep.subr.mxu0 %v2108
        %3423 = vmatpush2.msra.mxu0 %v2107
        %3424 = vmatprep.subr.mxu0 %v2076
        %3425 = vmatpush2.msra.mxu0 %v2075
        %3426 = vmatprep.subr.mxu0 %v2044
        %3427 = vmatpush2.msra.mxu0 %v2043
        %3428 = vmatprep.subr.mxu0 %v2012
        %3429 = vmatpush2.msra.mxu0 %v2011
        %3430 = vmatprep.subr.mxu0 %v1980
        %3431 = vmatpush2.msra.mxu0 %v1979
        %3432 = vmatprep.subr.mxu0 %v1948
        %3433 = vmatpush2.msra.mxu0 %v1947
        %3434 = vmatprep.mubr.f32.mxu0 %v366
        %3435 = vmatmul.mubr.f32.gmra.mxu0 %v365
        %v3436 = vpop.f32.mrf.mxu0
        %v3437 = vadd.f32 %v3366, %v3436
        %v3438 = vpop.f32.mrf.mxu0
        %v3439 = vadd.f32 %v3368, %v3438
        %3440 = vdwg.mxu0
        %3441 = vmatprep.subr.mxu0 %v894
        %3442 = vmatpush1.msra.mxu0 %v893
        %3443 = vmatprep.subr.mxu0 %v862
        %3444 = vmatpush1.msra.mxu0 %v861
        %3445 = vmatprep.subr.mxu0 %v830
        %3446 = vmatpush1.msra.mxu0 %v829
        %3447 = vmatprep.subr.mxu0 %v798
        %3448 = vmatpush1.msra.mxu0 %v797
        %3449 = vmatprep.subr.mxu0 %v766
        %3450 = vmatpush1.msra.mxu0 %v765
        %3451 = vmatprep.subr.mxu0 %v734
        %3452 = vmatpush1.msra.mxu0 %v733
        %3453 = vmatprep.subr.mxu0 %v702
        %3454 = vmatpush1.msra.mxu0 %v701
        %3455 = vmatprep.subr.mxu0 %v670
        %3456 = vmatpush1.msra.mxu0 %v669
        %3457 = vmatprep.subr.mxu0 %v638
        %3458 = vmatpush1.msra.mxu0 %v637
        %3459 = vmatprep.subr.mxu0 %v606
        %3460 = vmatpush1.msra.mxu0 %v605
        %3461 = vmatprep.subr.mxu0 %v574
        %3462 = vmatpush1.msra.mxu0 %v573
        %3463 = vmatprep.subr.mxu0 %v542
        %3464 = vmatpush1.msra.mxu0 %v541
        %3465 = vmatprep.subr.mxu0 %v510
        %3466 = vmatpush1.msra.mxu0 %v509
        %3467 = vmatprep.subr.mxu0 %v478
        %3468 = vmatpush1.msra.mxu0 %v477
        %3469 = vmatprep.subr.mxu0 %v446
        %3470 = vmatpush1.msra.mxu0 %v445
        %3471 = vmatprep.subr.mxu0 %v414
        %3472 = vmatpush1.msra.mxu0 %v413
        %3473 = vmatprep.subr.mxu0 %v1406
        %3474 = vmatpush2.msra.mxu0 %v1405
        %3475 = vmatprep.subr.mxu0 %v1374
        %3476 = vmatpush2.msra.mxu0 %v1373
        %3477 = vmatprep.subr.mxu0 %v1342
        %3478 = vmatpush2.msra.mxu0 %v1341
        %3479 = vmatprep.subr.mxu0 %v1310
        %3480 = vmatpush2.msra.mxu0 %v1309
        %3481 = vmatprep.subr.mxu0 %v1278
        %3482 = vmatpush2.msra.mxu0 %v1277
        %3483 = vmatprep.subr.mxu0 %v1246
        %3484 = vmatpush2.msra.mxu0 %v1245
        %3485 = vmatprep.subr.mxu0 %v1214
        %3486 = vmatpush2.msra.mxu0 %v1213
        %3487 = vmatprep.subr.mxu0 %v1182
        %3488 = vmatpush2.msra.mxu0 %v1181
        %3489 = vmatprep.subr.mxu0 %v1150
        %3490 = vmatpush2.msra.mxu0 %v1149
        %3491 = vmatprep.subr.mxu0 %v1118
        %3492 = vmatpush2.msra.mxu0 %v1117
        %3493 = vmatprep.subr.mxu0 %v1086
        %3494 = vmatpush2.msra.mxu0 %v1085
        %3495 = vmatprep.subr.mxu0 %v1054
        %3496 = vmatpush2.msra.mxu0 %v1053
        %3497 = vmatprep.subr.mxu0 %v1022
        %3498 = vmatpush2.msra.mxu0 %v1021
        %3499 = vmatprep.subr.mxu0 %v990
        %3500 = vmatpush2.msra.mxu0 %v989
        %3501 = vmatprep.subr.mxu0 %v958
        %3502 = vmatpush2.msra.mxu0 %v957
        %3503 = vmatprep.subr.mxu0 %v926
        %3504 = vmatpush2.msra.mxu0 %v925
        %3505 = vmatprep.mubr.f32.mxu0 %v364
        %3506 = vmatmul.mubr.f32.gmra.mxu0 %v363
        %v3507 = vpop.f32.mrf.mxu0
        %v3508 = vadd.f32 0.0, %v3507
        %v3509 = vpop.f32.mrf.mxu0
        %v3510 = vadd.f32 0.0, %v3509
        %3511 = vdwg.mxu0
        %3512 = vmatprep.subr.mxu0 %v1918
        %3513 = vmatpush1.msra.mxu0 %v1917
        %3514 = vmatprep.subr.mxu0 %v1886
        %3515 = vmatpush1.msra.mxu0 %v1885
        %3516 = vmatprep.subr.mxu0 %v1854
        %3517 = vmatpush1.msra.mxu0 %v1853
        %3518 = vmatprep.subr.mxu0 %v1822
        %3519 = vmatpush1.msra.mxu0 %v1821
        %3520 = vmatprep.subr.mxu0 %v1790
        %3521 = vmatpush1.msra.mxu0 %v1789
        %3522 = vmatprep.subr.mxu0 %v1758
        %3523 = vmatpush1.msra.mxu0 %v1757
        %3524 = vmatprep.subr.mxu0 %v1726
        %3525 = vmatpush1.msra.mxu0 %v1725
        %3526 = vmatprep.subr.mxu0 %v1694
        %3527 = vmatpush1.msra.mxu0 %v1693
        %3528 = vmatprep.subr.mxu0 %v1662
        %3529 = vmatpush1.msra.mxu0 %v1661
        %3530 = vmatprep.subr.mxu0 %v1630
        %3531 = vmatpush1.msra.mxu0 %v1629
        %3532 = vmatprep.subr.mxu0 %v1598
        %3533 = vmatpush1.msra.mxu0 %v1597
        %3534 = vmatprep.subr.mxu0 %v1566
        %3535 = vmatpush1.msra.mxu0 %v1565
        %3536 = vmatprep.subr.mxu0 %v1534
        %3537 = vmatpush1.msra.mxu0 %v1533
        %3538 = vmatprep.subr.mxu0 %v1502
        %3539 = vmatpush1.msra.mxu0 %v1501
        %3540 = vmatprep.subr.mxu0 %v1470
        %3541 = vmatpush1.msra.mxu0 %v1469
        %3542 = vmatprep.subr.mxu0 %v1438
        %3543 = vmatpush1.msra.mxu0 %v1437
        %3544 = vmatprep.subr.mxu0 %v2430
        %3545 = vmatpush2.msra.mxu0 %v2429
        %3546 = vmatprep.subr.mxu0 %v2398
        %3547 = vmatpush2.msra.mxu0 %v2397
        %3548 = vmatprep.subr.mxu0 %v2366
        %3549 = vmatpush2.msra.mxu0 %v2365
        %3550 = vmatprep.subr.mxu0 %v2334
        %3551 = vmatpush2.msra.mxu0 %v2333
        %3552 = vmatprep.subr.mxu0 %v2302
        %3553 = vmatpush2.msra.mxu0 %v2301
        %3554 = vmatprep.subr.mxu0 %v2270
        %3555 = vmatpush2.msra.mxu0 %v2269
        %3556 = vmatprep.subr.mxu0 %v2238
        %3557 = vmatpush2.msra.mxu0 %v2237
        %3558 = vmatprep.subr.mxu0 %v2206
        %3559 = vmatpush2.msra.mxu0 %v2205
        %3560 = vmatprep.subr.mxu0 %v2174
        %3561 = vmatpush2.msra.mxu0 %v2173
        %3562 = vmatprep.subr.mxu0 %v2142
        %3563 = vmatpush2.msra.mxu0 %v2141
        %3564 = vmatprep.subr.mxu0 %v2110
        %3565 = vmatpush2.msra.mxu0 %v2109
        %3566 = vmatprep.subr.mxu0 %v2078
        %3567 = vmatpush2.msra.mxu0 %v2077
        %3568 = vmatprep.subr.mxu0 %v2046
        %3569 = vmatpush2.msra.mxu0 %v2045
        %3570 = vmatprep.subr.mxu0 %v2014
        %3571 = vmatpush2.msra.mxu0 %v2013
        %3572 = vmatprep.subr.mxu0 %v1982
        %3573 = vmatpush2.msra.mxu0 %v1981
        %3574 = vmatprep.subr.mxu0 %v1950
        %3575 = vmatpush2.msra.mxu0 %v1949
        %3576 = vmatprep.mubr.f32.mxu0 %v366
        %3577 = vmatmul.mubr.f32.gmra.mxu0 %v365
        %v3578 = vpop.f32.mrf.mxu0
        %v3579 = vadd.f32 %v3508, %v3578
        %v3580 = vpop.f32.mrf.mxu0
        %v3581 = vadd.f32 %v3510, %v3580
        %3582 = vdwg.mxu0
        %3583 = vmatprep.subr.mxu0 %v896
        %3584 = vmatpush1.msra.mxu0 %v895
        %3585 = vmatprep.subr.mxu0 %v864
        %3586 = vmatpush1.msra.mxu0 %v863
        %3587 = vmatprep.subr.mxu0 %v832
        %3588 = vmatpush1.msra.mxu0 %v831
        %3589 = vmatprep.subr.mxu0 %v800
        %3590 = vmatpush1.msra.mxu0 %v799
        %3591 = vmatprep.subr.mxu0 %v768
        %3592 = vmatpush1.msra.mxu0 %v767
        %3593 = vmatprep.subr.mxu0 %v736
        %3594 = vmatpush1.msra.mxu0 %v735
        %3595 = vmatprep.subr.mxu0 %v704
        %3596 = vmatpush1.msra.mxu0 %v703
        %3597 = vmatprep.subr.mxu0 %v672
        %3598 = vmatpush1.msra.mxu0 %v671
        %3599 = vmatprep.subr.mxu0 %v640
        %3600 = vmatpush1.msra.mxu0 %v639
        %3601 = vmatprep.subr.mxu0 %v608
        %3602 = vmatpush1.msra.mxu0 %v607
        %3603 = vmatprep.subr.mxu0 %v576
        %3604 = vmatpush1.msra.mxu0 %v575
        %3605 = vmatprep.subr.mxu0 %v544
        %3606 = vmatpush1.msra.mxu0 %v543
        %3607 = vmatprep.subr.mxu0 %v512
        %3608 = vmatpush1.msra.mxu0 %v511
        %3609 = vmatprep.subr.mxu0 %v480
        %3610 = vmatpush1.msra.mxu0 %v479
        %3611 = vmatprep.subr.mxu0 %v448
        %3612 = vmatpush1.msra.mxu0 %v447
        %3613 = vmatprep.subr.mxu0 %v416
        %3614 = vmatpush1.msra.mxu0 %v415
        %3615 = vmatprep.subr.mxu0 %v1408
        %3616 = vmatpush2.msra.mxu0 %v1407
        %3617 = vmatprep.subr.mxu0 %v1376
        %3618 = vmatpush2.msra.mxu0 %v1375
        %3619 = vmatprep.subr.mxu0 %v1344
        %3620 = vmatpush2.msra.mxu0 %v1343
        %3621 = vmatprep.subr.mxu0 %v1312
        %3622 = vmatpush2.msra.mxu0 %v1311
        %3623 = vmatprep.subr.mxu0 %v1280
        %3624 = vmatpush2.msra.mxu0 %v1279
        %3625 = vmatprep.subr.mxu0 %v1248
        %3626 = vmatpush2.msra.mxu0 %v1247
        %3627 = vmatprep.subr.mxu0 %v1216
        %3628 = vmatpush2.msra.mxu0 %v1215
        %3629 = vmatprep.subr.mxu0 %v1184
        %3630 = vmatpush2.msra.mxu0 %v1183
        %3631 = vmatprep.subr.mxu0 %v1152
        %3632 = vmatpush2.msra.mxu0 %v1151
        %3633 = vmatprep.subr.mxu0 %v1120
        %3634 = vmatpush2.msra.mxu0 %v1119
        %3635 = vmatprep.subr.mxu0 %v1088
        %3636 = vmatpush2.msra.mxu0 %v1087
        %3637 = vmatprep.subr.mxu0 %v1056
        %3638 = vmatpush2.msra.mxu0 %v1055
        %3639 = vmatprep.subr.mxu0 %v1024
        %3640 = vmatpush2.msra.mxu0 %v1023
        %3641 = vmatprep.subr.mxu0 %v992
        %3642 = vmatpush2.msra.mxu0 %v991
        %3643 = vmatprep.subr.mxu0 %v960
        %3644 = vmatpush2.msra.mxu0 %v959
        %3645 = vmatprep.subr.mxu0 %v928
        %3646 = vmatpush2.msra.mxu0 %v927
        %3647 = vmatprep.mubr.f32.mxu0 %v364
        %3648 = vmatmul.mubr.f32.gmra.mxu0 %v363
        %v3649 = vpop.f32.mrf.mxu0
        %v3650 = vadd.f32 0.0, %v3649
        %v3651 = vpop.f32.mrf.mxu0
        %v3652 = vadd.f32 0.0, %v3651
        %3653 = vdwg.mxu0
        %3654 = vmatprep.subr.mxu0 %v1920
        %3655 = vmatpush1.msra.mxu0 %v1919
        %3656 = vmatprep.subr.mxu0 %v1888
        %3657 = vmatpush1.msra.mxu0 %v1887
        %3658 = vmatprep.subr.mxu0 %v1856
        %3659 = vmatpush1.msra.mxu0 %v1855
        %3660 = vmatprep.subr.mxu0 %v1824
        %3661 = vmatpush1.msra.mxu0 %v1823
        %3662 = vmatprep.subr.mxu0 %v1792
        %3663 = vmatpush1.msra.mxu0 %v1791
        %3664 = vmatprep.subr.mxu0 %v1760
        %3665 = vmatpush1.msra.mxu0 %v1759
        %3666 = vmatprep.subr.mxu0 %v1728
        %3667 = vmatpush1.msra.mxu0 %v1727
        %3668 = vmatprep.subr.mxu0 %v1696
        %3669 = vmatpush1.msra.mxu0 %v1695
        %3670 = vmatprep.subr.mxu0 %v1664
        %3671 = vmatpush1.msra.mxu0 %v1663
        %3672 = vmatprep.subr.mxu0 %v1632
        %3673 = vmatpush1.msra.mxu0 %v1631
        %3674 = vmatprep.subr.mxu0 %v1600
        %3675 = vmatpush1.msra.mxu0 %v1599
        %3676 = vmatprep.subr.mxu0 %v1568
        %3677 = vmatpush1.msra.mxu0 %v1567
        %3678 = vmatprep.subr.mxu0 %v1536
        %3679 = vmatpush1.msra.mxu0 %v1535
        %3680 = vmatprep.subr.mxu0 %v1504
        %3681 = vmatpush1.msra.mxu0 %v1503
        %3682 = vmatprep.subr.mxu0 %v1472
        %3683 = vmatpush1.msra.mxu0 %v1471
        %3684 = vmatprep.subr.mxu0 %v1440
        %3685 = vmatpush1.msra.mxu0 %v1439
        %3686 = vmatprep.subr.mxu0 %v2432
        %3687 = vmatpush2.msra.mxu0 %v2431
        %3688 = vmatprep.subr.mxu0 %v2400
        %3689 = vmatpush2.msra.mxu0 %v2399
        %3690 = vmatprep.subr.mxu0 %v2368
        %3691 = vmatpush2.msra.mxu0 %v2367
        %3692 = vmatprep.subr.mxu0 %v2336
        %3693 = vmatpush2.msra.mxu0 %v2335
        %3694 = vmatprep.subr.mxu0 %v2304
        %3695 = vmatpush2.msra.mxu0 %v2303
        %3696 = vmatprep.subr.mxu0 %v2272
        %3697 = vmatpush2.msra.mxu0 %v2271
        %3698 = vmatprep.subr.mxu0 %v2240
        %3699 = vmatpush2.msra.mxu0 %v2239
        %3700 = vmatprep.subr.mxu0 %v2208
        %3701 = vmatpush2.msra.mxu0 %v2207
        %3702 = vmatprep.subr.mxu0 %v2176
        %3703 = vmatpush2.msra.mxu0 %v2175
        %3704 = vmatprep.subr.mxu0 %v2144
        %3705 = vmatpush2.msra.mxu0 %v2143
        %3706 = vmatprep.subr.mxu0 %v2112
        %3707 = vmatpush2.msra.mxu0 %v2111
        %3708 = vmatprep.subr.mxu0 %v2080
        %3709 = vmatpush2.msra.mxu0 %v2079
        %3710 = vmatprep.subr.mxu0 %v2048
        %3711 = vmatpush2.msra.mxu0 %v2047
        %3712 = vmatprep.subr.mxu0 %v2016
        %3713 = vmatpush2.msra.mxu0 %v2015
        %3714 = vmatprep.subr.mxu0 %v1984
        %3715 = vmatpush2.msra.mxu0 %v1983
        %3716 = vmatprep.subr.mxu0 %v1952
        %3717 = vmatpush2.msra.mxu0 %v1951
        %3718 = vmatprep.mubr.f32.mxu0 %v366
        %3719 = vmatmul.mubr.f32.gmra.mxu0 %v365
        %v3720 = vpop.f32.mrf.mxu0
        %v3721 = vadd.f32 %v3650, %v3720
        %v3722 = vpop.f32.mrf.mxu0
        %v3723 = vadd.f32 %v3652, %v3722
        %3724 = vdwg.mxu0
        %3725 = vmatprep.subr.mxu0 %v898
        %3726 = vmatpush1.msra.mxu0 %v897
        %3727 = vmatprep.subr.mxu0 %v866
        %3728 = vmatpush1.msra.mxu0 %v865
        %3729 = vmatprep.subr.mxu0 %v834
        %3730 = vmatpush1.msra.mxu0 %v833
        %3731 = vmatprep.subr.mxu0 %v802
        %3732 = vmatpush1.msra.mxu0 %v801
        %3733 = vmatprep.subr.mxu0 %v770
        %3734 = vmatpush1.msra.mxu0 %v769
        %3735 = vmatprep.subr.mxu0 %v738
        %3736 = vmatpush1.msra.mxu0 %v737
        %3737 = vmatprep.subr.mxu0 %v706
        %3738 = vmatpush1.msra.mxu0 %v705
        %3739 = vmatprep.subr.mxu0 %v674
        %3740 = vmatpush1.msra.mxu0 %v673
        %3741 = vmatprep.subr.mxu0 %v642
        %3742 = vmatpush1.msra.mxu0 %v641
        %3743 = vmatprep.subr.mxu0 %v610
        %3744 = vmatpush1.msra.mxu0 %v609
        %3745 = vmatprep.subr.mxu0 %v578
        %3746 = vmatpush1.msra.mxu0 %v577
        %3747 = vmatprep.subr.mxu0 %v546
        %3748 = vmatpush1.msra.mxu0 %v545
        %3749 = vmatprep.subr.mxu0 %v514
        %3750 = vmatpush1.msra.mxu0 %v513
        %3751 = vmatprep.subr.mxu0 %v482
        %3752 = vmatpush1.msra.mxu0 %v481
        %3753 = vmatprep.subr.mxu0 %v450
        %3754 = vmatpush1.msra.mxu0 %v449
        %3755 = vmatprep.subr.mxu0 %v418
        %3756 = vmatpush1.msra.mxu0 %v417
        %3757 = vmatprep.subr.mxu0 %v1410
        %3758 = vmatpush2.msra.mxu0 %v1409
        %3759 = vmatprep.subr.mxu0 %v1378
        %3760 = vmatpush2.msra.mxu0 %v1377
        %3761 = vmatprep.subr.mxu0 %v1346
        %3762 = vmatpush2.msra.mxu0 %v1345
        %3763 = vmatprep.subr.mxu0 %v1314
        %3764 = vmatpush2.msra.mxu0 %v1313
        %3765 = vmatprep.subr.mxu0 %v1282
        %3766 = vmatpush2.msra.mxu0 %v1281
        %3767 = vmatprep.subr.mxu0 %v1250
        %3768 = vmatpush2.msra.mxu0 %v1249
        %3769 = vmatprep.subr.mxu0 %v1218
        %3770 = vmatpush2.msra.mxu0 %v1217
        %3771 = vmatprep.subr.mxu0 %v1186
        %3772 = vmatpush2.msra.mxu0 %v1185
        %3773 = vmatprep.subr.mxu0 %v1154
        %3774 = vmatpush2.msra.mxu0 %v1153
        %3775 = vmatprep.subr.mxu0 %v1122
        %3776 = vmatpush2.msra.mxu0 %v1121
        %3777 = vmatprep.subr.mxu0 %v1090
        %3778 = vmatpush2.msra.mxu0 %v1089
        %3779 = vmatprep.subr.mxu0 %v1058
        %3780 = vmatpush2.msra.mxu0 %v1057
        %3781 = vmatprep.subr.mxu0 %v1026
        %3782 = vmatpush2.msra.mxu0 %v1025
        %3783 = vmatprep.subr.mxu0 %v994
        %3784 = vmatpush2.msra.mxu0 %v993
        %3785 = vmatprep.subr.mxu0 %v962
        %3786 = vmatpush2.msra.mxu0 %v961
        %3787 = vmatprep.subr.mxu0 %v930
        %3788 = vmatpush2.msra.mxu0 %v929
        %3789 = vmatprep.mubr.f32.mxu0 %v364
        %3790 = vmatmul.mubr.f32.gmra.mxu0 %v363
        %v3791 = vpop.f32.mrf.mxu0
        %v3792 = vadd.f32 0.0, %v3791
        %v3793 = vpop.f32.mrf.mxu0
        %v3794 = vadd.f32 0.0, %v3793
        %3795 = vdwg.mxu0
        %3796 = vmatprep.subr.mxu0 %v1922
        %3797 = vmatpush1.msra.mxu0 %v1921
        %3798 = vmatprep.subr.mxu0 %v1890
        %3799 = vmatpush1.msra.mxu0 %v1889
        %3800 = vmatprep.subr.mxu0 %v1858
        %3801 = vmatpush1.msra.mxu0 %v1857
        %3802 = vmatprep.subr.mxu0 %v1826
        %3803 = vmatpush1.msra.mxu0 %v1825
        %3804 = vmatprep.subr.mxu0 %v1794
        %3805 = vmatpush1.msra.mxu0 %v1793
        %3806 = vmatprep.subr.mxu0 %v1762
        %3807 = vmatpush1.msra.mxu0 %v1761
        %3808 = vmatprep.subr.mxu0 %v1730
        %3809 = vmatpush1.msra.mxu0 %v1729
        %3810 = vmatprep.subr.mxu0 %v1698
        %3811 = vmatpush1.msra.mxu0 %v1697
        %3812 = vmatprep.subr.mxu0 %v1666
        %3813 = vmatpush1.msra.mxu0 %v1665
        %3814 = vmatprep.subr.mxu0 %v1634
        %3815 = vmatpush1.msra.mxu0 %v1633
        %3816 = vmatprep.subr.mxu0 %v1602
        %3817 = vmatpush1.msra.mxu0 %v1601
        %3818 = vmatprep.subr.mxu0 %v1570
        %3819 = vmatpush1.msra.mxu0 %v1569
        %3820 = vmatprep.subr.mxu0 %v1538
        %3821 = vmatpush1.msra.mxu0 %v1537
        %3822 = vmatprep.subr.mxu0 %v1506
        %3823 = vmatpush1.msra.mxu0 %v1505
        %3824 = vmatprep.subr.mxu0 %v1474
        %3825 = vmatpush1.msra.mxu0 %v1473
        %3826 = vmatprep.subr.mxu0 %v1442
        %3827 = vmatpush1.msra.mxu0 %v1441
        %3828 = vmatprep.subr.mxu0 %v2434
        %3829 = vmatpush2.msra.mxu0 %v2433
        %3830 = vmatprep.subr.mxu0 %v2402
        %3831 = vmatpush2.msra.mxu0 %v2401
        %3832 = vmatprep.subr.mxu0 %v2370
        %3833 = vmatpush2.msra.mxu0 %v2369
        %3834 = vmatprep.subr.mxu0 %v2338
        %3835 = vmatpush2.msra.mxu0 %v2337
        %3836 = vmatprep.subr.mxu0 %v2306
        %3837 = vmatpush2.msra.mxu0 %v2305
        %3838 = vmatprep.subr.mxu0 %v2274
        %3839 = vmatpush2.msra.mxu0 %v2273
        %3840 = vmatprep.subr.mxu0 %v2242
        %3841 = vmatpush2.msra.mxu0 %v2241
        %3842 = vmatprep.subr.mxu0 %v2210
        %3843 = vmatpush2.msra.mxu0 %v2209
        %3844 = vmatprep.subr.mxu0 %v2178
        %3845 = vmatpush2.msra.mxu0 %v2177
        %3846 = vmatprep.subr.mxu0 %v2146
        %3847 = vmatpush2.msra.mxu0 %v2145
        %3848 = vmatprep.subr.mxu0 %v2114
        %3849 = vmatpush2.msra.mxu0 %v2113
        %3850 = vmatprep.subr.mxu0 %v2082
        %3851 = vmatpush2.msra.mxu0 %v2081
        %3852 = vmatprep.subr.mxu0 %v2050
        %3853 = vmatpush2.msra.mxu0 %v2049
        %3854 = vmatprep.subr.mxu0 %v2018
        %3855 = vmatpush2.msra.mxu0 %v2017
        %3856 = vmatprep.subr.mxu0 %v1986
        %3857 = vmatpush2.msra.mxu0 %v1985
        %3858 = vmatprep.subr.mxu0 %v1954
        %3859 = vmatpush2.msra.mxu0 %v1953
        %3860 = vmatprep.mubr.f32.mxu0 %v366
        %3861 = vmatmul.mubr.f32.gmra.mxu0 %v365
        %v3862 = vpop.f32.mrf.mxu0
        %v3863 = vadd.f32 %v3792, %v3862
        %v3864 = vpop.f32.mrf.mxu0
        %v3865 = vadd.f32 %v3794, %v3864
        %3866 = vdwg.mxu0
        %3867 = vmatprep.subr.mxu0 %v900
        %3868 = vmatpush1.msra.mxu0 %v899
        %3869 = vmatprep.subr.mxu0 %v868
        %3870 = vmatpush1.msra.mxu0 %v867
        %3871 = vmatprep.subr.mxu0 %v836
        %3872 = vmatpush1.msra.mxu0 %v835
        %3873 = vmatprep.subr.mxu0 %v804
        %3874 = vmatpush1.msra.mxu0 %v803
        %3875 = vmatprep.subr.mxu0 %v772
        %3876 = vmatpush1.msra.mxu0 %v771
        %3877 = vmatprep.subr.mxu0 %v740
        %3878 = vmatpush1.msra.mxu0 %v739
        %3879 = vmatprep.subr.mxu0 %v708
        %3880 = vmatpush1.msra.mxu0 %v707
        %3881 = vmatprep.subr.mxu0 %v676
        %3882 = vmatpush1.msra.mxu0 %v675
        %3883 = vmatprep.subr.mxu0 %v644
        %3884 = vmatpush1.msra.mxu0 %v643
        %3885 = vmatprep.subr.mxu0 %v612
        %3886 = vmatpush1.msra.mxu0 %v611
        %3887 = vmatprep.subr.mxu0 %v580
        %3888 = vmatpush1.msra.mxu0 %v579
        %3889 = vmatprep.subr.mxu0 %v548
        %3890 = vmatpush1.msra.mxu0 %v547
        %3891 = vmatprep.subr.mxu0 %v516
        %3892 = vmatpush1.msra.mxu0 %v515
        %3893 = vmatprep.subr.mxu0 %v484
        %3894 = vmatpush1.msra.mxu0 %v483
        %3895 = vmatprep.subr.mxu0 %v452
        %3896 = vmatpush1.msra.mxu0 %v451
        %3897 = vmatprep.subr.mxu0 %v420
        %3898 = vmatpush1.msra.mxu0 %v419
        %3899 = vmatprep.subr.mxu0 %v1412
        %3900 = vmatpush2.msra.mxu0 %v1411
        %3901 = vmatprep.subr.mxu0 %v1380
        %3902 = vmatpush2.msra.mxu0 %v1379
        %3903 = vmatprep.subr.mxu0 %v1348
        %3904 = vmatpush2.msra.mxu0 %v1347
        %3905 = vmatprep.subr.mxu0 %v1316
        %3906 = vmatpush2.msra.mxu0 %v1315
        %3907 = vmatprep.subr.mxu0 %v1284
        %3908 = vmatpush2.msra.mxu0 %v1283
        %3909 = vmatprep.subr.mxu0 %v1252
        %3910 = vmatpush2.msra.mxu0 %v1251
        %3911 = vmatprep.subr.mxu0 %v1220
        %3912 = vmatpush2.msra.mxu0 %v1219
        %3913 = vmatprep.subr.mxu0 %v1188
        %3914 = vmatpush2.msra.mxu0 %v1187
        %3915 = vmatprep.subr.mxu0 %v1156
        %3916 = vmatpush2.msra.mxu0 %v1155
        %3917 = vmatprep.subr.mxu0 %v1124
        %3918 = vmatpush2.msra.mxu0 %v1123
        %3919 = vmatprep.subr.mxu0 %v1092
        %3920 = vmatpush2.msra.mxu0 %v1091
        %3921 = vmatprep.subr.mxu0 %v1060
        %3922 = vmatpush2.msra.mxu0 %v1059
        %3923 = vmatprep.subr.mxu0 %v1028
        %3924 = vmatpush2.msra.mxu0 %v1027
        %3925 = vmatprep.subr.mxu0 %v996
        %3926 = vmatpush2.msra.mxu0 %v995
        %3927 = vmatprep.subr.mxu0 %v964
        %3928 = vmatpush2.msra.mxu0 %v963
        %3929 = vmatprep.subr.mxu0 %v932
        %3930 = vmatpush2.msra.mxu0 %v931
        %3931 = vmatprep.mubr.f32.mxu0 %v364
        %3932 = vmatmul.mubr.f32.gmra.mxu0 %v363
        %v3933 = vpop.f32.mrf.mxu0
        %v3934 = vadd.f32 0.0, %v3933
        %v3935 = vpop.f32.mrf.mxu0
        %v3936 = vadd.f32 0.0, %v3935
        %3937 = vdwg.mxu0
        %3938 = vmatprep.subr.mxu0 %v1924
        %3939 = vmatpush1.msra.mxu0 %v1923
        %3940 = vmatprep.subr.mxu0 %v1892
        %3941 = vmatpush1.msra.mxu0 %v1891
        %3942 = vmatprep.subr.mxu0 %v1860
        %3943 = vmatpush1.msra.mxu0 %v1859
        %3944 = vmatprep.subr.mxu0 %v1828
        %3945 = vmatpush1.msra.mxu0 %v1827
        %3946 = vmatprep.subr.mxu0 %v1796
        %3947 = vmatpush1.msra.mxu0 %v1795
        %3948 = vmatprep.subr.mxu0 %v1764
        %3949 = vmatpush1.msra.mxu0 %v1763
        %3950 = vmatprep.subr.mxu0 %v1732
        %3951 = vmatpush1.msra.mxu0 %v1731
        %3952 = vmatprep.subr.mxu0 %v1700
        %3953 = vmatpush1.msra.mxu0 %v1699
        %3954 = vmatprep.subr.mxu0 %v1668
        %3955 = vmatpush1.msra.mxu0 %v1667
        %3956 = vmatprep.subr.mxu0 %v1636
        %3957 = vmatpush1.msra.mxu0 %v1635
        %3958 = vmatprep.subr.mxu0 %v1604
        %3959 = vmatpush1.msra.mxu0 %v1603
        %3960 = vmatprep.subr.mxu0 %v1572
        %3961 = vmatpush1.msra.mxu0 %v1571
        %3962 = vmatprep.subr.mxu0 %v1540
        %3963 = vmatpush1.msra.mxu0 %v1539
        %3964 = vmatprep.subr.mxu0 %v1508
        %3965 = vmatpush1.msra.mxu0 %v1507
        %3966 = vmatprep.subr.mxu0 %v1476
        %3967 = vmatpush1.msra.mxu0 %v1475
        %3968 = vmatprep.subr.mxu0 %v1444
        %3969 = vmatpush1.msra.mxu0 %v1443
        %3970 = vmatprep.subr.mxu0 %v2436
        %3971 = vmatpush2.msra.mxu0 %v2435
        %3972 = vmatprep.subr.mxu0 %v2404
        %3973 = vmatpush2.msra.mxu0 %v2403
        %3974 = vmatprep.subr.mxu0 %v2372
        %3975 = vmatpush2.msra.mxu0 %v2371
        %3976 = vmatprep.subr.mxu0 %v2340
        %3977 = vmatpush2.msra.mxu0 %v2339
        %3978 = vmatprep.subr.mxu0 %v2308
        %3979 = vmatpush2.msra.mxu0 %v2307
        %3980 = vmatprep.subr.mxu0 %v2276
        %3981 = vmatpush2.msra.mxu0 %v2275
        %3982 = vmatprep.subr.mxu0 %v2244
        %3983 = vmatpush2.msra.mxu0 %v2243
        %3984 = vmatprep.subr.mxu0 %v2212
        %3985 = vmatpush2.msra.mxu0 %v2211
        %3986 = vmatprep.subr.mxu0 %v2180
        %3987 = vmatpush2.msra.mxu0 %v2179
        %3988 = vmatprep.subr.mxu0 %v2148
        %3989 = vmatpush2.msra.mxu0 %v2147
        %3990 = vmatprep.subr.mxu0 %v2116
        %3991 = vmatpush2.msra.mxu0 %v2115
        %3992 = vmatprep.subr.mxu0 %v2084
        %3993 = vmatpush2.msra.mxu0 %v2083
        %3994 = vmatprep.subr.mxu0 %v2052
        %3995 = vmatpush2.msra.mxu0 %v2051
        %3996 = vmatprep.subr.mxu0 %v2020
        %3997 = vmatpush2.msra.mxu0 %v2019
        %3998 = vmatprep.subr.mxu0 %v1988
        %3999 = vmatpush2.msra.mxu0 %v1987
        %4000 = vmatprep.subr.mxu0 %v1956
        %4001 = vmatpush2.msra.mxu0 %v1955
        %4002 = vmatprep.mubr.f32.mxu0 %v366
        %4003 = vmatmul.mubr.f32.gmra.mxu0 %v365
        %v4004 = vpop.f32.mrf.mxu0
        %v4005 = vadd.f32 %v3934, %v4004
        %v4006 = vpop.f32.mrf.mxu0
        %v4007 = vadd.f32 %v3936, %v4006
        %4008 = vdwg.mxu0
        %4009 = vmatprep.subr.mxu0 %v902
        %4010 = vmatpush1.msra.mxu0 %v901
        %4011 = vmatprep.subr.mxu0 %v870
        %4012 = vmatpush1.msra.mxu0 %v869
        %4013 = vmatprep.subr.mxu0 %v838
        %4014 = vmatpush1.msra.mxu0 %v837
        %4015 = vmatprep.subr.mxu0 %v806
        %4016 = vmatpush1.msra.mxu0 %v805
        %4017 = vmatprep.subr.mxu0 %v774
        %4018 = vmatpush1.msra.mxu0 %v773
        %4019 = vmatprep.subr.mxu0 %v742
        %4020 = vmatpush1.msra.mxu0 %v741
        %4021 = vmatprep.subr.mxu0 %v710
        %4022 = vmatpush1.msra.mxu0 %v709
        %4023 = vmatprep.subr.mxu0 %v678
        %4024 = vmatpush1.msra.mxu0 %v677
        %4025 = vmatprep.subr.mxu0 %v646
        %4026 = vmatpush1.msra.mxu0 %v645
        %4027 = vmatprep.subr.mxu0 %v614
        %4028 = vmatpush1.msra.mxu0 %v613
        %4029 = vmatprep.subr.mxu0 %v582
        %4030 = vmatpush1.msra.mxu0 %v581
        %4031 = vmatprep.subr.mxu0 %v550
        %4032 = vmatpush1.msra.mxu0 %v549
        %4033 = vmatprep.subr.mxu0 %v518
        %4034 = vmatpush1.msra.mxu0 %v517
        %4035 = vmatprep.subr.mxu0 %v486
        %4036 = vmatpush1.msra.mxu0 %v485
        %4037 = vmatprep.subr.mxu0 %v454
        %4038 = vmatpush1.msra.mxu0 %v453
        %4039 = vmatprep.subr.mxu0 %v422
        %4040 = vmatpush1.msra.mxu0 %v421
        %4041 = vmatprep.subr.mxu0 %v1414
        %4042 = vmatpush2.msra.mxu0 %v1413
        %4043 = vmatprep.subr.mxu0 %v1382
        %4044 = vmatpush2.msra.mxu0 %v1381
        %4045 = vmatprep.subr.mxu0 %v1350
        %4046 = vmatpush2.msra.mxu0 %v1349
        %4047 = vmatprep.subr.mxu0 %v1318
        %4048 = vmatpush2.msra.mxu0 %v1317
        %4049 = vmatprep.subr.mxu0 %v1286
        %4050 = vmatpush2.msra.mxu0 %v1285
        %4051 = vmatprep.subr.mxu0 %v1254
        %4052 = vmatpush2.msra.mxu0 %v1253
        %4053 = vmatprep.subr.mxu0 %v1222
        %4054 = vmatpush2.msra.mxu0 %v1221
        %4055 = vmatprep.subr.mxu0 %v1190
        %4056 = vmatpush2.msra.mxu0 %v1189
        %4057 = vmatprep.subr.mxu0 %v1158
        %4058 = vmatpush2.msra.mxu0 %v1157
        %4059 = vmatprep.subr.mxu0 %v1126
        %4060 = vmatpush2.msra.mxu0 %v1125
        %4061 = vmatprep.subr.mxu0 %v1094
        %4062 = vmatpush2.msra.mxu0 %v1093
        %4063 = vmatprep.subr.mxu0 %v1062
        %4064 = vmatpush2.msra.mxu0 %v1061
        %4065 = vmatprep.subr.mxu0 %v1030
        %4066 = vmatpush2.msra.mxu0 %v1029
        %4067 = vmatprep.subr.mxu0 %v998
        %4068 = vmatpush2.msra.mxu0 %v997
        %4069 = vmatprep.subr.mxu0 %v966
        %4070 = vmatpush2.msra.mxu0 %v965
        %4071 = vmatprep.subr.mxu0 %v934
        %4072 = vmatpush2.msra.mxu0 %v933
        %4073 = vmatprep.mubr.f32.mxu0 %v364
        %4074 = vmatmul.mubr.f32.gmra.mxu0 %v363
        %v4075 = vpop.f32.mrf.mxu0
        %v4076 = vadd.f32 0.0, %v4075
        %v4077 = vpop.f32.mrf.mxu0
        %v4078 = vadd.f32 0.0, %v4077
        %4079 = vdwg.mxu0
        %4080 = vmatprep.subr.mxu0 %v1926
        %4081 = vmatpush1.msra.mxu0 %v1925
        %4082 = vmatprep.subr.mxu0 %v1894
        %4083 = vmatpush1.msra.mxu0 %v1893
        %4084 = vmatprep.subr.mxu0 %v1862
        %4085 = vmatpush1.msra.mxu0 %v1861
        %4086 = vmatprep.subr.mxu0 %v1830
        %4087 = vmatpush1.msra.mxu0 %v1829
        %4088 = vmatprep.subr.mxu0 %v1798
        %4089 = vmatpush1.msra.mxu0 %v1797
        %4090 = vmatprep.subr.mxu0 %v1766
        %4091 = vmatpush1.msra.mxu0 %v1765
        %4092 = vmatprep.subr.mxu0 %v1734
        %4093 = vmatpush1.msra.mxu0 %v1733
        %4094 = vmatprep.subr.mxu0 %v1702
        %4095 = vmatpush1.msra.mxu0 %v1701
        %4096 = vmatprep.subr.mxu0 %v1670
        %4097 = vmatpush1.msra.mxu0 %v1669
        %4098 = vmatprep.subr.mxu0 %v1638
        %4099 = vmatpush1.msra.mxu0 %v1637
        %4100 = vmatprep.subr.mxu0 %v1606
        %4101 = vmatpush1.msra.mxu0 %v1605
        %4102 = vmatprep.subr.mxu0 %v1574
        %4103 = vmatpush1.msra.mxu0 %v1573
        %4104 = vmatprep.subr.mxu0 %v1542
        %4105 = vmatpush1.msra.mxu0 %v1541
        %4106 = vmatprep.subr.mxu0 %v1510
        %4107 = vmatpush1.msra.mxu0 %v1509
        %4108 = vmatprep.subr.mxu0 %v1478
        %4109 = vmatpush1.msra.mxu0 %v1477
        %4110 = vmatprep.subr.mxu0 %v1446
        %4111 = vmatpush1.msra.mxu0 %v1445
        %4112 = vmatprep.subr.mxu0 %v2438
        %4113 = vmatpush2.msra.mxu0 %v2437
        %4114 = vmatprep.subr.mxu0 %v2406
        %4115 = vmatpush2.msra.mxu0 %v2405
        %4116 = vmatprep.subr.mxu0 %v2374
        %4117 = vmatpush2.msra.mxu0 %v2373
        %4118 = vmatprep.subr.mxu0 %v2342
        %4119 = vmatpush2.msra.mxu0 %v2341
        %4120 = vmatprep.subr.mxu0 %v2310
        %4121 = vmatpush2.msra.mxu0 %v2309
        %4122 = vmatprep.subr.mxu0 %v2278
        %4123 = vmatpush2.msra.mxu0 %v2277
        %4124 = vmatprep.subr.mxu0 %v2246
        %4125 = vmatpush2.msra.mxu0 %v2245
        %4126 = vmatprep.subr.mxu0 %v2214
        %4127 = vmatpush2.msra.mxu0 %v2213
        %4128 = vmatprep.subr.mxu0 %v2182
        %4129 = vmatpush2.msra.mxu0 %v2181
        %4130 = vmatprep.subr.mxu0 %v2150
        %4131 = vmatpush2.msra.mxu0 %v2149
        %4132 = vmatprep.subr.mxu0 %v2118
        %4133 = vmatpush2.msra.mxu0 %v2117
        %4134 = vmatprep.subr.mxu0 %v2086
        %4135 = vmatpush2.msra.mxu0 %v2085
        %4136 = vmatprep.subr.mxu0 %v2054
        %4137 = vmatpush2.msra.mxu0 %v2053
        %4138 = vmatprep.subr.mxu0 %v2022
        %4139 = vmatpush2.msra.mxu0 %v2021
        %4140 = vmatprep.subr.mxu0 %v1990
        %4141 = vmatpush2.msra.mxu0 %v1989
        %4142 = vmatprep.subr.mxu0 %v1958
        %4143 = vmatpush2.msra.mxu0 %v1957
        %4144 = vmatprep.mubr.f32.mxu0 %v366
        %4145 = vmatmul.mubr.f32.gmra.mxu0 %v365
        %v4146 = vpop.f32.mrf.mxu0
        %v4147 = vadd.f32 %v4076, %v4146
        %v4148 = vpop.f32.mrf.mxu0
        %v4149 = vadd.f32 %v4078, %v4148
        %4150 = vdwg.mxu0
        %4151 = vmatprep.subr.mxu0 %v904
        %4152 = vmatpush1.msra.mxu0 %v903
        %4153 = vmatprep.subr.mxu0 %v872
        %4154 = vmatpush1.msra.mxu0 %v871
        %4155 = vmatprep.subr.mxu0 %v840
        %4156 = vmatpush1.msra.mxu0 %v839
        %4157 = vmatprep.subr.mxu0 %v808
        %4158 = vmatpush1.msra.mxu0 %v807
        %4159 = vmatprep.subr.mxu0 %v776
        %4160 = vmatpush1.msra.mxu0 %v775
        %4161 = vmatprep.subr.mxu0 %v744
        %4162 = vmatpush1.msra.mxu0 %v743
        %4163 = vmatprep.subr.mxu0 %v712
        %4164 = vmatpush1.msra.mxu0 %v711
        %4165 = vmatprep.subr.mxu0 %v680
        %4166 = vmatpush1.msra.mxu0 %v679
        %4167 = vmatprep.subr.mxu0 %v648
        %4168 = vmatpush1.msra.mxu0 %v647
        %4169 = vmatprep.subr.mxu0 %v616
        %4170 = vmatpush1.msra.mxu0 %v615
        %4171 = vmatprep.subr.mxu0 %v584
        %4172 = vmatpush1.msra.mxu0 %v583
        %4173 = vmatprep.subr.mxu0 %v552
        %4174 = vmatpush1.msra.mxu0 %v551
        %4175 = vmatprep.subr.mxu0 %v520
        %4176 = vmatpush1.msra.mxu0 %v519
        %4177 = vmatprep.subr.mxu0 %v488
        %4178 = vmatpush1.msra.mxu0 %v487
        %4179 = vmatprep.subr.mxu0 %v456
        %4180 = vmatpush1.msra.mxu0 %v455
        %4181 = vmatprep.subr.mxu0 %v424
        %4182 = vmatpush1.msra.mxu0 %v423
        %4183 = vmatprep.subr.mxu0 %v1416
        %4184 = vmatpush2.msra.mxu0 %v1415
        %4185 = vmatprep.subr.mxu0 %v1384
        %4186 = vmatpush2.msra.mxu0 %v1383
        %4187 = vmatprep.subr.mxu0 %v1352
        %4188 = vmatpush2.msra.mxu0 %v1351
        %4189 = vmatprep.subr.mxu0 %v1320
        %4190 = vmatpush2.msra.mxu0 %v1319
        %4191 = vmatprep.subr.mxu0 %v1288
        %4192 = vmatpush2.msra.mxu0 %v1287
        %4193 = vmatprep.subr.mxu0 %v1256
        %4194 = vmatpush2.msra.mxu0 %v1255
        %4195 = vmatprep.subr.mxu0 %v1224
        %4196 = vmatpush2.msra.mxu0 %v1223
        %4197 = vmatprep.subr.mxu0 %v1192
        %4198 = vmatpush2.msra.mxu0 %v1191
        %4199 = vmatprep.subr.mxu0 %v1160
        %4200 = vmatpush2.msra.mxu0 %v1159
        %4201 = vmatprep.subr.mxu0 %v1128
        %4202 = vmatpush2.msra.mxu0 %v1127
        %4203 = vmatprep.subr.mxu0 %v1096
        %4204 = vmatpush2.msra.mxu0 %v1095
        %4205 = vmatprep.subr.mxu0 %v1064
        %4206 = vmatpush2.msra.mxu0 %v1063
        %4207 = vmatprep.subr.mxu0 %v1032
        %4208 = vmatpush2.msra.mxu0 %v1031
        %4209 = vmatprep.subr.mxu0 %v1000
        %4210 = vmatpush2.msra.mxu0 %v999
        %4211 = vmatprep.subr.mxu0 %v968
        %4212 = vmatpush2.msra.mxu0 %v967
        %4213 = vmatprep.subr.mxu0 %v936
        %4214 = vmatpush2.msra.mxu0 %v935
        %4215 = vmatprep.mubr.f32.mxu0 %v364
        %4216 = vmatmul.mubr.f32.gmra.mxu0 %v363
        %v4217 = vpop.f32.mrf.mxu0
        %v4218 = vadd.f32 0.0, %v4217
        %v4219 = vpop.f32.mrf.mxu0
        %v4220 = vadd.f32 0.0, %v4219
        %4221 = vdwg.mxu0
        %4222 = vmatprep.subr.mxu0 %v1928
        %4223 = vmatpush1.msra.mxu0 %v1927
        %4224 = vmatprep.subr.mxu0 %v1896
        %4225 = vmatpush1.msra.mxu0 %v1895
        %4226 = vmatprep.subr.mxu0 %v1864
        %4227 = vmatpush1.msra.mxu0 %v1863
        %4228 = vmatprep.subr.mxu0 %v1832
        %4229 = vmatpush1.msra.mxu0 %v1831
        %4230 = vmatprep.subr.mxu0 %v1800
        %4231 = vmatpush1.msra.mxu0 %v1799
        %4232 = vmatprep.subr.mxu0 %v1768
        %4233 = vmatpush1.msra.mxu0 %v1767
        %4234 = vmatprep.subr.mxu0 %v1736
        %4235 = vmatpush1.msra.mxu0 %v1735
        %4236 = vmatprep.subr.mxu0 %v1704
        %4237 = vmatpush1.msra.mxu0 %v1703
        %4238 = vmatprep.subr.mxu0 %v1672
        %4239 = vmatpush1.msra.mxu0 %v1671
        %4240 = vmatprep.subr.mxu0 %v1640
        %4241 = vmatpush1.msra.mxu0 %v1639
        %4242 = vmatprep.subr.mxu0 %v1608
        %4243 = vmatpush1.msra.mxu0 %v1607
        %4244 = vmatprep.subr.mxu0 %v1576
        %4245 = vmatpush1.msra.mxu0 %v1575
        %4246 = vmatprep.subr.mxu0 %v1544
        %4247 = vmatpush1.msra.mxu0 %v1543
        %4248 = vmatprep.subr.mxu0 %v1512
        %4249 = vmatpush1.msra.mxu0 %v1511
        %4250 = vmatprep.subr.mxu0 %v1480
        %4251 = vmatpush1.msra.mxu0 %v1479
        %4252 = vmatprep.subr.mxu0 %v1448
        %4253 = vmatpush1.msra.mxu0 %v1447
        %4254 = vmatprep.subr.mxu0 %v2440
        %4255 = vmatpush2.msra.mxu0 %v2439
        %4256 = vmatprep.subr.mxu0 %v2408
        %4257 = vmatpush2.msra.mxu0 %v2407
        %4258 = vmatprep.subr.mxu0 %v2376
        %4259 = vmatpush2.msra.mxu0 %v2375
        %4260 = vmatprep.subr.mxu0 %v2344
        %4261 = vmatpush2.msra.mxu0 %v2343
        %4262 = vmatprep.subr.mxu0 %v2312
        %4263 = vmatpush2.msra.mxu0 %v2311
        %4264 = vmatprep.subr.mxu0 %v2280
        %4265 = vmatpush2.msra.mxu0 %v2279
        %4266 = vmatprep.subr.mxu0 %v2248
        %4267 = vmatpush2.msra.mxu0 %v2247
        %4268 = vmatprep.subr.mxu0 %v2216
        %4269 = vmatpush2.msra.mxu0 %v2215
        %4270 = vmatprep.subr.mxu0 %v2184
        %4271 = vmatpush2.msra.mxu0 %v2183
        %4272 = vmatprep.subr.mxu0 %v2152
        %4273 = vmatpush2.msra.mxu0 %v2151
        %4274 = vmatprep.subr.mxu0 %v2120
        %4275 = vmatpush2.msra.mxu0 %v2119
        %4276 = vmatprep.subr.mxu0 %v2088
        %4277 = vmatpush2.msra.mxu0 %v2087
        %4278 = vmatprep.subr.mxu0 %v2056
        %4279 = vmatpush2.msra.mxu0 %v2055
        %4280 = vmatprep.subr.mxu0 %v2024
        %4281 = vmatpush2.msra.mxu0 %v2023
        %4282 = vmatprep.subr.mxu0 %v1992
        %4283 = vmatpush2.msra.mxu0 %v1991
        %4284 = vmatprep.subr.mxu0 %v1960
        %4285 = vmatpush2.msra.mxu0 %v1959
        %4286 = vmatprep.mubr.f32.mxu0 %v366
        %4287 = vmatmul.mubr.f32.gmra.mxu0 %v365
        %v4288 = vpop.f32.mrf.mxu0
        %v4289 = vadd.f32 %v4218, %v4288
        %v4290 = vpop.f32.mrf.mxu0
        %v4291 = vadd.f32 %v4220, %v4290
        %4292 = vdwg.mxu0
        %4293 = vmatprep.subr.mxu0 %v906
        %4294 = vmatpush1.msra.mxu0 %v905
        %4295 = vmatprep.subr.mxu0 %v874
        %4296 = vmatpush1.msra.mxu0 %v873
        %4297 = vmatprep.subr.mxu0 %v842
        %4298 = vmatpush1.msra.mxu0 %v841
        %4299 = vmatprep.subr.mxu0 %v810
        %4300 = vmatpush1.msra.mxu0 %v809
        %4301 = vmatprep.subr.mxu0 %v778
        %4302 = vmatpush1.msra.mxu0 %v777
        %4303 = vmatprep.subr.mxu0 %v746
        %4304 = vmatpush1.msra.mxu0 %v745
        %4305 = vmatprep.subr.mxu0 %v714
        %4306 = vmatpush1.msra.mxu0 %v713
        %4307 = vmatprep.subr.mxu0 %v682
        %4308 = vmatpush1.msra.mxu0 %v681
        %4309 = vmatprep.subr.mxu0 %v650
        %4310 = vmatpush1.msra.mxu0 %v649
        %4311 = vmatprep.subr.mxu0 %v618
        %4312 = vmatpush1.msra.mxu0 %v617
        %4313 = vmatprep.subr.mxu0 %v586
        %4314 = vmatpush1.msra.mxu0 %v585
        %4315 = vmatprep.subr.mxu0 %v554
        %4316 = vmatpush1.msra.mxu0 %v553
        %4317 = vmatprep.subr.mxu0 %v522
        %4318 = vmatpush1.msra.mxu0 %v521
        %4319 = vmatprep.subr.mxu0 %v490
        %4320 = vmatpush1.msra.mxu0 %v489
        %4321 = vmatprep.subr.mxu0 %v458
        %4322 = vmatpush1.msra.mxu0 %v457
        %4323 = vmatprep.subr.mxu0 %v426
        %4324 = vmatpush1.msra.mxu0 %v425
        %4325 = vmatprep.subr.mxu0 %v1418
        %4326 = vmatpush2.msra.mxu0 %v1417
        %4327 = vmatprep.subr.mxu0 %v1386
        %4328 = vmatpush2.msra.mxu0 %v1385
        %4329 = vmatprep.subr.mxu0 %v1354
        %4330 = vmatpush2.msra.mxu0 %v1353
        %4331 = vmatprep.subr.mxu0 %v1322
        %4332 = vmatpush2.msra.mxu0 %v1321
        %4333 = vmatprep.subr.mxu0 %v1290
        %4334 = vmatpush2.msra.mxu0 %v1289
        %4335 = vmatprep.subr.mxu0 %v1258
        %4336 = vmatpush2.msra.mxu0 %v1257
        %4337 = vmatprep.subr.mxu0 %v1226
        %4338 = vmatpush2.msra.mxu0 %v1225
        %4339 = vmatprep.subr.mxu0 %v1194
        %4340 = vmatpush2.msra.mxu0 %v1193
        %4341 = vmatprep.subr.mxu0 %v1162
        %4342 = vmatpush2.msra.mxu0 %v1161
        %4343 = vmatprep.subr.mxu0 %v1130
        %4344 = vmatpush2.msra.mxu0 %v1129
        %4345 = vmatprep.subr.mxu0 %v1098
        %4346 = vmatpush2.msra.mxu0 %v1097
        %4347 = vmatprep.subr.mxu0 %v1066
        %4348 = vmatpush2.msra.mxu0 %v1065
        %4349 = vmatprep.subr.mxu0 %v1034
        %4350 = vmatpush2.msra.mxu0 %v1033
        %4351 = vmatprep.subr.mxu0 %v1002
        %4352 = vmatpush2.msra.mxu0 %v1001
        %4353 = vmatprep.subr.mxu0 %v970
        %4354 = vmatpush2.msra.mxu0 %v969
        %4355 = vmatprep.subr.mxu0 %v938
        %4356 = vmatpush2.msra.mxu0 %v937
        %4357 = vmatprep.mubr.f32.mxu0 %v364
        %4358 = vmatmul.mubr.f32.gmra.mxu0 %v363
        %v4359 = vpop.f32.mrf.mxu0
        %v4360 = vadd.f32 0.0, %v4359
        %v4361 = vpop.f32.mrf.mxu0
        %v4362 = vadd.f32 0.0, %v4361
        %4363 = vdwg.mxu0
        %4364 = vmatprep.subr.mxu0 %v1930
        %4365 = vmatpush1.msra.mxu0 %v1929
        %4366 = vmatprep.subr.mxu0 %v1898
        %4367 = vmatpush1.msra.mxu0 %v1897
        %4368 = vmatprep.subr.mxu0 %v1866
        %4369 = vmatpush1.msra.mxu0 %v1865
        %4370 = vmatprep.subr.mxu0 %v1834
        %4371 = vmatpush1.msra.mxu0 %v1833
        %4372 = vmatprep.subr.mxu0 %v1802
        %4373 = vmatpush1.msra.mxu0 %v1801
        %4374 = vmatprep.subr.mxu0 %v1770
        %4375 = vmatpush1.msra.mxu0 %v1769
        %4376 = vmatprep.subr.mxu0 %v1738
        %4377 = vmatpush1.msra.mxu0 %v1737
        %4378 = vmatprep.subr.mxu0 %v1706
        %4379 = vmatpush1.msra.mxu0 %v1705
        %4380 = vmatprep.subr.mxu0 %v1674
        %4381 = vmatpush1.msra.mxu0 %v1673
        %4382 = vmatprep.subr.mxu0 %v1642
        %4383 = vmatpush1.msra.mxu0 %v1641
        %4384 = vmatprep.subr.mxu0 %v1610
        %4385 = vmatpush1.msra.mxu0 %v1609
        %4386 = vmatprep.subr.mxu0 %v1578
        %4387 = vmatpush1.msra.mxu0 %v1577
        %4388 = vmatprep.subr.mxu0 %v1546
        %4389 = vmatpush1.msra.mxu0 %v1545
        %4390 = vmatprep.subr.mxu0 %v1514
        %4391 = vmatpush1.msra.mxu0 %v1513
        %4392 = vmatprep.subr.mxu0 %v1482
        %4393 = vmatpush1.msra.mxu0 %v1481
        %4394 = vmatprep.subr.mxu0 %v1450
        %4395 = vmatpush1.msra.mxu0 %v1449
        %4396 = vmatprep.subr.mxu0 %v2442
        %4397 = vmatpush2.msra.mxu0 %v2441
        %4398 = vmatprep.subr.mxu0 %v2410
        %4399 = vmatpush2.msra.mxu0 %v2409
        %4400 = vmatprep.subr.mxu0 %v2378
        %4401 = vmatpush2.msra.mxu0 %v2377
        %4402 = vmatprep.subr.mxu0 %v2346
        %4403 = vmatpush2.msra.mxu0 %v2345
        %4404 = vmatprep.subr.mxu0 %v2314
        %4405 = vmatpush2.msra.mxu0 %v2313
        %4406 = vmatprep.subr.mxu0 %v2282
        %4407 = vmatpush2.msra.mxu0 %v2281
        %4408 = vmatprep.subr.mxu0 %v2250
        %4409 = vmatpush2.msra.mxu0 %v2249
        %4410 = vmatprep.subr.mxu0 %v2218
        %4411 = vmatpush2.msra.mxu0 %v2217
        %4412 = vmatprep.subr.mxu0 %v2186
        %4413 = vmatpush2.msra.mxu0 %v2185
        %4414 = vmatprep.subr.mxu0 %v2154
        %4415 = vmatpush2.msra.mxu0 %v2153
        %4416 = vmatprep.subr.mxu0 %v2122
        %4417 = vmatpush2.msra.mxu0 %v2121
        %4418 = vmatprep.subr.mxu0 %v2090
        %4419 = vmatpush2.msra.mxu0 %v2089
        %4420 = vmatprep.subr.mxu0 %v2058
        %4421 = vmatpush2.msra.mxu0 %v2057
        %4422 = vmatprep.subr.mxu0 %v2026
        %4423 = vmatpush2.msra.mxu0 %v2025
        %4424 = vmatprep.subr.mxu0 %v1994
        %4425 = vmatpush2.msra.mxu0 %v1993
        %4426 = vmatprep.subr.mxu0 %v1962
        %4427 = vmatpush2.msra.mxu0 %v1961
        %4428 = vmatprep.mubr.f32.mxu0 %v366
        %4429 = vmatmul.mubr.f32.gmra.mxu0 %v365
        %v4430 = vpop.f32.mrf.mxu0
        %v4431 = vadd.f32 %v4360, %v4430
        %v4432 = vpop.f32.mrf.mxu0
        %v4433 = vadd.f32 %v4362, %v4432
        %4434 = vdwg.mxu0
        %4435 = vmatprep.subr.mxu0 %v908
        %4436 = vmatpush1.msra.mxu0 %v907
        %4437 = vmatprep.subr.mxu0 %v876
        %4438 = vmatpush1.msra.mxu0 %v875
        %4439 = vmatprep.subr.mxu0 %v844
        %4440 = vmatpush1.msra.mxu0 %v843
        %4441 = vmatprep.subr.mxu0 %v812
        %4442 = vmatpush1.msra.mxu0 %v811
        %4443 = vmatprep.subr.mxu0 %v780
        %4444 = vmatpush1.msra.mxu0 %v779
        %4445 = vmatprep.subr.mxu0 %v748
        %4446 = vmatpush1.msra.mxu0 %v747
        %4447 = vmatprep.subr.mxu0 %v716
        %4448 = vmatpush1.msra.mxu0 %v715
        %4449 = vmatprep.subr.mxu0 %v684
        %4450 = vmatpush1.msra.mxu0 %v683
        %4451 = vmatprep.subr.mxu0 %v652
        %4452 = vmatpush1.msra.mxu0 %v651
        %4453 = vmatprep.subr.mxu0 %v620
        %4454 = vmatpush1.msra.mxu0 %v619
        %4455 = vmatprep.subr.mxu0 %v588
        %4456 = vmatpush1.msra.mxu0 %v587
        %4457 = vmatprep.subr.mxu0 %v556
        %4458 = vmatpush1.msra.mxu0 %v555
        %4459 = vmatprep.subr.mxu0 %v524
        %4460 = vmatpush1.msra.mxu0 %v523
        %4461 = vmatprep.subr.mxu0 %v492
        %4462 = vmatpush1.msra.mxu0 %v491
        %4463 = vmatprep.subr.mxu0 %v460
        %4464 = vmatpush1.msra.mxu0 %v459
        %4465 = vmatprep.subr.mxu0 %v428
        %4466 = vmatpush1.msra.mxu0 %v427
        %4467 = vmatprep.subr.mxu0 %v1420
        %4468 = vmatpush2.msra.mxu0 %v1419
        %4469 = vmatprep.subr.mxu0 %v1388
        %4470 = vmatpush2.msra.mxu0 %v1387
        %4471 = vmatprep.subr.mxu0 %v1356
        %4472 = vmatpush2.msra.mxu0 %v1355
        %4473 = vmatprep.subr.mxu0 %v1324
        %4474 = vmatpush2.msra.mxu0 %v1323
        %4475 = vmatprep.subr.mxu0 %v1292
        %4476 = vmatpush2.msra.mxu0 %v1291
        %4477 = vmatprep.subr.mxu0 %v1260
        %4478 = vmatpush2.msra.mxu0 %v1259
        %4479 = vmatprep.subr.mxu0 %v1228
        %4480 = vmatpush2.msra.mxu0 %v1227
        %4481 = vmatprep.subr.mxu0 %v1196
        %4482 = vmatpush2.msra.mxu0 %v1195
        %4483 = vmatprep.subr.mxu0 %v1164
        %4484 = vmatpush2.msra.mxu0 %v1163
        %4485 = vmatprep.subr.mxu0 %v1132
        %4486 = vmatpush2.msra.mxu0 %v1131
        %4487 = vmatprep.subr.mxu0 %v1100
        %4488 = vmatpush2.msra.mxu0 %v1099
        %4489 = vmatprep.subr.mxu0 %v1068
        %4490 = vmatpush2.msra.mxu0 %v1067
        %4491 = vmatprep.subr.mxu0 %v1036
        %4492 = vmatpush2.msra.mxu0 %v1035
        %4493 = vmatprep.subr.mxu0 %v1004
        %4494 = vmatpush2.msra.mxu0 %v1003
        %4495 = vmatprep.subr.mxu0 %v972
        %4496 = vmatpush2.msra.mxu0 %v971
        %4497 = vmatprep.subr.mxu0 %v940
        %4498 = vmatpush2.msra.mxu0 %v939
        %4499 = vmatprep.mubr.f32.mxu0 %v364
        %4500 = vmatmul.mubr.f32.gmra.mxu0 %v363
        %v4501 = vpop.f32.mrf.mxu0
        %v4502 = vadd.f32 0.0, %v4501
        %v4503 = vpop.f32.mrf.mxu0
        %v4504 = vadd.f32 0.0, %v4503
        %4505 = vdwg.mxu0
        %4506 = vmatprep.subr.mxu0 %v1932
        %4507 = vmatpush1.msra.mxu0 %v1931
        %4508 = vmatprep.subr.mxu0 %v1900
        %4509 = vmatpush1.msra.mxu0 %v1899
        %4510 = vmatprep.subr.mxu0 %v1868
        %4511 = vmatpush1.msra.mxu0 %v1867
        %4512 = vmatprep.subr.mxu0 %v1836
        %4513 = vmatpush1.msra.mxu0 %v1835
        %4514 = vmatprep.subr.mxu0 %v1804
        %4515 = vmatpush1.msra.mxu0 %v1803
        %4516 = vmatprep.subr.mxu0 %v1772
        %4517 = vmatpush1.msra.mxu0 %v1771
        %4518 = vmatprep.subr.mxu0 %v1740
        %4519 = vmatpush1.msra.mxu0 %v1739
        %4520 = vmatprep.subr.mxu0 %v1708
        %4521 = vmatpush1.msra.mxu0 %v1707
        %4522 = vmatprep.subr.mxu0 %v1676
        %4523 = vmatpush1.msra.mxu0 %v1675
        %4524 = vmatprep.subr.mxu0 %v1644
        %4525 = vmatpush1.msra.mxu0 %v1643
        %4526 = vmatprep.subr.mxu0 %v1612
        %4527 = vmatpush1.msra.mxu0 %v1611
        %4528 = vmatprep.subr.mxu0 %v1580
        %4529 = vmatpush1.msra.mxu0 %v1579
        %4530 = vmatprep.subr.mxu0 %v1548
        %4531 = vmatpush1.msra.mxu0 %v1547
        %4532 = vmatprep.subr.mxu0 %v1516
        %4533 = vmatpush1.msra.mxu0 %v1515
        %4534 = vmatprep.subr.mxu0 %v1484
        %4535 = vmatpush1.msra.mxu0 %v1483
        %4536 = vmatprep.subr.mxu0 %v1452
        %4537 = vmatpush1.msra.mxu0 %v1451
        %4538 = vmatprep.subr.mxu0 %v2444
        %4539 = vmatpush2.msra.mxu0 %v2443
        %4540 = vmatprep.subr.mxu0 %v2412
        %4541 = vmatpush2.msra.mxu0 %v2411
        %4542 = vmatprep.subr.mxu0 %v2380
        %4543 = vmatpush2.msra.mxu0 %v2379
        %4544 = vmatprep.subr.mxu0 %v2348
        %4545 = vmatpush2.msra.mxu0 %v2347
        %4546 = vmatprep.subr.mxu0 %v2316
        %4547 = vmatpush2.msra.mxu0 %v2315
        %4548 = vmatprep.subr.mxu0 %v2284
        %4549 = vmatpush2.msra.mxu0 %v2283
        %4550 = vmatprep.subr.mxu0 %v2252
        %4551 = vmatpush2.msra.mxu0 %v2251
        %4552 = vmatprep.subr.mxu0 %v2220
        %4553 = vmatpush2.msra.mxu0 %v2219
        %4554 = vmatprep.subr.mxu0 %v2188
        %4555 = vmatpush2.msra.mxu0 %v2187
        %4556 = vmatprep.subr.mxu0 %v2156
        %4557 = vmatpush2.msra.mxu0 %v2155
        %4558 = vmatprep.subr.mxu0 %v2124
        %4559 = vmatpush2.msra.mxu0 %v2123
        %4560 = vmatprep.subr.mxu0 %v2092
        %4561 = vmatpush2.msra.mxu0 %v2091
        %4562 = vmatprep.subr.mxu0 %v2060
        %4563 = vmatpush2.msra.mxu0 %v2059
        %4564 = vmatprep.subr.mxu0 %v2028
        %4565 = vmatpush2.msra.mxu0 %v2027
        %4566 = vmatprep.subr.mxu0 %v1996
        %4567 = vmatpush2.msra.mxu0 %v1995
        %4568 = vmatprep.subr.mxu0 %v1964
        %4569 = vmatpush2.msra.mxu0 %v1963
        %4570 = vmatprep.mubr.f32.mxu0 %v366
        %4571 = vmatmul.mubr.f32.gmra.mxu0 %v365
        %v4572 = vpop.f32.mrf.mxu0
        %v4573 = vadd.f32 %v4502, %v4572
        %v4574 = vpop.f32.mrf.mxu0
        %v4575 = vadd.f32 %v4504, %v4574
        %4576 = vdwg.mxu0
        %4577 = vmatprep.subr.mxu0 %v910
        %4578 = vmatpush1.msra.mxu0 %v909
        %4579 = vmatprep.subr.mxu0 %v878
        %4580 = vmatpush1.msra.mxu0 %v877
        %4581 = vmatprep.subr.mxu0 %v846
        %4582 = vmatpush1.msra.mxu0 %v845
        %4583 = vmatprep.subr.mxu0 %v814
        %4584 = vmatpush1.msra.mxu0 %v813
        %4585 = vmatprep.subr.mxu0 %v782
        %4586 = vmatpush1.msra.mxu0 %v781
        %4587 = vmatprep.subr.mxu0 %v750
        %4588 = vmatpush1.msra.mxu0 %v749
        %4589 = vmatprep.subr.mxu0 %v718
        %4590 = vmatpush1.msra.mxu0 %v717
        %4591 = vmatprep.subr.mxu0 %v686
        %4592 = vmatpush1.msra.mxu0 %v685
        %4593 = vmatprep.subr.mxu0 %v654
        %4594 = vmatpush1.msra.mxu0 %v653
        %4595 = vmatprep.subr.mxu0 %v622
        %4596 = vmatpush1.msra.mxu0 %v621
        %4597 = vmatprep.subr.mxu0 %v590
        %4598 = vmatpush1.msra.mxu0 %v589
        %4599 = vmatprep.subr.mxu0 %v558
        %4600 = vmatpush1.msra.mxu0 %v557
        %4601 = vmatprep.subr.mxu0 %v526
        %4602 = vmatpush1.msra.mxu0 %v525
        %4603 = vmatprep.subr.mxu0 %v494
        %4604 = vmatpush1.msra.mxu0 %v493
        %4605 = vmatprep.subr.mxu0 %v462
        %4606 = vmatpush1.msra.mxu0 %v461
        %4607 = vmatprep.subr.mxu0 %v430
        %4608 = vmatpush1.msra.mxu0 %v429
        %4609 = vmatprep.subr.mxu0 %v1422
        %4610 = vmatpush2.msra.mxu0 %v1421
        %4611 = vmatprep.subr.mxu0 %v1390
        %4612 = vmatpush2.msra.mxu0 %v1389
        %4613 = vmatprep.subr.mxu0 %v1358
        %4614 = vmatpush2.msra.mxu0 %v1357
        %4615 = vmatprep.subr.mxu0 %v1326
        %4616 = vmatpush2.msra.mxu0 %v1325
        %4617 = vmatprep.subr.mxu0 %v1294
        %4618 = vmatpush2.msra.mxu0 %v1293
        %4619 = vmatprep.subr.mxu0 %v1262
        %4620 = vmatpush2.msra.mxu0 %v1261
        %4621 = vmatprep.subr.mxu0 %v1230
        %4622 = vmatpush2.msra.mxu0 %v1229
        %4623 = vmatprep.subr.mxu0 %v1198
        %4624 = vmatpush2.msra.mxu0 %v1197
        %4625 = vmatprep.subr.mxu0 %v1166
        %4626 = vmatpush2.msra.mxu0 %v1165
        %4627 = vmatprep.subr.mxu0 %v1134
        %4628 = vmatpush2.msra.mxu0 %v1133
        %4629 = vmatprep.subr.mxu0 %v1102
        %4630 = vmatpush2.msra.mxu0 %v1101
        %4631 = vmatprep.subr.mxu0 %v1070
        %4632 = vmatpush2.msra.mxu0 %v1069
        %4633 = vmatprep.subr.mxu0 %v1038
        %4634 = vmatpush2.msra.mxu0 %v1037
        %4635 = vmatprep.subr.mxu0 %v1006
        %4636 = vmatpush2.msra.mxu0 %v1005
        %4637 = vmatprep.subr.mxu0 %v974
        %4638 = vmatpush2.msra.mxu0 %v973
        %4639 = vmatprep.subr.mxu0 %v942
        %4640 = vmatpush2.msra.mxu0 %v941
        %4641 = vmatprep.mubr.f32.mxu0 %v364
        %4642 = vmatmul.mubr.f32.gmra.mxu0 %v363
        %v4643 = vpop.f32.mrf.mxu0
        %v4644 = vadd.f32 0.0, %v4643
        %v4645 = vpop.f32.mrf.mxu0
        %v4646 = vadd.f32 0.0, %v4645
        %4647 = vdwg.mxu0
        %4648 = vmatprep.subr.mxu0 %v1934
        %4649 = vmatpush1.msra.mxu0 %v1933
        %4650 = vmatprep.subr.mxu0 %v1902
        %4651 = vmatpush1.msra.mxu0 %v1901
        %4652 = vmatprep.subr.mxu0 %v1870
        %4653 = vmatpush1.msra.mxu0 %v1869
        %4654 = vmatprep.subr.mxu0 %v1838
        %4655 = vmatpush1.msra.mxu0 %v1837
        %4656 = vmatprep.subr.mxu0 %v1806
        %4657 = vmatpush1.msra.mxu0 %v1805
        %4658 = vmatprep.subr.mxu0 %v1774
        %4659 = vmatpush1.msra.mxu0 %v1773
        %4660 = vmatprep.subr.mxu0 %v1742
        %4661 = vmatpush1.msra.mxu0 %v1741
        %4662 = vmatprep.subr.mxu0 %v1710
        %4663 = vmatpush1.msra.mxu0 %v1709
        %4664 = vmatprep.subr.mxu0 %v1678
        %4665 = vmatpush1.msra.mxu0 %v1677
        %4666 = vmatprep.subr.mxu0 %v1646
        %4667 = vmatpush1.msra.mxu0 %v1645
        %4668 = vmatprep.subr.mxu0 %v1614
        %4669 = vmatpush1.msra.mxu0 %v1613
        %4670 = vmatprep.subr.mxu0 %v1582
        %4671 = vmatpush1.msra.mxu0 %v1581
        %4672 = vmatprep.subr.mxu0 %v1550
        %4673 = vmatpush1.msra.mxu0 %v1549
        %4674 = vmatprep.subr.mxu0 %v1518
        %4675 = vmatpush1.msra.mxu0 %v1517
        %4676 = vmatprep.subr.mxu0 %v1486
        %4677 = vmatpush1.msra.mxu0 %v1485
        %4678 = vmatprep.subr.mxu0 %v1454
        %4679 = vmatpush1.msra.mxu0 %v1453
        %4680 = vmatprep.subr.mxu0 %v2446
        %4681 = vmatpush2.msra.mxu0 %v2445
        %4682 = vmatprep.subr.mxu0 %v2414
        %4683 = vmatpush2.msra.mxu0 %v2413
        %4684 = vmatprep.subr.mxu0 %v2382
        %4685 = vmatpush2.msra.mxu0 %v2381
        %4686 = vmatprep.subr.mxu0 %v2350
        %4687 = vmatpush2.msra.mxu0 %v2349
        %4688 = vmatprep.subr.mxu0 %v2318
        %4689 = vmatpush2.msra.mxu0 %v2317
        %4690 = vmatprep.subr.mxu0 %v2286
        %4691 = vmatpush2.msra.mxu0 %v2285
        %4692 = vmatprep.subr.mxu0 %v2254
        %4693 = vmatpush2.msra.mxu0 %v2253
        %4694 = vmatprep.subr.mxu0 %v2222
        %4695 = vmatpush2.msra.mxu0 %v2221
        %4696 = vmatprep.subr.mxu0 %v2190
        %4697 = vmatpush2.msra.mxu0 %v2189
        %4698 = vmatprep.subr.mxu0 %v2158
        %4699 = vmatpush2.msra.mxu0 %v2157
        %4700 = vmatprep.subr.mxu0 %v2126
        %4701 = vmatpush2.msra.mxu0 %v2125
        %4702 = vmatprep.subr.mxu0 %v2094
        %4703 = vmatpush2.msra.mxu0 %v2093
        %4704 = vmatprep.subr.mxu0 %v2062
        %4705 = vmatpush2.msra.mxu0 %v2061
        %4706 = vmatprep.subr.mxu0 %v2030
        %4707 = vmatpush2.msra.mxu0 %v2029
        %4708 = vmatprep.subr.mxu0 %v1998
        %4709 = vmatpush2.msra.mxu0 %v1997
        %4710 = vmatprep.subr.mxu0 %v1966
        %4711 = vmatpush2.msra.mxu0 %v1965
        %4712 = vmatprep.mubr.f32.mxu0 %v366
        %4713 = vmatmul.mubr.f32.gmra.mxu0 %v365
        %v4714 = vpop.f32.mrf.mxu0
        %v4715 = vadd.f32 %v4644, %v4714
        %v4716 = vpop.f32.mrf.mxu0
        %v4717 = vadd.f32 %v4646, %v4716
        %4718 = vdwg.mxu0
        %v4719 = vadd.f32 %v367, %v2585
        %v4720 = vadd.f32 %v368, %v2587
        %v4721 = vadd.f32 %v369, %v2727
        %v4722 = vadd.f32 %v370, %v2729
        %v4723 = vadd.f32 %v371, %v2869
        %v4724 = vadd.f32 %v372, %v2871
        %v4725 = vadd.f32 %v373, %v3011
        %v4726 = vadd.f32 %v374, %v3013
        %v4727 = vadd.f32 %v375, %v3153
        %v4728 = vadd.f32 %v376, %v3155
        %v4729 = vadd.f32 %v377, %v3295
        %v4730 = vadd.f32 %v378, %v3297
        %v4731 = vadd.f32 %v379, %v3437
        %v4732 = vadd.f32 %v380, %v3439
        %v4733 = vadd.f32 %v381, %v3579
        %v4734 = vadd.f32 %v382, %v3581
        %v4735 = vadd.f32 %v383, %v3721
        %v4736 = vadd.f32 %v384, %v3723
        %v4737 = vadd.f32 %v385, %v3863
        %v4738 = vadd.f32 %v386, %v3865
        %v4739 = vadd.f32 %v387, %v4005
        %v4740 = vadd.f32 %v388, %v4007
        %v4741 = vadd.f32 %v389, %v4147
        %v4742 = vadd.f32 %v390, %v4149
        %v4743 = vadd.f32 %v391, %v4289
        %v4744 = vadd.f32 %v392, %v4291
        %v4745 = vadd.f32 %v393, %v4431
        %v4746 = vadd.f32 %v394, %v4433
        %v4747 = vadd.f32 %v395, %v4573
        %v4748 = vadd.f32 %v396, %v4575
        %v4749 = vadd.f32 %v397, %v4715
        %v4750 = vadd.f32 %v398, %v4717
        %4751 = vst [vmem:[#allocation2] sm:$0xff] %v4719
        %4752 = vst [vmem:[#allocation2 + $0x8] sm:$0xff] %v4720
        %4753 = vst [vmem:[#allocation2 + $0x10] sm:$0xff] %v4721
        %4754 = vst [vmem:[#allocation2 + $0x18] sm:$0xff] %v4722
        %4755 = vst [vmem:[#allocation2 + $0x20] sm:$0xff] %v4723
        %4756 = vst [vmem:[#allocation2 + $0x28] sm:$0xff] %v4724
        %4757 = vst [vmem:[#allocation2 + $0x30] sm:$0xff] %v4725
        %4758 = vst [vmem:[#allocation2 + $0x38] sm:$0xff] %v4726
        %4759 = vst [vmem:[#allocation2 + $0x40] sm:$0xff] %v4727
        %4760 = vst [vmem:[#allocation2 + $0x48] sm:$0xff] %v4728
        %4761 = vst [vmem:[#allocation2 + $0x50] sm:$0xff] %v4729
        %4762 = vst [vmem:[#allocation2 + $0x58] sm:$0xff] %v4730
        %4763 = vst [vmem:[#allocation2 + $0x60] sm:$0xff] %v4731
        %4764 = vst [vmem:[#allocation2 + $0x68] sm:$0xff] %v4732
        %4765 = vst [vmem:[#allocation2 + $0x70] sm:$0xff] %v4733
        %4766 = vst [vmem:[#allocation2 + $0x78] sm:$0xff] %v4734
        %4767 = vst [vmem:[#allocation2 + $0x80] sm:$0xff] %v4735
        %4768 = vst [vmem:[#allocation2 + $0x88] sm:$0xff] %v4736
        %4769 = vst [vmem:[#allocation2 + $0x90] sm:$0xff] %v4737
        %4770 = vst [vmem:[#allocation2 + $0x98] sm:$0xff] %v4738
        %4771 = vst [vmem:[#allocation2 + $0xa0] sm:$0xff] %v4739
        %4772 = vst [vmem:[#allocation2 + $0xa8] sm:$0xff] %v4740
        %4773 = vst [vmem:[#allocation2 + $0xb0] sm:$0xff] %v4741
        %4774 = vst [vmem:[#allocation2 + $0xb8] sm:$0xff] %v4742
        %4775 = vst [vmem:[#allocation2 + $0xc0] sm:$0xff] %v4743
        %4776 = vst [vmem:[#allocation2 + $0xc8] sm:$0xff] %v4744
        %4777 = vst [vmem:[#allocation2 + $0xd0] sm:$0xff] %v4745
        %4778 = vst [vmem:[#allocation2 + $0xd8] sm:$0xff] %v4746
        %4779 = vst [vmem:[#allocation2 + $0xe0] sm:$0xff] %v4747
        %4780 = vst [vmem:[#allocation2 + $0xe8] sm:$0xff] %v4748
        %4781 = vst [vmem:[#allocation2 + $0xf0] sm:$0xff] %v4749
        %4782 = vst [vmem:[#allocation2 + $0xf8] sm:$0xff] %v4750
        %p4783 = scmp.eq.s32.totalorder %s24, 5
        // Predicated region
        $region49: #{_forward_impl.1} parent=39 // pred_check
          %p4784 = pneg %p4783
        $region50: #{_forward_impl.1} parent=39 // pred_check_branch
          %4786 = sbr.rel (%p4784) target = $region52
        $region51: #{_forward_impl.1} parent=39 // pred_region
          %v4787 = vld [vmem:[#allocation2] sm:$0xff]
          %v4788 = vld [vmem:[#allocation2 + $0x8] sm:$0xff]
          %v4789 = vld [vmem:[#allocation2 + $0x10] sm:$0xff]
          %v4790 = vld [vmem:[#allocation2 + $0x18] sm:$0xff]
          %v4791 = vld [vmem:[#allocation2 + $0x20] sm:$0xff]
          %v4792 = vld [vmem:[#allocation2 + $0x28] sm:$0xff]
          %v4793 = vld [vmem:[#allocation2 + $0x30] sm:$0xff]
          %v4794 = vld [vmem:[#allocation2 + $0x38] sm:$0xff]
          %v4795 = vld [vmem:[#allocation2 + $0x40] sm:$0xff]
          %v4796 = vld [vmem:[#allocation2 + $0x48] sm:$0xff]
          %v4797 = vld [vmem:[#allocation2 + $0x50] sm:$0xff]
          %v4798 = vld [vmem:[#allocation2 + $0x58] sm:$0xff]
          %v4799 = vld [vmem:[#allocation2 + $0x60] sm:$0xff]
          %v4800 = vld [vmem:[#allocation2 + $0x68] sm:$0xff]
          %v4801 = vld [vmem:[#allocation2 + $0x70] sm:$0xff]
          %v4802 = vld [vmem:[#allocation2 + $0x78] sm:$0xff]
          %v4803 = vld [vmem:[#allocation2 + $0x80] sm:$0xff]
          %v4804 = vld [vmem:[#allocation2 + $0x88] sm:$0xff]
          %v4805 = vld [vmem:[#allocation2 + $0x90] sm:$0xff]
          %v4806 = vld [vmem:[#allocation2 + $0x98] sm:$0xff]
          %v4807 = vld [vmem:[#allocation2 + $0xa0] sm:$0xff]
          %v4808 = vld [vmem:[#allocation2 + $0xa8] sm:$0xff]
          %v4809 = vld [vmem:[#allocation2 + $0xb0] sm:$0xff]
          %v4810 = vld [vmem:[#allocation2 + $0xb8] sm:$0xff]
          %v4811 = vld [vmem:[#allocation2 + $0xc0] sm:$0xff]
          %v4812 = vld [vmem:[#allocation2 + $0xc8] sm:$0xff]
          %v4813 = vld [vmem:[#allocation2 + $0xd0] sm:$0xff]
          %v4814 = vld [vmem:[#allocation2 + $0xd8] sm:$0xff]
          %v4815 = vld [vmem:[#allocation2 + $0xe0] sm:$0xff]
          %v4816 = vld [vmem:[#allocation2 + $0xe8] sm:$0xff]
          %v4817 = vld [vmem:[#allocation2 + $0xf0] sm:$0xff]
          %v4818 = vld [vmem:[#allocation2 + $0xf8] sm:$0xff]
          %v4819 = vld [vmem:[%s305] sm:$0xff]
          %v4820 = vld [vmem:[%s305 + $0x8] sm:$0xff]
          %v4821 = vld [vmem:[%s305 + $0x10] sm:$0xff]
          %v4822 = vld [vmem:[%s305 + $0x18] sm:$0xff]
          %v4827 = vlaneseq
          %v4828 = vshrl.u32 %v4827, 7
          %v4829 = vsub.s32 0, %v4828
          %v4830 = vrot.slane %v4819, %v4829
          %v4831 = vlaneseq
          %v4832 = vshrl.u32 %v4831, 7
          %v4833 = vsub.s32 1, %v4832
          %v4834 = vrot.slane %v4819, %v4833
          %v4835 = vlaneseq
          %v4836 = vshrl.u32 %v4835, 7
          %v4837 = vsub.s32 2, %v4836
          %v4838 = vrot.slane %v4819, %v4837
          %v4839 = vlaneseq
          %v4840 = vshrl.u32 %v4839, 7
          %v4841 = vsub.s32 3, %v4840
          %v4842 = vrot.slane %v4819, %v4841
          %v4843 = vlaneseq
          %v4844 = vshrl.u32 %v4843, 7
          %v4845 = vsub.s32 4, %v4844
          %v4846 = vrot.slane %v4819, %v4845
          %v4847 = vlaneseq
          %v4848 = vshrl.u32 %v4847, 7
          %v4849 = vsub.s32 5, %v4848
          %v4850 = vrot.slane %v4819, %v4849
          %v4851 = vlaneseq
          %v4852 = vshrl.u32 %v4851, 7
          %v4853 = vsub.s32 6, %v4852
          %v4854 = vrot.slane %v4819, %v4853
          %v4855 = vlaneseq
          %v4856 = vshrl.u32 %v4855, 7
          %v4857 = vsub.s32 7, %v4856
          %v4858 = vrot.slane %v4819, %v4857
          %v4859 = vlaneseq
          %v4860 = vshrl.u32 %v4859, 7
          %v4861 = vsub.s32 0, %v4860
          %v4862 = vrot.slane %v4820, %v4861
          %v4863 = vlaneseq
          %v4864 = vshrl.u32 %v4863, 7
          %v4865 = vsub.s32 1, %v4864
          %v4866 = vrot.slane %v4820, %v4865
          %v4867 = vlaneseq
          %v4868 = vshrl.u32 %v4867, 7
          %v4869 = vsub.s32 2, %v4868
          %v4870 = vrot.slane %v4820, %v4869
          %v4871 = vlaneseq
          %v4872 = vshrl.u32 %v4871, 7
          %v4873 = vsub.s32 3, %v4872
          %v4874 = vrot.slane %v4820, %v4873
          %v4875 = vlaneseq
          %v4876 = vshrl.u32 %v4875, 7
          %v4877 = vsub.s32 4, %v4876
          %v4878 = vrot.slane %v4820, %v4877
          %v4879 = vlaneseq
          %v4880 = vshrl.u32 %v4879, 7
          %v4881 = vsub.s32 5, %v4880
          %v4882 = vrot.slane %v4820, %v4881
          %v4883 = vlaneseq
          %v4884 = vshrl.u32 %v4883, 7
          %v4885 = vsub.s32 6, %v4884
          %v4886 = vrot.slane %v4820, %v4885
          %v4887 = vlaneseq
          %v4888 = vshrl.u32 %v4887, 7
          %v4889 = vsub.s32 7, %v4888
          %v4890 = vrot.slane %v4820, %v4889
          %v4891 = vlaneseq
          %v4892 = vshrl.u32 %v4891, 7
          %v4893 = vsub.s32 0, %v4892
          %v4894 = vrot.slane %v4821, %v4893
          %v4895 = vlaneseq
          %v4896 = vshrl.u32 %v4895, 7
          %v4897 = vsub.s32 1, %v4896
          %v4898 = vrot.slane %v4821, %v4897
          %v4899 = vlaneseq
          %v4900 = vshrl.u32 %v4899, 7
          %v4901 = vsub.s32 2, %v4900
          %v4902 = vrot.slane %v4821, %v4901
          %v4903 = vlaneseq
          %v4904 = vshrl.u32 %v4903, 7
          %v4905 = vsub.s32 3, %v4904
          %v4906 = vrot.slane %v4821, %v4905
          %v4907 = vlaneseq
          %v4908 = vshrl.u32 %v4907, 7
          %v4909 = vsub.s32 4, %v4908
          %v4910 = vrot.slane %v4821, %v4909
          %v4911 = vlaneseq
          %v4912 = vshrl.u32 %v4911, 7
          %v4913 = vsub.s32 5, %v4912
          %v4914 = vrot.slane %v4821, %v4913
          %v4915 = vlaneseq
          %v4916 = vshrl.u32 %v4915, 7
          %v4917 = vsub.s32 6, %v4916
          %v4918 = vrot.slane %v4821, %v4917
          %v4919 = vlaneseq
          %v4920 = vshrl.u32 %v4919, 7
          %v4921 = vsub.s32 7, %v4920
          %v4922 = vrot.slane %v4821, %v4921
          %v4923 = vlaneseq
          %v4924 = vshrl.u32 %v4923, 7
          %v4925 = vsub.s32 0, %v4924
          %v4926 = vrot.slane %v4822, %v4925
          %v4927 = vlaneseq
          %v4928 = vshrl.u32 %v4927, 7
          %v4929 = vsub.s32 1, %v4928
          %v4930 = vrot.slane %v4822, %v4929
          %v4931 = vlaneseq
          %v4932 = vshrl.u32 %v4931, 7
          %v4933 = vsub.s32 2, %v4932
          %v4934 = vrot.slane %v4822, %v4933
          %v4935 = vlaneseq
          %v4936 = vshrl.u32 %v4935, 7
          %v4937 = vsub.s32 3, %v4936
          %v4938 = vrot.slane %v4822, %v4937
          %v4939 = vlaneseq
          %v4940 = vshrl.u32 %v4939, 7
          %v4941 = vsub.s32 4, %v4940
          %v4942 = vrot.slane %v4822, %v4941
          %v4943 = vlaneseq
          %v4944 = vshrl.u32 %v4943, 7
          %v4945 = vsub.s32 5, %v4944
          %v4946 = vrot.slane %v4822, %v4945
          %v4947 = vlaneseq
          %v4948 = vshrl.u32 %v4947, 7
          %v4949 = vsub.s32 6, %v4948
          %v4950 = vrot.slane %v4822, %v4949
          %v4951 = vlaneseq
          %v4952 = vshrl.u32 %v4951, 7
          %v4953 = vsub.s32 7, %v4952
          %v4954 = vrot.slane %v4822, %v4953
          %v4987 = vmul.f32 %v4787, %v4830
          %v4988 = vmul.f32 %v4788, %v4834
          %v4989 = vmul.f32 %v4789, %v4838
          %v4990 = vmul.f32 %v4790, %v4842
          %v4991 = vmul.f32 %v4791, %v4846
          %v4992 = vmul.f32 %v4792, %v4850
          %v4993 = vmul.f32 %v4793, %v4854
          %v4994 = vmul.f32 %v4794, %v4858
          %v4995 = vmul.f32 %v4795, %v4862
          %v4996 = vmul.f32 %v4796, %v4866
          %v4997 = vmul.f32 %v4797, %v4870
          %v4998 = vmul.f32 %v4798, %v4874
          %v4999 = vmul.f32 %v4799, %v4878
          %v5000 = vmul.f32 %v4800, %v4882
          %v5001 = vmul.f32 %v4801, %v4886
          %v5002 = vmul.f32 %v4802, %v4890
          %v5003 = vmul.f32 %v4803, %v4894
          %v5004 = vmul.f32 %v4804, %v4898
          %v5005 = vmul.f32 %v4805, %v4902
          %v5006 = vmul.f32 %v4806, %v4906
          %v5007 = vmul.f32 %v4807, %v4910
          %v5008 = vmul.f32 %v4808, %v4914
          %v5009 = vmul.f32 %v4809, %v4918
          %v5010 = vmul.f32 %v4810, %v4922
          %v5011 = vmul.f32 %v4811, %v4926
          %v5012 = vmul.f32 %v4812, %v4930
          %v5013 = vmul.f32 %v4813, %v4934
          %v5014 = vmul.f32 %v4814, %v4938
          %v5015 = vmul.f32 %v4815, %v4942
          %v5016 = vmul.f32 %v4816, %v4946
          %v5017 = vmul.f32 %v4817, %v4950
          %v5018 = vmul.f32 %v4818, %v4954
          %v5019 = vld [vmem:[%s310] sm:$0xff]
          %v5020 = vld [vmem:[%s310 + $0x8] sm:$0xff]
          %v5021 = vld [vmem:[%s310 + $0x10] sm:$0xff]
          %v5022 = vld [vmem:[%s310 + $0x18] sm:$0xff]
          %v5027 = vlaneseq
          %v5028 = vshrl.u32 %v5027, 7
          %v5029 = vsub.s32 0, %v5028
          %v5030 = vrot.slane %v5019, %v5029
          %v5031 = vlaneseq
          %v5032 = vshrl.u32 %v5031, 7
          %v5033 = vsub.s32 1, %v5032
          %v5034 = vrot.slane %v5019, %v5033
          %v5035 = vlaneseq
          %v5036 = vshrl.u32 %v5035, 7
          %v5037 = vsub.s32 2, %v5036
          %v5038 = vrot.slane %v5019, %v5037
          %v5039 = vlaneseq
          %v5040 = vshrl.u32 %v5039, 7
          %v5041 = vsub.s32 3, %v5040
          %v5042 = vrot.slane %v5019, %v5041
          %v5043 = vlaneseq
          %v5044 = vshrl.u32 %v5043, 7
          %v5045 = vsub.s32 4, %v5044
          %v5046 = vrot.slane %v5019, %v5045
          %v5047 = vlaneseq
          %v5048 = vshrl.u32 %v5047, 7
          %v5049 = vsub.s32 5, %v5048
          %v5050 = vrot.slane %v5019, %v5049
          %v5051 = vlaneseq
          %v5052 = vshrl.u32 %v5051, 7
          %v5053 = vsub.s32 6, %v5052
          %v5054 = vrot.slane %v5019, %v5053
          %v5055 = vlaneseq
          %v5056 = vshrl.u32 %v5055, 7
          %v5057 = vsub.s32 7, %v5056
          %v5058 = vrot.slane %v5019, %v5057
          %v5059 = vlaneseq
          %v5060 = vshrl.u32 %v5059, 7
          %v5061 = vsub.s32 0, %v5060
          %v5062 = vrot.slane %v5020, %v5061
          %v5063 = vlaneseq
          %v5064 = vshrl.u32 %v5063, 7
          %v5065 = vsub.s32 1, %v5064
          %v5066 = vrot.slane %v5020, %v5065
          %v5067 = vlaneseq
          %v5068 = vshrl.u32 %v5067, 7
          %v5069 = vsub.s32 2, %v5068
          %v5070 = vrot.slane %v5020, %v5069
          %v5071 = vlaneseq
          %v5072 = vshrl.u32 %v5071, 7
          %v5073 = vsub.s32 3, %v5072
          %v5074 = vrot.slane %v5020, %v5073
          %v5075 = vlaneseq
          %v5076 = vshrl.u32 %v5075, 7
          %v5077 = vsub.s32 4, %v5076
          %v5078 = vrot.slane %v5020, %v5077
          %v5079 = vlaneseq
          %v5080 = vshrl.u32 %v5079, 7
          %v5081 = vsub.s32 5, %v5080
          %v5082 = vrot.slane %v5020, %v5081
          %v5083 = vlaneseq
          %v5084 = vshrl.u32 %v5083, 7
          %v5085 = vsub.s32 6, %v5084
          %v5086 = vrot.slane %v5020, %v5085
          %v5087 = vlaneseq
          %v5088 = vshrl.u32 %v5087, 7
          %v5089 = vsub.s32 7, %v5088
          %v5090 = vrot.slane %v5020, %v5089
          %v5091 = vlaneseq
          %v5092 = vshrl.u32 %v5091, 7
          %v5093 = vsub.s32 0, %v5092
          %v5094 = vrot.slane %v5021, %v5093
          %v5095 = vlaneseq
          %v5096 = vshrl.u32 %v5095, 7
          %v5097 = vsub.s32 1, %v5096
          %v5098 = vrot.slane %v5021, %v5097
          %v5099 = vlaneseq
          %v5100 = vshrl.u32 %v5099, 7
          %v5101 = vsub.s32 2, %v5100
          %v5102 = vrot.slane %v5021, %v5101
          %v5103 = vlaneseq
          %v5104 = vshrl.u32 %v5103, 7
          %v5105 = vsub.s32 3, %v5104
          %v5106 = vrot.slane %v5021, %v5105
          %v5107 = vlaneseq
          %v5108 = vshrl.u32 %v5107, 7
          %v5109 = vsub.s32 4, %v5108
          %v5110 = vrot.slane %v5021, %v5109
          %v5111 = vlaneseq
          %v5112 = vshrl.u32 %v5111, 7
          %v5113 = vsub.s32 5, %v5112
          %v5114 = vrot.slane %v5021, %v5113
          %v5115 = vlaneseq
          %v5116 = vshrl.u32 %v5115, 7
          %v5117 = vsub.s32 6, %v5116
          %v5118 = vrot.slane %v5021, %v5117
          %v5119 = vlaneseq
          %v5120 = vshrl.u32 %v5119, 7
          %v5121 = vsub.s32 7, %v5120
          %v5122 = vrot.slane %v5021, %v5121
          %v5123 = vlaneseq
          %v5124 = vshrl.u32 %v5123, 7
          %v5125 = vsub.s32 0, %v5124
          %v5126 = vrot.slane %v5022, %v5125
          %v5127 = vlaneseq
          %v5128 = vshrl.u32 %v5127, 7
          %v5129 = vsub.s32 1, %v5128
          %v5130 = vrot.slane %v5022, %v5129
          %v5131 = vlaneseq
          %v5132 = vshrl.u32 %v5131, 7
          %v5133 = vsub.s32 2, %v5132
          %v5134 = vrot.slane %v5022, %v5133
          %v5135 = vlaneseq
          %v5136 = vshrl.u32 %v5135, 7
          %v5137 = vsub.s32 3, %v5136
          %v5138 = vrot.slane %v5022, %v5137
          %v5139 = vlaneseq
          %v5140 = vshrl.u32 %v5139, 7
          %v5141 = vsub.s32 4, %v5140
          %v5142 = vrot.slane %v5022, %v5141
          %v5143 = vlaneseq
          %v5144 = vshrl.u32 %v5143, 7
          %v5145 = vsub.s32 5, %v5144
          %v5146 = vrot.slane %v5022, %v5145
          %v5147 = vlaneseq
          %v5148 = vshrl.u32 %v5147, 7
          %v5149 = vsub.s32 6, %v5148
          %v5150 = vrot.slane %v5022, %v5149
          %v5151 = vlaneseq
          %v5152 = vshrl.u32 %v5151, 7
          %v5153 = vsub.s32 7, %v5152
          %v5154 = vrot.slane %v5022, %v5153
          %v5187 = vadd.f32 %v4987, %v5030
          %v5188 = vadd.f32 %v4988, %v5034
          %v5189 = vadd.f32 %v4989, %v5038
          %v5190 = vadd.f32 %v4990, %v5042
          %v5191 = vadd.f32 %v4991, %v5046
          %v5192 = vadd.f32 %v4992, %v5050
          %v5193 = vadd.f32 %v4993, %v5054
          %v5194 = vadd.f32 %v4994, %v5058
          %v5195 = vadd.f32 %v4995, %v5062
          %v5196 = vadd.f32 %v4996, %v5066
          %v5197 = vadd.f32 %v4997, %v5070
          %v5198 = vadd.f32 %v4998, %v5074
          %v5199 = vadd.f32 %v4999, %v5078
          %v5200 = vadd.f32 %v5000, %v5082
          %v5201 = vadd.f32 %v5001, %v5086
          %v5202 = vadd.f32 %v5002, %v5090
          %v5203 = vadd.f32 %v5003, %v5094
          %v5204 = vadd.f32 %v5004, %v5098
          %v5205 = vadd.f32 %v5005, %v5102
          %v5206 = vadd.f32 %v5006, %v5106
          %v5207 = vadd.f32 %v5007, %v5110
          %v5208 = vadd.f32 %v5008, %v5114
          %v5209 = vadd.f32 %v5009, %v5118
          %v5210 = vadd.f32 %v5010, %v5122
          %v5211 = vadd.f32 %v5011, %v5126
          %v5212 = vadd.f32 %v5012, %v5130
          %v5213 = vadd.f32 %v5013, %v5134
          %v5214 = vadd.f32 %v5014, %v5138
          %v5215 = vadd.f32 %v5015, %v5142
          %v5216 = vadd.f32 %v5016, %v5146
          %v5217 = vadd.f32 %v5017, %v5150
          %v5218 = vadd.f32 %v5018, %v5154
          %v5219 = vmax.f32 %v5187, 0.0
          %v5220 = vmax.f32 %v5188, 0.0
          %v5221 = vmax.f32 %v5189, 0.0
          %v5222 = vmax.f32 %v5190, 0.0
          %v5223 = vmax.f32 %v5191, 0.0
          %v5224 = vmax.f32 %v5192, 0.0
          %v5225 = vmax.f32 %v5193, 0.0
          %v5226 = vmax.f32 %v5194, 0.0
          %v5227 = vmax.f32 %v5195, 0.0
          %v5228 = vmax.f32 %v5196, 0.0
          %v5229 = vmax.f32 %v5197, 0.0
          %v5230 = vmax.f32 %v5198, 0.0
          %v5231 = vmax.f32 %v5199, 0.0
          %v5232 = vmax.f32 %v5200, 0.0
          %v5233 = vmax.f32 %v5201, 0.0
          %v5234 = vmax.f32 %v5202, 0.0
          %v5235 = vmax.f32 %v5203, 0.0
          %v5236 = vmax.f32 %v5204, 0.0
          %v5237 = vmax.f32 %v5205, 0.0
          %v5238 = vmax.f32 %v5206, 0.0
          %v5239 = vmax.f32 %v5207, 0.0
          %v5240 = vmax.f32 %v5208, 0.0
          %v5241 = vmax.f32 %v5209, 0.0
          %v5242 = vmax.f32 %v5210, 0.0
          %v5243 = vmax.f32 %v5211, 0.0
          %v5244 = vmax.f32 %v5212, 0.0
          %v5245 = vmax.f32 %v5213, 0.0
          %v5246 = vmax.f32 %v5214, 0.0
          %v5247 = vmax.f32 %v5215, 0.0
          %v5248 = vmax.f32 %v5216, 0.0
          %v5249 = vmax.f32 %v5217, 0.0
          %v5250 = vmax.f32 %v5218, 0.0
          %v5251 = vld [vmem:[%s316] sm:$0xff]
          %v5252 = vld [vmem:[%s316 + $0x8] sm:$0xff]
          %v5253 = vld [vmem:[%s316 + $0x10] sm:$0xff]
          %v5254 = vld [vmem:[%s316 + $0x18] sm:$0xff]
          %v5255 = vld [vmem:[%s316 + $0x20] sm:$0xff]
          %v5256 = vld [vmem:[%s316 + $0x28] sm:$0xff]
          %v5257 = vld [vmem:[%s316 + $0x30] sm:$0xff]
          %v5258 = vld [vmem:[%s316 + $0x38] sm:$0xff]
          %v5259 = vld [vmem:[%s316 + $0x40] sm:$0xff]
          %v5260 = vld [vmem:[%s316 + $0x48] sm:$0xff]
          %v5261 = vld [vmem:[%s316 + $0x50] sm:$0xff]
          %v5262 = vld [vmem:[%s316 + $0x58] sm:$0xff]
          %v5263 = vld [vmem:[%s316 + $0x60] sm:$0xff]
          %v5264 = vld [vmem:[%s316 + $0x68] sm:$0xff]
          %v5265 = vld [vmem:[%s316 + $0x70] sm:$0xff]
          %v5266 = vld [vmem:[%s316 + $0x78] sm:$0xff]
          %v5267 = vld [vmem:[%s316 + $0x80] sm:$0xff]
          %v5268 = vld [vmem:[%s316 + $0x88] sm:$0xff]
          %v5269 = vld [vmem:[%s316 + $0x90] sm:$0xff]
          %v5270 = vld [vmem:[%s316 + $0x98] sm:$0xff]
          %v5271 = vld [vmem:[%s316 + $0xa0] sm:$0xff]
          %v5272 = vld [vmem:[%s316 + $0xa8] sm:$0xff]
          %v5273 = vld [vmem:[%s316 + $0xb0] sm:$0xff]
          %v5274 = vld [vmem:[%s316 + $0xb8] sm:$0xff]
          %v5275 = vld [vmem:[%s316 + $0xc0] sm:$0xff]
          %v5276 = vld [vmem:[%s316 + $0xc8] sm:$0xff]
          %v5277 = vld [vmem:[%s316 + $0xd0] sm:$0xff]
          %v5278 = vld [vmem:[%s316 + $0xd8] sm:$0xff]
          %v5279 = vld [vmem:[%s316 + $0xe0] sm:$0xff]
          %v5280 = vld [vmem:[%s316 + $0xe8] sm:$0xff]
          %v5281 = vld [vmem:[%s316 + $0xf0] sm:$0xff]
          %v5282 = vld [vmem:[%s316 + $0xf8] sm:$0xff]
          %v5283 = vld [vmem:[%s316 + $0x100] sm:$0xff]
          %v5284 = vld [vmem:[%s316 + $0x108] sm:$0xff]
          %v5285 = vld [vmem:[%s316 + $0x110] sm:$0xff]
          %v5286 = vld [vmem:[%s316 + $0x118] sm:$0xff]
          %v5287 = vld [vmem:[%s316 + $0x120] sm:$0xff]
          %v5288 = vld [vmem:[%s316 + $0x128] sm:$0xff]
          %v5289 = vld [vmem:[%s316 + $0x130] sm:$0xff]
          %v5290 = vld [vmem:[%s316 + $0x138] sm:$0xff]
          %v5291 = vld [vmem:[%s316 + $0x140] sm:$0xff]
          %v5292 = vld [vmem:[%s316 + $0x148] sm:$0xff]
          %v5293 = vld [vmem:[%s316 + $0x150] sm:$0xff]
          %v5294 = vld [vmem:[%s316 + $0x158] sm:$0xff]
          %v5295 = vld [vmem:[%s316 + $0x160] sm:$0xff]
          %v5296 = vld [vmem:[%s316 + $0x168] sm:$0xff]
          %v5297 = vld [vmem:[%s316 + $0x170] sm:$0xff]
          %v5298 = vld [vmem:[%s316 + $0x178] sm:$0xff]
          %v5299 = vld [vmem:[%s316 + $0x180] sm:$0xff]
          %v5300 = vld [vmem:[%s316 + $0x188] sm:$0xff]
          %v5301 = vld [vmem:[%s316 + $0x190] sm:$0xff]
          %v5302 = vld [vmem:[%s316 + $0x198] sm:$0xff]
          %v5303 = vld [vmem:[%s316 + $0x1a0] sm:$0xff]
          %v5304 = vld [vmem:[%s316 + $0x1a8] sm:$0xff]
          %v5305 = vld [vmem:[%s316 + $0x1b0] sm:$0xff]
          %v5306 = vld [vmem:[%s316 + $0x1b8] sm:$0xff]
          %v5307 = vld [vmem:[%s316 + $0x1c0] sm:$0xff]
          %v5308 = vld [vmem:[%s316 + $0x1c8] sm:$0xff]
          %v5309 = vld [vmem:[%s316 + $0x1d0] sm:$0xff]
          %v5310 = vld [vmem:[%s316 + $0x1d8] sm:$0xff]
          %v5311 = vld [vmem:[%s316 + $0x1e0] sm:$0xff]
          %v5312 = vld [vmem:[%s316 + $0x1e8] sm:$0xff]
          %v5313 = vld [vmem:[%s316 + $0x1f0] sm:$0xff]
          %v5314 = vld [vmem:[%s316 + $0x1f8] sm:$0xff]
          %v5315 = vld [vmem:[%s316 + $0x200] sm:$0xff]
          %v5316 = vld [vmem:[%s316 + $0x208] sm:$0xff]
          %v5317 = vld [vmem:[%s316 + $0x210] sm:$0xff]
          %v5318 = vld [vmem:[%s316 + $0x218] sm:$0xff]
          %v5319 = vld [vmem:[%s316 + $0x220] sm:$0xff]
          %v5320 = vld [vmem:[%s316 + $0x228] sm:$0xff]
          %v5321 = vld [vmem:[%s316 + $0x230] sm:$0xff]
          %v5322 = vld [vmem:[%s316 + $0x238] sm:$0xff]
          %v5323 = vld [vmem:[%s316 + $0x240] sm:$0xff]
          %v5324 = vld [vmem:[%s316 + $0x248] sm:$0xff]
          %v5325 = vld [vmem:[%s316 + $0x250] sm:$0xff]
          %v5326 = vld [vmem:[%s316 + $0x258] sm:$0xff]
          %v5327 = vld [vmem:[%s316 + $0x260] sm:$0xff]
          %v5328 = vld [vmem:[%s316 + $0x268] sm:$0xff]
          %v5329 = vld [vmem:[%s316 + $0x270] sm:$0xff]
          %v5330 = vld [vmem:[%s316 + $0x278] sm:$0xff]
          %v5331 = vld [vmem:[%s316 + $0x280] sm:$0xff]
          %v5332 = vld [vmem:[%s316 + $0x288] sm:$0xff]
          %v5333 = vld [vmem:[%s316 + $0x290] sm:$0xff]
          %v5334 = vld [vmem:[%s316 + $0x298] sm:$0xff]
          %v5335 = vld [vmem:[%s316 + $0x2a0] sm:$0xff]
          %v5336 = vld [vmem:[%s316 + $0x2a8] sm:$0xff]
          %v5337 = vld [vmem:[%s316 + $0x2b0] sm:$0xff]
          %v5338 = vld [vmem:[%s316 + $0x2b8] sm:$0xff]
          %v5339 = vld [vmem:[%s316 + $0x2c0] sm:$0xff]
          %v5340 = vld [vmem:[%s316 + $0x2c8] sm:$0xff]
          %v5341 = vld [vmem:[%s316 + $0x2d0] sm:$0xff]
          %v5342 = vld [vmem:[%s316 + $0x2d8] sm:$0xff]
          %v5343 = vld [vmem:[%s316 + $0x2e0] sm:$0xff]
          %v5344 = vld [vmem:[%s316 + $0x2e8] sm:$0xff]
          %v5345 = vld [vmem:[%s316 + $0x2f0] sm:$0xff]
          %v5346 = vld [vmem:[%s316 + $0x2f8] sm:$0xff]
          %v5347 = vld [vmem:[%s316 + $0x300] sm:$0xff]
          %v5348 = vld [vmem:[%s316 + $0x308] sm:$0xff]
          %v5349 = vld [vmem:[%s316 + $0x310] sm:$0xff]
          %v5350 = vld [vmem:[%s316 + $0x318] sm:$0xff]
          %v5351 = vld [vmem:[%s316 + $0x320] sm:$0xff]
          %v5352 = vld [vmem:[%s316 + $0x328] sm:$0xff]
          %v5353 = vld [vmem:[%s316 + $0x330] sm:$0xff]
          %v5354 = vld [vmem:[%s316 + $0x338] sm:$0xff]
          %v5355 = vld [vmem:[%s316 + $0x340] sm:$0xff]
          %v5356 = vld [vmem:[%s316 + $0x348] sm:$0xff]
          %v5357 = vld [vmem:[%s316 + $0x350] sm:$0xff]
          %v5358 = vld [vmem:[%s316 + $0x358] sm:$0xff]
          %v5359 = vld [vmem:[%s316 + $0x360] sm:$0xff]
          %v5360 = vld [vmem:[%s316 + $0x368] sm:$0xff]
          %v5361 = vld [vmem:[%s316 + $0x370] sm:$0xff]
          %v5362 = vld [vmem:[%s316 + $0x378] sm:$0xff]
          %v5363 = vld [vmem:[%s316 + $0x380] sm:$0xff]
          %v5364 = vld [vmem:[%s316 + $0x388] sm:$0xff]
          %v5365 = vld [vmem:[%s316 + $0x390] sm:$0xff]
          %v5366 = vld [vmem:[%s316 + $0x398] sm:$0xff]
          %v5367 = vld [vmem:[%s316 + $0x3a0] sm:$0xff]
          %v5368 = vld [vmem:[%s316 + $0x3a8] sm:$0xff]
          %v5369 = vld [vmem:[%s316 + $0x3b0] sm:$0xff]
          %v5370 = vld [vmem:[%s316 + $0x3b8] sm:$0xff]
          %v5371 = vld [vmem:[%s316 + $0x3c0] sm:$0xff]
          %v5372 = vld [vmem:[%s316 + $0x3c8] sm:$0xff]
          %v5373 = vld [vmem:[%s316 + $0x3d0] sm:$0xff]
          %v5374 = vld [vmem:[%s316 + $0x3d8] sm:$0xff]
          %v5375 = vld [vmem:[%s316 + $0x3e0] sm:$0xff]
          %v5376 = vld [vmem:[%s316 + $0x3e8] sm:$0xff]
          %v5377 = vld [vmem:[%s316 + $0x3f0] sm:$0xff]
          %v5378 = vld [vmem:[%s316 + $0x3f8] sm:$0xff]
          %v5379 = vld [vmem:[%s316 + $0x400] sm:$0xff]
          %v5380 = vld [vmem:[%s316 + $0x408] sm:$0xff]
          %v5381 = vld [vmem:[%s316 + $0x410] sm:$0xff]
          %v5382 = vld [vmem:[%s316 + $0x418] sm:$0xff]
          %v5383 = vld [vmem:[%s316 + $0x420] sm:$0xff]
          %v5384 = vld [vmem:[%s316 + $0x428] sm:$0xff]
          %v5385 = vld [vmem:[%s316 + $0x430] sm:$0xff]
          %v5386 = vld [vmem:[%s316 + $0x438] sm:$0xff]
          %v5387 = vld [vmem:[%s316 + $0x440] sm:$0xff]
          %v5388 = vld [vmem:[%s316 + $0x448] sm:$0xff]
          %v5389 = vld [vmem:[%s316 + $0x450] sm:$0xff]
          %v5390 = vld [vmem:[%s316 + $0x458] sm:$0xff]
          %v5391 = vld [vmem:[%s316 + $0x460] sm:$0xff]
          %v5392 = vld [vmem:[%s316 + $0x468] sm:$0xff]
          %v5393 = vld [vmem:[%s316 + $0x470] sm:$0xff]
          %v5394 = vld [vmem:[%s316 + $0x478] sm:$0xff]
          %v5395 = vld [vmem:[%s316 + $0x480] sm:$0xff]
          %v5396 = vld [vmem:[%s316 + $0x488] sm:$0xff]
          %v5397 = vld [vmem:[%s316 + $0x490] sm:$0xff]
          %v5398 = vld [vmem:[%s316 + $0x498] sm:$0xff]
          %v5399 = vld [vmem:[%s316 + $0x4a0] sm:$0xff]
          %v5400 = vld [vmem:[%s316 + $0x4a8] sm:$0xff]
          %v5401 = vld [vmem:[%s316 + $0x4b0] sm:$0xff]
          %v5402 = vld [vmem:[%s316 + $0x4b8] sm:$0xff]
          %v5403 = vld [vmem:[%s316 + $0x4c0] sm:$0xff]
          %v5404 = vld [vmem:[%s316 + $0x4c8] sm:$0xff]
          %v5405 = vld [vmem:[%s316 + $0x4d0] sm:$0xff]
          %v5406 = vld [vmem:[%s316 + $0x4d8] sm:$0xff]
          %v5407 = vld [vmem:[%s316 + $0x4e0] sm:$0xff]
          %v5408 = vld [vmem:[%s316 + $0x4e8] sm:$0xff]
          %v5409 = vld [vmem:[%s316 + $0x4f0] sm:$0xff]
          %v5410 = vld [vmem:[%s316 + $0x4f8] sm:$0xff]
          %v5411 = vld [vmem:[%s316 + $0x500] sm:$0xff]
          %v5412 = vld [vmem:[%s316 + $0x508] sm:$0xff]
          %v5413 = vld [vmem:[%s316 + $0x510] sm:$0xff]
          %v5414 = vld [vmem:[%s316 + $0x518] sm:$0xff]
          %v5415 = vld [vmem:[%s316 + $0x520] sm:$0xff]
          %v5416 = vld [vmem:[%s316 + $0x528] sm:$0xff]
          %v5417 = vld [vmem:[%s316 + $0x530] sm:$0xff]
          %v5418 = vld [vmem:[%s316 + $0x538] sm:$0xff]
          %v5419 = vld [vmem:[%s316 + $0x540] sm:$0xff]
          %v5420 = vld [vmem:[%s316 + $0x548] sm:$0xff]
          %v5421 = vld [vmem:[%s316 + $0x550] sm:$0xff]
          %v5422 = vld [vmem:[%s316 + $0x558] sm:$0xff]
          %v5423 = vld [vmem:[%s316 + $0x560] sm:$0xff]
          %v5424 = vld [vmem:[%s316 + $0x568] sm:$0xff]
          %v5425 = vld [vmem:[%s316 + $0x570] sm:$0xff]
          %v5426 = vld [vmem:[%s316 + $0x578] sm:$0xff]
          %v5427 = vld [vmem:[%s316 + $0x580] sm:$0xff]
          %v5428 = vld [vmem:[%s316 + $0x588] sm:$0xff]
          %v5429 = vld [vmem:[%s316 + $0x590] sm:$0xff]
          %v5430 = vld [vmem:[%s316 + $0x598] sm:$0xff]
          %v5431 = vld [vmem:[%s316 + $0x5a0] sm:$0xff]
          %v5432 = vld [vmem:[%s316 + $0x5a8] sm:$0xff]
          %v5433 = vld [vmem:[%s316 + $0x5b0] sm:$0xff]
          %v5434 = vld [vmem:[%s316 + $0x5b8] sm:$0xff]
          %v5435 = vld [vmem:[%s316 + $0x5c0] sm:$0xff]
          %v5436 = vld [vmem:[%s316 + $0x5c8] sm:$0xff]
          %v5437 = vld [vmem:[%s316 + $0x5d0] sm:$0xff]
          %v5438 = vld [vmem:[%s316 + $0x5d8] sm:$0xff]
          %v5439 = vld [vmem:[%s316 + $0x5e0] sm:$0xff]
          %v5440 = vld [vmem:[%s316 + $0x5e8] sm:$0xff]
          %v5441 = vld [vmem:[%s316 + $0x5f0] sm:$0xff]
          %v5442 = vld [vmem:[%s316 + $0x5f8] sm:$0xff]
          %v5443 = vld [vmem:[%s316 + $0x600] sm:$0xff]
          %v5444 = vld [vmem:[%s316 + $0x608] sm:$0xff]
          %v5445 = vld [vmem:[%s316 + $0x610] sm:$0xff]
          %v5446 = vld [vmem:[%s316 + $0x618] sm:$0xff]
          %v5447 = vld [vmem:[%s316 + $0x620] sm:$0xff]
          %v5448 = vld [vmem:[%s316 + $0x628] sm:$0xff]
          %v5449 = vld [vmem:[%s316 + $0x630] sm:$0xff]
          %v5450 = vld [vmem:[%s316 + $0x638] sm:$0xff]
          %v5451 = vld [vmem:[%s316 + $0x640] sm:$0xff]
          %v5452 = vld [vmem:[%s316 + $0x648] sm:$0xff]
          %v5453 = vld [vmem:[%s316 + $0x650] sm:$0xff]
          %v5454 = vld [vmem:[%s316 + $0x658] sm:$0xff]
          %v5455 = vld [vmem:[%s316 + $0x660] sm:$0xff]
          %v5456 = vld [vmem:[%s316 + $0x668] sm:$0xff]
          %v5457 = vld [vmem:[%s316 + $0x670] sm:$0xff]
          %v5458 = vld [vmem:[%s316 + $0x678] sm:$0xff]
          %v5459 = vld [vmem:[%s316 + $0x680] sm:$0xff]
          %v5460 = vld [vmem:[%s316 + $0x688] sm:$0xff]
          %v5461 = vld [vmem:[%s316 + $0x690] sm:$0xff]
          %v5462 = vld [vmem:[%s316 + $0x698] sm:$0xff]
          %v5463 = vld [vmem:[%s316 + $0x6a0] sm:$0xff]
          %v5464 = vld [vmem:[%s316 + $0x6a8] sm:$0xff]
          %v5465 = vld [vmem:[%s316 + $0x6b0] sm:$0xff]
          %v5466 = vld [vmem:[%s316 + $0x6b8] sm:$0xff]
          %v5467 = vld [vmem:[%s316 + $0x6c0] sm:$0xff]
          %v5468 = vld [vmem:[%s316 + $0x6c8] sm:$0xff]
          %v5469 = vld [vmem:[%s316 + $0x6d0] sm:$0xff]
          %v5470 = vld [vmem:[%s316 + $0x6d8] sm:$0xff]
          %v5471 = vld [vmem:[%s316 + $0x6e0] sm:$0xff]
          %v5472 = vld [vmem:[%s316 + $0x6e8] sm:$0xff]
          %v5473 = vld [vmem:[%s316 + $0x6f0] sm:$0xff]
          %v5474 = vld [vmem:[%s316 + $0x6f8] sm:$0xff]
          %v5475 = vld [vmem:[%s316 + $0x700] sm:$0xff]
          %v5476 = vld [vmem:[%s316 + $0x708] sm:$0xff]
          %v5477 = vld [vmem:[%s316 + $0x710] sm:$0xff]
          %v5478 = vld [vmem:[%s316 + $0x718] sm:$0xff]
          %v5479 = vld [vmem:[%s316 + $0x720] sm:$0xff]
          %v5480 = vld [vmem:[%s316 + $0x728] sm:$0xff]
          %v5481 = vld [vmem:[%s316 + $0x730] sm:$0xff]
          %v5482 = vld [vmem:[%s316 + $0x738] sm:$0xff]
          %v5483 = vld [vmem:[%s316 + $0x740] sm:$0xff]
          %v5484 = vld [vmem:[%s316 + $0x748] sm:$0xff]
          %v5485 = vld [vmem:[%s316 + $0x750] sm:$0xff]
          %v5486 = vld [vmem:[%s316 + $0x758] sm:$0xff]
          %v5487 = vld [vmem:[%s316 + $0x760] sm:$0xff]
          %v5488 = vld [vmem:[%s316 + $0x768] sm:$0xff]
          %v5489 = vld [vmem:[%s316 + $0x770] sm:$0xff]
          %v5490 = vld [vmem:[%s316 + $0x778] sm:$0xff]
          %v5491 = vld [vmem:[%s316 + $0x780] sm:$0xff]
          %v5492 = vld [vmem:[%s316 + $0x788] sm:$0xff]
          %v5493 = vld [vmem:[%s316 + $0x790] sm:$0xff]
          %v5494 = vld [vmem:[%s316 + $0x798] sm:$0xff]
          %v5495 = vld [vmem:[%s316 + $0x7a0] sm:$0xff]
          %v5496 = vld [vmem:[%s316 + $0x7a8] sm:$0xff]
          %v5497 = vld [vmem:[%s316 + $0x7b0] sm:$0xff]
          %v5498 = vld [vmem:[%s316 + $0x7b8] sm:$0xff]
          %v5499 = vld [vmem:[%s316 + $0x7c0] sm:$0xff]
          %v5500 = vld [vmem:[%s316 + $0x7c8] sm:$0xff]
          %v5501 = vld [vmem:[%s316 + $0x7d0] sm:$0xff]
          %v5502 = vld [vmem:[%s316 + $0x7d8] sm:$0xff]
          %v5503 = vld [vmem:[%s316 + $0x7e0] sm:$0xff]
          %v5504 = vld [vmem:[%s316 + $0x7e8] sm:$0xff]
          %v5505 = vld [vmem:[%s316 + $0x7f0] sm:$0xff]
          %v5506 = vld [vmem:[%s316 + $0x7f8] sm:$0xff]
          %v5507 = vld [vmem:[%s316 + $0x800] sm:$0xff]
          %v5508 = vld [vmem:[%s316 + $0x808] sm:$0xff]
          %v5509 = vld [vmem:[%s316 + $0x810] sm:$0xff]
          %v5510 = vld [vmem:[%s316 + $0x818] sm:$0xff]
          %v5511 = vld [vmem:[%s316 + $0x820] sm:$0xff]
          %v5512 = vld [vmem:[%s316 + $0x828] sm:$0xff]
          %v5513 = vld [vmem:[%s316 + $0x830] sm:$0xff]
          %v5514 = vld [vmem:[%s316 + $0x838] sm:$0xff]
          %v5515 = vld [vmem:[%s316 + $0x840] sm:$0xff]
          %v5516 = vld [vmem:[%s316 + $0x848] sm:$0xff]
          %v5517 = vld [vmem:[%s316 + $0x850] sm:$0xff]
          %v5518 = vld [vmem:[%s316 + $0x858] sm:$0xff]
          %v5519 = vld [vmem:[%s316 + $0x860] sm:$0xff]
          %v5520 = vld [vmem:[%s316 + $0x868] sm:$0xff]
          %v5521 = vld [vmem:[%s316 + $0x870] sm:$0xff]
          %v5522 = vld [vmem:[%s316 + $0x878] sm:$0xff]
          %v5523 = vld [vmem:[%s316 + $0x880] sm:$0xff]
          %v5524 = vld [vmem:[%s316 + $0x888] sm:$0xff]
          %v5525 = vld [vmem:[%s316 + $0x890] sm:$0xff]
          %v5526 = vld [vmem:[%s316 + $0x898] sm:$0xff]
          %v5527 = vld [vmem:[%s316 + $0x8a0] sm:$0xff]
          %v5528 = vld [vmem:[%s316 + $0x8a8] sm:$0xff]
          %v5529 = vld [vmem:[%s316 + $0x8b0] sm:$0xff]
          %v5530 = vld [vmem:[%s316 + $0x8b8] sm:$0xff]
          %v5531 = vld [vmem:[%s316 + $0x8c0] sm:$0xff]
          %v5532 = vld [vmem:[%s316 + $0x8c8] sm:$0xff]
          %v5533 = vld [vmem:[%s316 + $0x8d0] sm:$0xff]
          %v5534 = vld [vmem:[%s316 + $0x8d8] sm:$0xff]
          %v5535 = vld [vmem:[%s316 + $0x8e0] sm:$0xff]
          %v5536 = vld [vmem:[%s316 + $0x8e8] sm:$0xff]
          %v5537 = vld [vmem:[%s316 + $0x8f0] sm:$0xff]
          %v5538 = vld [vmem:[%s316 + $0x8f8] sm:$0xff]
          %v5539 = vld [vmem:[%s316 + $0x900] sm:$0xff]
          %v5540 = vld [vmem:[%s316 + $0x908] sm:$0xff]
          %v5541 = vld [vmem:[%s316 + $0x910] sm:$0xff]
          %v5542 = vld [vmem:[%s316 + $0x918] sm:$0xff]
          %v5543 = vld [vmem:[%s316 + $0x920] sm:$0xff]
          %v5544 = vld [vmem:[%s316 + $0x928] sm:$0xff]
          %v5545 = vld [vmem:[%s316 + $0x930] sm:$0xff]
          %v5546 = vld [vmem:[%s316 + $0x938] sm:$0xff]
          %v5547 = vld [vmem:[%s316 + $0x940] sm:$0xff]
          %v5548 = vld [vmem:[%s316 + $0x948] sm:$0xff]
          %v5549 = vld [vmem:[%s316 + $0x950] sm:$0xff]
          %v5550 = vld [vmem:[%s316 + $0x958] sm:$0xff]
          %v5551 = vld [vmem:[%s316 + $0x960] sm:$0xff]
          %v5552 = vld [vmem:[%s316 + $0x968] sm:$0xff]
          %v5553 = vld [vmem:[%s316 + $0x970] sm:$0xff]
          %v5554 = vld [vmem:[%s316 + $0x978] sm:$0xff]
          %v5555 = vld [vmem:[%s316 + $0x980] sm:$0xff]
          %v5556 = vld [vmem:[%s316 + $0x988] sm:$0xff]
          %v5557 = vld [vmem:[%s316 + $0x990] sm:$0xff]
          %v5558 = vld [vmem:[%s316 + $0x998] sm:$0xff]
          %v5559 = vld [vmem:[%s316 + $0x9a0] sm:$0xff]
          %v5560 = vld [vmem:[%s316 + $0x9a8] sm:$0xff]
          %v5561 = vld [vmem:[%s316 + $0x9b0] sm:$0xff]
          %v5562 = vld [vmem:[%s316 + $0x9b8] sm:$0xff]
          %v5563 = vld [vmem:[%s316 + $0x9c0] sm:$0xff]
          %v5564 = vld [vmem:[%s316 + $0x9c8] sm:$0xff]
          %v5565 = vld [vmem:[%s316 + $0x9d0] sm:$0xff]
          %v5566 = vld [vmem:[%s316 + $0x9d8] sm:$0xff]
          %v5567 = vld [vmem:[%s316 + $0x9e0] sm:$0xff]
          %v5568 = vld [vmem:[%s316 + $0x9e8] sm:$0xff]
          %v5569 = vld [vmem:[%s316 + $0x9f0] sm:$0xff]
          %v5570 = vld [vmem:[%s316 + $0x9f8] sm:$0xff]
          %v5571 = vld [vmem:[%s316 + $0xa00] sm:$0xff]
          %v5572 = vld [vmem:[%s316 + $0xa08] sm:$0xff]
          %v5573 = vld [vmem:[%s316 + $0xa10] sm:$0xff]
          %v5574 = vld [vmem:[%s316 + $0xa18] sm:$0xff]
          %v5575 = vld [vmem:[%s316 + $0xa20] sm:$0xff]
          %v5576 = vld [vmem:[%s316 + $0xa28] sm:$0xff]
          %v5577 = vld [vmem:[%s316 + $0xa30] sm:$0xff]
          %v5578 = vld [vmem:[%s316 + $0xa38] sm:$0xff]
          %v5579 = vld [vmem:[%s316 + $0xa40] sm:$0xff]
          %v5580 = vld [vmem:[%s316 + $0xa48] sm:$0xff]
          %v5581 = vld [vmem:[%s316 + $0xa50] sm:$0xff]
          %v5582 = vld [vmem:[%s316 + $0xa58] sm:$0xff]
          %v5583 = vld [vmem:[%s316 + $0xa60] sm:$0xff]
          %v5584 = vld [vmem:[%s316 + $0xa68] sm:$0xff]
          %v5585 = vld [vmem:[%s316 + $0xa70] sm:$0xff]
          %v5586 = vld [vmem:[%s316 + $0xa78] sm:$0xff]
          %v5587 = vld [vmem:[%s316 + $0xa80] sm:$0xff]
          %v5588 = vld [vmem:[%s316 + $0xa88] sm:$0xff]
          %v5589 = vld [vmem:[%s316 + $0xa90] sm:$0xff]
          %v5590 = vld [vmem:[%s316 + $0xa98] sm:$0xff]
          %v5591 = vld [vmem:[%s316 + $0xaa0] sm:$0xff]
          %v5592 = vld [vmem:[%s316 + $0xaa8] sm:$0xff]
          %v5593 = vld [vmem:[%s316 + $0xab0] sm:$0xff]
          %v5594 = vld [vmem:[%s316 + $0xab8] sm:$0xff]
          %v5595 = vld [vmem:[%s316 + $0xac0] sm:$0xff]
          %v5596 = vld [vmem:[%s316 + $0xac8] sm:$0xff]
          %v5597 = vld [vmem:[%s316 + $0xad0] sm:$0xff]
          %v5598 = vld [vmem:[%s316 + $0xad8] sm:$0xff]
          %v5599 = vld [vmem:[%s316 + $0xae0] sm:$0xff]
          %v5600 = vld [vmem:[%s316 + $0xae8] sm:$0xff]
          %v5601 = vld [vmem:[%s316 + $0xaf0] sm:$0xff]
          %v5602 = vld [vmem:[%s316 + $0xaf8] sm:$0xff]
          %v5603 = vld [vmem:[%s316 + $0xb00] sm:$0xff]
          %v5604 = vld [vmem:[%s316 + $0xb08] sm:$0xff]
          %v5605 = vld [vmem:[%s316 + $0xb10] sm:$0xff]
          %v5606 = vld [vmem:[%s316 + $0xb18] sm:$0xff]
          %v5607 = vld [vmem:[%s316 + $0xb20] sm:$0xff]
          %v5608 = vld [vmem:[%s316 + $0xb28] sm:$0xff]
          %v5609 = vld [vmem:[%s316 + $0xb30] sm:$0xff]
          %v5610 = vld [vmem:[%s316 + $0xb38] sm:$0xff]
          %v5611 = vld [vmem:[%s316 + $0xb40] sm:$0xff]
          %v5612 = vld [vmem:[%s316 + $0xb48] sm:$0xff]
          %v5613 = vld [vmem:[%s316 + $0xb50] sm:$0xff]
          %v5614 = vld [vmem:[%s316 + $0xb58] sm:$0xff]
          %v5615 = vld [vmem:[%s316 + $0xb60] sm:$0xff]
          %v5616 = vld [vmem:[%s316 + $0xb68] sm:$0xff]
          %v5617 = vld [vmem:[%s316 + $0xb70] sm:$0xff]
          %v5618 = vld [vmem:[%s316 + $0xb78] sm:$0xff]
          %v5619 = vld [vmem:[%s316 + $0xb80] sm:$0xff]
          %v5620 = vld [vmem:[%s316 + $0xb88] sm:$0xff]
          %v5621 = vld [vmem:[%s316 + $0xb90] sm:$0xff]
          %v5622 = vld [vmem:[%s316 + $0xb98] sm:$0xff]
          %v5623 = vld [vmem:[%s316 + $0xba0] sm:$0xff]
          %v5624 = vld [vmem:[%s316 + $0xba8] sm:$0xff]
          %v5625 = vld [vmem:[%s316 + $0xbb0] sm:$0xff]
          %v5626 = vld [vmem:[%s316 + $0xbb8] sm:$0xff]
          %v5627 = vld [vmem:[%s316 + $0xbc0] sm:$0xff]
          %v5628 = vld [vmem:[%s316 + $0xbc8] sm:$0xff]
          %v5629 = vld [vmem:[%s316 + $0xbd0] sm:$0xff]
          %v5630 = vld [vmem:[%s316 + $0xbd8] sm:$0xff]
          %v5631 = vld [vmem:[%s316 + $0xbe0] sm:$0xff]
          %v5632 = vld [vmem:[%s316 + $0xbe8] sm:$0xff]
          %v5633 = vld [vmem:[%s316 + $0xbf0] sm:$0xff]
          %v5634 = vld [vmem:[%s316 + $0xbf8] sm:$0xff]
          %v5635 = vld [vmem:[%s316 + $0xc00] sm:$0xff]
          %v5636 = vld [vmem:[%s316 + $0xc08] sm:$0xff]
          %v5637 = vld [vmem:[%s316 + $0xc10] sm:$0xff]
          %v5638 = vld [vmem:[%s316 + $0xc18] sm:$0xff]
          %v5639 = vld [vmem:[%s316 + $0xc20] sm:$0xff]
          %v5640 = vld [vmem:[%s316 + $0xc28] sm:$0xff]
          %v5641 = vld [vmem:[%s316 + $0xc30] sm:$0xff]
          %v5642 = vld [vmem:[%s316 + $0xc38] sm:$0xff]
          %v5643 = vld [vmem:[%s316 + $0xc40] sm:$0xff]
          %v5644 = vld [vmem:[%s316 + $0xc48] sm:$0xff]
          %v5645 = vld [vmem:[%s316 + $0xc50] sm:$0xff]
          %v5646 = vld [vmem:[%s316 + $0xc58] sm:$0xff]
          %v5647 = vld [vmem:[%s316 + $0xc60] sm:$0xff]
          %v5648 = vld [vmem:[%s316 + $0xc68] sm:$0xff]
          %v5649 = vld [vmem:[%s316 + $0xc70] sm:$0xff]
          %v5650 = vld [vmem:[%s316 + $0xc78] sm:$0xff]
          %v5651 = vld [vmem:[%s316 + $0xc80] sm:$0xff]
          %v5652 = vld [vmem:[%s316 + $0xc88] sm:$0xff]
          %v5653 = vld [vmem:[%s316 + $0xc90] sm:$0xff]
          %v5654 = vld [vmem:[%s316 + $0xc98] sm:$0xff]
          %v5655 = vld [vmem:[%s316 + $0xca0] sm:$0xff]
          %v5656 = vld [vmem:[%s316 + $0xca8] sm:$0xff]
          %v5657 = vld [vmem:[%s316 + $0xcb0] sm:$0xff]
          %v5658 = vld [vmem:[%s316 + $0xcb8] sm:$0xff]
          %v5659 = vld [vmem:[%s316 + $0xcc0] sm:$0xff]
          %v5660 = vld [vmem:[%s316 + $0xcc8] sm:$0xff]
          %v5661 = vld [vmem:[%s316 + $0xcd0] sm:$0xff]
          %v5662 = vld [vmem:[%s316 + $0xcd8] sm:$0xff]
          %v5663 = vld [vmem:[%s316 + $0xce0] sm:$0xff]
          %v5664 = vld [vmem:[%s316 + $0xce8] sm:$0xff]
          %v5665 = vld [vmem:[%s316 + $0xcf0] sm:$0xff]
          %v5666 = vld [vmem:[%s316 + $0xcf8] sm:$0xff]
          %v5667 = vld [vmem:[%s316 + $0xd00] sm:$0xff]
          %v5668 = vld [vmem:[%s316 + $0xd08] sm:$0xff]
          %v5669 = vld [vmem:[%s316 + $0xd10] sm:$0xff]
          %v5670 = vld [vmem:[%s316 + $0xd18] sm:$0xff]
          %v5671 = vld [vmem:[%s316 + $0xd20] sm:$0xff]
          %v5672 = vld [vmem:[%s316 + $0xd28] sm:$0xff]
          %v5673 = vld [vmem:[%s316 + $0xd30] sm:$0xff]
          %v5674 = vld [vmem:[%s316 + $0xd38] sm:$0xff]
          %v5675 = vld [vmem:[%s316 + $0xd40] sm:$0xff]
          %v5676 = vld [vmem:[%s316 + $0xd48] sm:$0xff]
          %v5677 = vld [vmem:[%s316 + $0xd50] sm:$0xff]
          %v5678 = vld [vmem:[%s316 + $0xd58] sm:$0xff]
          %v5679 = vld [vmem:[%s316 + $0xd60] sm:$0xff]
          %v5680 = vld [vmem:[%s316 + $0xd68] sm:$0xff]
          %v5681 = vld [vmem:[%s316 + $0xd70] sm:$0xff]
          %v5682 = vld [vmem:[%s316 + $0xd78] sm:$0xff]
          %v5683 = vld [vmem:[%s316 + $0xd80] sm:$0xff]
          %v5684 = vld [vmem:[%s316 + $0xd88] sm:$0xff]
          %v5685 = vld [vmem:[%s316 + $0xd90] sm:$0xff]
          %v5686 = vld [vmem:[%s316 + $0xd98] sm:$0xff]
          %v5687 = vld [vmem:[%s316 + $0xda0] sm:$0xff]
          %v5688 = vld [vmem:[%s316 + $0xda8] sm:$0xff]
          %v5689 = vld [vmem:[%s316 + $0xdb0] sm:$0xff]
          %v5690 = vld [vmem:[%s316 + $0xdb8] sm:$0xff]
          %v5691 = vld [vmem:[%s316 + $0xdc0] sm:$0xff]
          %v5692 = vld [vmem:[%s316 + $0xdc8] sm:$0xff]
          %v5693 = vld [vmem:[%s316 + $0xdd0] sm:$0xff]
          %v5694 = vld [vmem:[%s316 + $0xdd8] sm:$0xff]
          %v5695 = vld [vmem:[%s316 + $0xde0] sm:$0xff]
          %v5696 = vld [vmem:[%s316 + $0xde8] sm:$0xff]
          %v5697 = vld [vmem:[%s316 + $0xdf0] sm:$0xff]
          %v5698 = vld [vmem:[%s316 + $0xdf8] sm:$0xff]
          %v5699 = vld [vmem:[%s316 + $0xe00] sm:$0xff]
          %v5700 = vld [vmem:[%s316 + $0xe08] sm:$0xff]
          %v5701 = vld [vmem:[%s316 + $0xe10] sm:$0xff]
          %v5702 = vld [vmem:[%s316 + $0xe18] sm:$0xff]
          %v5703 = vld [vmem:[%s316 + $0xe20] sm:$0xff]
          %v5704 = vld [vmem:[%s316 + $0xe28] sm:$0xff]
          %v5705 = vld [vmem:[%s316 + $0xe30] sm:$0xff]
          %v5706 = vld [vmem:[%s316 + $0xe38] sm:$0xff]
          %v5707 = vld [vmem:[%s316 + $0xe40] sm:$0xff]
          %v5708 = vld [vmem:[%s316 + $0xe48] sm:$0xff]
          %v5709 = vld [vmem:[%s316 + $0xe50] sm:$0xff]
          %v5710 = vld [vmem:[%s316 + $0xe58] sm:$0xff]
          %v5711 = vld [vmem:[%s316 + $0xe60] sm:$0xff]
          %v5712 = vld [vmem:[%s316 + $0xe68] sm:$0xff]
          %v5713 = vld [vmem:[%s316 + $0xe70] sm:$0xff]
          %v5714 = vld [vmem:[%s316 + $0xe78] sm:$0xff]
          %v5715 = vld [vmem:[%s316 + $0xe80] sm:$0xff]
          %v5716 = vld [vmem:[%s316 + $0xe88] sm:$0xff]
          %v5717 = vld [vmem:[%s316 + $0xe90] sm:$0xff]
          %v5718 = vld [vmem:[%s316 + $0xe98] sm:$0xff]
          %v5719 = vld [vmem:[%s316 + $0xea0] sm:$0xff]
          %v5720 = vld [vmem:[%s316 + $0xea8] sm:$0xff]
          %v5721 = vld [vmem:[%s316 + $0xeb0] sm:$0xff]
          %v5722 = vld [vmem:[%s316 + $0xeb8] sm:$0xff]
          %v5723 = vld [vmem:[%s316 + $0xec0] sm:$0xff]
          %v5724 = vld [vmem:[%s316 + $0xec8] sm:$0xff]
          %v5725 = vld [vmem:[%s316 + $0xed0] sm:$0xff]
          %v5726 = vld [vmem:[%s316 + $0xed8] sm:$0xff]
          %v5727 = vld [vmem:[%s316 + $0xee0] sm:$0xff]
          %v5728 = vld [vmem:[%s316 + $0xee8] sm:$0xff]
          %v5729 = vld [vmem:[%s316 + $0xef0] sm:$0xff]
          %v5730 = vld [vmem:[%s316 + $0xef8] sm:$0xff]
          %v5731 = vld [vmem:[%s316 + $0xf00] sm:$0xff]
          %v5732 = vld [vmem:[%s316 + $0xf08] sm:$0xff]
          %v5733 = vld [vmem:[%s316 + $0xf10] sm:$0xff]
          %v5734 = vld [vmem:[%s316 + $0xf18] sm:$0xff]
          %v5735 = vld [vmem:[%s316 + $0xf20] sm:$0xff]
          %v5736 = vld [vmem:[%s316 + $0xf28] sm:$0xff]
          %v5737 = vld [vmem:[%s316 + $0xf30] sm:$0xff]
          %v5738 = vld [vmem:[%s316 + $0xf38] sm:$0xff]
          %v5739 = vld [vmem:[%s316 + $0xf40] sm:$0xff]
          %v5740 = vld [vmem:[%s316 + $0xf48] sm:$0xff]
          %v5741 = vld [vmem:[%s316 + $0xf50] sm:$0xff]
          %v5742 = vld [vmem:[%s316 + $0xf58] sm:$0xff]
          %v5743 = vld [vmem:[%s316 + $0xf60] sm:$0xff]
          %v5744 = vld [vmem:[%s316 + $0xf68] sm:$0xff]
          %v5745 = vld [vmem:[%s316 + $0xf70] sm:$0xff]
          %v5746 = vld [vmem:[%s316 + $0xf78] sm:$0xff]
          %v5747 = vld [vmem:[%s316 + $0xf80] sm:$0xff]
          %v5748 = vld [vmem:[%s316 + $0xf88] sm:$0xff]
          %v5749 = vld [vmem:[%s316 + $0xf90] sm:$0xff]
          %v5750 = vld [vmem:[%s316 + $0xf98] sm:$0xff]
          %v5751 = vld [vmem:[%s316 + $0xfa0] sm:$0xff]
          %v5752 = vld [vmem:[%s316 + $0xfa8] sm:$0xff]
          %v5753 = vld [vmem:[%s316 + $0xfb0] sm:$0xff]
          %v5754 = vld [vmem:[%s316 + $0xfb8] sm:$0xff]
          %v5755 = vld [vmem:[%s316 + $0xfc0] sm:$0xff]
          %v5756 = vld [vmem:[%s316 + $0xfc8] sm:$0xff]
          %v5757 = vld [vmem:[%s316 + $0xfd0] sm:$0xff]
          %v5758 = vld [vmem:[%s316 + $0xfd8] sm:$0xff]
          %v5759 = vld [vmem:[%s316 + $0xfe0] sm:$0xff]
          %v5760 = vld [vmem:[%s316 + $0xfe8] sm:$0xff]
          %v5761 = vld [vmem:[%s316 + $0xff0] sm:$0xff]
          %v5762 = vld [vmem:[%s316 + $0xff8] sm:$0xff]
          %5763 = vmatprep.subr.mxu0 0.0
          %5764 = vmatpush1.msra.mxu0 %v5266
          %5765 = vmatprep.subr.mxu0 0.0
          %5766 = vmatpush1.msra.mxu0 %v5265
          %5767 = vmatprep.subr.mxu0 0.0
          %5768 = vmatpush1.msra.mxu0 %v5264
          %5769 = vmatprep.subr.mxu0 0.0
          %5770 = vmatpush1.msra.mxu0 %v5263
          %5771 = vmatprep.subr.mxu0 0.0
          %5772 = vmatpush1.msra.mxu0 %v5262
          %5773 = vmatprep.subr.mxu0 0.0
          %5774 = vmatpush1.msra.mxu0 %v5261
          %5775 = vmatprep.subr.mxu0 0.0
          %5776 = vmatpush1.msra.mxu0 %v5260
          %5777 = vmatprep.subr.mxu0 0.0
          %5778 = vmatpush1.msra.mxu0 %v5259
          %5779 = vmatprep.subr.mxu0 0.0
          %5780 = vmatpush1.msra.mxu0 %v5258
          %5781 = vmatprep.subr.mxu0 0.0
          %5782 = vmatpush1.msra.mxu0 %v5257
          %5783 = vmatprep.subr.mxu0 0.0
          %5784 = vmatpush1.msra.mxu0 %v5256
          %5785 = vmatprep.subr.mxu0 0.0
          %5786 = vmatpush1.msra.mxu0 %v5255
          %5787 = vmatprep.subr.mxu0 0.0
          %5788 = vmatpush1.msra.mxu0 %v5254
          %5789 = vmatprep.subr.mxu0 0.0
          %5790 = vmatpush1.msra.mxu0 %v5253
          %5791 = vmatprep.subr.mxu0 0.0
          %5792 = vmatpush1.msra.mxu0 %v5252
          %5793 = vmatprep.subr.mxu0 0.0
          %5794 = vmatpush1.msra.mxu0 %v5251
          %5795 = vmatprep.subr.mxu0 0.0
          %5796 = vmatpush2.msra.mxu0 %v5282
          %5797 = vmatprep.subr.mxu0 0.0
          %5798 = vmatpush2.msra.mxu0 %v5281
          %5799 = vmatprep.subr.mxu0 0.0
          %5800 = vmatpush2.msra.mxu0 %v5280
          %5801 = vmatprep.subr.mxu0 0.0
          %5802 = vmatpush2.msra.mxu0 %v5279
          %5803 = vmatprep.subr.mxu0 0.0
          %5804 = vmatpush2.msra.mxu0 %v5278
          %5805 = vmatprep.subr.mxu0 0.0
          %5806 = vmatpush2.msra.mxu0 %v5277
          %5807 = vmatprep.subr.mxu0 0.0
          %5808 = vmatpush2.msra.mxu0 %v5276
          %5809 = vmatprep.subr.mxu0 0.0
          %5810 = vmatpush2.msra.mxu0 %v5275
          %5811 = vmatprep.subr.mxu0 0.0
          %5812 = vmatpush2.msra.mxu0 %v5274
          %5813 = vmatprep.subr.mxu0 0.0
          %5814 = vmatpush2.msra.mxu0 %v5273
          %5815 = vmatprep.subr.mxu0 0.0
          %5816 = vmatpush2.msra.mxu0 %v5272
          %5817 = vmatprep.subr.mxu0 0.0
          %5818 = vmatpush2.msra.mxu0 %v5271
          %5819 = vmatprep.subr.mxu0 0.0
          %5820 = vmatpush2.msra.mxu0 %v5270
          %5821 = vmatprep.subr.mxu0 0.0
          %5822 = vmatpush2.msra.mxu0 %v5269
          %5823 = vmatprep.subr.mxu0 0.0
          %5824 = vmatpush2.msra.mxu0 %v5268
          %5825 = vmatprep.subr.mxu0 0.0
          %5826 = vmatpush2.msra.mxu0 %v5267
          %5827 = vmatprep.mubr.f32.mxu0 %v5220
          %5828 = vmatmul.mubr.f32.gmra.mxu0 %v5219
          %v5829 = vpop.f32.mrf.mxu0
          %v5830 = vadd.f32 0.0, %v5829
          %v5831 = vpop.f32.mrf.mxu0
          %5832 = vdwg.mxu0
          %5833 = vmatprep.subr.mxu0 0.0
          %5834 = vmatpush1.msra.mxu0 %v5298
          %5835 = vmatprep.subr.mxu0 0.0
          %5836 = vmatpush1.msra.mxu0 %v5297
          %5837 = vmatprep.subr.mxu0 0.0
          %5838 = vmatpush1.msra.mxu0 %v5296
          %5839 = vmatprep.subr.mxu0 0.0
          %5840 = vmatpush1.msra.mxu0 %v5295
          %5841 = vmatprep.subr.mxu0 0.0
          %5842 = vmatpush1.msra.mxu0 %v5294
          %5843 = vmatprep.subr.mxu0 0.0
          %5844 = vmatpush1.msra.mxu0 %v5293
          %5845 = vmatprep.subr.mxu0 0.0
          %5846 = vmatpush1.msra.mxu0 %v5292
          %5847 = vmatprep.subr.mxu0 0.0
          %5848 = vmatpush1.msra.mxu0 %v5291
          %5849 = vmatprep.subr.mxu0 0.0
          %5850 = vmatpush1.msra.mxu0 %v5290
          %5851 = vmatprep.subr.mxu0 0.0
          %5852 = vmatpush1.msra.mxu0 %v5289
          %5853 = vmatprep.subr.mxu0 0.0
          %5854 = vmatpush1.msra.mxu0 %v5288
          %5855 = vmatprep.subr.mxu0 0.0
          %5856 = vmatpush1.msra.mxu0 %v5287
          %5857 = vmatprep.subr.mxu0 0.0
          %5858 = vmatpush1.msra.mxu0 %v5286
          %5859 = vmatprep.subr.mxu0 0.0
          %5860 = vmatpush1.msra.mxu0 %v5285
          %5861 = vmatprep.subr.mxu0 0.0
          %5862 = vmatpush1.msra.mxu0 %v5284
          %5863 = vmatprep.subr.mxu0 0.0
          %5864 = vmatpush1.msra.mxu0 %v5283
          %5865 = vmatprep.subr.mxu0 0.0
          %5866 = vmatpush2.msra.mxu0 %v5314
          %5867 = vmatprep.subr.mxu0 0.0
          %5868 = vmatpush2.msra.mxu0 %v5313
          %5869 = vmatprep.subr.mxu0 0.0
          %5870 = vmatpush2.msra.mxu0 %v5312
          %5871 = vmatprep.subr.mxu0 0.0
          %5872 = vmatpush2.msra.mxu0 %v5311
          %5873 = vmatprep.subr.mxu0 0.0
          %5874 = vmatpush2.msra.mxu0 %v5310
          %5875 = vmatprep.subr.mxu0 0.0
          %5876 = vmatpush2.msra.mxu0 %v5309
          %5877 = vmatprep.subr.mxu0 0.0
          %5878 = vmatpush2.msra.mxu0 %v5308
          %5879 = vmatprep.subr.mxu0 0.0
          %5880 = vmatpush2.msra.mxu0 %v5307
          %5881 = vmatprep.subr.mxu0 0.0
          %5882 = vmatpush2.msra.mxu0 %v5306
          %5883 = vmatprep.subr.mxu0 0.0
          %5884 = vmatpush2.msra.mxu0 %v5305
          %5885 = vmatprep.subr.mxu0 0.0
          %5886 = vmatpush2.msra.mxu0 %v5304
          %5887 = vmatprep.subr.mxu0 0.0
          %5888 = vmatpush2.msra.mxu0 %v5303
          %5889 = vmatprep.subr.mxu0 0.0
          %5890 = vmatpush2.msra.mxu0 %v5302
          %5891 = vmatprep.subr.mxu0 0.0
          %5892 = vmatpush2.msra.mxu0 %v5301
          %5893 = vmatprep.subr.mxu0 0.0
          %5894 = vmatpush2.msra.mxu0 %v5300
          %5895 = vmatprep.subr.mxu0 0.0
          %5896 = vmatpush2.msra.mxu0 %v5299
          %5897 = vmatprep.mubr.f32.mxu0 %v5222
          %5898 = vmatmul.mubr.f32.gmra.mxu0 %v5221
          %v5899 = vpop.f32.mrf.mxu0
          %v5900 = vadd.f32 %v5830, %v5899
          %v5901 = vpop.f32.mrf.mxu0
          %5902 = vdwg.mxu0
          %5903 = vmatprep.subr.mxu0 0.0
          %5904 = vmatpush1.msra.mxu0 %v5330
          %5905 = vmatprep.subr.mxu0 0.0
          %5906 = vmatpush1.msra.mxu0 %v5329
          %5907 = vmatprep.subr.mxu0 0.0
          %5908 = vmatpush1.msra.mxu0 %v5328
          %5909 = vmatprep.subr.mxu0 0.0
          %5910 = vmatpush1.msra.mxu0 %v5327
          %5911 = vmatprep.subr.mxu0 0.0
          %5912 = vmatpush1.msra.mxu0 %v5326
          %5913 = vmatprep.subr.mxu0 0.0
          %5914 = vmatpush1.msra.mxu0 %v5325
          %5915 = vmatprep.subr.mxu0 0.0
          %5916 = vmatpush1.msra.mxu0 %v5324
          %5917 = vmatprep.subr.mxu0 0.0
          %5918 = vmatpush1.msra.mxu0 %v5323
          %5919 = vmatprep.subr.mxu0 0.0
          %5920 = vmatpush1.msra.mxu0 %v5322
          %5921 = vmatprep.subr.mxu0 0.0
          %5922 = vmatpush1.msra.mxu0 %v5321
          %5923 = vmatprep.subr.mxu0 0.0
          %5924 = vmatpush1.msra.mxu0 %v5320
          %5925 = vmatprep.subr.mxu0 0.0
          %5926 = vmatpush1.msra.mxu0 %v5319
          %5927 = vmatprep.subr.mxu0 0.0
          %5928 = vmatpush1.msra.mxu0 %v5318
          %5929 = vmatprep.subr.mxu0 0.0
          %5930 = vmatpush1.msra.mxu0 %v5317
          %5931 = vmatprep.subr.mxu0 0.0
          %5932 = vmatpush1.msra.mxu0 %v5316
          %5933 = vmatprep.subr.mxu0 0.0
          %5934 = vmatpush1.msra.mxu0 %v5315
          %5935 = vmatprep.subr.mxu0 0.0
          %5936 = vmatpush2.msra.mxu0 %v5346
          %5937 = vmatprep.subr.mxu0 0.0
          %5938 = vmatpush2.msra.mxu0 %v5345
          %5939 = vmatprep.subr.mxu0 0.0
          %5940 = vmatpush2.msra.mxu0 %v5344
          %5941 = vmatprep.subr.mxu0 0.0
          %5942 = vmatpush2.msra.mxu0 %v5343
          %5943 = vmatprep.subr.mxu0 0.0
          %5944 = vmatpush2.msra.mxu0 %v5342
          %5945 = vmatprep.subr.mxu0 0.0
          %5946 = vmatpush2.msra.mxu0 %v5341
          %5947 = vmatprep.subr.mxu0 0.0
          %5948 = vmatpush2.msra.mxu0 %v5340
          %5949 = vmatprep.subr.mxu0 0.0
          %5950 = vmatpush2.msra.mxu0 %v5339
          %5951 = vmatprep.subr.mxu0 0.0
          %5952 = vmatpush2.msra.mxu0 %v5338
          %5953 = vmatprep.subr.mxu0 0.0
          %5954 = vmatpush2.msra.mxu0 %v5337
          %5955 = vmatprep.subr.mxu0 0.0
          %5956 = vmatpush2.msra.mxu0 %v5336
          %5957 = vmatprep.subr.mxu0 0.0
          %5958 = vmatpush2.msra.mxu0 %v5335
          %5959 = vmatprep.subr.mxu0 0.0
          %5960 = vmatpush2.msra.mxu0 %v5334
          %5961 = vmatprep.subr.mxu0 0.0
          %5962 = vmatpush2.msra.mxu0 %v5333
          %5963 = vmatprep.subr.mxu0 0.0
          %5964 = vmatpush2.msra.mxu0 %v5332
          %5965 = vmatprep.subr.mxu0 0.0
          %5966 = vmatpush2.msra.mxu0 %v5331
          %5967 = vmatprep.mubr.f32.mxu0 %v5224
          %5968 = vmatmul.mubr.f32.gmra.mxu0 %v5223
          %v5969 = vpop.f32.mrf.mxu0
          %v5970 = vadd.f32 %v5900, %v5969
          %v5971 = vpop.f32.mrf.mxu0
          %5972 = vdwg.mxu0
          %5973 = vmatprep.subr.mxu0 0.0
          %5974 = vmatpush1.msra.mxu0 %v5362
          %5975 = vmatprep.subr.mxu0 0.0
          %5976 = vmatpush1.msra.mxu0 %v5361
          %5977 = vmatprep.subr.mxu0 0.0
          %5978 = vmatpush1.msra.mxu0 %v5360
          %5979 = vmatprep.subr.mxu0 0.0
          %5980 = vmatpush1.msra.mxu0 %v5359
          %5981 = vmatprep.subr.mxu0 0.0
          %5982 = vmatpush1.msra.mxu0 %v5358
          %5983 = vmatprep.subr.mxu0 0.0
          %5984 = vmatpush1.msra.mxu0 %v5357
          %5985 = vmatprep.subr.mxu0 0.0
          %5986 = vmatpush1.msra.mxu0 %v5356
          %5987 = vmatprep.subr.mxu0 0.0
          %5988 = vmatpush1.msra.mxu0 %v5355
          %5989 = vmatprep.subr.mxu0 0.0
          %5990 = vmatpush1.msra.mxu0 %v5354
          %5991 = vmatprep.subr.mxu0 0.0
          %5992 = vmatpush1.msra.mxu0 %v5353
          %5993 = vmatprep.subr.mxu0 0.0
          %5994 = vmatpush1.msra.mxu0 %v5352
          %5995 = vmatprep.subr.mxu0 0.0
          %5996 = vmatpush1.msra.mxu0 %v5351
          %5997 = vmatprep.subr.mxu0 0.0
          %5998 = vmatpush1.msra.mxu0 %v5350
          %5999 = vmatprep.subr.mxu0 0.0
          %6000 = vmatpush1.msra.mxu0 %v5349
          %6001 = vmatprep.subr.mxu0 0.0
          %6002 = vmatpush1.msra.mxu0 %v5348
          %6003 = vmatprep.subr.mxu0 0.0
          %6004 = vmatpush1.msra.mxu0 %v5347
          %6005 = vmatprep.subr.mxu0 0.0
          %6006 = vmatpush2.msra.mxu0 %v5378
          %6007 = vmatprep.subr.mxu0 0.0
          %6008 = vmatpush2.msra.mxu0 %v5377
          %6009 = vmatprep.subr.mxu0 0.0
          %6010 = vmatpush2.msra.mxu0 %v5376
          %6011 = vmatprep.subr.mxu0 0.0
          %6012 = vmatpush2.msra.mxu0 %v5375
          %6013 = vmatprep.subr.mxu0 0.0
          %6014 = vmatpush2.msra.mxu0 %v5374
          %6015 = vmatprep.subr.mxu0 0.0
          %6016 = vmatpush2.msra.mxu0 %v5373
          %6017 = vmatprep.subr.mxu0 0.0
          %6018 = vmatpush2.msra.mxu0 %v5372
          %6019 = vmatprep.subr.mxu0 0.0
          %6020 = vmatpush2.msra.mxu0 %v5371
          %6021 = vmatprep.subr.mxu0 0.0
          %6022 = vmatpush2.msra.mxu0 %v5370
          %6023 = vmatprep.subr.mxu0 0.0
          %6024 = vmatpush2.msra.mxu0 %v5369
          %6025 = vmatprep.subr.mxu0 0.0
          %6026 = vmatpush2.msra.mxu0 %v5368
          %6027 = vmatprep.subr.mxu0 0.0
          %6028 = vmatpush2.msra.mxu0 %v5367
          %6029 = vmatprep.subr.mxu0 0.0
          %6030 = vmatpush2.msra.mxu0 %v5366
          %6031 = vmatprep.subr.mxu0 0.0
          %6032 = vmatpush2.msra.mxu0 %v5365
          %6033 = vmatprep.subr.mxu0 0.0
          %6034 = vmatpush2.msra.mxu0 %v5364
          %6035 = vmatprep.subr.mxu0 0.0
          %6036 = vmatpush2.msra.mxu0 %v5363
          %6037 = vmatprep.mubr.f32.mxu0 %v5226
          %6038 = vmatmul.mubr.f32.gmra.mxu0 %v5225
          %v6039 = vpop.f32.mrf.mxu0
          %v6040 = vadd.f32 %v5970, %v6039
          %v6041 = vpop.f32.mrf.mxu0
          %6042 = vdwg.mxu0
          %6043 = vmatprep.subr.mxu0 0.0
          %6044 = vmatpush1.msra.mxu0 %v5394
          %6045 = vmatprep.subr.mxu0 0.0
          %6046 = vmatpush1.msra.mxu0 %v5393
          %6047 = vmatprep.subr.mxu0 0.0
          %6048 = vmatpush1.msra.mxu0 %v5392
          %6049 = vmatprep.subr.mxu0 0.0
          %6050 = vmatpush1.msra.mxu0 %v5391
          %6051 = vmatprep.subr.mxu0 0.0
          %6052 = vmatpush1.msra.mxu0 %v5390
          %6053 = vmatprep.subr.mxu0 0.0
          %6054 = vmatpush1.msra.mxu0 %v5389
          %6055 = vmatprep.subr.mxu0 0.0
          %6056 = vmatpush1.msra.mxu0 %v5388
          %6057 = vmatprep.subr.mxu0 0.0
          %6058 = vmatpush1.msra.mxu0 %v5387
          %6059 = vmatprep.subr.mxu0 0.0
          %6060 = vmatpush1.msra.mxu0 %v5386
          %6061 = vmatprep.subr.mxu0 0.0
          %6062 = vmatpush1.msra.mxu0 %v5385
          %6063 = vmatprep.subr.mxu0 0.0
          %6064 = vmatpush1.msra.mxu0 %v5384
          %6065 = vmatprep.subr.mxu0 0.0
          %6066 = vmatpush1.msra.mxu0 %v5383
          %6067 = vmatprep.subr.mxu0 0.0
          %6068 = vmatpush1.msra.mxu0 %v5382
          %6069 = vmatprep.subr.mxu0 0.0
          %6070 = vmatpush1.msra.mxu0 %v5381
          %6071 = vmatprep.subr.mxu0 0.0
          %6072 = vmatpush1.msra.mxu0 %v5380
          %6073 = vmatprep.subr.mxu0 0.0
          %6074 = vmatpush1.msra.mxu0 %v5379
          %6075 = vmatprep.subr.mxu0 0.0
          %6076 = vmatpush2.msra.mxu0 %v5410
          %6077 = vmatprep.subr.mxu0 0.0
          %6078 = vmatpush2.msra.mxu0 %v5409
          %6079 = vmatprep.subr.mxu0 0.0
          %6080 = vmatpush2.msra.mxu0 %v5408
          %6081 = vmatprep.subr.mxu0 0.0
          %6082 = vmatpush2.msra.mxu0 %v5407
          %6083 = vmatprep.subr.mxu0 0.0
          %6084 = vmatpush2.msra.mxu0 %v5406
          %6085 = vmatprep.subr.mxu0 0.0
          %6086 = vmatpush2.msra.mxu0 %v5405
          %6087 = vmatprep.subr.mxu0 0.0
          %6088 = vmatpush2.msra.mxu0 %v5404
          %6089 = vmatprep.subr.mxu0 0.0
          %6090 = vmatpush2.msra.mxu0 %v5403
          %6091 = vmatprep.subr.mxu0 0.0
          %6092 = vmatpush2.msra.mxu0 %v5402
          %6093 = vmatprep.subr.mxu0 0.0
          %6094 = vmatpush2.msra.mxu0 %v5401
          %6095 = vmatprep.subr.mxu0 0.0
          %6096 = vmatpush2.msra.mxu0 %v5400
          %6097 = vmatprep.subr.mxu0 0.0
          %6098 = vmatpush2.msra.mxu0 %v5399
          %6099 = vmatprep.subr.mxu0 0.0
          %6100 = vmatpush2.msra.mxu0 %v5398
          %6101 = vmatprep.subr.mxu0 0.0
          %6102 = vmatpush2.msra.mxu0 %v5397
          %6103 = vmatprep.subr.mxu0 0.0
          %6104 = vmatpush2.msra.mxu0 %v5396
          %6105 = vmatprep.subr.mxu0 0.0
          %6106 = vmatpush2.msra.mxu0 %v5395
          %6107 = vmatprep.mubr.f32.mxu0 %v5228
          %6108 = vmatmul.mubr.f32.gmra.mxu0 %v5227
          %v6109 = vpop.f32.mrf.mxu0
          %v6110 = vadd.f32 %v6040, %v6109
          %v6111 = vpop.f32.mrf.mxu0
          %6112 = vdwg.mxu0
          %6113 = vmatprep.subr.mxu0 0.0
          %6114 = vmatpush1.msra.mxu0 %v5426
          %6115 = vmatprep.subr.mxu0 0.0
          %6116 = vmatpush1.msra.mxu0 %v5425
          %6117 = vmatprep.subr.mxu0 0.0
          %6118 = vmatpush1.msra.mxu0 %v5424
          %6119 = vmatprep.subr.mxu0 0.0
          %6120 = vmatpush1.msra.mxu0 %v5423
          %6121 = vmatprep.subr.mxu0 0.0
          %6122 = vmatpush1.msra.mxu0 %v5422
          %6123 = vmatprep.subr.mxu0 0.0
          %6124 = vmatpush1.msra.mxu0 %v5421
          %6125 = vmatprep.subr.mxu0 0.0
          %6126 = vmatpush1.msra.mxu0 %v5420
          %6127 = vmatprep.subr.mxu0 0.0
          %6128 = vmatpush1.msra.mxu0 %v5419
          %6129 = vmatprep.subr.mxu0 0.0
          %6130 = vmatpush1.msra.mxu0 %v5418
          %6131 = vmatprep.subr.mxu0 0.0
          %6132 = vmatpush1.msra.mxu0 %v5417
          %6133 = vmatprep.subr.mxu0 0.0
          %6134 = vmatpush1.msra.mxu0 %v5416
          %6135 = vmatprep.subr.mxu0 0.0
          %6136 = vmatpush1.msra.mxu0 %v5415
          %6137 = vmatprep.subr.mxu0 0.0
          %6138 = vmatpush1.msra.mxu0 %v5414
          %6139 = vmatprep.subr.mxu0 0.0
          %6140 = vmatpush1.msra.mxu0 %v5413
          %6141 = vmatprep.subr.mxu0 0.0
          %6142 = vmatpush1.msra.mxu0 %v5412
          %6143 = vmatprep.subr.mxu0 0.0
          %6144 = vmatpush1.msra.mxu0 %v5411
          %6145 = vmatprep.subr.mxu0 0.0
          %6146 = vmatpush2.msra.mxu0 %v5442
          %6147 = vmatprep.subr.mxu0 0.0
          %6148 = vmatpush2.msra.mxu0 %v5441
          %6149 = vmatprep.subr.mxu0 0.0
          %6150 = vmatpush2.msra.mxu0 %v5440
          %6151 = vmatprep.subr.mxu0 0.0
          %6152 = vmatpush2.msra.mxu0 %v5439
          %6153 = vmatprep.subr.mxu0 0.0
          %6154 = vmatpush2.msra.mxu0 %v5438
          %6155 = vmatprep.subr.mxu0 0.0
          %6156 = vmatpush2.msra.mxu0 %v5437
          %6157 = vmatprep.subr.mxu0 0.0
          %6158 = vmatpush2.msra.mxu0 %v5436
          %6159 = vmatprep.subr.mxu0 0.0
          %6160 = vmatpush2.msra.mxu0 %v5435
          %6161 = vmatprep.subr.mxu0 0.0
          %6162 = vmatpush2.msra.mxu0 %v5434
          %6163 = vmatprep.subr.mxu0 0.0
          %6164 = vmatpush2.msra.mxu0 %v5433
          %6165 = vmatprep.subr.mxu0 0.0
          %6166 = vmatpush2.msra.mxu0 %v5432
          %6167 = vmatprep.subr.mxu0 0.0
          %6168 = vmatpush2.msra.mxu0 %v5431
          %6169 = vmatprep.subr.mxu0 0.0
          %6170 = vmatpush2.msra.mxu0 %v5430
          %6171 = vmatprep.subr.mxu0 0.0
          %6172 = vmatpush2.msra.mxu0 %v5429
          %6173 = vmatprep.subr.mxu0 0.0
          %6174 = vmatpush2.msra.mxu0 %v5428
          %6175 = vmatprep.subr.mxu0 0.0
          %6176 = vmatpush2.msra.mxu0 %v5427
          %6177 = vmatprep.mubr.f32.mxu0 %v5230
          %6178 = vmatmul.mubr.f32.gmra.mxu0 %v5229
          %v6179 = vpop.f32.mrf.mxu0
          %v6180 = vadd.f32 %v6110, %v6179
          %v6181 = vpop.f32.mrf.mxu0
          %6182 = vdwg.mxu0
          %6183 = vmatprep.subr.mxu0 0.0
          %6184 = vmatpush1.msra.mxu0 %v5458
          %6185 = vmatprep.subr.mxu0 0.0
          %6186 = vmatpush1.msra.mxu0 %v5457
          %6187 = vmatprep.subr.mxu0 0.0
          %6188 = vmatpush1.msra.mxu0 %v5456
          %6189 = vmatprep.subr.mxu0 0.0
          %6190 = vmatpush1.msra.mxu0 %v5455
          %6191 = vmatprep.subr.mxu0 0.0
          %6192 = vmatpush1.msra.mxu0 %v5454
          %6193 = vmatprep.subr.mxu0 0.0
          %6194 = vmatpush1.msra.mxu0 %v5453
          %6195 = vmatprep.subr.mxu0 0.0
          %6196 = vmatpush1.msra.mxu0 %v5452
          %6197 = vmatprep.subr.mxu0 0.0
          %6198 = vmatpush1.msra.mxu0 %v5451
          %6199 = vmatprep.subr.mxu0 0.0
          %6200 = vmatpush1.msra.mxu0 %v5450
          %6201 = vmatprep.subr.mxu0 0.0
          %6202 = vmatpush1.msra.mxu0 %v5449
          %6203 = vmatprep.subr.mxu0 0.0
          %6204 = vmatpush1.msra.mxu0 %v5448
          %6205 = vmatprep.subr.mxu0 0.0
          %6206 = vmatpush1.msra.mxu0 %v5447
          %6207 = vmatprep.subr.mxu0 0.0
          %6208 = vmatpush1.msra.mxu0 %v5446
          %6209 = vmatprep.subr.mxu0 0.0
          %6210 = vmatpush1.msra.mxu0 %v5445
          %6211 = vmatprep.subr.mxu0 0.0
          %6212 = vmatpush1.msra.mxu0 %v5444
          %6213 = vmatprep.subr.mxu0 0.0
          %6214 = vmatpush1.msra.mxu0 %v5443
          %6215 = vmatprep.subr.mxu0 0.0
          %6216 = vmatpush2.msra.mxu0 %v5474
          %6217 = vmatprep.subr.mxu0 0.0
          %6218 = vmatpush2.msra.mxu0 %v5473
          %6219 = vmatprep.subr.mxu0 0.0
          %6220 = vmatpush2.msra.mxu0 %v5472
          %6221 = vmatprep.subr.mxu0 0.0
          %6222 = vmatpush2.msra.mxu0 %v5471
          %6223 = vmatprep.subr.mxu0 0.0
          %6224 = vmatpush2.msra.mxu0 %v5470
          %6225 = vmatprep.subr.mxu0 0.0
          %6226 = vmatpush2.msra.mxu0 %v5469
          %6227 = vmatprep.subr.mxu0 0.0
          %6228 = vmatpush2.msra.mxu0 %v5468
          %6229 = vmatprep.subr.mxu0 0.0
          %6230 = vmatpush2.msra.mxu0 %v5467
          %6231 = vmatprep.subr.mxu0 0.0
          %6232 = vmatpush2.msra.mxu0 %v5466
          %6233 = vmatprep.subr.mxu0 0.0
          %6234 = vmatpush2.msra.mxu0 %v5465
          %6235 = vmatprep.subr.mxu0 0.0
          %6236 = vmatpush2.msra.mxu0 %v5464
          %6237 = vmatprep.subr.mxu0 0.0
          %6238 = vmatpush2.msra.mxu0 %v5463
          %6239 = vmatprep.subr.mxu0 0.0
          %6240 = vmatpush2.msra.mxu0 %v5462
          %6241 = vmatprep.subr.mxu0 0.0
          %6242 = vmatpush2.msra.mxu0 %v5461
          %6243 = vmatprep.subr.mxu0 0.0
          %6244 = vmatpush2.msra.mxu0 %v5460
          %6245 = vmatprep.subr.mxu0 0.0
          %6246 = vmatpush2.msra.mxu0 %v5459
          %6247 = vmatprep.mubr.f32.mxu0 %v5232
          %6248 = vmatmul.mubr.f32.gmra.mxu0 %v5231
          %v6249 = vpop.f32.mrf.mxu0
          %v6250 = vadd.f32 %v6180, %v6249
          %v6251 = vpop.f32.mrf.mxu0
          %6252 = vdwg.mxu0
          %6253 = vmatprep.subr.mxu0 0.0
          %6254 = vmatpush1.msra.mxu0 %v5490
          %6255 = vmatprep.subr.mxu0 0.0
          %6256 = vmatpush1.msra.mxu0 %v5489
          %6257 = vmatprep.subr.mxu0 0.0
          %6258 = vmatpush1.msra.mxu0 %v5488
          %6259 = vmatprep.subr.mxu0 0.0
          %6260 = vmatpush1.msra.mxu0 %v5487
          %6261 = vmatprep.subr.mxu0 0.0
          %6262 = vmatpush1.msra.mxu0 %v5486
          %6263 = vmatprep.subr.mxu0 0.0
          %6264 = vmatpush1.msra.mxu0 %v5485
          %6265 = vmatprep.subr.mxu0 0.0
          %6266 = vmatpush1.msra.mxu0 %v5484
          %6267 = vmatprep.subr.mxu0 0.0
          %6268 = vmatpush1.msra.mxu0 %v5483
          %6269 = vmatprep.subr.mxu0 0.0
          %6270 = vmatpush1.msra.mxu0 %v5482
          %6271 = vmatprep.subr.mxu0 0.0
          %6272 = vmatpush1.msra.mxu0 %v5481
          %6273 = vmatprep.subr.mxu0 0.0
          %6274 = vmatpush1.msra.mxu0 %v5480
          %6275 = vmatprep.subr.mxu0 0.0
          %6276 = vmatpush1.msra.mxu0 %v5479
          %6277 = vmatprep.subr.mxu0 0.0
          %6278 = vmatpush1.msra.mxu0 %v5478
          %6279 = vmatprep.subr.mxu0 0.0
          %6280 = vmatpush1.msra.mxu0 %v5477
          %6281 = vmatprep.subr.mxu0 0.0
          %6282 = vmatpush1.msra.mxu0 %v5476
          %6283 = vmatprep.subr.mxu0 0.0
          %6284 = vmatpush1.msra.mxu0 %v5475
          %6285 = vmatprep.subr.mxu0 0.0
          %6286 = vmatpush2.msra.mxu0 %v5506
          %6287 = vmatprep.subr.mxu0 0.0
          %6288 = vmatpush2.msra.mxu0 %v5505
          %6289 = vmatprep.subr.mxu0 0.0
          %6290 = vmatpush2.msra.mxu0 %v5504
          %6291 = vmatprep.subr.mxu0 0.0
          %6292 = vmatpush2.msra.mxu0 %v5503
          %6293 = vmatprep.subr.mxu0 0.0
          %6294 = vmatpush2.msra.mxu0 %v5502
          %6295 = vmatprep.subr.mxu0 0.0
          %6296 = vmatpush2.msra.mxu0 %v5501
          %6297 = vmatprep.subr.mxu0 0.0
          %6298 = vmatpush2.msra.mxu0 %v5500
          %6299 = vmatprep.subr.mxu0 0.0
          %6300 = vmatpush2.msra.mxu0 %v5499
          %6301 = vmatprep.subr.mxu0 0.0
          %6302 = vmatpush2.msra.mxu0 %v5498
          %6303 = vmatprep.subr.mxu0 0.0
          %6304 = vmatpush2.msra.mxu0 %v5497
          %6305 = vmatprep.subr.mxu0 0.0
          %6306 = vmatpush2.msra.mxu0 %v5496
          %6307 = vmatprep.subr.mxu0 0.0
          %6308 = vmatpush2.msra.mxu0 %v5495
          %6309 = vmatprep.subr.mxu0 0.0
          %6310 = vmatpush2.msra.mxu0 %v5494
          %6311 = vmatprep.subr.mxu0 0.0
          %6312 = vmatpush2.msra.mxu0 %v5493
          %6313 = vmatprep.subr.mxu0 0.0
          %6314 = vmatpush2.msra.mxu0 %v5492
          %6315 = vmatprep.subr.mxu0 0.0
          %6316 = vmatpush2.msra.mxu0 %v5491
          %6317 = vmatprep.mubr.f32.mxu0 %v5234
          %6318 = vmatmul.mubr.f32.gmra.mxu0 %v5233
          %v6319 = vpop.f32.mrf.mxu0
          %v6320 = vadd.f32 %v6250, %v6319
          %v6321 = vpop.f32.mrf.mxu0
          %6322 = vdwg.mxu0
          %6323 = vmatprep.subr.mxu0 0.0
          %6324 = vmatpush1.msra.mxu0 %v5522
          %6325 = vmatprep.subr.mxu0 0.0
          %6326 = vmatpush1.msra.mxu0 %v5521
          %6327 = vmatprep.subr.mxu0 0.0
          %6328 = vmatpush1.msra.mxu0 %v5520
          %6329 = vmatprep.subr.mxu0 0.0
          %6330 = vmatpush1.msra.mxu0 %v5519
          %6331 = vmatprep.subr.mxu0 0.0
          %6332 = vmatpush1.msra.mxu0 %v5518
          %6333 = vmatprep.subr.mxu0 0.0
          %6334 = vmatpush1.msra.mxu0 %v5517
          %6335 = vmatprep.subr.mxu0 0.0
          %6336 = vmatpush1.msra.mxu0 %v5516
          %6337 = vmatprep.subr.mxu0 0.0
          %6338 = vmatpush1.msra.mxu0 %v5515
          %6339 = vmatprep.subr.mxu0 0.0
          %6340 = vmatpush1.msra.mxu0 %v5514
          %6341 = vmatprep.subr.mxu0 0.0
          %6342 = vmatpush1.msra.mxu0 %v5513
          %6343 = vmatprep.subr.mxu0 0.0
          %6344 = vmatpush1.msra.mxu0 %v5512
          %6345 = vmatprep.subr.mxu0 0.0
          %6346 = vmatpush1.msra.mxu0 %v5511
          %6347 = vmatprep.subr.mxu0 0.0
          %6348 = vmatpush1.msra.mxu0 %v5510
          %6349 = vmatprep.subr.mxu0 0.0
          %6350 = vmatpush1.msra.mxu0 %v5509
          %6351 = vmatprep.subr.mxu0 0.0
          %6352 = vmatpush1.msra.mxu0 %v5508
          %6353 = vmatprep.subr.mxu0 0.0
          %6354 = vmatpush1.msra.mxu0 %v5507
          %6355 = vmatprep.subr.mxu0 0.0
          %6356 = vmatpush2.msra.mxu0 %v5538
          %6357 = vmatprep.subr.mxu0 0.0
          %6358 = vmatpush2.msra.mxu0 %v5537
          %6359 = vmatprep.subr.mxu0 0.0
          %6360 = vmatpush2.msra.mxu0 %v5536
          %6361 = vmatprep.subr.mxu0 0.0
          %6362 = vmatpush2.msra.mxu0 %v5535
          %6363 = vmatprep.subr.mxu0 0.0
          %6364 = vmatpush2.msra.mxu0 %v5534
          %6365 = vmatprep.subr.mxu0 0.0
          %6366 = vmatpush2.msra.mxu0 %v5533
          %6367 = vmatprep.subr.mxu0 0.0
          %6368 = vmatpush2.msra.mxu0 %v5532
          %6369 = vmatprep.subr.mxu0 0.0
          %6370 = vmatpush2.msra.mxu0 %v5531
          %6371 = vmatprep.subr.mxu0 0.0
          %6372 = vmatpush2.msra.mxu0 %v5530
          %6373 = vmatprep.subr.mxu0 0.0
          %6374 = vmatpush2.msra.mxu0 %v5529
          %6375 = vmatprep.subr.mxu0 0.0
          %6376 = vmatpush2.msra.mxu0 %v5528
          %6377 = vmatprep.subr.mxu0 0.0
          %6378 = vmatpush2.msra.mxu0 %v5527
          %6379 = vmatprep.subr.mxu0 0.0
          %6380 = vmatpush2.msra.mxu0 %v5526
          %6381 = vmatprep.subr.mxu0 0.0
          %6382 = vmatpush2.msra.mxu0 %v5525
          %6383 = vmatprep.subr.mxu0 0.0
          %6384 = vmatpush2.msra.mxu0 %v5524
          %6385 = vmatprep.subr.mxu0 0.0
          %6386 = vmatpush2.msra.mxu0 %v5523
          %6387 = vmatprep.mubr.f32.mxu0 %v5236
          %6388 = vmatmul.mubr.f32.gmra.mxu0 %v5235
          %v6389 = vpop.f32.mrf.mxu0
          %v6390 = vadd.f32 %v6320, %v6389
          %v6391 = vpop.f32.mrf.mxu0
          %6392 = vdwg.mxu0
          %6393 = vmatprep.subr.mxu0 0.0
          %6394 = vmatpush1.msra.mxu0 %v5554
          %6395 = vmatprep.subr.mxu0 0.0
          %6396 = vmatpush1.msra.mxu0 %v5553
          %6397 = vmatprep.subr.mxu0 0.0
          %6398 = vmatpush1.msra.mxu0 %v5552
          %6399 = vmatprep.subr.mxu0 0.0
          %6400 = vmatpush1.msra.mxu0 %v5551
          %6401 = vmatprep.subr.mxu0 0.0
          %6402 = vmatpush1.msra.mxu0 %v5550
          %6403 = vmatprep.subr.mxu0 0.0
          %6404 = vmatpush1.msra.mxu0 %v5549
          %6405 = vmatprep.subr.mxu0 0.0
          %6406 = vmatpush1.msra.mxu0 %v5548
          %6407 = vmatprep.subr.mxu0 0.0
          %6408 = vmatpush1.msra.mxu0 %v5547
          %6409 = vmatprep.subr.mxu0 0.0
          %6410 = vmatpush1.msra.mxu0 %v5546
          %6411 = vmatprep.subr.mxu0 0.0
          %6412 = vmatpush1.msra.mxu0 %v5545
          %6413 = vmatprep.subr.mxu0 0.0
          %6414 = vmatpush1.msra.mxu0 %v5544
          %6415 = vmatprep.subr.mxu0 0.0
          %6416 = vmatpush1.msra.mxu0 %v5543
          %6417 = vmatprep.subr.mxu0 0.0
          %6418 = vmatpush1.msra.mxu0 %v5542
          %6419 = vmatprep.subr.mxu0 0.0
          %6420 = vmatpush1.msra.mxu0 %v5541
          %6421 = vmatprep.subr.mxu0 0.0
          %6422 = vmatpush1.msra.mxu0 %v5540
          %6423 = vmatprep.subr.mxu0 0.0
          %6424 = vmatpush1.msra.mxu0 %v5539
          %6425 = vmatprep.subr.mxu0 0.0
          %6426 = vmatpush2.msra.mxu0 %v5570
          %6427 = vmatprep.subr.mxu0 0.0
          %6428 = vmatpush2.msra.mxu0 %v5569
          %6429 = vmatprep.subr.mxu0 0.0
          %6430 = vmatpush2.msra.mxu0 %v5568
          %6431 = vmatprep.subr.mxu0 0.0
          %6432 = vmatpush2.msra.mxu0 %v5567
          %6433 = vmatprep.subr.mxu0 0.0
          %6434 = vmatpush2.msra.mxu0 %v5566
          %6435 = vmatprep.subr.mxu0 0.0
          %6436 = vmatpush2.msra.mxu0 %v5565
          %6437 = vmatprep.subr.mxu0 0.0
          %6438 = vmatpush2.msra.mxu0 %v5564
          %6439 = vmatprep.subr.mxu0 0.0
          %6440 = vmatpush2.msra.mxu0 %v5563
          %6441 = vmatprep.subr.mxu0 0.0
          %6442 = vmatpush2.msra.mxu0 %v5562
          %6443 = vmatprep.subr.mxu0 0.0
          %6444 = vmatpush2.msra.mxu0 %v5561
          %6445 = vmatprep.subr.mxu0 0.0
          %6446 = vmatpush2.msra.mxu0 %v5560
          %6447 = vmatprep.subr.mxu0 0.0
          %6448 = vmatpush2.msra.mxu0 %v5559
          %6449 = vmatprep.subr.mxu0 0.0
          %6450 = vmatpush2.msra.mxu0 %v5558
          %6451 = vmatprep.subr.mxu0 0.0
          %6452 = vmatpush2.msra.mxu0 %v5557
          %6453 = vmatprep.subr.mxu0 0.0
          %6454 = vmatpush2.msra.mxu0 %v5556
          %6455 = vmatprep.subr.mxu0 0.0
          %6456 = vmatpush2.msra.mxu0 %v5555
          %6457 = vmatprep.mubr.f32.mxu0 %v5238
          %6458 = vmatmul.mubr.f32.gmra.mxu0 %v5237
          %v6459 = vpop.f32.mrf.mxu0
          %v6460 = vadd.f32 %v6390, %v6459
          %v6461 = vpop.f32.mrf.mxu0
          %6462 = vdwg.mxu0
          %6463 = vmatprep.subr.mxu0 0.0
          %6464 = vmatpush1.msra.mxu0 %v5586
          %6465 = vmatprep.subr.mxu0 0.0
          %6466 = vmatpush1.msra.mxu0 %v5585
          %6467 = vmatprep.subr.mxu0 0.0
          %6468 = vmatpush1.msra.mxu0 %v5584
          %6469 = vmatprep.subr.mxu0 0.0
          %6470 = vmatpush1.msra.mxu0 %v5583
          %6471 = vmatprep.subr.mxu0 0.0
          %6472 = vmatpush1.msra.mxu0 %v5582
          %6473 = vmatprep.subr.mxu0 0.0
          %6474 = vmatpush1.msra.mxu0 %v5581
          %6475 = vmatprep.subr.mxu0 0.0
          %6476 = vmatpush1.msra.mxu0 %v5580
          %6477 = vmatprep.subr.mxu0 0.0
          %6478 = vmatpush1.msra.mxu0 %v5579
          %6479 = vmatprep.subr.mxu0 0.0
          %6480 = vmatpush1.msra.mxu0 %v5578
          %6481 = vmatprep.subr.mxu0 0.0
          %6482 = vmatpush1.msra.mxu0 %v5577
          %6483 = vmatprep.subr.mxu0 0.0
          %6484 = vmatpush1.msra.mxu0 %v5576
          %6485 = vmatprep.subr.mxu0 0.0
          %6486 = vmatpush1.msra.mxu0 %v5575
          %6487 = vmatprep.subr.mxu0 0.0
          %6488 = vmatpush1.msra.mxu0 %v5574
          %6489 = vmatprep.subr.mxu0 0.0
          %6490 = vmatpush1.msra.mxu0 %v5573
          %6491 = vmatprep.subr.mxu0 0.0
          %6492 = vmatpush1.msra.mxu0 %v5572
          %6493 = vmatprep.subr.mxu0 0.0
          %6494 = vmatpush1.msra.mxu0 %v5571
          %6495 = vmatprep.subr.mxu0 0.0
          %6496 = vmatpush2.msra.mxu0 %v5602
          %6497 = vmatprep.subr.mxu0 0.0
          %6498 = vmatpush2.msra.mxu0 %v5601
          %6499 = vmatprep.subr.mxu0 0.0
          %6500 = vmatpush2.msra.mxu0 %v5600
          %6501 = vmatprep.subr.mxu0 0.0
          %6502 = vmatpush2.msra.mxu0 %v5599
          %6503 = vmatprep.subr.mxu0 0.0
          %6504 = vmatpush2.msra.mxu0 %v5598
          %6505 = vmatprep.subr.mxu0 0.0
          %6506 = vmatpush2.msra.mxu0 %v5597
          %6507 = vmatprep.subr.mxu0 0.0
          %6508 = vmatpush2.msra.mxu0 %v5596
          %6509 = vmatprep.subr.mxu0 0.0
          %6510 = vmatpush2.msra.mxu0 %v5595
          %6511 = vmatprep.subr.mxu0 0.0
          %6512 = vmatpush2.msra.mxu0 %v5594
          %6513 = vmatprep.subr.mxu0 0.0
          %6514 = vmatpush2.msra.mxu0 %v5593
          %6515 = vmatprep.subr.mxu0 0.0
          %6516 = vmatpush2.msra.mxu0 %v5592
          %6517 = vmatprep.subr.mxu0 0.0
          %6518 = vmatpush2.msra.mxu0 %v5591
          %6519 = vmatprep.subr.mxu0 0.0
          %6520 = vmatpush2.msra.mxu0 %v5590
          %6521 = vmatprep.subr.mxu0 0.0
          %6522 = vmatpush2.msra.mxu0 %v5589
          %6523 = vmatprep.subr.mxu0 0.0
          %6524 = vmatpush2.msra.mxu0 %v5588
          %6525 = vmatprep.subr.mxu0 0.0
          %6526 = vmatpush2.msra.mxu0 %v5587
          %6527 = vmatprep.mubr.f32.mxu0 %v5240
          %6528 = vmatmul.mubr.f32.gmra.mxu0 %v5239
          %v6529 = vpop.f32.mrf.mxu0
          %v6530 = vadd.f32 %v6460, %v6529
          %v6531 = vpop.f32.mrf.mxu0
          %6532 = vdwg.mxu0
          %6533 = vmatprep.subr.mxu0 0.0
          %6534 = vmatpush1.msra.mxu0 %v5618
          %6535 = vmatprep.subr.mxu0 0.0
          %6536 = vmatpush1.msra.mxu0 %v5617
          %6537 = vmatprep.subr.mxu0 0.0
          %6538 = vmatpush1.msra.mxu0 %v5616
          %6539 = vmatprep.subr.mxu0 0.0
          %6540 = vmatpush1.msra.mxu0 %v5615
          %6541 = vmatprep.subr.mxu0 0.0
          %6542 = vmatpush1.msra.mxu0 %v5614
          %6543 = vmatprep.subr.mxu0 0.0
          %6544 = vmatpush1.msra.mxu0 %v5613
          %6545 = vmatprep.subr.mxu0 0.0
          %6546 = vmatpush1.msra.mxu0 %v5612
          %6547 = vmatprep.subr.mxu0 0.0
          %6548 = vmatpush1.msra.mxu0 %v5611
          %6549 = vmatprep.subr.mxu0 0.0
          %6550 = vmatpush1.msra.mxu0 %v5610
          %6551 = vmatprep.subr.mxu0 0.0
          %6552 = vmatpush1.msra.mxu0 %v5609
          %6553 = vmatprep.subr.mxu0 0.0
          %6554 = vmatpush1.msra.mxu0 %v5608
          %6555 = vmatprep.subr.mxu0 0.0
          %6556 = vmatpush1.msra.mxu0 %v5607
          %6557 = vmatprep.subr.mxu0 0.0
          %6558 = vmatpush1.msra.mxu0 %v5606
          %6559 = vmatprep.subr.mxu0 0.0
          %6560 = vmatpush1.msra.mxu0 %v5605
          %6561 = vmatprep.subr.mxu0 0.0
          %6562 = vmatpush1.msra.mxu0 %v5604
          %6563 = vmatprep.subr.mxu0 0.0
          %6564 = vmatpush1.msra.mxu0 %v5603
          %6565 = vmatprep.subr.mxu0 0.0
          %6566 = vmatpush2.msra.mxu0 %v5634
          %6567 = vmatprep.subr.mxu0 0.0
          %6568 = vmatpush2.msra.mxu0 %v5633
          %6569 = vmatprep.subr.mxu0 0.0
          %6570 = vmatpush2.msra.mxu0 %v5632
          %6571 = vmatprep.subr.mxu0 0.0
          %6572 = vmatpush2.msra.mxu0 %v5631
          %6573 = vmatprep.subr.mxu0 0.0
          %6574 = vmatpush2.msra.mxu0 %v5630
          %6575 = vmatprep.subr.mxu0 0.0
          %6576 = vmatpush2.msra.mxu0 %v5629
          %6577 = vmatprep.subr.mxu0 0.0
          %6578 = vmatpush2.msra.mxu0 %v5628
          %6579 = vmatprep.subr.mxu0 0.0
          %6580 = vmatpush2.msra.mxu0 %v5627
          %6581 = vmatprep.subr.mxu0 0.0
          %6582 = vmatpush2.msra.mxu0 %v5626
          %6583 = vmatprep.subr.mxu0 0.0
          %6584 = vmatpush2.msra.mxu0 %v5625
          %6585 = vmatprep.subr.mxu0 0.0
          %6586 = vmatpush2.msra.mxu0 %v5624
          %6587 = vmatprep.subr.mxu0 0.0
          %6588 = vmatpush2.msra.mxu0 %v5623
          %6589 = vmatprep.subr.mxu0 0.0
          %6590 = vmatpush2.msra.mxu0 %v5622
          %6591 = vmatprep.subr.mxu0 0.0
          %6592 = vmatpush2.msra.mxu0 %v5621
          %6593 = vmatprep.subr.mxu0 0.0
          %6594 = vmatpush2.msra.mxu0 %v5620
          %6595 = vmatprep.subr.mxu0 0.0
          %6596 = vmatpush2.msra.mxu0 %v5619
          %6597 = vmatprep.mubr.f32.mxu0 %v5242
          %6598 = vmatmul.mubr.f32.gmra.mxu0 %v5241
          %v6599 = vpop.f32.mrf.mxu0
          %v6600 = vadd.f32 %v6530, %v6599
          %v6601 = vpop.f32.mrf.mxu0
          %6602 = vdwg.mxu0
          %6603 = vmatprep.subr.mxu0 0.0
          %6604 = vmatpush1.msra.mxu0 %v5650
          %6605 = vmatprep.subr.mxu0 0.0
          %6606 = vmatpush1.msra.mxu0 %v5649
          %6607 = vmatprep.subr.mxu0 0.0
          %6608 = vmatpush1.msra.mxu0 %v5648
          %6609 = vmatprep.subr.mxu0 0.0
          %6610 = vmatpush1.msra.mxu0 %v5647
          %6611 = vmatprep.subr.mxu0 0.0
          %6612 = vmatpush1.msra.mxu0 %v5646
          %6613 = vmatprep.subr.mxu0 0.0
          %6614 = vmatpush1.msra.mxu0 %v5645
          %6615 = vmatprep.subr.mxu0 0.0
          %6616 = vmatpush1.msra.mxu0 %v5644
          %6617 = vmatprep.subr.mxu0 0.0
          %6618 = vmatpush1.msra.mxu0 %v5643
          %6619 = vmatprep.subr.mxu0 0.0
          %6620 = vmatpush1.msra.mxu0 %v5642
          %6621 = vmatprep.subr.mxu0 0.0
          %6622 = vmatpush1.msra.mxu0 %v5641
          %6623 = vmatprep.subr.mxu0 0.0
          %6624 = vmatpush1.msra.mxu0 %v5640
          %6625 = vmatprep.subr.mxu0 0.0
          %6626 = vmatpush1.msra.mxu0 %v5639
          %6627 = vmatprep.subr.mxu0 0.0
          %6628 = vmatpush1.msra.mxu0 %v5638
          %6629 = vmatprep.subr.mxu0 0.0
          %6630 = vmatpush1.msra.mxu0 %v5637
          %6631 = vmatprep.subr.mxu0 0.0
          %6632 = vmatpush1.msra.mxu0 %v5636
          %6633 = vmatprep.subr.mxu0 0.0
          %6634 = vmatpush1.msra.mxu0 %v5635
          %6635 = vmatprep.subr.mxu0 0.0
          %6636 = vmatpush2.msra.mxu0 %v5666
          %6637 = vmatprep.subr.mxu0 0.0
          %6638 = vmatpush2.msra.mxu0 %v5665
          %6639 = vmatprep.subr.mxu0 0.0
          %6640 = vmatpush2.msra.mxu0 %v5664
          %6641 = vmatprep.subr.mxu0 0.0
          %6642 = vmatpush2.msra.mxu0 %v5663
          %6643 = vmatprep.subr.mxu0 0.0
          %6644 = vmatpush2.msra.mxu0 %v5662
          %6645 = vmatprep.subr.mxu0 0.0
          %6646 = vmatpush2.msra.mxu0 %v5661
          %6647 = vmatprep.subr.mxu0 0.0
          %6648 = vmatpush2.msra.mxu0 %v5660
          %6649 = vmatprep.subr.mxu0 0.0
          %6650 = vmatpush2.msra.mxu0 %v5659
          %6651 = vmatprep.subr.mxu0 0.0
          %6652 = vmatpush2.msra.mxu0 %v5658
          %6653 = vmatprep.subr.mxu0 0.0
          %6654 = vmatpush2.msra.mxu0 %v5657
          %6655 = vmatprep.subr.mxu0 0.0
          %6656 = vmatpush2.msra.mxu0 %v5656
          %6657 = vmatprep.subr.mxu0 0.0
          %6658 = vmatpush2.msra.mxu0 %v5655
          %6659 = vmatprep.subr.mxu0 0.0
          %6660 = vmatpush2.msra.mxu0 %v5654
          %6661 = vmatprep.subr.mxu0 0.0
          %6662 = vmatpush2.msra.mxu0 %v5653
          %6663 = vmatprep.subr.mxu0 0.0
          %6664 = vmatpush2.msra.mxu0 %v5652
          %6665 = vmatprep.subr.mxu0 0.0
          %6666 = vmatpush2.msra.mxu0 %v5651
          %6667 = vmatprep.mubr.f32.mxu0 %v5244
          %6668 = vmatmul.mubr.f32.gmra.mxu0 %v5243
          %v6669 = vpop.f32.mrf.mxu0
          %v6670 = vadd.f32 %v6600, %v6669
          %v6671 = vpop.f32.mrf.mxu0
          %6672 = vdwg.mxu0
          %6673 = vmatprep.subr.mxu0 0.0
          %6674 = vmatpush1.msra.mxu0 %v5682
          %6675 = vmatprep.subr.mxu0 0.0
          %6676 = vmatpush1.msra.mxu0 %v5681
          %6677 = vmatprep.subr.mxu0 0.0
          %6678 = vmatpush1.msra.mxu0 %v5680
          %6679 = vmatprep.subr.mxu0 0.0
          %6680 = vmatpush1.msra.mxu0 %v5679
          %6681 = vmatprep.subr.mxu0 0.0
          %6682 = vmatpush1.msra.mxu0 %v5678
          %6683 = vmatprep.subr.mxu0 0.0
          %6684 = vmatpush1.msra.mxu0 %v5677
          %6685 = vmatprep.subr.mxu0 0.0
          %6686 = vmatpush1.msra.mxu0 %v5676
          %6687 = vmatprep.subr.mxu0 0.0
          %6688 = vmatpush1.msra.mxu0 %v5675
          %6689 = vmatprep.subr.mxu0 0.0
          %6690 = vmatpush1.msra.mxu0 %v5674
          %6691 = vmatprep.subr.mxu0 0.0
          %6692 = vmatpush1.msra.mxu0 %v5673
          %6693 = vmatprep.subr.mxu0 0.0
          %6694 = vmatpush1.msra.mxu0 %v5672
          %6695 = vmatprep.subr.mxu0 0.0
          %6696 = vmatpush1.msra.mxu0 %v5671
          %6697 = vmatprep.subr.mxu0 0.0
          %6698 = vmatpush1.msra.mxu0 %v5670
          %6699 = vmatprep.subr.mxu0 0.0
          %6700 = vmatpush1.msra.mxu0 %v5669
          %6701 = vmatprep.subr.mxu0 0.0
          %6702 = vmatpush1.msra.mxu0 %v5668
          %6703 = vmatprep.subr.mxu0 0.0
          %6704 = vmatpush1.msra.mxu0 %v5667
          %6705 = vmatprep.subr.mxu0 0.0
          %6706 = vmatpush2.msra.mxu0 %v5698
          %6707 = vmatprep.subr.mxu0 0.0
          %6708 = vmatpush2.msra.mxu0 %v5697
          %6709 = vmatprep.subr.mxu0 0.0
          %6710 = vmatpush2.msra.mxu0 %v5696
          %6711 = vmatprep.subr.mxu0 0.0
          %6712 = vmatpush2.msra.mxu0 %v5695
          %6713 = vmatprep.subr.mxu0 0.0
          %6714 = vmatpush2.msra.mxu0 %v5694
          %6715 = vmatprep.subr.mxu0 0.0
          %6716 = vmatpush2.msra.mxu0 %v5693
          %6717 = vmatprep.subr.mxu0 0.0
          %6718 = vmatpush2.msra.mxu0 %v5692
          %6719 = vmatprep.subr.mxu0 0.0
          %6720 = vmatpush2.msra.mxu0 %v5691
          %6721 = vmatprep.subr.mxu0 0.0
          %6722 = vmatpush2.msra.mxu0 %v5690
          %6723 = vmatprep.subr.mxu0 0.0
          %6724 = vmatpush2.msra.mxu0 %v5689
          %6725 = vmatprep.subr.mxu0 0.0
          %6726 = vmatpush2.msra.mxu0 %v5688
          %6727 = vmatprep.subr.mxu0 0.0
          %6728 = vmatpush2.msra.mxu0 %v5687
          %6729 = vmatprep.subr.mxu0 0.0
          %6730 = vmatpush2.msra.mxu0 %v5686
          %6731 = vmatprep.subr.mxu0 0.0
          %6732 = vmatpush2.msra.mxu0 %v5685
          %6733 = vmatprep.subr.mxu0 0.0
          %6734 = vmatpush2.msra.mxu0 %v5684
          %6735 = vmatprep.subr.mxu0 0.0
          %6736 = vmatpush2.msra.mxu0 %v5683
          %6737 = vmatprep.mubr.f32.mxu0 %v5246
          %6738 = vmatmul.mubr.f32.gmra.mxu0 %v5245
          %v6739 = vpop.f32.mrf.mxu0
          %v6740 = vadd.f32 %v6670, %v6739
          %v6741 = vpop.f32.mrf.mxu0
          %6742 = vdwg.mxu0
          %6743 = vmatprep.subr.mxu0 0.0
          %6744 = vmatpush1.msra.mxu0 %v5714
          %6745 = vmatprep.subr.mxu0 0.0
          %6746 = vmatpush1.msra.mxu0 %v5713
          %6747 = vmatprep.subr.mxu0 0.0
          %6748 = vmatpush1.msra.mxu0 %v5712
          %6749 = vmatprep.subr.mxu0 0.0
          %6750 = vmatpush1.msra.mxu0 %v5711
          %6751 = vmatprep.subr.mxu0 0.0
          %6752 = vmatpush1.msra.mxu0 %v5710
          %6753 = vmatprep.subr.mxu0 0.0
          %6754 = vmatpush1.msra.mxu0 %v5709
          %6755 = vmatprep.subr.mxu0 0.0
          %6756 = vmatpush1.msra.mxu0 %v5708
          %6757 = vmatprep.subr.mxu0 0.0
          %6758 = vmatpush1.msra.mxu0 %v5707
          %6759 = vmatprep.subr.mxu0 0.0
          %6760 = vmatpush1.msra.mxu0 %v5706
          %6761 = vmatprep.subr.mxu0 0.0
          %6762 = vmatpush1.msra.mxu0 %v5705
          %6763 = vmatprep.subr.mxu0 0.0
          %6764 = vmatpush1.msra.mxu0 %v5704
          %6765 = vmatprep.subr.mxu0 0.0
          %6766 = vmatpush1.msra.mxu0 %v5703
          %6767 = vmatprep.subr.mxu0 0.0
          %6768 = vmatpush1.msra.mxu0 %v5702
          %6769 = vmatprep.subr.mxu0 0.0
          %6770 = vmatpush1.msra.mxu0 %v5701
          %6771 = vmatprep.subr.mxu0 0.0
          %6772 = vmatpush1.msra.mxu0 %v5700
          %6773 = vmatprep.subr.mxu0 0.0
          %6774 = vmatpush1.msra.mxu0 %v5699
          %6775 = vmatprep.subr.mxu0 0.0
          %6776 = vmatpush2.msra.mxu0 %v5730
          %6777 = vmatprep.subr.mxu0 0.0
          %6778 = vmatpush2.msra.mxu0 %v5729
          %6779 = vmatprep.subr.mxu0 0.0
          %6780 = vmatpush2.msra.mxu0 %v5728
          %6781 = vmatprep.subr.mxu0 0.0
          %6782 = vmatpush2.msra.mxu0 %v5727
          %6783 = vmatprep.subr.mxu0 0.0
          %6784 = vmatpush2.msra.mxu0 %v5726
          %6785 = vmatprep.subr.mxu0 0.0
          %6786 = vmatpush2.msra.mxu0 %v5725
          %6787 = vmatprep.subr.mxu0 0.0
          %6788 = vmatpush2.msra.mxu0 %v5724
          %6789 = vmatprep.subr.mxu0 0.0
          %6790 = vmatpush2.msra.mxu0 %v5723
          %6791 = vmatprep.subr.mxu0 0.0
          %6792 = vmatpush2.msra.mxu0 %v5722
          %6793 = vmatprep.subr.mxu0 0.0
          %6794 = vmatpush2.msra.mxu0 %v5721
          %6795 = vmatprep.subr.mxu0 0.0
          %6796 = vmatpush2.msra.mxu0 %v5720
          %6797 = vmatprep.subr.mxu0 0.0
          %6798 = vmatpush2.msra.mxu0 %v5719
          %6799 = vmatprep.subr.mxu0 0.0
          %6800 = vmatpush2.msra.mxu0 %v5718
          %6801 = vmatprep.subr.mxu0 0.0
          %6802 = vmatpush2.msra.mxu0 %v5717
          %6803 = vmatprep.subr.mxu0 0.0
          %6804 = vmatpush2.msra.mxu0 %v5716
          %6805 = vmatprep.subr.mxu0 0.0
          %6806 = vmatpush2.msra.mxu0 %v5715
          %6807 = vmatprep.mubr.f32.mxu0 %v5248
          %6808 = vmatmul.mubr.f32.gmra.mxu0 %v5247
          %v6809 = vpop.f32.mrf.mxu0
          %v6810 = vadd.f32 %v6740, %v6809
          %v6811 = vpop.f32.mrf.mxu0
          %6812 = vdwg.mxu0
          %6813 = vmatprep.subr.mxu0 0.0
          %6814 = vmatpush1.msra.mxu0 %v5746
          %6815 = vmatprep.subr.mxu0 0.0
          %6816 = vmatpush1.msra.mxu0 %v5745
          %6817 = vmatprep.subr.mxu0 0.0
          %6818 = vmatpush1.msra.mxu0 %v5744
          %6819 = vmatprep.subr.mxu0 0.0
          %6820 = vmatpush1.msra.mxu0 %v5743
          %6821 = vmatprep.subr.mxu0 0.0
          %6822 = vmatpush1.msra.mxu0 %v5742
          %6823 = vmatprep.subr.mxu0 0.0
          %6824 = vmatpush1.msra.mxu0 %v5741
          %6825 = vmatprep.subr.mxu0 0.0
          %6826 = vmatpush1.msra.mxu0 %v5740
          %6827 = vmatprep.subr.mxu0 0.0
          %6828 = vmatpush1.msra.mxu0 %v5739
          %6829 = vmatprep.subr.mxu0 0.0
          %6830 = vmatpush1.msra.mxu0 %v5738
          %6831 = vmatprep.subr.mxu0 0.0
          %6832 = vmatpush1.msra.mxu0 %v5737
          %6833 = vmatprep.subr.mxu0 0.0
          %6834 = vmatpush1.msra.mxu0 %v5736
          %6835 = vmatprep.subr.mxu0 0.0
          %6836 = vmatpush1.msra.mxu0 %v5735
          %6837 = vmatprep.subr.mxu0 0.0
          %6838 = vmatpush1.msra.mxu0 %v5734
          %6839 = vmatprep.subr.mxu0 0.0
          %6840 = vmatpush1.msra.mxu0 %v5733
          %6841 = vmatprep.subr.mxu0 0.0
          %6842 = vmatpush1.msra.mxu0 %v5732
          %6843 = vmatprep.subr.mxu0 0.0
          %6844 = vmatpush1.msra.mxu0 %v5731
          %6845 = vmatprep.subr.mxu0 0.0
          %6846 = vmatpush2.msra.mxu0 %v5762
          %6847 = vmatprep.subr.mxu0 0.0
          %6848 = vmatpush2.msra.mxu0 %v5761
          %6849 = vmatprep.subr.mxu0 0.0
          %6850 = vmatpush2.msra.mxu0 %v5760
          %6851 = vmatprep.subr.mxu0 0.0
          %6852 = vmatpush2.msra.mxu0 %v5759
          %6853 = vmatprep.subr.mxu0 0.0
          %6854 = vmatpush2.msra.mxu0 %v5758
          %6855 = vmatprep.subr.mxu0 0.0
          %6856 = vmatpush2.msra.mxu0 %v5757
          %6857 = vmatprep.subr.mxu0 0.0
          %6858 = vmatpush2.msra.mxu0 %v5756
          %6859 = vmatprep.subr.mxu0 0.0
          %6860 = vmatpush2.msra.mxu0 %v5755
          %6861 = vmatprep.subr.mxu0 0.0
          %6862 = vmatpush2.msra.mxu0 %v5754
          %6863 = vmatprep.subr.mxu0 0.0
          %6864 = vmatpush2.msra.mxu0 %v5753
          %6865 = vmatprep.subr.mxu0 0.0
          %6866 = vmatpush2.msra.mxu0 %v5752
          %6867 = vmatprep.subr.mxu0 0.0
          %6868 = vmatpush2.msra.mxu0 %v5751
          %6869 = vmatprep.subr.mxu0 0.0
          %6870 = vmatpush2.msra.mxu0 %v5750
          %6871 = vmatprep.subr.mxu0 0.0
          %6872 = vmatpush2.msra.mxu0 %v5749
          %6873 = vmatprep.subr.mxu0 0.0
          %6874 = vmatpush2.msra.mxu0 %v5748
          %6875 = vmatprep.subr.mxu0 0.0
          %6876 = vmatpush2.msra.mxu0 %v5747
          %6877 = vmatprep.mubr.f32.mxu0 %v5250
          %6878 = vmatmul.mubr.f32.gmra.mxu0 %v5249
          %v6879 = vpop.f32.mrf.mxu0
          %v6880 = vadd.f32 %v6810, %v6879
          %v6881 = vpop.f32.mrf.mxu0
          %6882 = vdwg.mxu0
          %6883 = vst [vmem:[%s321] sm:$0xff] %v6880
        $region52: #{_forward_impl.1} parent=39 // pred_fallthru
          _
        %p6884 = scmp.lt.s32.totalorder %s23, 0
        %s6885 = scalar_select %p6884, %s23, 0
        %s6886 = smul.addr %s6885, 8
        %s6887 = scalar_lea.vmem %s5, %s6886
        // Predicated region
        $region53: #{_forward_impl.1} parent=39 // pred_check
          %p6888 = pneg %p176
        $region54: #{_forward_impl.1} parent=39 // pred_check_branch
          %6890 = sbr.rel (%p6888) target = $region56
        $region55: #{_forward_impl.1} parent=39 // pred_region
          _
        $region56: #{_forward_impl.1} parent=39 // pred_fallthru
          _
        // Predicated region
        $region57: #{_forward_impl.1} parent=39 // pred_check
          %p6891 = pneg %p176
        $region58: #{_forward_impl.1} parent=39 // pred_check_branch
          %6893 = sbr.rel (%p6891) target = $region60
        $region59: #{_forward_impl.1} parent=39 // pred_region
          %p6894 = scmp.lt.s32.totalorder %s23, 0
          %s6895 = scalar_select %p6894, %s23, 0
          %s6896 = smul.addr %s6895, 8
          %s6897 = scalar_lea.vmem %s5, %s6896
        $region60: #{_forward_impl.1} parent=39 // pred_fallthru
          _
      $region40: #{_forward_impl.1} parent=5 // pred_fallthru
        _
      %p6898 = scmp.le.s32.totalorder 2, %s14
      // Predicated region
      $region61: #{_forward_impl.1} parent=5 // pred_check
        %p6899 = pneg %p6898
      $region62: #{_forward_impl.1} parent=5 // pred_check_branch
        %6901 = sbr.rel (%p6899) target = $region64
      $region63: #{_forward_impl.1} parent=5 // pred_region
        %s6902 = ssub.s32 %s14, 2
      $region64: #{_forward_impl.1} parent=5 // pred_fallthru
        _
    $region6: #{_forward_impl.1} parent=1 // loop_footer
      %s18 = sadd.s32 1, %s14
    $region7: #{_forward_impl.1} parent=1 // loop_footer_branch
      %13 = sbr.rel target = $region3
    $region8: #{_forward_impl.1} parent=1 // loop_exit
      _
    %6903 = vsyncpa [#allocation4], 1
    %s6904 = scalar_lea.sflag [#allocation4], 1
    %6905 = vsyncpa %s6904, 1

</llo_original>
